<compile_context>
chip_gen: v7x
topology: tpu7x:2x2x1
jax: 0.10.0
libtpu: 0.0.40
codegen_flags: <defaults>
</compile_context>

<pallas_src>
import numpy as np
import jax
import jax.numpy as jnp
from jax.experimental import pallas as pl
from jax.experimental.pallas import tpu as pltpu


# --------------------------------------------------------------------------------------
# MEANTIME LayerNorm: g*(x-mean)/(std+eps)+b, UNBIASED std (torch default), eps on std.
# Exact divide (review correctness note) — used both in-kernel (LN2) and in XLA prep (LN1).
def _layer_norm(v, g, b, eps=1e-6):
    n = v.shape[-1]
    mean = jnp.mean(v, axis=-1, keepdims=True)
    var = jnp.sum(jnp.square(v - mean), axis=-1, keepdims=True) * (1.0 / (n - 1))
    return g * (v - mean) / (jnp.sqrt(var) + eps) + b


# --------------------------------------------------------------------------------------
# Kernel: one (batch, query-tile, key-tile) grid step.
def _block_kernel(x_ref, qs_ref, qw_ref, kt_ref, v_ref, r_ref, bias_ref,
                  wo_ref, bo_ref, ln2_g_ref, ln2_b_ref,
                  w1_ref, b1_ref, w2_ref, b2_ref,
                  o_ref,
                  m_scr, l_scr, acc_scr):
    ki = pl.program_id(2)
    nk = pl.num_programs(2)

    @pl.when(ki == 0)
    def _():
        m_scr[...] = jnp.full(m_scr.shape, -jnp.inf, dtype=m_scr.dtype)
        l_scr[...] = jnp.zeros(l_scr.shape, dtype=l_scr.dtype)
        acc_scr[...] = jnp.zeros(acc_scr.shape, dtype=acc_scr.dtype)

    # scores (h, tq, tk) = q.K^T + fused relative term + additive mask bias
    # (scale already folded into qs/qw; br term dropped — it is softmax-invariant).
    s = jnp.einsum('hqd,hdk->hqk', qs_ref[0], kt_ref[0],
                   preferred_element_type=jnp.float32)
    s += jnp.einsum('hqm,qkm->hqk', qw_ref[0], r_ref[0],
                    preferred_element_type=jnp.float32)
    s += bias_ref[0][None, :, :]

    # online (flash-style) softmax accumulation across key tiles
    m_prev = m_scr[...]
    m_new = jnp.maximum(m_prev, jnp.max(s, axis=-1, keepdims=True))
    alpha = jnp.exp(m_prev - m_new)
    p = jnp.exp(s - m_new)
    l_scr[...] = alpha * l_scr[...] + jnp.sum(p, axis=-1, keepdims=True)
    acc_scr[...] = alpha * acc_scr[...] + jnp.einsum(
        'hqk,hkd->hqd', p.astype(v_ref.dtype), v_ref[0],
        preferred_element_type=jnp.float32)
    m_scr[...] = m_new
    # TODO(synk): attention-probability dropout (p=0.1) omitted — identity in eval mode.

    @pl.when(ki == nk - 1)
    def _():
        # normalize once on the small (h,tq,dk) accumulator instead of on p (h,tq,T)
        ctx = acc_scr[...] * pl.reciprocal(l_scr[...], approx=True)
        # output projection fused per head (wo as (h,dk,H)); head-sum on the VPU —
        # avoids the (tq,h,dk)->(tq,H) lane-compaction relayout.
        proj = jnp.einsum('hqd,hdm->hqm', ctx.astype(wo_ref.dtype), wo_ref[...],
                          preferred_element_type=jnp.float32)
        attn = jnp.sum(proj, axis=0) + bo_ref[...]
        x1 = x_ref[0] + attn                                   # residual 1

        # positionwise feed-forward (pre-LN residual)
        n2 = _layer_norm(x1, ln2_g_ref[...], ln2_b_ref[...])
        h1 = jnp.dot(n2.astype(w1_ref.dtype), w1_ref[...],
                     preferred_element_type=jnp.float32) + b1_ref[...]
        h1 = jax.nn.gelu(h1, approximate=True)                 # BERT tanh-GELU
        ff = jnp.dot(h1.astype(w2_ref.dtype), w2_ref[...],
                     preferred_element_type=jnp.float32) + b2_ref[...]
        o_ref[0] = (x1 + ff).astype(o_ref.dtype)               # residual 2


# --------------------------------------------------------------------------------------
# Generation-aware VMEM budgeting and tile selection.
def _rup(n, m):
    return ((n + m - 1) // m) * m


def _vmem_capacity_bytes():
    try:
        info = pltpu.get_tpu_info()
        for attr in ("vmem_capacity_bytes", "vmem_size_bytes", "vmem_bytes"):
            cap = getattr(info, attr, None)
            if cap:
                return int(cap)
    except Exception:
        pass
    return 128 * 1024 * 1024   # v5e/v6e default; v7x reports 64 MiB when queryable


def _vmem_budget_bytes(T, H, h, dk, d_ff, tq, tk, weight_bytes, weight_bufs, mxu_bytes):
    f4 = 4
    lH, lK, lD, lF = _rup(H, 128), _rup(tk, 128), _rup(dk, 128), _rup(d_ff, 128)
    sq, sk = _rup(tq, 8), _rup(tk, 8)
    est = 0
    # double-buffered streamed blocks (r dominates the HBM roofline)
    est += 2 * sq * sk * lH * mxu_bytes          # r tile
    est += 2 * h * _rup(dk, 8) * lK * mxu_bytes  # K^T tile
    est += 2 * h * sk * lD * mxu_bytes           # V tile
    est += 2 * sq * lK * f4                      # additive mask bias tile
    # per-query-tile blocks (constant over the key axis; still allocated double-buffered)
    est += 2 * sq * lH * f4                      # x (residual)
    est += 2 * h * sq * lD * mxu_bytes           # q * scale
    est += 2 * h * sq * lH * mxu_bytes           # qw
    est += 2 * sq * lH * f4                      # output tile
    # resident weights (single- or double-buffered)
    est += weight_bufs * weight_bytes
    # accumulator scratch (m, l lane-pad to 128) + acc
    est += 2 * h * sq * 128 * f4 + h * sq * lD * f4
    # live f32 temporaries: scores / p / rescaled copies (~4x) + FF hidden (~2x)
    est += 4 * h * sq * lK * f4
    est += 2 * sq * lF * f4
    return est


def _pick_tiles(T, H, h, dk, d_ff, weight_bytes, vmem_budget, weight_bufs, mxu_bytes):
    tq_cands = sorted({t for t in (T, 1024, 512, 256, 128, 64, 32, 16, 8)
                       if t <= T and T % t == 0 and (t == T or t % 8 == 0)}, reverse=True)
    tk_cands = sorted({t for t in (T, 2048, 1024, 512, 256, 128)
                       if t <= T and T % t == 0 and (t == T or t % 128 == 0)}, reverse=True)
    for tq in tq_cands:                 # prefer largest tq (step-overhead amortization,
        for tk in tk_cands:             # lane-dense output, large contiguous r DMAs)
            if _vmem_budget_bytes(T, H, h, dk, d_ff, tq, tk,
                                  weight_bytes, weight_bufs, mxu_bytes) <= vmem_budget:
                return tq, tk
    return tq_cands[-1], tk_cands[-1]


# --------------------------------------------------------------------------------------
def transformer_relative_block(x, r, mask, params, n_heads,
                               q_tile=None, k_tile=None,
                               mxu_dtype=jnp.bfloat16,
                               single_buffer_weights=True):
    B, T, H = x.shape
    assert H % n_heads == 0
    h = n_heads
    dk = H // h
    d_ff = params["w1"].shape[1]
    f32 = jnp.float32
    scale = 1.0 / (dk ** 0.5)

    # ---------------- XLA-side prep (tiny: O(B T H^2); keeps the kernel HBM-bound on r) ----
    xf = x.astype(f32)
    n1 = _layer_norm(xf, params["ln1_g"].astype(f32), params["ln1_b"].astype(f32))
    q = n1 @ params["wq"].astype(f32) + params["bq"].astype(f32)
    k = n1 @ params["wk"].astype(f32) + params["bk"].astype(f32)
    v = n1 @ params["wv"].astype(f32) + params["bv"].astype(f32)

    q_h = q.reshape(B, T, h, dk).transpose(0, 2, 1, 3)                       # (B,h,T,dk)
    qb_h = q_h + params["rbias"].astype(f32)[None, :, None, :]               # + r_bias
    wr_heads = params["wr"].astype(f32).reshape(H, h, dk).transpose(1, 2, 0)  # (h,dk,H)
    # fused relative projection; 1/sqrt(dk) folded in; softmax-invariant br term dropped.
    qw = (jnp.einsum("bhtd,hdm->bhtm", qb_h, wr_heads) * scale).astype(mxu_dtype)
    q_s = (q_h * scale).astype(mxu_dtype)                                    # (B,h,T,dk)
    k_t = k.reshape(B, T, h, dk).transpose(0, 2, 3, 1).astype(mxu_dtype)     # (B,h,dk,T)
    v_h = v.reshape(B, T, h, dk).transpose(0, 2, 1, 3).astype(mxu_dtype)     # (B,h,T,dk)
    r_lp = r.astype(mxu_dtype)                               # bf16 r: halves HBM traffic
    bias = jnp.where(mask.reshape(B, T, T) == 0, -1e9, 0.0).astype(f32)

    # in-kernel weights (output projection fused per head)
    wo_h = params["wo"].astype(mxu_dtype).reshape(h, dk, H)
    weights = [
        wo_h,
        params["bo"].astype(f32).reshape(1, H),
        params["ln2_g"].astype(f32).reshape(1, H),
        params["ln2_b"].astype(f32).reshape(1, H),
        params["w1"].astype(mxu_dtype),
        params["b1"].astype(f32).reshape(1, d_ff),
        params["w2"].astype(mxu_dtype),
        params["b2"].astype(f32).reshape(1, H),
    ]
    weight_bytes = sum(int(w.size) * w.dtype.itemsize for w in weights)
    weight_bufs = 1 if single_buffer_weights else 2
    mxu_bytes = np.dtype(mxu_dtype).itemsize

    # ---------------- generation-aware tiling / VMEM limit ----------------
    vmem_cap = _vmem_capacity_bytes()
    usable = vmem_cap - max(8 << 20, vmem_cap // 8)   # ~112 MiB on v5e/v6e, ~56 MiB on v7x
    tq, tk = _pick_tiles(T, H, h, dk, d_ff, weight_bytes, usable, weight_bufs, mxu_bytes)
    if q_tile is not None:
        tq = q_tile
    if k_tile is not None:
        tk = k_tile
    assert T % tq == 0 and (tq == T or tq % 8 == 0)
    assert T % tk == 0 and (tk == T or tk % 128 == 0)
    nq, nk = T // tq, T // tk

    est = _vmem_budget_bytes(T, H, h, dk, d_ff, tq, tk, weight_bytes, weight_bufs, mxu_bytes)
    vmem_limit = int(min(usable, max(32 << 20, est + (8 << 20))))

    # ---------------- specs ----------------
    def _w_spec(w):
        idx = lambda b, qi, ki, _nd=w.ndim: (0,) * _nd
        if single_buffer_weights:
            # grid-invariant weights: single-buffered (no pointless double-buffer DMA/VMEM)
            return pl.BlockSpec(w.shape, idx, pipeline_mode=pl.Buffered(1))
        return pl.BlockSpec(w.shape, idx)

    in_specs = [
        pl.BlockSpec((1, tq, H), lambda b, qi, ki: (b, qi, 0)),         # x (residual)
        pl.BlockSpec((1, h, tq, dk), lambda b, qi, ki: (b, 0, qi, 0)),  # q*scale head-major
        pl.BlockSpec((1, h, tq, H), lambda b, qi, ki: (b, 0, qi, 0)),   # qw (fused rel proj)
        pl.BlockSpec((1, h, dk, tk), lambda b, qi, ki: (b, 0, 0, ki)),  # K^T (lane-dense T)
        pl.BlockSpec((1, h, tk, dk), lambda b, qi, ki: (b, 0, ki, 0)),  # V
        pl.BlockSpec((1, tq, tk, H), lambda b, qi, ki: (b, qi, ki, 0)), # r (dominant stream)
        pl.BlockSpec((1, tq, tk), lambda b, qi, ki: (b, qi, ki)),       # additive mask bias
    ] + [_w_spec(w) for w in weights]

    return pl.pallas_call(
        _block_kernel,
        out_shape=jax.ShapeDtypeStruct((B, T, H), jnp.float32),
        grid_spec=pltpu.PrefetchScalarGridSpec(
            num_scalar_prefetch=0,
            grid=(B, nq, nk),
            in_specs=in_specs,
            out_specs=pl.BlockSpec((1, tq, H), lambda b, qi, ki: (b, qi, 0)),
            scratch_shapes=[
                pltpu.VMEM((h, tq, 1), jnp.float32),    # online-softmax running max
                pltpu.VMEM((h, tq, 1), jnp.float32),    # online-softmax running sum
                pltpu.VMEM((h, tq, dk), jnp.float32),   # unnormalized context accumulator
            ],
        ),
        compiler_params=pltpu.CompilerParams(
            # K/V hoisted -> no cross-tile scratch dependence: both outer axes parallel
            dimension_semantics=("parallel", "parallel", "arbitrary"),
            vmem_limit_bytes=vmem_limit,
        ),
    )(xf, q_s, qw, k_t, v_h, r_lp, bias, *weights)


# --------------------------------------------------------------------------------------
def make_params(key, hidden, n_heads, d_ff):
    dk = hidden // n_heads
    ks = jax.random.split(key, 8)
    init = lambda k, shape: jax.random.normal(k, shape, jnp.float32) * 0.02
    return dict(
        ln1_g=jnp.ones((1, hidden), jnp.float32),
        ln1_b=jnp.zeros((1, hidden), jnp.float32),
        wq=init(ks[0], (hidden, hidden)), bq=jnp.zeros((1, hidden), jnp.float32),
        wk=init(ks[1], (hidden, hidden)), bk=jnp.zeros((1, hidden), jnp.float32),
        wv=init(ks[2], (hidden, hidden)), bv=jnp.zeros((1, hidden), jnp.float32),
        wr=init(ks[3], (hidden, hidden)), br=jnp.zeros((1, hidden), jnp.float32),
        rbias=init(ks[4], (n_heads, dk)),
        wo=init(ks[5], (hidden, hidden)), bo=jnp.zeros((1, hidden), jnp.float32),
        ln2_g=jnp.ones((1, hidden), jnp.float32),
        ln2_b=jnp.zeros((1, hidden), jnp.float32),
        w1=init(ks[6], (hidden, d_ff)), b1=jnp.zeros((1, d_ff), jnp.float32),
        w2=init(ks[7], (d_ff, hidden)), b2=jnp.zeros((1, hidden), jnp.float32),
    )


# ----------------------------- pure-JAX reference (f32) -----------------------------
def reference_block(x, r, mask, params, n_heads):
    B, T, H = x.shape
    dk = H // n_heads
    bias = jnp.where(mask.reshape(B, T, T) == 0, -1e9, 0.0)

    n1 = _layer_norm(x, params["ln1_g"], params["ln1_b"])
    q = n1 @ params["wq"] + params["bq"]
    k = n1 @ params["wk"] + params["bk"]
    v = n1 @ params["wv"] + params["bv"]
    rp = jnp.einsum("btsh,hj->btsj", r, params["wr"]) + params["br"]

    qh = q.reshape(B, T, n_heads, dk).transpose(0, 2, 1, 3)
    kh = k.reshape(B, T, n_heads, dk).transpose(0, 2, 1, 3)
    vh = v.reshape(B, T, n_heads, dk).transpose(0, 2, 1, 3)
    rph = rp.reshape(B, T, T, n_heads, dk).transpose(0, 3, 1, 2, 4)

    scores = jnp.einsum("bhid,bhjd->bhij", qh, kh)
    scores = scores + jnp.einsum("bhid,bhijd->bhij",
                                 qh + params["rbias"][None, :, None, :], rph)
    scores = scores / (dk ** 0.5) + bias[:, None, :, :]
    p = jax.nn.softmax(scores, axis=-1)

    ctx = jnp.einsum("bhij,bhjd->bhid", p, vh)
    ctx = ctx.transpose(0, 2, 1, 3).reshape(B, T, H)
    x1 = x + (ctx @ params["wo"] + params["bo"])

    n2 = _layer_norm(x1, params["ln2_g"], params["ln2_b"])
    h1 = jax.nn.gelu(n2 @ params["w1"] + params["b1"], approximate=True)
    return x1 + (h1 @ params["w2"] + params["b2"])


if __name__ == "__main__":
    B, T, H, heads = 2, 8, 32, 4
    key = jax.random.PRNGKey(0)
    kx, kr, kp = jax.random.split(key, 3)

    x = jax.random.normal(kx, (B, T, H), jnp.float32)
    r = jax.random.normal(kr, (B, T, T, H), jnp.float32)
    mask = jnp.broadcast_to(jnp.tril(jnp.ones((T, T), jnp.float32)), (B, 1, T, T))
    params = make_params(kp, H, heads, 4 * H)

    try:
        out = jax.block_until_ready(
            transformer_relative_block(x, r, mask, params, heads))
    except Exception:
        # Fallback for jax versions that reject single-buffered (pl.Buffered(1)) weight specs.
        out = jax.block_until_ready(
            transformer_relative_block(x, r, mask, params, heads,
                                       single_buffer_weights=False))
    assert out.shape == (B, T, H) and out.dtype == jnp.float32

    ref = jax.block_until_ready(reference_block(x, r, mask, params, heads))
    max_err = float(jnp.max(jnp.abs(out - ref)))
    assert max_err < 3e-2, f"kernel deviates from reference: max_err={max_err}"
    print("KERNEL_OK")
</pallas_src>

<mosaic_0001>
module attributes {stable_mosaic.version = 11 : i64} {
  func.func @_block_kernel(%arg0: i32, %arg1: i32, %arg2: i32, %arg3: memref<1x8x32xf32, #tpu.memory_space<vmem>>, %arg4: memref<1x4x8x8xbf16, #tpu.memory_space<vmem>>, %arg5: memref<1x4x8x32xbf16, #tpu.memory_space<vmem>>, %arg6: memref<1x4x8x8xbf16, #tpu.memory_space<vmem>>, %arg7: memref<1x4x8x8xbf16, #tpu.memory_space<vmem>>, %arg8: memref<1x8x8x32xbf16, #tpu.memory_space<vmem>>, %arg9: memref<1x8x8xf32, #tpu.memory_space<vmem>>, %arg10: memref<4x8x32xbf16, #tpu.memory_space<vmem>>, %arg11: memref<1x32xf32, #tpu.memory_space<vmem>>, %arg12: memref<1x32xf32, #tpu.memory_space<vmem>>, %arg13: memref<1x32xf32, #tpu.memory_space<vmem>>, %arg14: memref<32x128xbf16, #tpu.memory_space<vmem>>, %arg15: memref<1x128xf32, #tpu.memory_space<vmem>>, %arg16: memref<128x32xbf16, #tpu.memory_space<vmem>>, %arg17: memref<1x32xf32, #tpu.memory_space<vmem>>, %arg18: memref<1x8x32xf32, #tpu.memory_space<vmem>>, %arg19: memref<4x8x1xf32, #tpu.memory_space<vmem>>, %arg20: memref<4x8x1xf32, #tpu.memory_space<vmem>>, %arg21: memref<4x8x8xf32, #tpu.memory_space<vmem>>) attributes {dimension_semantics = [#tpu.dimension_semantics<parallel>, #tpu.dimension_semantics<parallel>, #tpu.dimension_semantics<arbitrary>], iteration_bounds = array<i64: 2, 1, 1>, scalar_prefetch = 0 : i64, scratch_operands = 3 : i64, tpu.core_type = #tpu.core_type<tc>, window_params = [{transform_indices = @transform_0, window_bounds = array<i64: 1, 8, 32>}, {transform_indices = @transform_1, window_bounds = array<i64: 1, 4, 8, 8>}, {transform_indices = @transform_2, window_bounds = array<i64: 1, 4, 8, 32>}, {transform_indices = @transform_3, window_bounds = array<i64: 1, 4, 8, 8>}, {transform_indices = @transform_4, window_bounds = array<i64: 1, 4, 8, 8>}, {transform_indices = @transform_5, window_bounds = array<i64: 1, 8, 8, 32>}, {transform_indices = @transform_6, window_bounds = array<i64: 1, 8, 8>}, {pipeline_mode = #tpu.pipeline_mode<synchronous>, transform_indices = @transform_7, window_bounds = array<i64: 4, 8, 32>}, {pipeline_mode = #tpu.pipeline_mode<synchronous>, transform_indices = @transform_8, window_bounds = array<i64: 1, 32>}, {pipeline_mode = #tpu.pipeline_mode<synchronous>, transform_indices = @transform_9, window_bounds = array<i64: 1, 32>}, {pipeline_mode = #tpu.pipeline_mode<synchronous>, transform_indices = @transform_10, window_bounds = array<i64: 1, 32>}, {pipeline_mode = #tpu.pipeline_mode<synchronous>, transform_indices = @transform_11, window_bounds = array<i64: 32, 128>}, {pipeline_mode = #tpu.pipeline_mode<synchronous>, transform_indices = @transform_12, window_bounds = array<i64: 1, 128>}, {pipeline_mode = #tpu.pipeline_mode<synchronous>, transform_indices = @transform_13, window_bounds = array<i64: 128, 32>}, {pipeline_mode = #tpu.pipeline_mode<synchronous>, transform_indices = @transform_14, window_bounds = array<i64: 1, 32>}, {transform_indices = @transform_15, window_bounds = array<i64: 1, 8, 32>}]} {
    %c0_i32 = arith.constant 0 : i32
    %0 = arith.cmpi eq, %arg2, %c0_i32 : i32
    %1 = arith.extui %0 : i1 to i32
    %c0_i32_0 = arith.constant 0 : i32
    %2 = arith.cmpi ne, %1, %c0_i32_0 : i32
    scf.if %2 {
      %cst_47 = arith.constant 0xFF800000 : f32
      %48 = vector.broadcast %cst_47 : f32 to vector<4x8x1xf32>
      %c0_48 = arith.constant 0 : index
      %c0_49 = arith.constant 0 : index
      %c0_50 = arith.constant 0 : index
      %49 = vector.load %arg19[%c0_48, %c0_49, %c0_50] : memref<4x8x1xf32, #tpu.memory_space<vmem>>, vector<4x8x1xf32>
      tpu.vector_store %arg19[%c0_48, %c0_49, %c0_50], %48 {strides = array<i32>} : memref<4x8x1xf32, #tpu.memory_space<vmem>>, vector<4x8x1xf32>,
      %cst_51 = arith.constant 0.000000e+00 : f32
      %50 = vector.broadcast %cst_51 : f32 to vector<4x8x1xf32>
      %c0_52 = arith.constant 0 : index
      %c0_53 = arith.constant 0 : index
      %c0_54 = arith.constant 0 : index
      %51 = vector.load %arg20[%c0_52, %c0_53, %c0_54] : memref<4x8x1xf32, #tpu.memory_space<vmem>>, vector<4x8x1xf32>
      tpu.vector_store %arg20[%c0_52, %c0_53, %c0_54], %50 {strides = array<i32>} : memref<4x8x1xf32, #tpu.memory_space<vmem>>, vector<4x8x1xf32>,
      %cst_55 = arith.constant 0.000000e+00 : f32
      %52 = vector.broadcast %cst_55 : f32 to vector<4x8x8xf32>
      %c0_56 = arith.constant 0 : index
      %c0_57 = arith.constant 0 : index
      %c0_58 = arith.constant 0 : index
      %53 = vector.load %arg21[%c0_56, %c0_57, %c0_58] : memref<4x8x8xf32, #tpu.memory_space<vmem>>, vector<4x8x8xf32>
      tpu.vector_store %arg21[%c0_56, %c0_57, %c0_58], %52 {strides = array<i32>} : memref<4x8x8xf32, #tpu.memory_space<vmem>>, vector<4x8x8xf32>,
    } else {
    }
    %c0 = arith.constant 0 : index
    %c0_1 = arith.constant 0 : index
    %c0_2 = arith.constant 0 : index
    %c0_3 = arith.constant 0 : index
    %3 = vector.load %arg4[%c0, %c0_1, %c0_2, %c0_3] : memref<1x4x8x8xbf16, #tpu.memory_space<vmem>>, vector<1x4x8x8xbf16>
    %4 = vector.shape_cast %3 : vector<1x4x8x8xbf16> to vector<4x8x8xbf16>
    %c0_4 = arith.constant 0 : index
    %c0_5 = arith.constant 0 : index
    %c0_6 = arith.constant 0 : index
    %c0_7 = arith.constant 0 : index
    %5 = vector.load %arg6[%c0_4, %c0_5, %c0_6, %c0_7] : memref<1x4x8x8xbf16, #tpu.memory_space<vmem>>, vector<1x4x8x8xbf16>
    %6 = vector.shape_cast %5 : vector<1x4x8x8xbf16> to vector<4x8x8xbf16>
    "tpu.trace_start"() <{level = 10 : i32, message = "hqd,hdk->hqk"}> : () -> ()
    %cst = arith.constant dense<0.000000e+00> : vector<4x8x8xf32>
    %7 = tpu.matmul %4, %6, %cst {dimension_numbers = #tpu.dot_dimension_numbers<[2], [1], [1], [2], [0, 0, 0, 1, 1, 2], [0], [0]>} : vector<4x8x8xbf16>, vector<4x8x8xbf16>, vector<4x8x8xf32> -> vector<4x8x8xf32>
    "tpu.trace_stop"() : () -> ()
    %c0_8 = arith.constant 0 : index
    %c0_9 = arith.constant 0 : index
    %c0_10 = arith.constant 0 : index
    %c0_11 = arith.constant 0 : index
    %8 = vector.load %arg5[%c0_8, %c0_9, %c0_10, %c0_11] : memref<1x4x8x32xbf16, #tpu.memory_space<vmem>>, vector<1x4x8x32xbf16>
    %9 = vector.shape_cast %8 : vector<1x4x8x32xbf16> to vector<4x8x32xbf16>
    %c0_12 = arith.constant 0 : index
    %c0_13 = arith.constant 0 : index
    %c0_14 = arith.constant 0 : index
    %c0_15 = arith.constant 0 : index
    %10 = vector.load %arg8[%c0_12, %c0_13, %c0_14, %c0_15] : memref<1x8x8x32xbf16, #tpu.memory_space<vmem>>, vector<1x8x8x32xbf16>
    %11 = vector.shape_cast %10 : vector<1x8x8x32xbf16> to vector<8x8x32xbf16>
    "tpu.trace_start"() <{level = 10 : i32, message = "hqm,qkm->hqk"}> : () -> ()
    %cst_16 = arith.constant dense<0.000000e+00> : vector<8x8x4xf32>
    %12 = tpu.matmul %11, %9, %cst_16 {dimension_numbers = #tpu.dot_dimension_numbers<[2], [2], [1], [0], [0, 0, 0, 1, 1, 0], [0], [1]>} : vector<8x8x32xbf16>, vector<4x8x32xbf16>, vector<8x8x4xf32> -> vector<8x8x4xf32>
    %13 = tpu.transpose %12, [2, 0, 1] : vector<8x8x4xf32> -> vector<4x8x8xf32>
    "tpu.trace_stop"() : () -> ()
    %14 = arith.addf %7, %13 : vector<4x8x8xf32>
    %c0_17 = arith.constant 0 : index
    %c0_18 = arith.constant 0 : index
    %c0_19 = arith.constant 0 : index
    %15 = vector.load %arg9[%c0_17, %c0_18, %c0_19] : memref<1x8x8xf32, #tpu.memory_space<vmem>>, vector<1x8x8xf32>
    %16 = vector.shape_cast %15 : vector<1x8x8xf32> to vector<8x8xf32>
    %17 = vector.shape_cast %16 : vector<8x8xf32> to vector<1x8x8xf32>
    %18 = vector.broadcast %17 : vector<1x8x8xf32> to vector<4x8x8xf32>
    %19 = arith.addf %14, %18 : vector<4x8x8xf32>
    %c0_20 = arith.constant 0 : index
    %c0_21 = arith.constant 0 : index
    %c0_22 = arith.constant 0 : index
    %20 = vector.load %arg19[%c0_20, %c0_21, %c0_22] : memref<4x8x1xf32, #tpu.memory_space<vmem>>, vector<4x8x1xf32>
    %cst_23 = arith.constant dense<0xFF800000> : vector<4x8xf32>
    %21 = vector.multi_reduction <maximumf>, %19, %cst_23 [2] : vector<4x8x8xf32> to vector<4x8xf32>
    %22 = vector.shape_cast %21 : vector<4x8xf32> to vector<4x8x1xf32>
    %23 = arith.maximumf %20, %22 : vector<4x8x1xf32>
    %24 = arith.subf %20, %23 : vector<4x8x1xf32>
    %25 = math.exp %24 : vector<4x8x1xf32>
    %26 = vector.broadcast %23 : vector<4x8x1xf32> to vector<4x8x8xf32>
    %27 = arith.subf %19, %26 : vector<4x8x8xf32>
    %28 = math.exp %27 : vector<4x8x8xf32>
    %c0_24 = arith.constant 0 : index
    %c0_25 = arith.constant 0 : index
    %c0_26 = arith.constant 0 : index
    %29 = vector.load %arg20[%c0_24, %c0_25, %c0_26] : memref<4x8x1xf32, #tpu.memory_space<vmem>>, vector<4x8x1xf32>
    %30 = arith.mulf %25, %29 : vector<4x8x1xf32>
    %cst_27 = arith.constant dense<0.000000e+00> : vector<4x8xf32>
    %31 = vector.multi_reduction <add>, %28, %cst_27 [2] : vector<4x8x8xf32> to vector<4x8xf32>
    %32 = vector.shape_cast %31 : vector<4x8xf32> to vector<4x8x1xf32>
    %33 = arith.addf %30, %32 : vector<4x8x1xf32>
    %c0_28 = arith.constant 0 : index
    %c0_29 = arith.constant 0 : index
    %c0_30 = arith.constant 0 : index
    %34 = vector.load %arg20[%c0_28, %c0_29, %c0_30] : memref<4x8x1xf32, #tpu.memory_space<vmem>>, vector<4x8x1xf32>
    tpu.vector_store %arg20[%c0_28, %c0_29, %c0_30], %33 {strides = array<i32>} : memref<4x8x1xf32, #tpu.memory_space<vmem>>, vector<4x8x1xf32>,
    %c0_31 = arith.constant 0 : index
    %c0_32 = arith.constant 0 : index
    %c0_33 = arith.constant 0 : index
    %35 = vector.load %arg21[%c0_31, %c0_32, %c0_33] : memref<4x8x8xf32, #tpu.memory_space<vmem>>, vector<4x8x8xf32>
    %36 = vector.broadcast %25 : vector<4x8x1xf32> to vector<4x8x8xf32>
    %37 = arith.mulf %36, %35 : vector<4x8x8xf32>
    %38 = arith.truncf %28 : vector<4x8x8xf32> to vector<4x8x8xbf16>
    %c0_34 = arith.constant 0 : index
    %c0_35 = arith.constant 0 : index
    %c0_36 = arith.constant 0 : index
    %c0_37 = arith.constant 0 : index
    %39 = vector.load %arg7[%c0_34, %c0_35, %c0_36, %c0_37] : memref<1x4x8x8xbf16, #tpu.memory_space<vmem>>, vector<1x4x8x8xbf16>
    %40 = vector.shape_cast %39 : vector<1x4x8x8xbf16> to vector<4x8x8xbf16>
    "tpu.trace_start"() <{level = 10 : i32, message = "hqk,hkd->hqd"}> : () -> ()
    %cst_38 = arith.constant dense<0.000000e+00> : vector<4x8x8xf32>
    %41 = tpu.matmul %38, %40, %cst_38 {dimension_numbers = #tpu.dot_dimension_numbers<[2], [1], [1], [2], [0, 0, 0, 1, 1, 2], [0], [0]>} : vector<4x8x8xbf16>, vector<4x8x8xbf16>, vector<4x8x8xf32> -> vector<4x8x8xf32>
    "tpu.trace_stop"() : () -> ()
    %42 = arith.addf %37, %41 : vector<4x8x8xf32>
    %c0_39 = arith.constant 0 : index
    %c0_40 = arith.constant 0 : index
    %c0_41 = arith.constant 0 : index
    %43 = vector.load %arg21[%c0_39, %c0_40, %c0_41] : memref<4x8x8xf32, #tpu.memory_space<vmem>>, vector<4x8x8xf32>
    tpu.vector_store %arg21[%c0_39, %c0_40, %c0_41], %42 {strides = array<i32>} : memref<4x8x8xf32, #tpu.memory_space<vmem>>, vector<4x8x8xf32>,
    %c0_42 = arith.constant 0 : index
    %c0_43 = arith.constant 0 : index
    %c0_44 = arith.constant 0 : index
    %44 = vector.load %arg19[%c0_42, %c0_43, %c0_44] : memref<4x8x1xf32, #tpu.memory_space<vmem>>, vector<4x8x1xf32>
    tpu.vector_store %arg19[%c0_42, %c0_43, %c0_44], %23 {strides = array<i32>} : memref<4x8x1xf32, #tpu.memory_space<vmem>>, vector<4x8x1xf32>,
    %c0_i32_45 = arith.constant 0 : i32
    %45 = arith.cmpi eq, %arg2, %c0_i32_45 : i32
    %46 = arith.extui %45 : i1 to i32
    %c0_i32_46 = arith.constant 0 : i32
    %47 = arith.cmpi ne, %46, %c0_i32_46 : i32
    scf.if %47 {
      %c0_47 = arith.constant 0 : index
      %c0_48 = arith.constant 0 : index
      %c0_49 = arith.constant 0 : index
      %48 = vector.load %arg21[%c0_47, %c0_48, %c0_49] : memref<4x8x8xf32, #tpu.memory_space<vmem>>, vector<4x8x8xf32>
      %c0_50 = arith.constant 0 : index
      %c0_51 = arith.constant 0 : index
      %c0_52 = arith.constant 0 : index
      %49 = vector.load %arg20[%c0_50, %c0_51, %c0_52] : memref<4x8x1xf32, #tpu.memory_space<vmem>>, vector<4x8x1xf32>
      %50 = tpu.reciprocal %49 {approx = true} : vector<4x8x1xf32> -> vector<4x8x1xf32>
      %51 = vector.broadcast %50 : vector<4x8x1xf32> to vector<4x8x8xf32>
      %52 = arith.mulf %48, %51 : vector<4x8x8xf32>
      %53 = arith.truncf %52 : vector<4x8x8xf32> to vector<4x8x8xbf16>
      %c0_53 = arith.constant 0 : index
      %c0_54 = arith.constant 0 : index
      %c0_55 = arith.constant 0 : index
      %54 = vector.load %arg10[%c0_53, %c0_54, %c0_55] : memref<4x8x32xbf16, #tpu.memory_space<vmem>>, vector<4x8x32xbf16>
      "tpu.trace_start"() <{level = 10 : i32, message = "hqd,hdm->hqm"}> : () -> ()
      %cst_56 = arith.constant dense<0.000000e+00> : vector<4x8x32xf32>
      %55 = tpu.matmul %53, %54, %cst_56 {dimension_numbers = #tpu.dot_dimension_numbers<[2], [1], [1], [2], [0, 0, 0, 1, 1, 2], [0], [0]>} : vector<4x8x8xbf16>, vector<4x8x32xbf16>, vector<4x8x32xf32> -> vector<4x8x32xf32>
      "tpu.trace_stop"() : () -> ()
      %cst_57 = arith.constant dense<0.000000e+00> : vector<8x32xf32>
      %56 = vector.multi_reduction <add>, %55, %cst_57 [0] : vector<4x8x32xf32> to vector<8x32xf32>
      %c0_58 = arith.constant 0 : index
      %c0_59 = arith.constant 0 : index
      %57 = vector.load %arg11[%c0_58, %c0_59] : memref<1x32xf32, #tpu.memory_space<vmem>>, vector<1x32xf32>
      %58 = vector.broadcast %57 : vector<1x32xf32> to vector<8x32xf32>
      %59 = arith.addf %56, %58 : vector<8x32xf32>
      %c0_60 = arith.constant 0 : index
      %c0_61 = arith.constant 0 : index
      %c0_62 = arith.constant 0 : index
      %60 = vector.load %arg3[%c0_60, %c0_61, %c0_62] : memref<1x8x32xf32, #tpu.memory_space<vmem>>, vector<1x8x32xf32>
      %61 = vector.shape_cast %60 : vector<1x8x32xf32> to vector<8x32xf32>
      %62 = arith.addf %61, %59 : vector<8x32xf32>
      %c0_63 = arith.constant 0 : index
      %c0_64 = arith.constant 0 : index
      %63 = vector.load %arg12[%c0_63, %c0_64] : memref<1x32xf32, #tpu.memory_space<vmem>>, vector<1x32xf32>
      %c0_65 = arith.constant 0 : index
      %c0_66 = arith.constant 0 : index
      %64 = vector.load %arg13[%c0_65, %c0_66] : memref<1x32xf32, #tpu.memory_space<vmem>>, vector<1x32xf32>
      %cst_67 = arith.constant dense<0.000000e+00> : vector<8xf32>
      %65 = vector.multi_reduction <add>, %62, %cst_67 [1] : vector<8x32xf32> to vector<8xf32>
      %66 = vector.shape_cast %65 : vector<8xf32> to vector<8x1xf32>
      %cst_68 = arith.constant 3.200000e+01 : f32
      %67 = vector.broadcast %cst_68 : f32 to vector<8x1xf32>
      %68 = arith.divf %66, %67 : vector<8x1xf32>
      %69 = vector.broadcast %68 : vector<8x1xf32> to vector<8x32xf32>
      %70 = arith.subf %62, %69 : vector<8x32xf32>
      %71 = arith.mulf %70, %70 : vector<8x32xf32>
      %cst_69 = arith.constant dense<0.000000e+00> : vector<8xf32>
      %72 = vector.multi_reduction <add>, %71, %cst_69 [1] : vector<8x32xf32> to vector<8xf32>
      %73 = vector.shape_cast %72 : vector<8xf32> to vector<8x1xf32>
      %cst_70 = arith.constant 0.0322580636 : f32
      %74 = vector.broadcast %cst_70 : f32 to vector<8x1xf32>
      %75 = arith.mulf %73, %74 : vector<8x1xf32>
      %76 = vector.broadcast %68 : vector<8x1xf32> to vector<8x32xf32>
      %77 = arith.subf %62, %76 : vector<8x32xf32>
      %78 = vector.broadcast %63 : vector<1x32xf32> to vector<8x32xf32>
      %79 = arith.mulf %78, %77 : vector<8x32xf32>
      %80 = math.sqrt %75 : vector<8x1xf32>
      %cst_71 = arith.constant 9.99999997E-7 : f32
      %81 = vector.broadcast %cst_71 : f32 to vector<8x1xf32>
      %82 = arith.addf %80, %81 : vector<8x1xf32>
      %83 = vector.broadcast %82 : vector<8x1xf32> to vector<8x32xf32>
      %84 = arith.divf %79, %83 : vector<8x32xf32>
      %85 = vector.broadcast %64 : vector<1x32xf32> to vector<8x32xf32>
      %86 = arith.addf %84, %85 : vector<8x32xf32>
      %87 = arith.truncf %86 : vector<8x32xf32> to vector<8x32xbf16>
      %c0_72 = arith.constant 0 : index
      %c0_73 = arith.constant 0 : index
      %88 = vector.load %arg14[%c0_72, %c0_73] : memref<32x128xbf16, #tpu.memory_space<vmem>>, vector<32x128xbf16>
      %cst_74 = arith.constant dense<0.000000e+00> : vector<8x128xf32>
      %89 = tpu.matmul %87, %88, %cst_74 {dimension_numbers = #tpu.dot_dimension_numbers<[1], [0], [0], [1], [0, 0, 1, 1], [], []>} : vector<8x32xbf16>, vector<32x128xbf16>, vector<8x128xf32> -> vector<8x128xf32>
      %c0_75 = arith.constant 0 : index
      %c0_76 = arith.constant 0 : index
      %90 = vector.load %arg15[%c0_75, %c0_76] : memref<1x128xf32, #tpu.memory_space<vmem>>, vector<1x128xf32>
      %91 = vector.broadcast %90 : vector<1x128xf32> to vector<8x128xf32>
      %92 = arith.addf %89, %91 : vector<8x128xf32>
      %93 = arith.mulf %92, %92 : vector<8x128xf32>
      %94 = arith.mulf %92, %93 : vector<8x128xf32>
      %cst_77 = arith.constant 4.471500e-02 : f32
      %95 = vector.broadcast %cst_77 : f32 to vector<8x128xf32>
      %96 = arith.mulf %95, %94 : vector<8x128xf32>
      %97 = arith.addf %92, %96 : vector<8x128xf32>
      %cst_78 = arith.constant 0.797884583 : f32
      %98 = vector.broadcast %cst_78 : f32 to vector<8x128xf32>
      %99 = arith.mulf %98, %97 : vector<8x128xf32>
      %100 = math.tanh %99 : vector<8x128xf32>
      %cst_79 = arith.constant 1.000000e+00 : f32
      %101 = vector.broadcast %cst_79 : f32 to vector<8x128xf32>
      %102 = arith.addf %101, %100 : vector<8x128xf32>
      %cst_80 = arith.constant 5.000000e-01 : f32
      %103 = vector.broadcast %cst_80 : f32 to vector<8x128xf32>
      %104 = arith.mulf %103, %102 : vector<8x128xf32>
      %105 = arith.mulf %92, %104 : vector<8x128xf32>
      %106 = arith.truncf %105 : vector<8x128xf32> to vector<8x128xbf16>
      %c0_81 = arith.constant 0 : index
      %c0_82 = arith.constant 0 : index
      %107 = vector.load %arg16[%c0_81, %c0_82] : memref<128x32xbf16, #tpu.memory_space<vmem>>, vector<128x32xbf16>
      %cst_83 = arith.constant dense<0.000000e+00> : vector<8x32xf32>
      %108 = tpu.matmul %106, %107, %cst_83 {dimension_numbers = #tpu.dot_dimension_numbers<[1], [0], [0], [1], [0, 0, 1, 1], [], []>} : vector<8x128xbf16>, vector<128x32xbf16>, vector<8x32xf32> -> vector<8x32xf32>
      %c0_84 = arith.constant 0 : index
      %c0_85 = arith.constant 0 : index
      %109 = vector.load %arg17[%c0_84, %c0_85] : memref<1x32xf32, #tpu.memory_space<vmem>>, vector<1x32xf32>
      %110 = vector.broadcast %109 : vector<1x32xf32> to vector<8x32xf32>
      %111 = arith.addf %108, %110 : vector<8x32xf32>
      %112 = arith.addf %62, %111 : vector<8x32xf32>
      %c0_86 = arith.constant 0 : index
      %c0_87 = arith.constant 0 : index
      %c0_88 = arith.constant 0 : index
      %113 = vector.load %arg18[%c0_86, %c0_87, %c0_88] : memref<1x8x32xf32, #tpu.memory_space<vmem>>, vector<1x8x32xf32>
      %114 = vector.shape_cast %113 : vector<1x8x32xf32> to vector<8x32xf32>
      %115 = vector.shape_cast %112 : vector<8x32xf32> to vector<1x8x32xf32>
      tpu.vector_store %arg18[%c0_86, %c0_87, %c0_88], %115 {strides = array<i32>} : memref<1x8x32xf32, #tpu.memory_space<vmem>>, vector<1x8x32xf32>,
    } else {
    }
    return
  }
  func.func @transform_0(%arg0: i32, %arg1: i32, %arg2: i32) -> (i32, i32, i32) {
    %c0_i32 = arith.constant 0 : i32
    %c0_i32_0 = arith.constant 0 : i32
    return %arg0, %arg1, %c0_i32 : i32, i32, i32
  }
  func.func @transform_1(%arg0: i32, %arg1: i32, %arg2: i32) -> (i32, i32, i32, i32) {
    %c0_i32 = arith.constant 0 : i32
    %c0_i32_0 = arith.constant 0 : i32
    %c0_i32_1 = arith.constant 0 : i32
    return %arg0, %c0_i32, %arg1, %c0_i32_0 : i32, i32, i32, i32
  }
  func.func @transform_2(%arg0: i32, %arg1: i32, %arg2: i32) -> (i32, i32, i32, i32) {
    %c0_i32 = arith.constant 0 : i32
    %c0_i32_0 = arith.constant 0 : i32
    %c0_i32_1 = arith.constant 0 : i32
    return %arg0, %c0_i32, %arg1, %c0_i32_0 : i32, i32, i32, i32
  }
  func.func @transform_3(%arg0: i32, %arg1: i32, %arg2: i32) -> (i32, i32, i32, i32) {
    %c0_i32 = arith.constant 0 : i32
    %c0_i32_0 = arith.constant 0 : i32
    %c0_i32_1 = arith.constant 0 : i32
    return %arg0, %c0_i32, %c0_i32_0, %arg2 : i32, i32, i32, i32
  }
  func.func @transform_4(%arg0: i32, %arg1: i32, %arg2: i32) -> (i32, i32, i32, i32) {
    %c0_i32 = arith.constant 0 : i32
    %c0_i32_0 = arith.constant 0 : i32
    %c0_i32_1 = arith.constant 0 : i32
    return %arg0, %c0_i32, %arg2, %c0_i32_0 : i32, i32, i32, i32
  }
  func.func @transform_5(%arg0: i32, %arg1: i32, %arg2: i32) -> (i32, i32, i32, i32) {
    %c0_i32 = arith.constant 0 : i32
    %c0_i32_0 = arith.constant 0 : i32
    return %arg0, %arg1, %arg2, %c0_i32 : i32, i32, i32, i32
  }
  func.func @transform_6(%arg0: i32, %arg1: i32, %arg2: i32) -> (i32, i32, i32) {
    %c0_i32 = arith.constant 0 : i32
    return %arg0, %arg1, %arg2 : i32, i32, i32
  }
  func.func @transform_7(%arg0: i32, %arg1: i32, %arg2: i32) -> (i32, i32, i32) {
    %c0_i32 = arith.constant 0 : i32
    %c0_i32_0 = arith.constant 0 : i32
    %c0_i32_1 = arith.constant 0 : i32
    %c0_i32_2 = arith.constant 0 : i32
    return %c0_i32, %c0_i32_0, %c0_i32_1 : i32, i32, i32
  }
  func.func @transform_8(%arg0: i32, %arg1: i32, %arg2: i32) -> (i32, i32) {
    %c0_i32 = arith.constant 0 : i32
    %c0_i32_0 = arith.constant 0 : i32
    %c0_i32_1 = arith.constant 0 : i32
    return %c0_i32, %c0_i32_0 : i32, i32
  }
  func.func @transform_9(%arg0: i32, %arg1: i32, %arg2: i32) -> (i32, i32) {
    %c0_i32 = arith.constant 0 : i32
    %c0_i32_0 = arith.constant 0 : i32
    %c0_i32_1 = arith.constant 0 : i32
    return %c0_i32, %c0_i32_0 : i32, i32
  }
  func.func @transform_10(%arg0: i32, %arg1: i32, %arg2: i32) -> (i32, i32) {
    %c0_i32 = arith.constant 0 : i32
    %c0_i32_0 = arith.constant 0 : i32
    %c0_i32_1 = arith.constant 0 : i32
    return %c0_i32, %c0_i32_0 : i32, i32
  }
  func.func @transform_11(%arg0: i32, %arg1: i32, %arg2: i32) -> (i32, i32) {
    %c0_i32 = arith.constant 0 : i32
    %c0_i32_0 = arith.constant 0 : i32
    %c0_i32_1 = arith.constant 0 : i32
    return %c0_i32, %c0_i32_0 : i32, i32
  }
  func.func @transform_12(%arg0: i32, %arg1: i32, %arg2: i32) -> (i32, i32) {
    %c0_i32 = arith.constant 0 : i32
    %c0_i32_0 = arith.constant 0 : i32
    %c0_i32_1 = arith.constant 0 : i32
    return %c0_i32, %c0_i32_0 : i32, i32
  }
  func.func @transform_13(%arg0: i32, %arg1: i32, %arg2: i32) -> (i32, i32) {
    %c0_i32 = arith.constant 0 : i32
    %c0_i32_0 = arith.constant 0 : i32
    %c0_i32_1 = arith.constant 0 : i32
    return %c0_i32, %c0_i32_0 : i32, i32
  }
  func.func @transform_14(%arg0: i32, %arg1: i32, %arg2: i32) -> (i32, i32) {
    %c0_i32 = arith.constant 0 : i32
    %c0_i32_0 = arith.constant 0 : i32
    %c0_i32_1 = arith.constant 0 : i32
    return %c0_i32, %c0_i32_0 : i32, i32
  }
  func.func @transform_15(%arg0: i32, %arg1: i32, %arg2: i32) -> (i32, i32, i32) {
    %c0_i32 = arith.constant 0 : i32
    %c0_i32_0 = arith.constant 0 : i32
    return %arg0, %arg1, %c0_i32 : i32, i32, i32
  }
}

module attributes {stable_mosaic.version = 11 : i64} {
  func.func @_block_kernel(%arg0: i32, %arg1: i32, %arg2: i32, %arg3: memref<1x8x32xf32, #tpu.memory_space<vmem>>, %arg4: memref<1x4x8x8xbf16, #tpu.memory_space<vmem>>, %arg5: memref<1x4x8x32xbf16, #tpu.memory_space<vmem>>, %arg6: memref<1x4x8x8xbf16, #tpu.memory_space<vmem>>, %arg7: memref<1x4x8x8xbf16, #tpu.memory_space<vmem>>, %arg8: memref<1x8x8x32xbf16, #tpu.memory_space<vmem>>, %arg9: memref<1x8x8xf32, #tpu.memory_space<vmem>>, %arg10: memref<4x8x32xbf16, #tpu.memory_space<vmem>>, %arg11: memref<1x32xf32, #tpu.memory_space<vmem>>, %arg12: memref<1x32xf32, #tpu.memory_space<vmem>>, %arg13: memref<1x32xf32, #tpu.memory_space<vmem>>, %arg14: memref<32x128xbf16, #tpu.memory_space<vmem>>, %arg15: memref<1x128xf32, #tpu.memory_space<vmem>>, %arg16: memref<128x32xbf16, #tpu.memory_space<vmem>>, %arg17: memref<1x32xf32, #tpu.memory_space<vmem>>, %arg18: memref<1x8x32xf32, #tpu.memory_space<vmem>>, %arg19: memref<4x8x1xf32, #tpu.memory_space<vmem>>, %arg20: memref<4x8x1xf32, #tpu.memory_space<vmem>>, %arg21: memref<4x8x8xf32, #tpu.memory_space<vmem>>) attributes {dimension_semantics = [#tpu.dimension_semantics<parallel>, #tpu.dimension_semantics<parallel>, #tpu.dimension_semantics<arbitrary>], iteration_bounds = array<i64: 2, 1, 1>, scalar_prefetch = 0 : i64, scratch_operands = 3 : i64, tpu.core_type = #tpu.core_type<tc>, window_params = [{transform_indices = @transform_0, window_bounds = array<i64: 1, 8, 32>}, {transform_indices = @transform_1, window_bounds = array<i64: 1, 4, 8, 8>}, {transform_indices = @transform_2, window_bounds = array<i64: 1, 4, 8, 32>}, {transform_indices = @transform_3, window_bounds = array<i64: 1, 4, 8, 8>}, {transform_indices = @transform_4, window_bounds = array<i64: 1, 4, 8, 8>}, {transform_indices = @transform_5, window_bounds = array<i64: 1, 8, 8, 32>}, {transform_indices = @transform_6, window_bounds = array<i64: 1, 8, 8>}, {pipeline_mode = #tpu.pipeline_mode<synchronous>, transform_indices = @transform_7, window_bounds = array<i64: 4, 8, 32>}, {pipeline_mode = #tpu.pipeline_mode<synchronous>, transform_indices = @transform_8, window_bounds = array<i64: 1, 32>}, {pipeline_mode = #tpu.pipeline_mode<synchronous>, transform_indices = @transform_9, window_bounds = array<i64: 1, 32>}, {pipeline_mode = #tpu.pipeline_mode<synchronous>, transform_indices = @transform_10, window_bounds = array<i64: 1, 32>}, {pipeline_mode = #tpu.pipeline_mode<synchronous>, transform_indices = @transform_11, window_bounds = array<i64: 32, 128>}, {pipeline_mode = #tpu.pipeline_mode<synchronous>, transform_indices = @transform_12, window_bounds = array<i64: 1, 128>}, {pipeline_mode = #tpu.pipeline_mode<synchronous>, transform_indices = @transform_13, window_bounds = array<i64: 128, 32>}, {pipeline_mode = #tpu.pipeline_mode<synchronous>, transform_indices = @transform_14, window_bounds = array<i64: 1, 32>}, {transform_indices = @transform_15, window_bounds = array<i64: 1, 8, 32>}]} {
    %c0_i32 = arith.constant 0 : i32
    %0 = arith.cmpi eq, %arg2, %c0_i32 : i32
    %1 = arith.extui %0 : i1 to i32
    %c0_i32_0 = arith.constant 0 : i32
    %2 = arith.cmpi ne, %1, %c0_i32_0 : i32
    scf.if %2 {
      %cst_47 = arith.constant 0xFF800000 : f32
      %48 = vector.broadcast %cst_47 : f32 to vector<4x8x1xf32>
      %c0_48 = arith.constant 0 : index
      %c0_49 = arith.constant 0 : index
      %c0_50 = arith.constant 0 : index
      %49 = vector.load %arg19[%c0_48, %c0_49, %c0_50] : memref<4x8x1xf32, #tpu.memory_space<vmem>>, vector<4x8x1xf32>
      tpu.vector_store %arg19[%c0_48, %c0_49, %c0_50], %48 {strides = array<i32>} : memref<4x8x1xf32, #tpu.memory_space<vmem>>, vector<4x8x1xf32>,
      %cst_51 = arith.constant 0.000000e+00 : f32
      %50 = vector.broadcast %cst_51 : f32 to vector<4x8x1xf32>
      %c0_52 = arith.constant 0 : index
      %c0_53 = arith.constant 0 : index
      %c0_54 = arith.constant 0 : index
      %51 = vector.load %arg20[%c0_52, %c0_53, %c0_54] : memref<4x8x1xf32, #tpu.memory_space<vmem>>, vector<4x8x1xf32>
      tpu.vector_store %arg20[%c0_52, %c0_53, %c0_54], %50 {strides = array<i32>} : memref<4x8x1xf32, #tpu.memory_space<vmem>>, vector<4x8x1xf32>,
      %cst_55 = arith.constant 0.000000e+00 : f32
      %52 = vector.broadcast %cst_55 : f32 to vector<4x8x8xf32>
      %c0_56 = arith.constant 0 : index
      %c0_57 = arith.constant 0 : index
      %c0_58 = arith.constant 0 : index
      %53 = vector.load %arg21[%c0_56, %c0_57, %c0_58] : memref<4x8x8xf32, #tpu.memory_space<vmem>>, vector<4x8x8xf32>
      tpu.vector_store %arg21[%c0_56, %c0_57, %c0_58], %52 {strides = array<i32>} : memref<4x8x8xf32, #tpu.memory_space<vmem>>, vector<4x8x8xf32>,
    } else {
    }
    %c0 = arith.constant 0 : index
    %c0_1 = arith.constant 0 : index
    %c0_2 = arith.constant 0 : index
    %c0_3 = arith.constant 0 : index
    %3 = vector.load %arg4[%c0, %c0_1, %c0_2, %c0_3] : memref<1x4x8x8xbf16, #tpu.memory_space<vmem>>, vector<1x4x8x8xbf16>
    %4 = vector.shape_cast %3 : vector<1x4x8x8xbf16> to vector<4x8x8xbf16>
    %c0_4 = arith.constant 0 : index
    %c0_5 = arith.constant 0 : index
    %c0_6 = arith.constant 0 : index
    %c0_7 = arith.constant 0 : index
    %5 = vector.load %arg6[%c0_4, %c0_5, %c0_6, %c0_7] : memref<1x4x8x8xbf16, #tpu.memory_space<vmem>>, vector<1x4x8x8xbf16>
    %6 = vector.shape_cast %5 : vector<1x4x8x8xbf16> to vector<4x8x8xbf16>
    "tpu.trace_start"() <{level = 10 : i32, message = "hqd,hdk->hqk"}> : () -> ()
    %cst = arith.constant dense<0.000000e+00> : vector<4x8x8xf32>
    %7 = tpu.matmul %4, %6, %cst {dimension_numbers = #tpu.dot_dimension_numbers<[2], [1], [1], [2], [0, 0, 0, 1, 1, 2], [0], [0]>} : vector<4x8x8xbf16>, vector<4x8x8xbf16>, vector<4x8x8xf32> -> vector<4x8x8xf32>
    "tpu.trace_stop"() : () -> ()
    %c0_8 = arith.constant 0 : index
    %c0_9 = arith.constant 0 : index
    %c0_10 = arith.constant 0 : index
    %c0_11 = arith.constant 0 : index
    %8 = vector.load %arg5[%c0_8, %c0_9, %c0_10, %c0_11] : memref<1x4x8x32xbf16, #tpu.memory_space<vmem>>, vector<1x4x8x32xbf16>
    %9 = vector.shape_cast %8 : vector<1x4x8x32xbf16> to vector<4x8x32xbf16>
    %c0_12 = arith.constant 0 : index
    %c0_13 = arith.constant 0 : index
    %c0_14 = arith.constant 0 : index
    %c0_15 = arith.constant 0 : index
    %10 = vector.load %arg8[%c0_12, %c0_13, %c0_14, %c0_15] : memref<1x8x8x32xbf16, #tpu.memory_space<vmem>>, vector<1x8x8x32xbf16>
    %11 = vector.shape_cast %10 : vector<1x8x8x32xbf16> to vector<8x8x32xbf16>
    "tpu.trace_start"() <{level = 10 : i32, message = "hqm,qkm->hqk"}> : () -> ()
    %cst_16 = arith.constant dense<0.000000e+00> : vector<8x8x4xf32>
    %12 = tpu.matmul %11, %9, %cst_16 {dimension_numbers = #tpu.dot_dimension_numbers<[2], [2], [1], [0], [0, 0, 0, 1, 1, 0], [0], [1]>} : vector<8x8x32xbf16>, vector<4x8x32xbf16>, vector<8x8x4xf32> -> vector<8x8x4xf32>
    %13 = tpu.transpose %12, [2, 0, 1] : vector<8x8x4xf32> -> vector<4x8x8xf32>
    "tpu.trace_stop"() : () -> ()
    %14 = arith.addf %7, %13 : vector<4x8x8xf32>
    %c0_17 = arith.constant 0 : index
    %c0_18 = arith.constant 0 : index
    %c0_19 = arith.constant 0 : index
    %15 = vector.load %arg9[%c0_17, %c0_18, %c0_19] : memref<1x8x8xf32, #tpu.memory_space<vmem>>, vector<1x8x8xf32>
    %16 = vector.shape_cast %15 : vector<1x8x8xf32> to vector<8x8xf32>
    %17 = vector.shape_cast %16 : vector<8x8xf32> to vector<1x8x8xf32>
    %18 = vector.broadcast %17 : vector<1x8x8xf32> to vector<4x8x8xf32>
    %19 = arith.addf %14, %18 : vector<4x8x8xf32>
    %c0_20 = arith.constant 0 : index
    %c0_21 = arith.constant 0 : index
    %c0_22 = arith.constant 0 : index
    %20 = vector.load %arg19[%c0_20, %c0_21, %c0_22] : memref<4x8x1xf32, #tpu.memory_space<vmem>>, vector<4x8x1xf32>
    %cst_23 = arith.constant dense<0xFF800000> : vector<4x8xf32>
    %21 = vector.multi_reduction <maximumf>, %19, %cst_23 [2] : vector<4x8x8xf32> to vector<4x8xf32>
    %22 = vector.shape_cast %21 : vector<4x8xf32> to vector<4x8x1xf32>
    %23 = arith.maximumf %20, %22 : vector<4x8x1xf32>
    %24 = arith.subf %20, %23 : vector<4x8x1xf32>
    %25 = math.exp %24 : vector<4x8x1xf32>
    %26 = vector.broadcast %23 : vector<4x8x1xf32> to vector<4x8x8xf32>
    %27 = arith.subf %19, %26 : vector<4x8x8xf32>
    %28 = math.exp %27 : vector<4x8x8xf32>
    %c0_24 = arith.constant 0 : index
    %c0_25 = arith.constant 0 : index
    %c0_26 = arith.constant 0 : index
    %29 = vector.load %arg20[%c0_24, %c0_25, %c0_26] : memref<4x8x1xf32, #tpu.memory_space<vmem>>, vector<4x8x1xf32>
    %30 = arith.mulf %25, %29 : vector<4x8x1xf32>
    %cst_27 = arith.constant dense<0.000000e+00> : vector<4x8xf32>
    %31 = vector.multi_reduction <add>, %28, %cst_27 [2] : vector<4x8x8xf32> to vector<4x8xf32>
    %32 = vector.shape_cast %31 : vector<4x8xf32> to vector<4x8x1xf32>
    %33 = arith.addf %30, %32 : vector<4x8x1xf32>
    %c0_28 = arith.constant 0 : index
    %c0_29 = arith.constant 0 : index
    %c0_30 = arith.constant 0 : index
    %34 = vector.load %arg20[%c0_28, %c0_29, %c0_30] : memref<4x8x1xf32, #tpu.memory_space<vmem>>, vector<4x8x1xf32>
    tpu.vector_store %arg20[%c0_28, %c0_29, %c0_30], %33 {strides = array<i32>} : memref<4x8x1xf32, #tpu.memory_space<vmem>>, vector<4x8x1xf32>,
    %c0_31 = arith.constant 0 : index
    %c0_32 = arith.constant 0 : index
    %c0_33 = arith.constant 0 : index
    %35 = vector.load %arg21[%c0_31, %c0_32, %c0_33] : memref<4x8x8xf32, #tpu.memory_space<vmem>>, vector<4x8x8xf32>
    %36 = vector.broadcast %25 : vector<4x8x1xf32> to vector<4x8x8xf32>
    %37 = arith.mulf %36, %35 : vector<4x8x8xf32>
    %38 = arith.truncf %28 : vector<4x8x8xf32> to vector<4x8x8xbf16>
    %c0_34 = arith.constant 0 : index
    %c0_35 = arith.constant 0 : index
    %c0_36 = arith.constant 0 : index
    %c0_37 = arith.constant 0 : index
    %39 = vector.load %arg7[%c0_34, %c0_35, %c0_36, %c0_37] : memref<1x4x8x8xbf16, #tpu.memory_space<vmem>>, vector<1x4x8x8xbf16>
    %40 = vector.shape_cast %39 : vector<1x4x8x8xbf16> to vector<4x8x8xbf16>
    "tpu.trace_start"() <{level = 10 : i32, message = "hqk,hkd->hqd"}> : () -> ()
    %cst_38 = arith.constant dense<0.000000e+00> : vector<4x8x8xf32>
    %41 = tpu.matmul %38, %40, %cst_38 {dimension_numbers = #tpu.dot_dimension_numbers<[2], [1], [1], [2], [0, 0, 0, 1, 1, 2], [0], [0]>} : vector<4x8x8xbf16>, vector<4x8x8xbf16>, vector<4x8x8xf32> -> vector<4x8x8xf32>
    "tpu.trace_stop"() : () -> ()
    %42 = arith.addf %37, %41 : vector<4x8x8xf32>
    %c0_39 = arith.constant 0 : index
    %c0_40 = arith.constant 0 : index
    %c0_41 = arith.constant 0 : index
    %43 = vector.load %arg21[%c0_39, %c0_40, %c0_41] : memref<4x8x8xf32, #tpu.memory_space<vmem>>, vector<4x8x8xf32>
    tpu.vector_store %arg21[%c0_39, %c0_40, %c0_41], %42 {strides = array<i32>} : memref<4x8x8xf32, #tpu.memory_space<vmem>>, vector<4x8x8xf32>,
    %c0_42 = arith.constant 0 : index
    %c0_43 = arith.constant 0 : index
    %c0_44 = arith.constant 0 : index
    %44 = vector.load %arg19[%c0_42, %c0_43, %c0_44] : memref<4x8x1xf32, #tpu.memory_space<vmem>>, vector<4x8x1xf32>
    tpu.vector_store %arg19[%c0_42, %c0_43, %c0_44], %23 {strides = array<i32>} : memref<4x8x1xf32, #tpu.memory_space<vmem>>, vector<4x8x1xf32>,
    %c0_i32_45 = arith.constant 0 : i32
    %45 = arith.cmpi eq, %arg2, %c0_i32_45 : i32
    %46 = arith.extui %45 : i1 to i32
    %c0_i32_46 = arith.constant 0 : i32
    %47 = arith.cmpi ne, %46, %c0_i32_46 : i32
    scf.if %47 {
      %c0_47 = arith.constant 0 : index
      %c0_48 = arith.constant 0 : index
      %c0_49 = arith.constant 0 : index
      %48 = vector.load %arg21[%c0_47, %c0_48, %c0_49] : memref<4x8x8xf32, #tpu.memory_space<vmem>>, vector<4x8x8xf32>
      %c0_50 = arith.constant 0 : index
      %c0_51 = arith.constant 0 : index
      %c0_52 = arith.constant 0 : index
      %49 = vector.load %arg20[%c0_50, %c0_51, %c0_52] : memref<4x8x1xf32, #tpu.memory_space<vmem>>, vector<4x8x1xf32>
      %50 = tpu.reciprocal %49 {approx = true} : vector<4x8x1xf32> -> vector<4x8x1xf32>
      %51 = vector.broadcast %50 : vector<4x8x1xf32> to vector<4x8x8xf32>
      %52 = arith.mulf %48, %51 : vector<4x8x8xf32>
      %53 = arith.truncf %52 : vector<4x8x8xf32> to vector<4x8x8xbf16>
      %c0_53 = arith.constant 0 : index
      %c0_54 = arith.constant 0 : index
      %c0_55 = arith.constant 0 : index
      %54 = vector.load %arg10[%c0_53, %c0_54, %c0_55] : memref<4x8x32xbf16, #tpu.memory_space<vmem>>, vector<4x8x32xbf16>
      "tpu.trace_start"() <{level = 10 : i32, message = "hqd,hdm->hqm"}> : () -> ()
      %cst_56 = arith.constant dense<0.000000e+00> : vector<4x8x32xf32>
      %55 = tpu.matmul %53, %54, %cst_56 {dimension_numbers = #tpu.dot_dimension_numbers<[2], [1], [1], [2], [0, 0, 0, 1, 1, 2], [0], [0]>} : vector<4x8x8xbf16>, vector<4x8x32xbf16>, vector<4x8x32xf32> -> vector<4x8x32xf32>
      "tpu.trace_stop"() : () -> ()
      %cst_57 = arith.constant dense<0.000000e+00> : vector<8x32xf32>
      %56 = vector.multi_reduction <add>, %55, %cst_57 [0] : vector<4x8x32xf32> to vector<8x32xf32>
      %c0_58 = arith.constant 0 : index
      %c0_59 = arith.constant 0 : index
      %57 = vector.load %arg11[%c0_58, %c0_59] : memref<1x32xf32, #tpu.memory_space<vmem>>, vector<1x32xf32>
      %58 = vector.broadcast %57 : vector<1x32xf32> to vector<8x32xf32>
      %59 = arith.addf %56, %58 : vector<8x32xf32>
      %c0_60 = arith.constant 0 : index
      %c0_61 = arith.constant 0 : index
      %c0_62 = arith.constant 0 : index
      %60 = vector.load %arg3[%c0_60, %c0_61, %c0_62] : memref<1x8x32xf32, #tpu.memory_space<vmem>>, vector<1x8x32xf32>
      %61 = vector.shape_cast %60 : vector<1x8x32xf32> to vector<8x32xf32>
      %62 = arith.addf %61, %59 : vector<8x32xf32>
      %c0_63 = arith.constant 0 : index
      %c0_64 = arith.constant 0 : index
      %63 = vector.load %arg12[%c0_63, %c0_64] : memref<1x32xf32, #tpu.memory_space<vmem>>, vector<1x32xf32>
      %c0_65 = arith.constant 0 : index
      %c0_66 = arith.constant 0 : index
      %64 = vector.load %arg13[%c0_65, %c0_66] : memref<1x32xf32, #tpu.memory_space<vmem>>, vector<1x32xf32>
      %cst_67 = arith.constant dense<0.000000e+00> : vector<8xf32>
      %65 = vector.multi_reduction <add>, %62, %cst_67 [1] : vector<8x32xf32> to vector<8xf32>
      %66 = vector.shape_cast %65 : vector<8xf32> to vector<8x1xf32>
      %cst_68 = arith.constant 3.200000e+01 : f32
      %67 = vector.broadcast %cst_68 : f32 to vector<8x1xf32>
      %68 = arith.divf %66, %67 : vector<8x1xf32>
      %69 = vector.broadcast %68 : vector<8x1xf32> to vector<8x32xf32>
      %70 = arith.subf %62, %69 : vector<8x32xf32>
      %71 = arith.mulf %70, %70 : vector<8x32xf32>
      %cst_69 = arith.constant dense<0.000000e+00> : vector<8xf32>
      %72 = vector.multi_reduction <add>, %71, %cst_69 [1] : vector<8x32xf32> to vector<8xf32>
      %73 = vector.shape_cast %72 : vector<8xf32> to vector<8x1xf32>
      %cst_70 = arith.constant 0.0322580636 : f32
      %74 = vector.broadcast %cst_70 : f32 to vector<8x1xf32>
      %75 = arith.mulf %73, %74 : vector<8x1xf32>
      %76 = vector.broadcast %68 : vector<8x1xf32> to vector<8x32xf32>
      %77 = arith.subf %62, %76 : vector<8x32xf32>
      %78 = vector.broadcast %63 : vector<1x32xf32> to vector<8x32xf32>
      %79 = arith.mulf %78, %77 : vector<8x32xf32>
      %80 = math.sqrt %75 : vector<8x1xf32>
      %cst_71 = arith.constant 9.99999997E-7 : f32
      %81 = vector.broadcast %cst_71 : f32 to vector<8x1xf32>
      %82 = arith.addf %80, %81 : vector<8x1xf32>
      %83 = vector.broadcast %82 : vector<8x1xf32> to vector<8x32xf32>
      %84 = arith.divf %79, %83 : vector<8x32xf32>
      %85 = vector.broadcast %64 : vector<1x32xf32> to vector<8x32xf32>
      %86 = arith.addf %84, %85 : vector<8x32xf32>
      %87 = arith.truncf %86 : vector<8x32xf32> to vector<8x32xbf16>
      %c0_72 = arith.constant 0 : index
      %c0_73 = arith.constant 0 : index
      %88 = vector.load %arg14[%c0_72, %c0_73] : memref<32x128xbf16, #tpu.memory_space<vmem>>, vector<32x128xbf16>
      %cst_74 = arith.constant dense<0.000000e+00> : vector<8x128xf32>
      %89 = tpu.matmul %87, %88, %cst_74 {dimension_numbers = #tpu.dot_dimension_numbers<[1], [0], [0], [1], [0, 0, 1, 1], [], []>} : vector<8x32xbf16>, vector<32x128xbf16>, vector<8x128xf32> -> vector<8x128xf32>
      %c0_75 = arith.constant 0 : index
      %c0_76 = arith.constant 0 : index
      %90 = vector.load %arg15[%c0_75, %c0_76] : memref<1x128xf32, #tpu.memory_space<vmem>>, vector<1x128xf32>
      %91 = vector.broadcast %90 : vector<1x128xf32> to vector<8x128xf32>
      %92 = arith.addf %89, %91 : vector<8x128xf32>
      %93 = arith.mulf %92, %92 : vector<8x128xf32>
      %94 = arith.mulf %92, %93 : vector<8x128xf32>
      %cst_77 = arith.constant 4.471500e-02 : f32
      %95 = vector.broadcast %cst_77 : f32 to vector<8x128xf32>
      %96 = arith.mulf %95, %94 : vector<8x128xf32>
      %97 = arith.addf %92, %96 : vector<8x128xf32>
      %cst_78 = arith.constant 0.797884583 : f32
      %98 = vector.broadcast %cst_78 : f32 to vector<8x128xf32>
      %99 = arith.mulf %98, %97 : vector<8x128xf32>
      %100 = math.tanh %99 : vector<8x128xf32>
      %cst_79 = arith.constant 1.000000e+00 : f32
      %101 = vector.broadcast %cst_79 : f32 to vector<8x128xf32>
      %102 = arith.addf %101, %100 : vector<8x128xf32>
      %cst_80 = arith.constant 5.000000e-01 : f32
      %103 = vector.broadcast %cst_80 : f32 to vector<8x128xf32>
      %104 = arith.mulf %103, %102 : vector<8x128xf32>
      %105 = arith.mulf %92, %104 : vector<8x128xf32>
      %106 = arith.truncf %105 : vector<8x128xf32> to vector<8x128xbf16>
      %c0_81 = arith.constant 0 : index
      %c0_82 = arith.constant 0 : index
      %107 = vector.load %arg16[%c0_81, %c0_82] : memref<128x32xbf16, #tpu.memory_space<vmem>>, vector<128x32xbf16>
      %cst_83 = arith.constant dense<0.000000e+00> : vector<8x32xf32>
      %108 = tpu.matmul %106, %107, %cst_83 {dimension_numbers = #tpu.dot_dimension_numbers<[1], [0], [0], [1], [0, 0, 1, 1], [], []>} : vector<8x128xbf16>, vector<128x32xbf16>, vector<8x32xf32> -> vector<8x32xf32>
      %c0_84 = arith.constant 0 : index
      %c0_85 = arith.constant 0 : index
      %109 = vector.load %arg17[%c0_84, %c0_85] : memref<1x32xf32, #tpu.memory_space<vmem>>, vector<1x32xf32>
      %110 = vector.broadcast %109 : vector<1x32xf32> to vector<8x32xf32>
      %111 = arith.addf %108, %110 : vector<8x32xf32>
      %112 = arith.addf %62, %111 : vector<8x32xf32>
      %c0_86 = arith.constant 0 : index
      %c0_87 = arith.constant 0 : index
      %c0_88 = arith.constant 0 : index
      %113 = vector.load %arg18[%c0_86, %c0_87, %c0_88] : memref<1x8x32xf32, #tpu.memory_space<vmem>>, vector<1x8x32xf32>
      %114 = vector.shape_cast %113 : vector<1x8x32xf32> to vector<8x32xf32>
      %115 = vector.shape_cast %112 : vector<8x32xf32> to vector<1x8x32xf32>
      tpu.vector_store %arg18[%c0_86, %c0_87, %c0_88], %115 {strides = array<i32>} : memref<1x8x32xf32, #tpu.memory_space<vmem>>, vector<1x8x32xf32>,
    } else {
    }
    return
  }
  func.func @transform_0(%arg0: i32, %arg1: i32, %arg2: i32) -> (i32, i32, i32) {
    %c0_i32 = arith.constant 0 : i32
    %c0_i32_0 = arith.constant 0 : i32
    return %arg0, %arg1, %c0_i32 : i32, i32, i32
  }
  func.func @transform_1(%arg0: i32, %arg1: i32, %arg2: i32) -> (i32, i32, i32, i32) {
    %c0_i32 = arith.constant 0 : i32
    %c0_i32_0 = arith.constant 0 : i32
    %c0_i32_1 = arith.constant 0 : i32
    return %arg0, %c0_i32, %arg1, %c0_i32_0 : i32, i32, i32, i32
  }
  func.func @transform_2(%arg0: i32, %arg1: i32, %arg2: i32) -> (i32, i32, i32, i32) {
    %c0_i32 = arith.constant 0 : i32
    %c0_i32_0 = arith.constant 0 : i32
    %c0_i32_1 = arith.constant 0 : i32
    return %arg0, %c0_i32, %arg1, %c0_i32_0 : i32, i32, i32, i32
  }
  func.func @transform_3(%arg0: i32, %arg1: i32, %arg2: i32) -> (i32, i32, i32, i32) {
    %c0_i32 = arith.constant 0 : i32
    %c0_i32_0 = arith.constant 0 : i32
    %c0_i32_1 = arith.constant 0 : i32
    return %arg0, %c0_i32, %c0_i32_0, %arg2 : i32, i32, i32, i32
  }
  func.func @transform_4(%arg0: i32, %arg1: i32, %arg2: i32) -> (i32, i32, i32, i32) {
    %c0_i32 = arith.constant 0 : i32
    %c0_i32_0 = arith.constant 0 : i32
    %c0_i32_1 = arith.constant 0 : i32
    return %arg0, %c0_i32, %arg2, %c0_i32_0 : i32, i32, i32, i32
  }
  func.func @transform_5(%arg0: i32, %arg1: i32, %arg2: i32) -> (i32, i32, i32, i32) {
    %c0_i32 = arith.constant 0 : i32
    %c0_i32_0 = arith.constant 0 : i32
    return %arg0, %arg1, %arg2, %c0_i32 : i32, i32, i32, i32
  }
  func.func @transform_6(%arg0: i32, %arg1: i32, %arg2: i32) -> (i32, i32, i32) {
    %c0_i32 = arith.constant 0 : i32
    return %arg0, %arg1, %arg2 : i32, i32, i32
  }
  func.func @transform_7(%arg0: i32, %arg1: i32, %arg2: i32) -> (i32, i32, i32) {
    %c0_i32 = arith.constant 0 : i32
    %c0_i32_0 = arith.constant 0 : i32
    %c0_i32_1 = arith.constant 0 : i32
    %c0_i32_2 = arith.constant 0 : i32
    return %c0_i32, %c0_i32_0, %c0_i32_1 : i32, i32, i32
  }
  func.func @transform_8(%arg0: i32, %arg1: i32, %arg2: i32) -> (i32, i32) {
    %c0_i32 = arith.constant 0 : i32
    %c0_i32_0 = arith.constant 0 : i32
    %c0_i32_1 = arith.constant 0 : i32
    return %c0_i32, %c0_i32_0 : i32, i32
  }
  func.func @transform_9(%arg0: i32, %arg1: i32, %arg2: i32) -> (i32, i32) {
    %c0_i32 = arith.constant 0 : i32
    %c0_i32_0 = arith.constant 0 : i32
    %c0_i32_1 = arith.constant 0 : i32
    return %c0_i32, %c0_i32_0 : i32, i32
  }
  func.func @transform_10(%arg0: i32, %arg1: i32, %arg2: i32) -> (i32, i32) {
    %c0_i32 = arith.constant 0 : i32
    %c0_i32_0 = arith.constant 0 : i32
    %c0_i32_1 = arith.constant 0 : i32
    return %c0_i32, %c0_i32_0 : i32, i32
  }
  func.func @transform_11(%arg0: i32, %arg1: i32, %arg2: i32) -> (i32, i32) {
    %c0_i32 = arith.constant 0 : i32
    %c0_i32_0 = arith.constant 0 : i32
    %c0_i32_1 = arith.constant 0 : i32
    return %c0_i32, %c0_i32_0 : i32, i32
  }
  func.func @transform_12(%arg0: i32, %arg1: i32, %arg2: i32) -> (i32, i32) {
    %c0_i32 = arith.constant 0 : i32
    %c0_i32_0 = arith.constant 0 : i32
    %c0_i32_1 = arith.constant 0 : i32
    return %c0_i32, %c0_i32_0 : i32, i32
  }
  func.func @transform_13(%arg0: i32, %arg1: i32, %arg2: i32) -> (i32, i32) {
    %c0_i32 = arith.constant 0 : i32
    %c0_i32_0 = arith.constant 0 : i32
    %c0_i32_1 = arith.constant 0 : i32
    return %c0_i32, %c0_i32_0 : i32, i32
  }
  func.func @transform_14(%arg0: i32, %arg1: i32, %arg2: i32) -> (i32, i32) {
    %c0_i32 = arith.constant 0 : i32
    %c0_i32_0 = arith.constant 0 : i32
    %c0_i32_1 = arith.constant 0 : i32
    return %c0_i32, %c0_i32_0 : i32, i32
  }
  func.func @transform_15(%arg0: i32, %arg1: i32, %arg2: i32) -> (i32, i32, i32) {
    %c0_i32 = arith.constant 0 : i32
    %c0_i32_0 = arith.constant 0 : i32
    return %arg0, %arg1, %c0_i32 : i32, i32, i32
  }
}

</mosaic_0001>

<llo_original>
// kernel: tpu_custom_call.1
$region0: #{tpu_custom_call.1}
  #allocation0 [shape = 'u32[]', space=smem, size = 0x4, offset = 0x4, fixed_abs, tag = 'smem constant byte address 0x4 - core index']
  #allocation1 [shape = 'u32[144,128]{1,0:T(1,128)}', space=vmem, size = 0x12000, scoped, tag = 'internal scratch']
  #allocation2 [shape = 'f32[4,8,1]{2,1,0:T(8,128)}', space=vmem, size = 0x4000, scoped, tag = 'scratch operand']
  #allocation3 [shape = 'f32[4,8,1]{2,1,0:T(8,128)}', space=vmem, size = 0x4000, scoped, tag = 'scratch operand']
  #allocation4 [shape = 'f32[4,8,8]{2,1,0:T(8,128)}', space=vmem, size = 0x4000, scoped, tag = 'scratch operand']
  %s0 = inlined_call_operand.hbm [shape: f32[2,8,32], index: 0, kind: input, shape index: {}]
  %s1 = inlined_call_operand.vmem [shape: bf16[2,4,8,8], index: 1, kind: input, shape index: {}]
  %s2 = inlined_call_operand.hbm [shape: bf16[2,4,8,32], index: 2, kind: input, shape index: {}]
  %s3 = inlined_call_operand.hbm [shape: bf16[2,4,8,8], index: 3, kind: input, shape index: {}]
  %s4 = inlined_call_operand.hbm [shape: bf16[2,4,8,8], index: 4, kind: input, shape index: {}]
  %s5 = inlined_call_operand.vmem [shape: bf16[2,8,8,32], index: 5, kind: input, shape index: {}]
  %s6 = inlined_call_operand.hbm [shape: f32[2,8,8], index: 6, kind: input, shape index: {}]
  %s7 = inlined_call_operand.hbm [shape: bf16[4,8,32], index: 7, kind: input, shape index: {}]
  %s8 = inlined_call_operand.vmem [shape: f32[1,32], index: 8, kind: input, shape index: {}]
  %s9 = inlined_call_operand.vmem [shape: f32[1,32], index: 9, kind: input, shape index: {}]
  %s10 = inlined_call_operand.vmem [shape: f32[1,32], index: 10, kind: input, shape index: {}]
  %s11 = inlined_call_operand.hbm [shape: bf16[32,128], index: 11, kind: input, shape index: {}]
  %s12 = inlined_call_operand.vmem [shape: f32[1,128], index: 12, kind: input, shape index: {}]
  %s13 = inlined_call_operand.vmem [shape: bf16[128,32], index: 13, kind: input, shape index: {}]
  %s14 = inlined_call_operand.vmem [shape: f32[1,32], index: 14, kind: input, shape index: {}]
  %s15 = inlined_call_operand.hbm [shape: f32[2,8,32], index: 15, kind: output, shape index: {}]
  %s16 = sld [smem:[#allocation0]]
  $region129: #{tpu_custom_call.1} parent=0
    _
  %s18 = ssub.s32 1, %s16
  %s19 = scalar_select 0, %s18, %s16
  $region1: #{tpu_custom_call.1} parent=0
    #allocation5 [shape = 'u8[8192]{0}', space=vmem, size = 0x2000, scoped, tag = 'input window, operand 0']
    #allocation6 [shape = 's32[2]{0}', space=sflag, size = 0x8, scoped, tag = 'scoped memory for tpu_custom_call.1']
    #allocation7 [shape = 's32[2]{0}', space=sflag, size = 0x8, scoped, tag = 'scoped memory for tpu_custom_call.1']
    #allocation8 [shape = 'u8[16384]{0}', space=vmem, size = 0x4000, scoped, tag = 'input window, operand 2']
    #allocation9 [shape = 's32[2]{0}', space=sflag, size = 0x8, scoped, tag = 'scoped memory for tpu_custom_call.1']
    #allocation10 [shape = 'u8[16384]{0}', space=vmem, size = 0x4000, scoped, tag = 'input window, operand 3']
    #allocation11 [shape = 'u8[16384]{0}', space=vmem, size = 0x4000, scoped, tag = 'input window, operand 4']
    #allocation12 [shape = 's32[2]{0}', space=sflag, size = 0x8, scoped, tag = 'scoped memory for tpu_custom_call.1']
    #allocation13 [shape = 'u8[8192]{0}', space=vmem, size = 0x2000, scoped, tag = 'input window, operand 6']
    #allocation14 [shape = 'u8[8192]{0}', space=vmem, size = 0x2000, scoped, tag = 'input window, operand 7, single buffered']
    #allocation15 [shape = 's32[1]{0}', space=sflag, size = 0x4, scoped, tag = 'scoped memory for tpu_custom_call.1']
    #allocation16 [shape = 'u8[8192]{0}', space=vmem, size = 0x2000, scoped, tag = 'input window, operand 11, single buffered']
    #allocation17 [shape = 'u8[8192]{0}', space=vmem, size = 0x2000, scoped, tag = 'output window, operand 0']
    %20 = vsyncpa [#allocation6], 0
    %s21 = scalar_lea.sflag [#allocation6], 1
    %22 = vsyncpa %s21, 0
    %23 = vsyncpa [#allocation9], 0
    %s24 = scalar_lea.sflag [#allocation9], 1
    %25 = vsyncpa %s24, 0
    %26 = vsyncpa [#allocation12], 0
    %s27 = scalar_lea.sflag [#allocation12], 1
    %28 = vsyncpa %s27, 0
    %29 = vsyncpa [#allocation15], 0
    %30 = vsyncpa [#allocation7], 0
    %s31 = scalar_lea.sflag [#allocation7], 1
    %32 = vsyncpa %s31, 0
    loop: start=0, step=1, limit=4
    $region2: #{tpu_custom_call.1} parent=1 // loop_pre_header
      _
    $region3: #{tpu_custom_call.1} parent=1 // loop_header
      %s34 = sphi 0, %s38
      %p35 = scmp.ge.s32.totalorder %s34, 4
      %s41 = sphi 0, %s60
      %s42 = sphi 0, %s56
      %s43 = sphi 0, %s52
      %s44 = sphi 0, %s41
      %s45 = sphi 0, %s42
      %s46 = sphi 0, %s43
      %s47 = sphi 0, %s44
      %s48 = sphi 0, %s45
      %s49 = sphi 0, %s46
      %s65 = sphi 0, %s67
      %s68 = sphi 0, %s65
      %s69 = sphi 0, %s68
      %s85 = sphi 0, %s69
      %s93 = sphi 0, %s95
      %s96 = sphi 0, %s93
      %s97 = sphi 0, %s96
      %s113 = sphi 0, %s97
      %s121 = sphi 0, %s123
      %s124 = sphi 0, %s121
      %s125 = sphi 0, %s124
      %s141 = sphi 0, %s125
      %s149 = sphi 0, %s151
      %s152 = sphi 0, %s149
      %s153 = sphi 0, %s152
      %s169 = sphi 0, %s153
      %s177 = sphi 0, %s179
      %s180 = sphi 0, %s177
      %s181 = sphi 0, %s180
      %s197 = sphi 0, %s181
      %s207 = sphi 0, %s209
      %s210 = sphi 0, %s207
      %s211 = sphi 0, %s210
      %s227 = sphi 0, %s211
      %s237 = sphi 0, %s239
      %s240 = sphi 0, %s237
      %s241 = sphi 0, %s240
      %s257 = sphi 0, %s241
      %s261 = sphi 0, %s261
      %s263 = sphi 0, %s261
      %s264 = sphi 0, %s263
      %s278 = sphi 0, %s264
      %s282 = sphi 0, %s282
      %s284 = sphi 0, %s282
      %s285 = sphi 0, %s284
      %s299 = sphi 0, %s285
      %s303 = sphi 0, %s303
      %s305 = sphi 0, %s303
      %s306 = sphi 0, %s305
      %s320 = sphi 0, %s306
      %s324 = sphi 0, %s324
      %s326 = sphi 0, %s324
      %s327 = sphi 0, %s326
      %s341 = sphi 0, %s327
      %s345 = sphi 0, %s345
      %s347 = sphi 0, %s345
      %s348 = sphi 0, %s347
      %s362 = sphi 0, %s348
      %s366 = sphi 0, %s366
      %s368 = sphi 0, %s366
      %s369 = sphi 0, %s368
      %s383 = sphi 0, %s369
      %s387 = sphi 0, %s387
      %s389 = sphi 0, %s387
      %s390 = sphi 0, %s389
      %s404 = sphi 0, %s390
      %s408 = sphi 0, %s408
      %s410 = sphi 0, %s408
      %s411 = sphi 0, %s410
      %s425 = sphi 0, %s411
      %s433 = sphi 0, %s435
      %s436 = sphi 0, %s433
      %s437 = sphi 0, %s436
      %s453 = sphi 0, %s437
    $region4: #{tpu_custom_call.1} parent=1 // loop_header_branch
      %37 = sbr.rel (%p35) target = $region8
    $region5: #{tpu_custom_call.1} parent=1 // loop_body
      %s39 = ssub.s32 %s34, 1
      %s40 = ssub.s32 %s34, 2
      %s50 = sadd.s32 1, %s43
      %p51 = scmp.ge.s32.totalorder %s50, 1
      %s52 = scalar_select %p51, 0, %s50
      %s53 = sadd.s32 1, %s42
      %s54 = scalar_select %p51, %s53, %s42
      %p55 = scmp.ge.s32.totalorder %s54, 1
      %s56 = scalar_select %p55, 0, %s54
      %s57 = sadd.s32 1, %s41
      %s58 = scalar_select %p55, %s57, %s41
      %p59 = scmp.ge.s32.totalorder %s58, 2
      %s60 = scalar_select %p59, 0, %s58
      %s61 = ssub.s32 %s41, %s60
      %s62 = ssub.s32 %s42, %s56
      %s63 = sor.u32 %s61, %s62
      %p64 = scmp.eq.s32.totalorder %s63, 0
      %s66 = sadd.s32 %s65, 1
      %s67 = scalar_select %p64, %s65, %s66
      %p70 = pneg %p64
      %p71 = scmp.eq.s32.totalorder %s34, 1
      %p72 = por %p70, %p71
      %p73 = scmp.ne.s32.totalorder %s65, %s68
      %p74 = scmp.eq.s32.totalorder %s34, 0
      %p75 = por %p73, %p74
      %p76 = scmp.ne.s32.totalorder %s65, %s68
      %p77 = scmp.eq.s32.totalorder %s39, 1
      %p78 = por %p76, %p77
      %p79 = scmp.ne.s32.totalorder %s68, %s69
      %p80 = scmp.eq.s32.totalorder %s39, 0
      %p81 = por %p79, %p80
      %p82 = scmp.ne.s32.totalorder %s68, %s69
      %p83 = scmp.eq.s32.totalorder %s40, 1
      %p84 = por %p82, %p83
      %p86 = scmp.ne.s32.totalorder %s69, %s85
      %p87 = scmp.eq.s32.totalorder %s40, 0
      %p88 = por %p86, %p87
      %s89 = ssub.s32 %s41, %s60
      %s90 = ssub.s32 %s42, %s56
      %s91 = sor.u32 %s89, %s90
      %p92 = scmp.eq.s32.totalorder %s91, 0
      %s94 = sadd.s32 %s93, 1
      %s95 = scalar_select %p92, %s93, %s94
      %p98 = pneg %p92
      %p99 = scmp.eq.s32.totalorder %s34, 1
      %p100 = por %p98, %p99
      %p101 = scmp.ne.s32.totalorder %s93, %s96
      %p102 = scmp.eq.s32.totalorder %s34, 0
      %p103 = por %p101, %p102
      %p104 = scmp.ne.s32.totalorder %s93, %s96
      %p105 = scmp.eq.s32.totalorder %s39, 1
      %p106 = por %p104, %p105
      %p107 = scmp.ne.s32.totalorder %s96, %s97
      %p108 = scmp.eq.s32.totalorder %s39, 0
      %p109 = por %p107, %p108
      %p110 = scmp.ne.s32.totalorder %s96, %s97
      %p111 = scmp.eq.s32.totalorder %s40, 1
      %p112 = por %p110, %p111
      %p114 = scmp.ne.s32.totalorder %s97, %s113
      %p115 = scmp.eq.s32.totalorder %s40, 0
      %p116 = por %p114, %p115
      %s117 = ssub.s32 %s41, %s60
      %s118 = ssub.s32 %s42, %s56
      %s119 = sor.u32 %s117, %s118
      %p120 = scmp.eq.s32.totalorder %s119, 0
      %s122 = sadd.s32 %s121, 1
      %s123 = scalar_select %p120, %s121, %s122
      %p126 = pneg %p120
      %p127 = scmp.eq.s32.totalorder %s34, 1
      %p128 = por %p126, %p127
      %p129 = scmp.ne.s32.totalorder %s121, %s124
      %p130 = scmp.eq.s32.totalorder %s34, 0
      %p131 = por %p129, %p130
      %p132 = scmp.ne.s32.totalorder %s121, %s124
      %p133 = scmp.eq.s32.totalorder %s39, 1
      %p134 = por %p132, %p133
      %p135 = scmp.ne.s32.totalorder %s124, %s125
      %p136 = scmp.eq.s32.totalorder %s39, 0
      %p137 = por %p135, %p136
      %p138 = scmp.ne.s32.totalorder %s124, %s125
      %p139 = scmp.eq.s32.totalorder %s40, 1
      %p140 = por %p138, %p139
      %p142 = scmp.ne.s32.totalorder %s125, %s141
      %p143 = scmp.eq.s32.totalorder %s40, 0
      %p144 = por %p142, %p143
      %s145 = ssub.s32 %s41, %s60
      %s146 = ssub.s32 %s43, %s52
      %s147 = sor.u32 %s145, %s146
      %p148 = scmp.eq.s32.totalorder %s147, 0
      %s150 = sadd.s32 %s149, 1
      %s151 = scalar_select %p148, %s149, %s150
      %p154 = pneg %p148
      %p155 = scmp.eq.s32.totalorder %s34, 1
      %p156 = por %p154, %p155
      %p157 = scmp.ne.s32.totalorder %s149, %s152
      %p158 = scmp.eq.s32.totalorder %s34, 0
      %p159 = por %p157, %p158
      %p160 = scmp.ne.s32.totalorder %s149, %s152
      %p161 = scmp.eq.s32.totalorder %s39, 1
      %p162 = por %p160, %p161
      %p163 = scmp.ne.s32.totalorder %s152, %s153
      %p164 = scmp.eq.s32.totalorder %s39, 0
      %p165 = por %p163, %p164
      %p166 = scmp.ne.s32.totalorder %s152, %s153
      %p167 = scmp.eq.s32.totalorder %s40, 1
      %p168 = por %p166, %p167
      %p170 = scmp.ne.s32.totalorder %s153, %s169
      %p171 = scmp.eq.s32.totalorder %s40, 0
      %p172 = por %p170, %p171
      %s173 = ssub.s32 %s41, %s60
      %s174 = ssub.s32 %s43, %s52
      %s175 = sor.u32 %s173, %s174
      %p176 = scmp.eq.s32.totalorder %s175, 0
      %s178 = sadd.s32 %s177, 1
      %s179 = scalar_select %p176, %s177, %s178
      %p182 = pneg %p176
      %p183 = scmp.eq.s32.totalorder %s34, 1
      %p184 = por %p182, %p183
      %p185 = scmp.ne.s32.totalorder %s177, %s180
      %p186 = scmp.eq.s32.totalorder %s34, 0
      %p187 = por %p185, %p186
      %p188 = scmp.ne.s32.totalorder %s177, %s180
      %p189 = scmp.eq.s32.totalorder %s39, 1
      %p190 = por %p188, %p189
      %p191 = scmp.ne.s32.totalorder %s180, %s181
      %p192 = scmp.eq.s32.totalorder %s39, 0
      %p193 = por %p191, %p192
      %p194 = scmp.ne.s32.totalorder %s180, %s181
      %p195 = scmp.eq.s32.totalorder %s40, 1
      %p196 = por %p194, %p195
      %p198 = scmp.ne.s32.totalorder %s181, %s197
      %p199 = scmp.eq.s32.totalorder %s40, 0
      %p200 = por %p198, %p199
      %s201 = ssub.s32 %s41, %s60
      %s202 = ssub.s32 %s42, %s56
      %s203 = sor.u32 %s201, %s202
      %s204 = ssub.s32 %s43, %s52
      %s205 = sor.u32 %s203, %s204
      %p206 = scmp.eq.s32.totalorder %s205, 0
      %s208 = sadd.s32 %s207, 1
      %s209 = scalar_select %p206, %s207, %s208
      %p212 = pneg %p206
      %p213 = scmp.eq.s32.totalorder %s34, 1
      %p214 = por %p212, %p213
      %p215 = scmp.ne.s32.totalorder %s207, %s210
      %p216 = scmp.eq.s32.totalorder %s34, 0
      %p217 = por %p215, %p216
      %p218 = scmp.ne.s32.totalorder %s207, %s210
      %p219 = scmp.eq.s32.totalorder %s39, 1
      %p220 = por %p218, %p219
      %p221 = scmp.ne.s32.totalorder %s210, %s211
      %p222 = scmp.eq.s32.totalorder %s39, 0
      %p223 = por %p221, %p222
      %p224 = scmp.ne.s32.totalorder %s210, %s211
      %p225 = scmp.eq.s32.totalorder %s40, 1
      %p226 = por %p224, %p225
      %p228 = scmp.ne.s32.totalorder %s211, %s227
      %p229 = scmp.eq.s32.totalorder %s40, 0
      %p230 = por %p228, %p229
      %s231 = ssub.s32 %s41, %s60
      %s232 = ssub.s32 %s42, %s56
      %s233 = sor.u32 %s231, %s232
      %s234 = ssub.s32 %s43, %s52
      %s235 = sor.u32 %s233, %s234
      %p236 = scmp.eq.s32.totalorder %s235, 0
      %s238 = sadd.s32 %s237, 1
      %s239 = scalar_select %p236, %s237, %s238
      %p242 = pneg %p236
      %p243 = scmp.eq.s32.totalorder %s34, 1
      %p244 = por %p242, %p243
      %p245 = scmp.ne.s32.totalorder %s237, %s240
      %p246 = scmp.eq.s32.totalorder %s34, 0
      %p247 = por %p245, %p246
      %p248 = scmp.ne.s32.totalorder %s237, %s240
      %p249 = scmp.eq.s32.totalorder %s39, 1
      %p250 = por %p248, %p249
      %p251 = scmp.ne.s32.totalorder %s240, %s241
      %p252 = scmp.eq.s32.totalorder %s39, 0
      %p253 = por %p251, %p252
      %p254 = scmp.ne.s32.totalorder %s240, %s241
      %p255 = scmp.eq.s32.totalorder %s40, 1
      %p256 = por %p254, %p255
      %p258 = scmp.ne.s32.totalorder %s241, %s257
      %p259 = scmp.eq.s32.totalorder %s40, 0
      %p260 = por %p258, %p259
      %s262 = sadd.s32 %s261, 1
      %p265 = scmp.eq.s32.totalorder %s34, 1
      %p266 = scmp.ne.s32.totalorder %s261, %s263
      %p267 = scmp.eq.s32.totalorder %s34, 0
      %p268 = por %p266, %p267
      %p269 = scmp.ne.s32.totalorder %s261, %s263
      %p270 = scmp.eq.s32.totalorder %s39, 1
      %p271 = por %p269, %p270
      %p272 = scmp.ne.s32.totalorder %s263, %s264
      %p273 = scmp.eq.s32.totalorder %s39, 0
      %p274 = por %p272, %p273
      %p275 = scmp.ne.s32.totalorder %s263, %s264
      %p276 = scmp.eq.s32.totalorder %s40, 1
      %p277 = por %p275, %p276
      %p279 = scmp.ne.s32.totalorder %s264, %s278
      %p280 = scmp.eq.s32.totalorder %s40, 0
      %p281 = por %p279, %p280
      %s283 = sadd.s32 %s282, 1
      %p286 = scmp.eq.s32.totalorder %s34, 1
      %p287 = scmp.ne.s32.totalorder %s282, %s284
      %p288 = scmp.eq.s32.totalorder %s34, 0
      %p289 = por %p287, %p288
      %p290 = scmp.ne.s32.totalorder %s282, %s284
      %p291 = scmp.eq.s32.totalorder %s39, 1
      %p292 = por %p290, %p291
      %p293 = scmp.ne.s32.totalorder %s284, %s285
      %p294 = scmp.eq.s32.totalorder %s39, 0
      %p295 = por %p293, %p294
      %p296 = scmp.ne.s32.totalorder %s284, %s285
      %p297 = scmp.eq.s32.totalorder %s40, 1
      %p298 = por %p296, %p297
      %p300 = scmp.ne.s32.totalorder %s285, %s299
      %p301 = scmp.eq.s32.totalorder %s40, 0
      %p302 = por %p300, %p301
      %s304 = sadd.s32 %s303, 1
      %p307 = scmp.eq.s32.totalorder %s34, 1
      %p308 = scmp.ne.s32.totalorder %s303, %s305
      %p309 = scmp.eq.s32.totalorder %s34, 0
      %p310 = por %p308, %p309
      %p311 = scmp.ne.s32.totalorder %s303, %s305
      %p312 = scmp.eq.s32.totalorder %s39, 1
      %p313 = por %p311, %p312
      %p314 = scmp.ne.s32.totalorder %s305, %s306
      %p315 = scmp.eq.s32.totalorder %s39, 0
      %p316 = por %p314, %p315
      %p317 = scmp.ne.s32.totalorder %s305, %s306
      %p318 = scmp.eq.s32.totalorder %s40, 1
      %p319 = por %p317, %p318
      %p321 = scmp.ne.s32.totalorder %s306, %s320
      %p322 = scmp.eq.s32.totalorder %s40, 0
      %p323 = por %p321, %p322
      %s325 = sadd.s32 %s324, 1
      %p328 = scmp.eq.s32.totalorder %s34, 1
      %p329 = scmp.ne.s32.totalorder %s324, %s326
      %p330 = scmp.eq.s32.totalorder %s34, 0
      %p331 = por %p329, %p330
      %p332 = scmp.ne.s32.totalorder %s324, %s326
      %p333 = scmp.eq.s32.totalorder %s39, 1
      %p334 = por %p332, %p333
      %p335 = scmp.ne.s32.totalorder %s326, %s327
      %p336 = scmp.eq.s32.totalorder %s39, 0
      %p337 = por %p335, %p336
      %p338 = scmp.ne.s32.totalorder %s326, %s327
      %p339 = scmp.eq.s32.totalorder %s40, 1
      %p340 = por %p338, %p339
      %p342 = scmp.ne.s32.totalorder %s327, %s341
      %p343 = scmp.eq.s32.totalorder %s40, 0
      %p344 = por %p342, %p343
      %s346 = sadd.s32 %s345, 1
      %p349 = scmp.eq.s32.totalorder %s34, 1
      %p350 = scmp.ne.s32.totalorder %s345, %s347
      %p351 = scmp.eq.s32.totalorder %s34, 0
      %p352 = por %p350, %p351
      %p353 = scmp.ne.s32.totalorder %s345, %s347
      %p354 = scmp.eq.s32.totalorder %s39, 1
      %p355 = por %p353, %p354
      %p356 = scmp.ne.s32.totalorder %s347, %s348
      %p357 = scmp.eq.s32.totalorder %s39, 0
      %p358 = por %p356, %p357
      %p359 = scmp.ne.s32.totalorder %s347, %s348
      %p360 = scmp.eq.s32.totalorder %s40, 1
      %p361 = por %p359, %p360
      %p363 = scmp.ne.s32.totalorder %s348, %s362
      %p364 = scmp.eq.s32.totalorder %s40, 0
      %p365 = por %p363, %p364
      %s367 = sadd.s32 %s366, 1
      %p370 = scmp.eq.s32.totalorder %s34, 1
      %p371 = scmp.ne.s32.totalorder %s366, %s368
      %p372 = scmp.eq.s32.totalorder %s34, 0
      %p373 = por %p371, %p372
      %p374 = scmp.ne.s32.totalorder %s366, %s368
      %p375 = scmp.eq.s32.totalorder %s39, 1
      %p376 = por %p374, %p375
      %p377 = scmp.ne.s32.totalorder %s368, %s369
      %p378 = scmp.eq.s32.totalorder %s39, 0
      %p379 = por %p377, %p378
      %p380 = scmp.ne.s32.totalorder %s368, %s369
      %p381 = scmp.eq.s32.totalorder %s40, 1
      %p382 = por %p380, %p381
      %p384 = scmp.ne.s32.totalorder %s369, %s383
      %p385 = scmp.eq.s32.totalorder %s40, 0
      %p386 = por %p384, %p385
      %s388 = sadd.s32 %s387, 1
      %p391 = scmp.eq.s32.totalorder %s34, 1
      %p392 = scmp.ne.s32.totalorder %s387, %s389
      %p393 = scmp.eq.s32.totalorder %s34, 0
      %p394 = por %p392, %p393
      %p395 = scmp.ne.s32.totalorder %s387, %s389
      %p396 = scmp.eq.s32.totalorder %s39, 1
      %p397 = por %p395, %p396
      %p398 = scmp.ne.s32.totalorder %s389, %s390
      %p399 = scmp.eq.s32.totalorder %s39, 0
      %p400 = por %p398, %p399
      %p401 = scmp.ne.s32.totalorder %s389, %s390
      %p402 = scmp.eq.s32.totalorder %s40, 1
      %p403 = por %p401, %p402
      %p405 = scmp.ne.s32.totalorder %s390, %s404
      %p406 = scmp.eq.s32.totalorder %s40, 0
      %p407 = por %p405, %p406
      %s409 = sadd.s32 %s408, 1
      %p412 = scmp.eq.s32.totalorder %s34, 1
      %p413 = scmp.ne.s32.totalorder %s408, %s410
      %p414 = scmp.eq.s32.totalorder %s34, 0
      %p415 = por %p413, %p414
      %p416 = scmp.ne.s32.totalorder %s408, %s410
      %p417 = scmp.eq.s32.totalorder %s39, 1
      %p418 = por %p416, %p417
      %p419 = scmp.ne.s32.totalorder %s410, %s411
      %p420 = scmp.eq.s32.totalorder %s39, 0
      %p421 = por %p419, %p420
      %p422 = scmp.ne.s32.totalorder %s410, %s411
      %p423 = scmp.eq.s32.totalorder %s40, 1
      %p424 = por %p422, %p423
      %p426 = scmp.ne.s32.totalorder %s411, %s425
      %p427 = scmp.eq.s32.totalorder %s40, 0
      %p428 = por %p426, %p427
      %s429 = ssub.s32 %s41, %s60
      %s430 = ssub.s32 %s42, %s56
      %s431 = sor.u32 %s429, %s430
      %p432 = scmp.eq.s32.totalorder %s431, 0
      %s434 = sadd.s32 %s433, 1
      %s435 = scalar_select %p432, %s433, %s434
      %p438 = pneg %p432
      %p439 = scmp.eq.s32.totalorder %s34, 1
      %p440 = por %p438, %p439
      %p441 = scmp.ne.s32.totalorder %s433, %s436
      %p442 = scmp.eq.s32.totalorder %s34, 0
      %p443 = por %p441, %p442
      %p444 = scmp.ne.s32.totalorder %s433, %s436
      %p445 = scmp.eq.s32.totalorder %s39, 1
      %p446 = por %p444, %p445
      %p447 = scmp.ne.s32.totalorder %s436, %s437
      %p448 = scmp.eq.s32.totalorder %s39, 0
      %p449 = por %p447, %p448
      %p450 = scmp.ne.s32.totalorder %s436, %s437
      %p451 = scmp.eq.s32.totalorder %s40, 1
      %p452 = por %p450, %p451
      %p454 = scmp.ne.s32.totalorder %s437, %s453
      %p455 = scmp.eq.s32.totalorder %s40, 0
      %p456 = por %p454, %p455
      %p457 = scmp.le.s32.totalorder 1, %s34
      %p458 = scmp.lt.s32.totalorder %s34, 3
      %p459 = pnand %p457, %p458
      %p460 = pneg %p459
      // Predicated region
      $region9: #{tpu_custom_call.1} parent=5 // pred_check
        _
      $region10: #{tpu_custom_call.1} parent=5 // pred_check_branch
        %462 = sbr.rel (%p459) target = $region12
      $region11: #{tpu_custom_call.1} parent=5 // pred_region
        %s463 = ssub.s32 %s34, 1
        // Predicated region
        $region13: #{tpu_custom_call.1} parent=11 // pred_check
          %p464 = pneg %p274
        $region14: #{tpu_custom_call.1} parent=11 // pred_check_branch
          %466 = sbr.rel (%p464) target = $region16
        $region15: #{tpu_custom_call.1} parent=11 // pred_region
          %s468 = ssub.s32 256, 256
          %469 = vsyncadd [#allocation15], %s468
          %s470 = sshll.u32 [#allocation14], 4
          %s471 = int_to_ptr.vmem [resolvable:$true] %s470
          %476 = dma.hbm_to_vmem [thread:$0]  %s7, 256, %s471, [#allocation15], 64, 64, 4
        $region16: #{tpu_custom_call.1} parent=11 // pred_fallthru
          _
        // Predicated region
        $region17: #{tpu_custom_call.1} parent=11 // pred_check
          %p477 = pneg %p295
        $region18: #{tpu_custom_call.1} parent=11 // pred_check_branch
          %479 = sbr.rel (%p477) target = $region20
        $region19: #{tpu_custom_call.1} parent=11 // pred_region
          _
        $region20: #{tpu_custom_call.1} parent=11 // pred_fallthru
          _
        // Predicated region
        $region21: #{tpu_custom_call.1} parent=11 // pred_check
          %p480 = pneg %p316
        $region22: #{tpu_custom_call.1} parent=11 // pred_check_branch
          %482 = sbr.rel (%p480) target = $region24
        $region23: #{tpu_custom_call.1} parent=11 // pred_region
          _
        $region24: #{tpu_custom_call.1} parent=11 // pred_fallthru
          _
        // Predicated region
        $region25: #{tpu_custom_call.1} parent=11 // pred_check
          %p483 = pneg %p337
        $region26: #{tpu_custom_call.1} parent=11 // pred_check_branch
          %485 = sbr.rel (%p483) target = $region28
        $region27: #{tpu_custom_call.1} parent=11 // pred_region
          _
        $region28: #{tpu_custom_call.1} parent=11 // pred_fallthru
          _
        // Predicated region
        $region29: #{tpu_custom_call.1} parent=11 // pred_check
          %p486 = pneg %p358
        $region30: #{tpu_custom_call.1} parent=11 // pred_check_branch
          %488 = sbr.rel (%p486) target = $region32
        $region31: #{tpu_custom_call.1} parent=11 // pred_region
          %s490 = ssub.s32 256, 256
          %491 = vsyncadd [#allocation15], %s490
          %s492 = sshll.u32 [#allocation16], 4
          %s493 = int_to_ptr.vmem [resolvable:$true] %s492
          %498 = dma.hbm_to_vmem [thread:$0]  %s11, 256, %s493, [#allocation15], 64, 64, 4
        $region32: #{tpu_custom_call.1} parent=11 // pred_fallthru
          _
        // Predicated region
        $region33: #{tpu_custom_call.1} parent=11 // pred_check
          %p499 = pneg %p379
        $region34: #{tpu_custom_call.1} parent=11 // pred_check_branch
          %501 = sbr.rel (%p499) target = $region36
        $region35: #{tpu_custom_call.1} parent=11 // pred_region
          _
        $region36: #{tpu_custom_call.1} parent=11 // pred_fallthru
          _
        // Predicated region
        $region37: #{tpu_custom_call.1} parent=11 // pred_check
          %p502 = pneg %p400
        $region38: #{tpu_custom_call.1} parent=11 // pred_check_branch
          %504 = sbr.rel (%p502) target = $region40
        $region39: #{tpu_custom_call.1} parent=11 // pred_region
          _
        $region40: #{tpu_custom_call.1} parent=11 // pred_fallthru
          _
        // Predicated region
        $region41: #{tpu_custom_call.1} parent=11 // pred_check
          %p505 = pneg %p421
        $region42: #{tpu_custom_call.1} parent=11 // pred_check_branch
          %507 = sbr.rel (%p505) target = $region44
        $region43: #{tpu_custom_call.1} parent=11 // pred_region
          _
        $region44: #{tpu_custom_call.1} parent=11 // pred_fallthru
          _
      $region12: #{tpu_custom_call.1} parent=5 // pred_fallthru
        _
      %p508 = scmp.lt.s32.totalorder %s34, 2
      // Predicated region
      $region45: #{tpu_custom_call.1} parent=5 // pred_check
        %p509 = pneg %p508
      $region46: #{tpu_custom_call.1} parent=5 // pred_check_branch
        %511 = sbr.rel (%p509) target = $region48
      $region47: #{tpu_custom_call.1} parent=5 // pred_region
        // Predicated region
        $region49: #{tpu_custom_call.1} parent=47 // pred_check
          %p512 = pneg %p75
        $region50: #{tpu_custom_call.1} parent=47 // pred_check_branch
          %514 = sbr.rel (%p512) target = $region52
        $region51: #{tpu_custom_call.1} parent=47 // pred_region
          %s515 = sand.u32 %s65, 1
          %s516 = scalar_lea.sflag [#allocation6], %s515
          %s517 = sand.u32 %s65, 1
          %s518 = smul.addr %s517, 8
          %s519 = scalar_lea.vmem [#allocation5], %s518
          %s521 = ssub.s32 128, 128
          %522 = vsyncadd %s516, %s521
          %s523 = sadd.s32 %s42, %s41
          %s524 = smul.addr %s523, 128
          %s525 = scalar_lea.hbm %s0, %s524
          %s527 = sshll.u32 %s519, 4
          %s528 = int_to_ptr.vmem [resolvable:$true] %s527
          %530 = dma.hbm_to_vmem [thread:$0]  %s525, 128, %s528, %s516
        $region52: #{tpu_custom_call.1} parent=47 // pred_fallthru
          _
        // Predicated region
        $region53: #{tpu_custom_call.1} parent=47 // pred_check
          %p531 = pneg %p103
        $region54: #{tpu_custom_call.1} parent=47 // pred_check_branch
          %533 = sbr.rel (%p531) target = $region56
        $region55: #{tpu_custom_call.1} parent=47 // pred_region
          %p534 = scmp.lt.s32.totalorder %s41, 1
          %s535 = scalar_select %p534, %s41, 1
          %p536 = scmp.lt.s32.totalorder %s42, 0
          %s537 = scalar_select %p536, %s42, 0
          %s538 = smul.addr %s535, 4
          %s539 = sadd.s32 %s537, %s538
          %s540 = smul.addr %s539, 4
          %s541 = scalar_lea.vmem %s1, %s540
        $region56: #{tpu_custom_call.1} parent=47 // pred_fallthru
          _
        // Predicated region
        $region57: #{tpu_custom_call.1} parent=47 // pred_check
          %p542 = pneg %p131
        $region58: #{tpu_custom_call.1} parent=47 // pred_check_branch
          %544 = sbr.rel (%p542) target = $region60
        $region59: #{tpu_custom_call.1} parent=47 // pred_region
          %s545 = sand.u32 %s34, 1
          %s546 = scalar_lea.sflag [#allocation9], %s545
          %s547 = sand.u32 %s121, 1
          %s548 = smul.addr %s547, 16
          %s549 = scalar_lea.vmem [#allocation8], %s548
          %s551 = ssub.s32 256, 256
          %552 = vsyncadd %s546, %s551
          %s553 = smul.addr %s41, 4
          %s554 = sadd.s32 %s42, %s553
          %s555 = smul.addr %s554, 64
          %s556 = scalar_lea.hbm %s2, %s555
          %s557 = sshll.u32 %s549, 4
          %s558 = int_to_ptr.vmem [resolvable:$true] %s557
          %563 = dma.hbm_to_vmem [thread:$0]  %s556, 256, %s558, %s546, 64, 64, 4
        $region60: #{tpu_custom_call.1} parent=47 // pred_fallthru
          _
        // Predicated region
        $region61: #{tpu_custom_call.1} parent=47 // pred_check
          %p564 = pneg %p159
        $region62: #{tpu_custom_call.1} parent=47 // pred_check_branch
          %566 = sbr.rel (%p564) target = $region64
        $region63: #{tpu_custom_call.1} parent=47 // pred_region
          %s567 = sand.u32 %s34, 1
          %s568 = scalar_lea.sflag [#allocation9], %s567
          %s569 = sand.u32 %s149, 1
          %s570 = smul.addr %s569, 16
          %s571 = scalar_lea.vmem [#allocation10], %s570
          %s573 = ssub.s32 256, 256
          %574 = vsyncadd %s568, %s573
          %s575 = smul.addr %s41, 4
          %s576 = sadd.s32 %s43, %s575
          %s577 = smul.addr %s576, 64
          %s578 = scalar_lea.hbm %s3, %s577
          %s579 = sshll.u32 %s571, 4
          %s580 = int_to_ptr.vmem [resolvable:$true] %s579
          %585 = dma.hbm_to_vmem [thread:$0]  %s578, 256, %s580, %s568, 64, 64, 4
        $region64: #{tpu_custom_call.1} parent=47 // pred_fallthru
          _
        // Predicated region
        $region65: #{tpu_custom_call.1} parent=47 // pred_check
          %p586 = pneg %p187
        $region66: #{tpu_custom_call.1} parent=47 // pred_check_branch
          %588 = sbr.rel (%p586) target = $region68
        $region67: #{tpu_custom_call.1} parent=47 // pred_region
          %s589 = sand.u32 %s34, 1
          %s590 = scalar_lea.sflag [#allocation12], %s589
          %s591 = sand.u32 %s177, 1
          %s592 = smul.addr %s591, 16
          %s593 = scalar_lea.vmem [#allocation11], %s592
          %s595 = ssub.s32 256, 256
          %596 = vsyncadd %s590, %s595
          %s597 = smul.addr %s41, 4
          %s598 = sadd.s32 %s43, %s597
          %s599 = smul.addr %s598, 64
          %s600 = scalar_lea.hbm %s4, %s599
          %s601 = sshll.u32 %s593, 4
          %s602 = int_to_ptr.vmem [resolvable:$true] %s601
          %607 = dma.hbm_to_vmem [thread:$0]  %s600, 256, %s602, %s590, 64, 64, 4
        $region68: #{tpu_custom_call.1} parent=47 // pred_fallthru
          _
        // Predicated region
        $region69: #{tpu_custom_call.1} parent=47 // pred_check
          %p608 = pneg %p217
        $region70: #{tpu_custom_call.1} parent=47 // pred_check_branch
          %610 = sbr.rel (%p608) target = $region72
        $region71: #{tpu_custom_call.1} parent=47 // pred_region
          %s611 = smul.u32 8, %s42
          %p612 = scmp.lt.s32.totalorder %s41, 1
          %s613 = scalar_select %p612, %s41, 1
          %p614 = scmp.lt.s32.totalorder %s611, 7
          %s615 = scalar_select %p614, %s611, 7
          %p616 = scmp.lt.s32.totalorder %s43, 0
          %s617 = scalar_select %p616, %s43, 0
          %s618 = sadd.s32 %s617, %s615
          %s619 = smul.addr %s613, 8
          %s620 = sadd.s32 %s618, %s619
          %s621 = smul.addr %s620, 4
          %s622 = scalar_lea.vmem %s5, %s621
          %s623 = smul.u32 8, %s42
        $region72: #{tpu_custom_call.1} parent=47 // pred_fallthru
          _
        // Predicated region
        $region73: #{tpu_custom_call.1} parent=47 // pred_check
          %p624 = pneg %p247
        $region74: #{tpu_custom_call.1} parent=47 // pred_check_branch
          %626 = sbr.rel (%p624) target = $region76
        $region75: #{tpu_custom_call.1} parent=47 // pred_region
          %s627 = sand.u32 %s34, 1
          %s628 = scalar_lea.sflag [#allocation12], %s627
          %s629 = sand.u32 %s237, 1
          %s630 = smul.addr %s629, 8
          %s631 = scalar_lea.vmem [#allocation13], %s630
          %s633 = ssub.s32 128, 128
          %634 = vsyncadd %s628, %s633
          %s635 = sadd.s32 %s43, %s42
          %s636 = sadd.s32 %s635, %s41
          %s637 = smul.addr %s636, 128
          %s638 = scalar_lea.hbm %s6, %s637
          %s640 = sshll.u32 %s631, 4
          %s641 = int_to_ptr.vmem [resolvable:$true] %s640
          %643 = dma.hbm_to_vmem [thread:$0]  %s638, 128, %s641, %s628
        $region76: #{tpu_custom_call.1} parent=47 // pred_fallthru
          _
      $region48: #{tpu_custom_call.1} parent=5 // pred_fallthru
        _
      %p644 = scmp.le.s32.totalorder 1, %s34
      %p645 = scmp.lt.s32.totalorder %s34, 3
      %p646 = pnand %p644, %p645
      %p647 = pneg %p646
      // Predicated region
      $region77: #{tpu_custom_call.1} parent=5 // pred_check
        _
      $region78: #{tpu_custom_call.1} parent=5 // pred_check_branch
        %649 = sbr.rel (%p646) target = $region80
      $region79: #{tpu_custom_call.1} parent=5 // pred_region
        %s650 = ssub.s32 %s34, 1
        %s651 = sand.u32 %s68, 1
        %s652 = scalar_lea.sflag [#allocation6], %s651
        %s653 = sand.u32 %s68, 1
        %s654 = smul.addr %s653, 8
        %s655 = scalar_lea.vmem [#allocation5], %s654
        // Predicated region
        $region81: #{tpu_custom_call.1} parent=79 // pred_check
          %p656 = pneg %p81
        $region82: #{tpu_custom_call.1} parent=79 // pred_check_branch
          %658 = sbr.rel (%p656) target = $region84
        $region83: #{tpu_custom_call.1} parent=79 // pred_region
          %659 = dma.done %s652, 128
        $region84: #{tpu_custom_call.1} parent=79 // pred_fallthru
          _
        %s660 = sand.u32 %s39, 1
        %s661 = scalar_lea.sflag [#allocation9], %s660
        %s662 = sand.u32 %s124, 1
        %s663 = smul.addr %s662, 16
        %s664 = scalar_lea.vmem [#allocation8], %s663
        // Predicated region
        $region85: #{tpu_custom_call.1} parent=79 // pred_check
          %p665 = pneg %p137
        $region86: #{tpu_custom_call.1} parent=79 // pred_check_branch
          %667 = sbr.rel (%p665) target = $region88
        $region87: #{tpu_custom_call.1} parent=79 // pred_region
          %668 = dma.done %s661, 256
        $region88: #{tpu_custom_call.1} parent=79 // pred_fallthru
          _
        %s669 = sand.u32 %s39, 1
        %s670 = scalar_lea.sflag [#allocation9], %s669
        %s671 = sand.u32 %s152, 1
        %s672 = smul.addr %s671, 16
        %s673 = scalar_lea.vmem [#allocation10], %s672
        // Predicated region
        $region89: #{tpu_custom_call.1} parent=79 // pred_check
          %p674 = pneg %p165
        $region90: #{tpu_custom_call.1} parent=79 // pred_check_branch
          %676 = sbr.rel (%p674) target = $region92
        $region91: #{tpu_custom_call.1} parent=79 // pred_region
          %677 = dma.done %s670, 256
        $region92: #{tpu_custom_call.1} parent=79 // pred_fallthru
          _
        %s678 = sand.u32 %s39, 1
        %s679 = scalar_lea.sflag [#allocation12], %s678
        %s680 = sand.u32 %s180, 1
        %s681 = smul.addr %s680, 16
        %s682 = scalar_lea.vmem [#allocation11], %s681
        // Predicated region
        $region93: #{tpu_custom_call.1} parent=79 // pred_check
          %p683 = pneg %p193
        $region94: #{tpu_custom_call.1} parent=79 // pred_check_branch
          %685 = sbr.rel (%p683) target = $region96
        $region95: #{tpu_custom_call.1} parent=79 // pred_region
          %686 = dma.done %s679, 256
        $region96: #{tpu_custom_call.1} parent=79 // pred_fallthru
          _
        %s687 = sand.u32 %s39, 1
        %s688 = scalar_lea.sflag [#allocation12], %s687
        %s689 = sand.u32 %s240, 1
        %s690 = smul.addr %s689, 8
        %s691 = scalar_lea.vmem [#allocation13], %s690
        // Predicated region
        $region97: #{tpu_custom_call.1} parent=79 // pred_check
          %p692 = pneg %p253
        $region98: #{tpu_custom_call.1} parent=79 // pred_check_branch
          %694 = sbr.rel (%p692) target = $region100
        $region99: #{tpu_custom_call.1} parent=79 // pred_region
          %695 = dma.done %s688, 128
        $region100: #{tpu_custom_call.1} parent=79 // pred_fallthru
          _
        // Predicated region
        $region101: #{tpu_custom_call.1} parent=79 // pred_check
          %p696 = pneg %p274
        $region102: #{tpu_custom_call.1} parent=79 // pred_check_branch
          %698 = sbr.rel (%p696) target = $region104
        $region103: #{tpu_custom_call.1} parent=79 // pred_region
          %699 = dma.done [#allocation15], 256
        $region104: #{tpu_custom_call.1} parent=79 // pred_fallthru
          _
        // Predicated region
        $region105: #{tpu_custom_call.1} parent=79 // pred_check
          %p700 = pneg %p358
        $region106: #{tpu_custom_call.1} parent=79 // pred_check_branch
          %702 = sbr.rel (%p700) target = $region108
        $region107: #{tpu_custom_call.1} parent=79 // pred_region
          %703 = dma.done [#allocation15], 256
        $region108: #{tpu_custom_call.1} parent=79 // pred_fallthru
          _
        %s704 = sand.u32 %s68, 1
        %s705 = scalar_lea.sflag [#allocation6], %s704
        %s706 = sand.u32 %s68, 1
        %s707 = smul.addr %s706, 8
        %s708 = scalar_lea.vmem [#allocation5], %s707
        %p709 = pneg %p81
        %p710 = pneg %p78
        %p711 = scmp.lt.s32.totalorder %s44, 1
        %s712 = scalar_select %p711, %s44, 1
        %p713 = scmp.lt.s32.totalorder %s45, 0
        %s714 = scalar_select %p713, %s45, 0
        %s715 = smul.addr %s712, 4
        %s716 = sadd.s32 %s714, %s715
        %s717 = smul.addr %s716, 4
        %s718 = scalar_lea.vmem %s1, %s717
        %p719 = pneg %p109
        %p720 = pneg %p106
        %s721 = sand.u32 %s39, 1
        %s722 = scalar_lea.sflag [#allocation9], %s721
        %s723 = sand.u32 %s124, 1
        %s724 = smul.addr %s723, 16
        %s725 = scalar_lea.vmem [#allocation8], %s724
        %p726 = pneg %p137
        %p727 = pneg %p134
        %s728 = sand.u32 %s39, 1
        %s729 = scalar_lea.sflag [#allocation9], %s728
        %s730 = sand.u32 %s152, 1
        %s731 = smul.addr %s730, 16
        %s732 = scalar_lea.vmem [#allocation10], %s731
        %p733 = pneg %p165
        %p734 = pneg %p162
        %s735 = sand.u32 %s39, 1
        %s736 = scalar_lea.sflag [#allocation12], %s735
        %s737 = sand.u32 %s180, 1
        %s738 = smul.addr %s737, 16
        %s739 = scalar_lea.vmem [#allocation11], %s738
        %p740 = pneg %p193
        %p741 = pneg %p190
        %s742 = smul.u32 8, %s45
        %p743 = scmp.lt.s32.totalorder %s44, 1
        %s744 = scalar_select %p743, %s44, 1
        %p745 = scmp.lt.s32.totalorder %s742, 7
        %s746 = scalar_select %p745, %s742, 7
        %p747 = scmp.lt.s32.totalorder %s46, 0
        %s748 = scalar_select %p747, %s46, 0
        %s749 = sadd.s32 %s748, %s746
        %s750 = smul.addr %s744, 8
        %s751 = sadd.s32 %s749, %s750
        %s752 = smul.addr %s751, 4
        %s753 = scalar_lea.vmem %s5, %s752
        %p754 = pneg %p223
        %p755 = pneg %p220
        %s756 = sand.u32 %s39, 1
        %s757 = scalar_lea.sflag [#allocation12], %s756
        %s758 = sand.u32 %s240, 1
        %s759 = smul.addr %s758, 8
        %s760 = scalar_lea.vmem [#allocation13], %s759
        %p761 = pneg %p253
        %p762 = pneg %p250
        %p763 = pneg %p274
        %p764 = pneg %p271
        %p765 = pneg %p295
        %p766 = pneg %p292
        %p767 = pneg %p316
        %p768 = pneg %p313
        %p769 = pneg %p337
        %p770 = pneg %p334
        %p771 = pneg %p358
        %p772 = pneg %p355
        %p773 = pneg %p379
        %p774 = pneg %p376
        %p775 = pneg %p400
        %p776 = pneg %p397
        %p777 = pneg %p421
        %p778 = pneg %p418
        %p779 = pneg %p449
        %p780 = pneg %p446
        %s781 = sand.u32 %s436, 1
        %s782 = scalar_lea.sflag [#allocation7], %s781
        %s783 = sand.u32 %s436, 1
        %s784 = smul.addr %s783, 8
        %s785 = scalar_lea.vmem [#allocation17], %s784
        %p786 = scmp.lt.s32.totalorder %s44, 1
        %s787 = scalar_select %p786, %s44, 1
        %p788 = scmp.lt.s32.totalorder %s45, 0
        %s789 = scalar_select %p788, %s45, 0
        %s790 = smul.addr %s787, 4
        %s791 = sadd.s32 %s789, %s790
        %s792 = smul.addr %s791, 4
        %s793 = scalar_lea.vmem %s1, %s792
        %s794 = smul.u32 8, %s45
        %p795 = scmp.lt.s32.totalorder %s44, 1
        %s796 = scalar_select %p795, %s44, 1
        %p797 = scmp.lt.s32.totalorder %s794, 7
        %s798 = scalar_select %p797, %s794, 7
        %p799 = scmp.lt.s32.totalorder %s46, 0
        %s800 = scalar_select %p799, %s46, 0
        %s801 = sadd.s32 %s800, %s798
        %s802 = smul.addr %s796, 8
        %s803 = sadd.s32 %s801, %s802
        %s804 = smul.addr %s803, 4
        %s805 = scalar_lea.vmem %s5, %s804
        %s806 = smul.u32 8, %s45
        %p808 = scmp.eq.s32.totalorder %s46, 0
        // Predicated region
        $region109: #{tpu_custom_call.1} parent=79 // pred_check
          %p809 = pneg %p808
        $region110: #{tpu_custom_call.1} parent=79 // pred_check_branch
          %811 = sbr.rel (%p809) target = $region112
        $region111: #{tpu_custom_call.1} parent=79 // pred_region
          %vm812 = vcmask 7168
          %813 = vst.msk [vmem:[#allocation2] sm:$0xff] %vm812, -inf
          %814 = vst.msk [vmem:[#allocation2 + $0x8] sm:$0xff] %vm812, -inf
          %815 = vst.msk [vmem:[#allocation2 + $0x10] sm:$0xff] %vm812, -inf
          %816 = vst.msk [vmem:[#allocation2 + $0x18] sm:$0xff] %vm812, -inf
          %817 = vst.msk [vmem:[#allocation3] sm:$0xff] %vm812, 0.0
          %818 = vst.msk [vmem:[#allocation3 + $0x8] sm:$0xff] %vm812, 0.0
          %819 = vst.msk [vmem:[#allocation3 + $0x10] sm:$0xff] %vm812, 0.0
          %820 = vst.msk [vmem:[#allocation3 + $0x18] sm:$0xff] %vm812, 0.0
          %vm821 = vcmask 64512
          %822 = vst.msk [vmem:[#allocation4] sm:$0xff] %vm821, 0.0
          %823 = vst.msk [vmem:[#allocation4 + $0x8] sm:$0xff] %vm821, 0.0
          %824 = vst.msk [vmem:[#allocation4 + $0x10] sm:$0xff] %vm821, 0.0
          %825 = vst.msk [vmem:[#allocation4 + $0x18] sm:$0xff] %vm821, 0.0
        $region112: #{tpu_custom_call.1} parent=79 // pred_fallthru
          _
        %v826 = vld [vmem:[%s793] sm:$0xf]
        %v827 = vld [vmem:[%s793 + $0x4] sm:$0xf]
        %v828 = vld [vmem:[%s793 + $0x8] sm:$0xf]
        %v829 = vld [vmem:[%s793 + $0xc] sm:$0xf]
        %v830 = vld [vmem:[%s673] sm:$0xf]
        %v831 = vld [vmem:[%s673 + $0x4] sm:$0xf]
        %v832 = vld [vmem:[%s673 + $0x8] sm:$0xf]
        %v833 = vld [vmem:[%s673 + $0xc] sm:$0xf]
        %v834 = vld [vmem:[%s664] sm:$0xf]
        %v835 = vld [vmem:[%s664 + $0x4] sm:$0xf]
        %v836 = vld [vmem:[%s664 + $0x8] sm:$0xf]
        %v837 = vld [vmem:[%s664 + $0xc] sm:$0xf]
        %v838 = vld [vmem:[%s805] sm:$0xf]
        %v839 = vld [vmem:[%s805 + $0x4] sm:$0xf]
        %v840 = vld [vmem:[%s805 + $0x8] sm:$0xf]
        %v841 = vld [vmem:[%s805 + $0xc] sm:$0xf]
        %v842 = vld [vmem:[%s805 + $0x10] sm:$0xf]
        %v843 = vld [vmem:[%s805 + $0x14] sm:$0xf]
        %v844 = vld [vmem:[%s805 + $0x18] sm:$0xf]
        %v845 = vld [vmem:[%s805 + $0x1c] sm:$0xf]
        %846 = vxpose.xlu0.c.b16.start [1/8] %v834, 128
        %847 = vxpose.xlu0.c.b16.cont [2/8] 0, 128
        %848 = vxpose.xlu0.c.b16.cont [3/8] 0, 128
        %849 = vxpose.xlu0.c.b16.cont [4/8] 0, 128
        %850 = vxpose.xlu0.c.b16.cont [5/8] 0, 128
        %851 = vxpose.xlu0.c.b16.cont [6/8] 0, 128
        %852 = vxpose.xlu0.c.b16.cont [7/8] 0, 128
        %853 = vxpose.xlu0.c.b16.end [8/8] 0, 128
        %v854 = vpop.trf.xlu0
        %v855 = vpop.trf.xlu0
        %v856 = vpop.trf.xlu0
        %v857 = vpop.trf.xlu0
        %v858 = vpop.trf.xlu0
        %v859 = vpop.trf.xlu0
        %v860 = vpop.trf.xlu0
        %v861 = vpop.trf.xlu0
        %862 = vxpose.xlu0.c.b16.start [1/8] %v835, 128
        %863 = vxpose.xlu0.c.b16.cont [2/8] 0, 128
        %864 = vxpose.xlu0.c.b16.cont [3/8] 0, 128
        %865 = vxpose.xlu0.c.b16.cont [4/8] 0, 128
        %866 = vxpose.xlu0.c.b16.cont [5/8] 0, 128
        %867 = vxpose.xlu0.c.b16.cont [6/8] 0, 128
        %868 = vxpose.xlu0.c.b16.cont [7/8] 0, 128
        %869 = vxpose.xlu0.c.b16.end [8/8] 0, 128
        %v870 = vpop.trf.xlu0
        %v871 = vpop.trf.xlu0
        %v872 = vpop.trf.xlu0
        %v873 = vpop.trf.xlu0
        %v874 = vpop.trf.xlu0
        %v875 = vpop.trf.xlu0
        %v876 = vpop.trf.xlu0
        %v877 = vpop.trf.xlu0
        %878 = vxpose.xlu0.c.b16.start [1/8] %v836, 128
        %879 = vxpose.xlu0.c.b16.cont [2/8] 0, 128
        %880 = vxpose.xlu0.c.b16.cont [3/8] 0, 128
        %881 = vxpose.xlu0.c.b16.cont [4/8] 0, 128
        %882 = vxpose.xlu0.c.b16.cont [5/8] 0, 128
        %883 = vxpose.xlu0.c.b16.cont [6/8] 0, 128
        %884 = vxpose.xlu0.c.b16.cont [7/8] 0, 128
        %885 = vxpose.xlu0.c.b16.end [8/8] 0, 128
        %v886 = vpop.trf.xlu0
        %v887 = vpop.trf.xlu0
        %v888 = vpop.trf.xlu0
        %v889 = vpop.trf.xlu0
        %v890 = vpop.trf.xlu0
        %v891 = vpop.trf.xlu0
        %v892 = vpop.trf.xlu0
        %v893 = vpop.trf.xlu0
        %894 = vxpose.xlu0.c.b16.start [1/8] %v837, 128
        %895 = vxpose.xlu0.c.b16.cont [2/8] 0, 128
        %896 = vxpose.xlu0.c.b16.cont [3/8] 0, 128
        %897 = vxpose.xlu0.c.b16.cont [4/8] 0, 128
        %898 = vxpose.xlu0.c.b16.cont [5/8] 0, 128
        %899 = vxpose.xlu0.c.b16.cont [6/8] 0, 128
        %900 = vxpose.xlu0.c.b16.cont [7/8] 0, 128
        %901 = vxpose.xlu0.c.b16.end [8/8] 0, 128
        %v902 = vpop.trf.xlu0
        %v903 = vpop.trf.xlu0
        %v904 = vpop.trf.xlu0
        %v905 = vpop.trf.xlu0
        %v906 = vpop.trf.xlu0
        %v907 = vpop.trf.xlu0
        %v908 = vpop.trf.xlu0
        %v909 = vpop.trf.xlu0
        %v912 = vpack.i.b16 %v870, %v854
        %v914 = vshrl.u32 %v854, 16
        %v915 = vshrl.u32 %v870, 16
        %v916 = vpack.i.b16 %v915, %v914
        %v920 = vpack.i.b16 %v902, %v886
        %v922 = vshrl.u32 %v886, 16
        %v923 = vshrl.u32 %v902, 16
        %v924 = vpack.i.b16 %v923, %v922
        %v927 = vpack.i.b16 0, 0
        %v929 = vshrl.u32 0, 16
        %v930 = vpack.i.b16 %v929, %v929
        %v934 = vpack.i.b16 %v871, %v855
        %v936 = vshrl.u32 %v855, 16
        %v937 = vshrl.u32 %v871, 16
        %v938 = vpack.i.b16 %v937, %v936
        %v942 = vpack.i.b16 %v903, %v887
        %v944 = vshrl.u32 %v887, 16
        %v945 = vshrl.u32 %v903, 16
        %v946 = vpack.i.b16 %v945, %v944
        %v948 = vcombine.high %v912, %v927
        %v950 = vunpack.c.l.s4 1983009808
        %v951 = vunpack.c.0.s8 %v950
        %v952 = vlaneseq
        %v953 = vshrl.u32 %v952, 7
        %v954 = vsub.s32 %v951, %v953
        %v955 = vrot.slane %v912, %v954
        %v957 = vunpack.c.l.s4 1983009808
        %v958 = vunpack.c.0.s8 %v957
        %v959 = vlaneseq
        %v960 = vshrl.u32 %v959, 7
        %v961 = vsub.s32 %v958, %v960
        %v962 = vrot.slane %v948, %v961
        %v963 = vcombine.high %v920, %v927
        %v965 = vunpack.c.l.s4 1983009808
        %v966 = vunpack.c.0.s8 %v965
        %v967 = vlaneseq
        %v968 = vshrl.u32 %v967, 7
        %v969 = vsub.s32 %v966, %v968
        %v970 = vrot.slane %v920, %v969
        %v972 = vunpack.c.l.s4 1983009808
        %v973 = vunpack.c.0.s8 %v972
        %v974 = vlaneseq
        %v975 = vshrl.u32 %v974, 7
        %v976 = vsub.s32 %v973, %v975
        %v977 = vrot.slane %v963, %v976
        %v978 = vcombine.low %v955, %v970
        %v979 = vcombine.high %v955, %v970
        %v981 = vunpack.c.l.s4 1934713408
        %v982 = vunpack.c.0.s8 %v981
        %v983 = vlaneseq
        %v984 = vshrl.u32 %v983, 7
        %v985 = vsub.s32 %v982, %v984
        %v986 = vrot.slane %v978, %v985
        %v988 = vunpack.c.l.s4 1934713408
        %v989 = vunpack.c.0.s8 %v988
        %v990 = vlaneseq
        %v991 = vshrl.u32 %v990, 7
        %v992 = vsub.s32 %v989, %v991
        %v993 = vrot.slane %v979, %v992
        %v994 = vcombine.low %v962, %v977
        %v995 = vcombine.high %v962, %v977
        %v997 = vunpack.c.l.s4 1934713408
        %v998 = vunpack.c.0.s8 %v997
        %v999 = vlaneseq
        %v1000 = vshrl.u32 %v999, 7
        %v1001 = vsub.s32 %v998, %v1000
        %v1002 = vrot.slane %v994, %v1001
        %v1004 = vunpack.c.l.s4 1934713408
        %v1005 = vunpack.c.0.s8 %v1004
        %v1006 = vlaneseq
        %v1007 = vshrl.u32 %v1006, 7
        %v1008 = vsub.s32 %v1005, %v1007
        %v1009 = vrot.slane %v995, %v1008
        %v1010 = vcombine.high %v986, 0
        %v1011 = vcombine.high %v993, 0
        %v1012 = vcombine.high %v1002, 0
        %v1013 = vcombine.high %v1009, 0
        %v1014 = vcombine.high %v916, %v930
        %v1016 = vunpack.c.l.s4 1983009808
        %v1017 = vunpack.c.0.s8 %v1016
        %v1018 = vlaneseq
        %v1019 = vshrl.u32 %v1018, 7
        %v1020 = vsub.s32 %v1017, %v1019
        %v1021 = vrot.slane %v916, %v1020
        %v1023 = vunpack.c.l.s4 1983009808
        %v1024 = vunpack.c.0.s8 %v1023
        %v1025 = vlaneseq
        %v1026 = vshrl.u32 %v1025, 7
        %v1027 = vsub.s32 %v1024, %v1026
        %v1028 = vrot.slane %v1014, %v1027
        %v1029 = vcombine.high %v924, %v930
        %v1031 = vunpack.c.l.s4 1983009808
        %v1032 = vunpack.c.0.s8 %v1031
        %v1033 = vlaneseq
        %v1034 = vshrl.u32 %v1033, 7
        %v1035 = vsub.s32 %v1032, %v1034
        %v1036 = vrot.slane %v924, %v1035
        %v1038 = vunpack.c.l.s4 1983009808
        %v1039 = vunpack.c.0.s8 %v1038
        %v1040 = vlaneseq
        %v1041 = vshrl.u32 %v1040, 7
        %v1042 = vsub.s32 %v1039, %v1041
        %v1043 = vrot.slane %v1029, %v1042
        %v1044 = vcombine.low %v1021, %v1036
        %v1045 = vcombine.high %v1021, %v1036
        %v1047 = vunpack.c.l.s4 1934713408
        %v1048 = vunpack.c.0.s8 %v1047
        %v1049 = vlaneseq
        %v1050 = vshrl.u32 %v1049, 7
        %v1051 = vsub.s32 %v1048, %v1050
        %v1052 = vrot.slane %v1044, %v1051
        %v1054 = vunpack.c.l.s4 1934713408
        %v1055 = vunpack.c.0.s8 %v1054
        %v1056 = vlaneseq
        %v1057 = vshrl.u32 %v1056, 7
        %v1058 = vsub.s32 %v1055, %v1057
        %v1059 = vrot.slane %v1045, %v1058
        %v1060 = vcombine.low %v1028, %v1043
        %v1061 = vcombine.high %v1028, %v1043
        %v1063 = vunpack.c.l.s4 1934713408
        %v1064 = vunpack.c.0.s8 %v1063
        %v1065 = vlaneseq
        %v1066 = vshrl.u32 %v1065, 7
        %v1067 = vsub.s32 %v1064, %v1066
        %v1068 = vrot.slane %v1060, %v1067
        %v1070 = vunpack.c.l.s4 1934713408
        %v1071 = vunpack.c.0.s8 %v1070
        %v1072 = vlaneseq
        %v1073 = vshrl.u32 %v1072, 7
        %v1074 = vsub.s32 %v1071, %v1073
        %v1075 = vrot.slane %v1061, %v1074
        %v1076 = vcombine.high %v1052, 0
        %v1077 = vcombine.high %v1059, 0
        %v1078 = vcombine.high %v1068, 0
        %v1079 = vcombine.high %v1075, 0
        %v1080 = vcombine.high %v934, %v927
        %v1082 = vunpack.c.l.s4 1983009808
        %v1083 = vunpack.c.0.s8 %v1082
        %v1084 = vlaneseq
        %v1085 = vshrl.u32 %v1084, 7
        %v1086 = vsub.s32 %v1083, %v1085
        %v1087 = vrot.slane %v934, %v1086
        %v1089 = vunpack.c.l.s4 1983009808
        %v1090 = vunpack.c.0.s8 %v1089
        %v1091 = vlaneseq
        %v1092 = vshrl.u32 %v1091, 7
        %v1093 = vsub.s32 %v1090, %v1092
        %v1094 = vrot.slane %v1080, %v1093
        %v1095 = vcombine.high %v942, %v927
        %v1097 = vunpack.c.l.s4 1983009808
        %v1098 = vunpack.c.0.s8 %v1097
        %v1099 = vlaneseq
        %v1100 = vshrl.u32 %v1099, 7
        %v1101 = vsub.s32 %v1098, %v1100
        %v1102 = vrot.slane %v942, %v1101
        %v1104 = vunpack.c.l.s4 1983009808
        %v1105 = vunpack.c.0.s8 %v1104
        %v1106 = vlaneseq
        %v1107 = vshrl.u32 %v1106, 7
        %v1108 = vsub.s32 %v1105, %v1107
        %v1109 = vrot.slane %v1095, %v1108
        %v1110 = vcombine.low %v1087, %v1102
        %v1111 = vcombine.high %v1087, %v1102
        %v1113 = vunpack.c.l.s4 1934713408
        %v1114 = vunpack.c.0.s8 %v1113
        %v1115 = vlaneseq
        %v1116 = vshrl.u32 %v1115, 7
        %v1117 = vsub.s32 %v1114, %v1116
        %v1118 = vrot.slane %v1110, %v1117
        %v1120 = vunpack.c.l.s4 1934713408
        %v1121 = vunpack.c.0.s8 %v1120
        %v1122 = vlaneseq
        %v1123 = vshrl.u32 %v1122, 7
        %v1124 = vsub.s32 %v1121, %v1123
        %v1125 = vrot.slane %v1111, %v1124
        %v1126 = vcombine.low %v1094, %v1109
        %v1127 = vcombine.high %v1094, %v1109
        %v1129 = vunpack.c.l.s4 1934713408
        %v1130 = vunpack.c.0.s8 %v1129
        %v1131 = vlaneseq
        %v1132 = vshrl.u32 %v1131, 7
        %v1133 = vsub.s32 %v1130, %v1132
        %v1134 = vrot.slane %v1126, %v1133
        %v1136 = vunpack.c.l.s4 1934713408
        %v1137 = vunpack.c.0.s8 %v1136
        %v1138 = vlaneseq
        %v1139 = vshrl.u32 %v1138, 7
        %v1140 = vsub.s32 %v1137, %v1139
        %v1141 = vrot.slane %v1127, %v1140
        %v1142 = vcombine.high %v1118, 0
        %v1143 = vcombine.high %v1125, 0
        %v1144 = vcombine.high %v1134, 0
        %v1145 = vcombine.high %v1141, 0
        %v1146 = vcombine.high %v938, %v930
        %v1148 = vunpack.c.l.s4 1983009808
        %v1149 = vunpack.c.0.s8 %v1148
        %v1150 = vlaneseq
        %v1151 = vshrl.u32 %v1150, 7
        %v1152 = vsub.s32 %v1149, %v1151
        %v1153 = vrot.slane %v938, %v1152
        %v1155 = vunpack.c.l.s4 1983009808
        %v1156 = vunpack.c.0.s8 %v1155
        %v1157 = vlaneseq
        %v1158 = vshrl.u32 %v1157, 7
        %v1159 = vsub.s32 %v1156, %v1158
        %v1160 = vrot.slane %v1146, %v1159
        %v1161 = vcombine.high %v946, %v930
        %v1163 = vunpack.c.l.s4 1983009808
        %v1164 = vunpack.c.0.s8 %v1163
        %v1165 = vlaneseq
        %v1166 = vshrl.u32 %v1165, 7
        %v1167 = vsub.s32 %v1164, %v1166
        %v1168 = vrot.slane %v946, %v1167
        %v1170 = vunpack.c.l.s4 1983009808
        %v1171 = vunpack.c.0.s8 %v1170
        %v1172 = vlaneseq
        %v1173 = vshrl.u32 %v1172, 7
        %v1174 = vsub.s32 %v1171, %v1173
        %v1175 = vrot.slane %v1161, %v1174
        %v1176 = vcombine.low %v1153, %v1168
        %v1177 = vcombine.high %v1153, %v1168
        %v1179 = vunpack.c.l.s4 1934713408
        %v1180 = vunpack.c.0.s8 %v1179
        %v1181 = vlaneseq
        %v1182 = vshrl.u32 %v1181, 7
        %v1183 = vsub.s32 %v1180, %v1182
        %v1184 = vrot.slane %v1176, %v1183
        %v1186 = vunpack.c.l.s4 1934713408
        %v1187 = vunpack.c.0.s8 %v1186
        %v1188 = vlaneseq
        %v1189 = vshrl.u32 %v1188, 7
        %v1190 = vsub.s32 %v1187, %v1189
        %v1191 = vrot.slane %v1177, %v1190
        %v1192 = vcombine.low %v1160, %v1175
        %v1193 = vcombine.high %v1160, %v1175
        %v1195 = vunpack.c.l.s4 1934713408
        %v1196 = vunpack.c.0.s8 %v1195
        %v1197 = vlaneseq
        %v1198 = vshrl.u32 %v1197, 7
        %v1199 = vsub.s32 %v1196, %v1198
        %v1200 = vrot.slane %v1192, %v1199
        %v1202 = vunpack.c.l.s4 1934713408
        %v1203 = vunpack.c.0.s8 %v1202
        %v1204 = vlaneseq
        %v1205 = vshrl.u32 %v1204, 7
        %v1206 = vsub.s32 %v1203, %v1205
        %v1207 = vrot.slane %v1193, %v1206
        %v1208 = vcombine.high %v1184, 0
        %v1209 = vcombine.high %v1191, 0
        %v1210 = vcombine.high %v1200, 0
        %v1211 = vcombine.high %v1207, 0
        %1212 = vxpose.xlu0.c.b16.start [1/8] %v986, 128
        %1213 = vxpose.xlu0.c.b16.cont [2/8] 0, 128
        %1214 = vxpose.xlu0.c.b16.cont [3/8] 0, 128
        %1215 = vxpose.xlu0.c.b16.cont [4/8] 0, 128
        %1216 = vxpose.xlu0.c.b16.cont [5/8] 0, 128
        %1217 = vxpose.xlu0.c.b16.cont [6/8] 0, 128
        %1218 = vxpose.xlu0.c.b16.cont [7/8] 0, 128
        %1219 = vxpose.xlu0.c.b16.end [8/8] 0, 128
        %v1220 = vpop.trf.xlu0
        %v1221 = vpop.trf.xlu0
        %v1222 = vpop.trf.xlu0
        %v1223 = vpop.trf.xlu0
        %v1224 = vpop.trf.xlu0
        %v1225 = vpop.trf.xlu0
        %v1226 = vpop.trf.xlu0
        %v1227 = vpop.trf.xlu0
        %1228 = vxpose.xlu0.c.b16.start [1/8] %v1052, 128
        %1229 = vxpose.xlu0.c.b16.cont [2/8] 0, 128
        %1230 = vxpose.xlu0.c.b16.cont [3/8] 0, 128
        %1231 = vxpose.xlu0.c.b16.cont [4/8] 0, 128
        %1232 = vxpose.xlu0.c.b16.cont [5/8] 0, 128
        %1233 = vxpose.xlu0.c.b16.cont [6/8] 0, 128
        %1234 = vxpose.xlu0.c.b16.cont [7/8] 0, 128
        %1235 = vxpose.xlu0.c.b16.end [8/8] 0, 128
        %v1236 = vpop.trf.xlu0
        %v1237 = vpop.trf.xlu0
        %v1238 = vpop.trf.xlu0
        %v1239 = vpop.trf.xlu0
        %v1240 = vpop.trf.xlu0
        %v1241 = vpop.trf.xlu0
        %v1242 = vpop.trf.xlu0
        %v1243 = vpop.trf.xlu0
        %1244 = vxpose.xlu0.c.b16.start [1/8] %v1010, 128
        %1245 = vxpose.xlu0.c.b16.cont [2/8] 0, 128
        %1246 = vxpose.xlu0.c.b16.cont [3/8] 0, 128
        %1247 = vxpose.xlu0.c.b16.cont [4/8] 0, 128
        %1248 = vxpose.xlu0.c.b16.cont [5/8] 0, 128
        %1249 = vxpose.xlu0.c.b16.cont [6/8] 0, 128
        %1250 = vxpose.xlu0.c.b16.cont [7/8] 0, 128
        %1251 = vxpose.xlu0.c.b16.end [8/8] 0, 128
        %v1252 = vpop.trf.xlu0
        %v1253 = vpop.trf.xlu0
        %v1254 = vpop.trf.xlu0
        %v1255 = vpop.trf.xlu0
        %v1256 = vpop.trf.xlu0
        %v1257 = vpop.trf.xlu0
        %v1258 = vpop.trf.xlu0
        %v1259 = vpop.trf.xlu0
        %1260 = vxpose.xlu0.c.b16.start [1/8] %v1076, 128
        %1261 = vxpose.xlu0.c.b16.cont [2/8] 0, 128
        %1262 = vxpose.xlu0.c.b16.cont [3/8] 0, 128
        %1263 = vxpose.xlu0.c.b16.cont [4/8] 0, 128
        %1264 = vxpose.xlu0.c.b16.cont [5/8] 0, 128
        %1265 = vxpose.xlu0.c.b16.cont [6/8] 0, 128
        %1266 = vxpose.xlu0.c.b16.cont [7/8] 0, 128
        %1267 = vxpose.xlu0.c.b16.end [8/8] 0, 128
        %v1268 = vpop.trf.xlu0
        %v1269 = vpop.trf.xlu0
        %v1270 = vpop.trf.xlu0
        %v1271 = vpop.trf.xlu0
        %v1272 = vpop.trf.xlu0
        %v1273 = vpop.trf.xlu0
        %v1274 = vpop.trf.xlu0
        %v1275 = vpop.trf.xlu0
        %1276 = vxpose.xlu0.c.b16.start [1/8] %v993, 128
        %1277 = vxpose.xlu0.c.b16.cont [2/8] 0, 128
        %1278 = vxpose.xlu0.c.b16.cont [3/8] 0, 128
        %1279 = vxpose.xlu0.c.b16.cont [4/8] 0, 128
        %1280 = vxpose.xlu0.c.b16.cont [5/8] 0, 128
        %1281 = vxpose.xlu0.c.b16.cont [6/8] 0, 128
        %1282 = vxpose.xlu0.c.b16.cont [7/8] 0, 128
        %1283 = vxpose.xlu0.c.b16.end [8/8] 0, 128
        %v1284 = vpop.trf.xlu0
        %v1285 = vpop.trf.xlu0
        %v1286 = vpop.trf.xlu0
        %v1287 = vpop.trf.xlu0
        %v1288 = vpop.trf.xlu0
        %v1289 = vpop.trf.xlu0
        %v1290 = vpop.trf.xlu0
        %v1291 = vpop.trf.xlu0
        %1292 = vxpose.xlu0.c.b16.start [1/8] %v1059, 128
        %1293 = vxpose.xlu0.c.b16.cont [2/8] 0, 128
        %1294 = vxpose.xlu0.c.b16.cont [3/8] 0, 128
        %1295 = vxpose.xlu0.c.b16.cont [4/8] 0, 128
        %1296 = vxpose.xlu0.c.b16.cont [5/8] 0, 128
        %1297 = vxpose.xlu0.c.b16.cont [6/8] 0, 128
        %1298 = vxpose.xlu0.c.b16.cont [7/8] 0, 128
        %1299 = vxpose.xlu0.c.b16.end [8/8] 0, 128
        %v1300 = vpop.trf.xlu0
        %v1301 = vpop.trf.xlu0
        %v1302 = vpop.trf.xlu0
        %v1303 = vpop.trf.xlu0
        %v1304 = vpop.trf.xlu0
        %v1305 = vpop.trf.xlu0
        %v1306 = vpop.trf.xlu0
        %v1307 = vpop.trf.xlu0
        %1308 = vxpose.xlu0.c.b16.start [1/8] %v1011, 128
        %1309 = vxpose.xlu0.c.b16.cont [2/8] 0, 128
        %1310 = vxpose.xlu0.c.b16.cont [3/8] 0, 128
        %1311 = vxpose.xlu0.c.b16.cont [4/8] 0, 128
        %1312 = vxpose.xlu0.c.b16.cont [5/8] 0, 128
        %1313 = vxpose.xlu0.c.b16.cont [6/8] 0, 128
        %1314 = vxpose.xlu0.c.b16.cont [7/8] 0, 128
        %1315 = vxpose.xlu0.c.b16.end [8/8] 0, 128
        %v1316 = vpop.trf.xlu0
        %v1317 = vpop.trf.xlu0
        %v1318 = vpop.trf.xlu0
        %v1319 = vpop.trf.xlu0
        %v1320 = vpop.trf.xlu0
        %v1321 = vpop.trf.xlu0
        %v1322 = vpop.trf.xlu0
        %v1323 = vpop.trf.xlu0
        %1324 = vxpose.xlu0.c.b16.start [1/8] %v1077, 128
        %1325 = vxpose.xlu0.c.b16.cont [2/8] 0, 128
        %1326 = vxpose.xlu0.c.b16.cont [3/8] 0, 128
        %1327 = vxpose.xlu0.c.b16.cont [4/8] 0, 128
        %1328 = vxpose.xlu0.c.b16.cont [5/8] 0, 128
        %1329 = vxpose.xlu0.c.b16.cont [6/8] 0, 128
        %1330 = vxpose.xlu0.c.b16.cont [7/8] 0, 128
        %1331 = vxpose.xlu0.c.b16.end [8/8] 0, 128
        %v1332 = vpop.trf.xlu0
        %v1333 = vpop.trf.xlu0
        %v1334 = vpop.trf.xlu0
        %v1335 = vpop.trf.xlu0
        %v1336 = vpop.trf.xlu0
        %v1337 = vpop.trf.xlu0
        %v1338 = vpop.trf.xlu0
        %v1339 = vpop.trf.xlu0
        %1340 = vxpose.xlu0.c.b16.start [1/8] %v1002, 128
        %1341 = vxpose.xlu0.c.b16.cont [2/8] 0, 128
        %1342 = vxpose.xlu0.c.b16.cont [3/8] 0, 128
        %1343 = vxpose.xlu0.c.b16.cont [4/8] 0, 128
        %1344 = vxpose.xlu0.c.b16.cont [5/8] 0, 128
        %1345 = vxpose.xlu0.c.b16.cont [6/8] 0, 128
        %1346 = vxpose.xlu0.c.b16.cont [7/8] 0, 128
        %1347 = vxpose.xlu0.c.b16.end [8/8] 0, 128
        %v1348 = vpop.trf.xlu0
        %v1349 = vpop.trf.xlu0
        %v1350 = vpop.trf.xlu0
        %v1351 = vpop.trf.xlu0
        %v1352 = vpop.trf.xlu0
        %v1353 = vpop.trf.xlu0
        %v1354 = vpop.trf.xlu0
        %v1355 = vpop.trf.xlu0
        %1356 = vxpose.xlu0.c.b16.start [1/8] %v1068, 128
        %1357 = vxpose.xlu0.c.b16.cont [2/8] 0, 128
        %1358 = vxpose.xlu0.c.b16.cont [3/8] 0, 128
        %1359 = vxpose.xlu0.c.b16.cont [4/8] 0, 128
        %1360 = vxpose.xlu0.c.b16.cont [5/8] 0, 128
        %1361 = vxpose.xlu0.c.b16.cont [6/8] 0, 128
        %1362 = vxpose.xlu0.c.b16.cont [7/8] 0, 128
        %1363 = vxpose.xlu0.c.b16.end [8/8] 0, 128
        %v1364 = vpop.trf.xlu0
        %v1365 = vpop.trf.xlu0
        %v1366 = vpop.trf.xlu0
        %v1367 = vpop.trf.xlu0
        %v1368 = vpop.trf.xlu0
        %v1369 = vpop.trf.xlu0
        %v1370 = vpop.trf.xlu0
        %v1371 = vpop.trf.xlu0
        %1372 = vxpose.xlu0.c.b16.start [1/8] %v1012, 128
        %1373 = vxpose.xlu0.c.b16.cont [2/8] 0, 128
        %1374 = vxpose.xlu0.c.b16.cont [3/8] 0, 128
        %1375 = vxpose.xlu0.c.b16.cont [4/8] 0, 128
        %1376 = vxpose.xlu0.c.b16.cont [5/8] 0, 128
        %1377 = vxpose.xlu0.c.b16.cont [6/8] 0, 128
        %1378 = vxpose.xlu0.c.b16.cont [7/8] 0, 128
        %1379 = vxpose.xlu0.c.b16.end [8/8] 0, 128
        %v1380 = vpop.trf.xlu0
        %v1381 = vpop.trf.xlu0
        %v1382 = vpop.trf.xlu0
        %v1383 = vpop.trf.xlu0
        %v1384 = vpop.trf.xlu0
        %v1385 = vpop.trf.xlu0
        %v1386 = vpop.trf.xlu0
        %v1387 = vpop.trf.xlu0
        %1388 = vxpose.xlu0.c.b16.start [1/8] %v1078, 128
        %1389 = vxpose.xlu0.c.b16.cont [2/8] 0, 128
        %1390 = vxpose.xlu0.c.b16.cont [3/8] 0, 128
        %1391 = vxpose.xlu0.c.b16.cont [4/8] 0, 128
        %1392 = vxpose.xlu0.c.b16.cont [5/8] 0, 128
        %1393 = vxpose.xlu0.c.b16.cont [6/8] 0, 128
        %1394 = vxpose.xlu0.c.b16.cont [7/8] 0, 128
        %1395 = vxpose.xlu0.c.b16.end [8/8] 0, 128
        %v1396 = vpop.trf.xlu0
        %v1397 = vpop.trf.xlu0
        %v1398 = vpop.trf.xlu0
        %v1399 = vpop.trf.xlu0
        %v1400 = vpop.trf.xlu0
        %v1401 = vpop.trf.xlu0
        %v1402 = vpop.trf.xlu0
        %v1403 = vpop.trf.xlu0
        %1404 = vxpose.xlu0.c.b16.start [1/8] %v1009, 128
        %1405 = vxpose.xlu0.c.b16.cont [2/8] 0, 128
        %1406 = vxpose.xlu0.c.b16.cont [3/8] 0, 128
        %1407 = vxpose.xlu0.c.b16.cont [4/8] 0, 128
        %1408 = vxpose.xlu0.c.b16.cont [5/8] 0, 128
        %1409 = vxpose.xlu0.c.b16.cont [6/8] 0, 128
        %1410 = vxpose.xlu0.c.b16.cont [7/8] 0, 128
        %1411 = vxpose.xlu0.c.b16.end [8/8] 0, 128
        %v1412 = vpop.trf.xlu0
        %v1413 = vpop.trf.xlu0
        %v1414 = vpop.trf.xlu0
        %v1415 = vpop.trf.xlu0
        %v1416 = vpop.trf.xlu0
        %v1417 = vpop.trf.xlu0
        %v1418 = vpop.trf.xlu0
        %v1419 = vpop.trf.xlu0
        %1420 = vxpose.xlu0.c.b16.start [1/8] %v1075, 128
        %1421 = vxpose.xlu0.c.b16.cont [2/8] 0, 128
        %1422 = vxpose.xlu0.c.b16.cont [3/8] 0, 128
        %1423 = vxpose.xlu0.c.b16.cont [4/8] 0, 128
        %1424 = vxpose.xlu0.c.b16.cont [5/8] 0, 128
        %1425 = vxpose.xlu0.c.b16.cont [6/8] 0, 128
        %1426 = vxpose.xlu0.c.b16.cont [7/8] 0, 128
        %1427 = vxpose.xlu0.c.b16.end [8/8] 0, 128
        %v1428 = vpop.trf.xlu0
        %v1429 = vpop.trf.xlu0
        %v1430 = vpop.trf.xlu0
        %v1431 = vpop.trf.xlu0
        %v1432 = vpop.trf.xlu0
        %v1433 = vpop.trf.xlu0
        %v1434 = vpop.trf.xlu0
        %v1435 = vpop.trf.xlu0
        %1436 = vxpose.xlu0.c.b16.start [1/8] %v1013, 128
        %1437 = vxpose.xlu0.c.b16.cont [2/8] 0, 128
        %1438 = vxpose.xlu0.c.b16.cont [3/8] 0, 128
        %1439 = vxpose.xlu0.c.b16.cont [4/8] 0, 128
        %1440 = vxpose.xlu0.c.b16.cont [5/8] 0, 128
        %1441 = vxpose.xlu0.c.b16.cont [6/8] 0, 128
        %1442 = vxpose.xlu0.c.b16.cont [7/8] 0, 128
        %1443 = vxpose.xlu0.c.b16.end [8/8] 0, 128
        %v1444 = vpop.trf.xlu0
        %v1445 = vpop.trf.xlu0
        %v1446 = vpop.trf.xlu0
        %v1447 = vpop.trf.xlu0
        %v1448 = vpop.trf.xlu0
        %v1449 = vpop.trf.xlu0
        %v1450 = vpop.trf.xlu0
        %v1451 = vpop.trf.xlu0
        %1452 = vxpose.xlu0.c.b16.start [1/8] %v1079, 128
        %1453 = vxpose.xlu0.c.b16.cont [2/8] 0, 128
        %1454 = vxpose.xlu0.c.b16.cont [3/8] 0, 128
        %1455 = vxpose.xlu0.c.b16.cont [4/8] 0, 128
        %1456 = vxpose.xlu0.c.b16.cont [5/8] 0, 128
        %1457 = vxpose.xlu0.c.b16.cont [6/8] 0, 128
        %1458 = vxpose.xlu0.c.b16.cont [7/8] 0, 128
        %1459 = vxpose.xlu0.c.b16.end [8/8] 0, 128
        %v1460 = vpop.trf.xlu0
        %v1461 = vpop.trf.xlu0
        %v1462 = vpop.trf.xlu0
        %v1463 = vpop.trf.xlu0
        %v1464 = vpop.trf.xlu0
        %v1465 = vpop.trf.xlu0
        %v1466 = vpop.trf.xlu0
        %v1467 = vpop.trf.xlu0
        %1468 = vxpose.xlu0.c.b16.start [1/8] %v1118, 128
        %1469 = vxpose.xlu0.c.b16.cont [2/8] 0, 128
        %1470 = vxpose.xlu0.c.b16.cont [3/8] 0, 128
        %1471 = vxpose.xlu0.c.b16.cont [4/8] 0, 128
        %1472 = vxpose.xlu0.c.b16.cont [5/8] 0, 128
        %1473 = vxpose.xlu0.c.b16.cont [6/8] 0, 128
        %1474 = vxpose.xlu0.c.b16.cont [7/8] 0, 128
        %1475 = vxpose.xlu0.c.b16.end [8/8] 0, 128
        %v1476 = vpop.trf.xlu0
        %v1477 = vpop.trf.xlu0
        %v1478 = vpop.trf.xlu0
        %v1479 = vpop.trf.xlu0
        %v1480 = vpop.trf.xlu0
        %v1481 = vpop.trf.xlu0
        %v1482 = vpop.trf.xlu0
        %v1483 = vpop.trf.xlu0
        %1484 = vxpose.xlu0.c.b16.start [1/8] %v1184, 128
        %1485 = vxpose.xlu0.c.b16.cont [2/8] 0, 128
        %1486 = vxpose.xlu0.c.b16.cont [3/8] 0, 128
        %1487 = vxpose.xlu0.c.b16.cont [4/8] 0, 128
        %1488 = vxpose.xlu0.c.b16.cont [5/8] 0, 128
        %1489 = vxpose.xlu0.c.b16.cont [6/8] 0, 128
        %1490 = vxpose.xlu0.c.b16.cont [7/8] 0, 128
        %1491 = vxpose.xlu0.c.b16.end [8/8] 0, 128
        %v1492 = vpop.trf.xlu0
        %v1493 = vpop.trf.xlu0
        %v1494 = vpop.trf.xlu0
        %v1495 = vpop.trf.xlu0
        %v1496 = vpop.trf.xlu0
        %v1497 = vpop.trf.xlu0
        %v1498 = vpop.trf.xlu0
        %v1499 = vpop.trf.xlu0
        %1500 = vxpose.xlu0.c.b16.start [1/8] %v1142, 128
        %1501 = vxpose.xlu0.c.b16.cont [2/8] 0, 128
        %1502 = vxpose.xlu0.c.b16.cont [3/8] 0, 128
        %1503 = vxpose.xlu0.c.b16.cont [4/8] 0, 128
        %1504 = vxpose.xlu0.c.b16.cont [5/8] 0, 128
        %1505 = vxpose.xlu0.c.b16.cont [6/8] 0, 128
        %1506 = vxpose.xlu0.c.b16.cont [7/8] 0, 128
        %1507 = vxpose.xlu0.c.b16.end [8/8] 0, 128
        %v1508 = vpop.trf.xlu0
        %v1509 = vpop.trf.xlu0
        %v1510 = vpop.trf.xlu0
        %v1511 = vpop.trf.xlu0
        %v1512 = vpop.trf.xlu0
        %v1513 = vpop.trf.xlu0
        %v1514 = vpop.trf.xlu0
        %v1515 = vpop.trf.xlu0
        %1516 = vxpose.xlu0.c.b16.start [1/8] %v1208, 128
        %1517 = vxpose.xlu0.c.b16.cont [2/8] 0, 128
        %1518 = vxpose.xlu0.c.b16.cont [3/8] 0, 128
        %1519 = vxpose.xlu0.c.b16.cont [4/8] 0, 128
        %1520 = vxpose.xlu0.c.b16.cont [5/8] 0, 128
        %1521 = vxpose.xlu0.c.b16.cont [6/8] 0, 128
        %1522 = vxpose.xlu0.c.b16.cont [7/8] 0, 128
        %1523 = vxpose.xlu0.c.b16.end [8/8] 0, 128
        %v1524 = vpop.trf.xlu0
        %v1525 = vpop.trf.xlu0
        %v1526 = vpop.trf.xlu0
        %v1527 = vpop.trf.xlu0
        %v1528 = vpop.trf.xlu0
        %v1529 = vpop.trf.xlu0
        %v1530 = vpop.trf.xlu0
        %v1531 = vpop.trf.xlu0
        %1532 = vxpose.xlu0.c.b16.start [1/8] %v1125, 128
        %1533 = vxpose.xlu0.c.b16.cont [2/8] 0, 128
        %1534 = vxpose.xlu0.c.b16.cont [3/8] 0, 128
        %1535 = vxpose.xlu0.c.b16.cont [4/8] 0, 128
        %1536 = vxpose.xlu0.c.b16.cont [5/8] 0, 128
        %1537 = vxpose.xlu0.c.b16.cont [6/8] 0, 128
        %1538 = vxpose.xlu0.c.b16.cont [7/8] 0, 128
        %1539 = vxpose.xlu0.c.b16.end [8/8] 0, 128
        %v1540 = vpop.trf.xlu0
        %v1541 = vpop.trf.xlu0
        %v1542 = vpop.trf.xlu0
        %v1543 = vpop.trf.xlu0
        %v1544 = vpop.trf.xlu0
        %v1545 = vpop.trf.xlu0
        %v1546 = vpop.trf.xlu0
        %v1547 = vpop.trf.xlu0
        %1548 = vxpose.xlu0.c.b16.start [1/8] %v1191, 128
        %1549 = vxpose.xlu0.c.b16.cont [2/8] 0, 128
        %1550 = vxpose.xlu0.c.b16.cont [3/8] 0, 128
        %1551 = vxpose.xlu0.c.b16.cont [4/8] 0, 128
        %1552 = vxpose.xlu0.c.b16.cont [5/8] 0, 128
        %1553 = vxpose.xlu0.c.b16.cont [6/8] 0, 128
        %1554 = vxpose.xlu0.c.b16.cont [7/8] 0, 128
        %1555 = vxpose.xlu0.c.b16.end [8/8] 0, 128
        %v1556 = vpop.trf.xlu0
        %v1557 = vpop.trf.xlu0
        %v1558 = vpop.trf.xlu0
        %v1559 = vpop.trf.xlu0
        %v1560 = vpop.trf.xlu0
        %v1561 = vpop.trf.xlu0
        %v1562 = vpop.trf.xlu0
        %v1563 = vpop.trf.xlu0
        %1564 = vxpose.xlu0.c.b16.start [1/8] %v1143, 128
        %1565 = vxpose.xlu0.c.b16.cont [2/8] 0, 128
        %1566 = vxpose.xlu0.c.b16.cont [3/8] 0, 128
        %1567 = vxpose.xlu0.c.b16.cont [4/8] 0, 128
        %1568 = vxpose.xlu0.c.b16.cont [5/8] 0, 128
        %1569 = vxpose.xlu0.c.b16.cont [6/8] 0, 128
        %1570 = vxpose.xlu0.c.b16.cont [7/8] 0, 128
        %1571 = vxpose.xlu0.c.b16.end [8/8] 0, 128
        %v1572 = vpop.trf.xlu0
        %v1573 = vpop.trf.xlu0
        %v1574 = vpop.trf.xlu0
        %v1575 = vpop.trf.xlu0
        %v1576 = vpop.trf.xlu0
        %v1577 = vpop.trf.xlu0
        %v1578 = vpop.trf.xlu0
        %v1579 = vpop.trf.xlu0
        %1580 = vxpose.xlu0.c.b16.start [1/8] %v1209, 128
        %1581 = vxpose.xlu0.c.b16.cont [2/8] 0, 128
        %1582 = vxpose.xlu0.c.b16.cont [3/8] 0, 128
        %1583 = vxpose.xlu0.c.b16.cont [4/8] 0, 128
        %1584 = vxpose.xlu0.c.b16.cont [5/8] 0, 128
        %1585 = vxpose.xlu0.c.b16.cont [6/8] 0, 128
        %1586 = vxpose.xlu0.c.b16.cont [7/8] 0, 128
        %1587 = vxpose.xlu0.c.b16.end [8/8] 0, 128
        %v1588 = vpop.trf.xlu0
        %v1589 = vpop.trf.xlu0
        %v1590 = vpop.trf.xlu0
        %v1591 = vpop.trf.xlu0
        %v1592 = vpop.trf.xlu0
        %v1593 = vpop.trf.xlu0
        %v1594 = vpop.trf.xlu0
        %v1595 = vpop.trf.xlu0
        %1596 = vxpose.xlu0.c.b16.start [1/8] %v1134, 128
        %1597 = vxpose.xlu0.c.b16.cont [2/8] 0, 128
        %1598 = vxpose.xlu0.c.b16.cont [3/8] 0, 128
        %1599 = vxpose.xlu0.c.b16.cont [4/8] 0, 128
        %1600 = vxpose.xlu0.c.b16.cont [5/8] 0, 128
        %1601 = vxpose.xlu0.c.b16.cont [6/8] 0, 128
        %1602 = vxpose.xlu0.c.b16.cont [7/8] 0, 128
        %1603 = vxpose.xlu0.c.b16.end [8/8] 0, 128
        %v1604 = vpop.trf.xlu0
        %v1605 = vpop.trf.xlu0
        %v1606 = vpop.trf.xlu0
        %v1607 = vpop.trf.xlu0
        %v1608 = vpop.trf.xlu0
        %v1609 = vpop.trf.xlu0
        %v1610 = vpop.trf.xlu0
        %v1611 = vpop.trf.xlu0
        %1612 = vxpose.xlu0.c.b16.start [1/8] %v1200, 128
        %1613 = vxpose.xlu0.c.b16.cont [2/8] 0, 128
        %1614 = vxpose.xlu0.c.b16.cont [3/8] 0, 128
        %1615 = vxpose.xlu0.c.b16.cont [4/8] 0, 128
        %1616 = vxpose.xlu0.c.b16.cont [5/8] 0, 128
        %1617 = vxpose.xlu0.c.b16.cont [6/8] 0, 128
        %1618 = vxpose.xlu0.c.b16.cont [7/8] 0, 128
        %1619 = vxpose.xlu0.c.b16.end [8/8] 0, 128
        %v1620 = vpop.trf.xlu0
        %v1621 = vpop.trf.xlu0
        %v1622 = vpop.trf.xlu0
        %v1623 = vpop.trf.xlu0
        %v1624 = vpop.trf.xlu0
        %v1625 = vpop.trf.xlu0
        %v1626 = vpop.trf.xlu0
        %v1627 = vpop.trf.xlu0
        %1628 = vxpose.xlu0.c.b16.start [1/8] %v1144, 128
        %1629 = vxpose.xlu0.c.b16.cont [2/8] 0, 128
        %1630 = vxpose.xlu0.c.b16.cont [3/8] 0, 128
        %1631 = vxpose.xlu0.c.b16.cont [4/8] 0, 128
        %1632 = vxpose.xlu0.c.b16.cont [5/8] 0, 128
        %1633 = vxpose.xlu0.c.b16.cont [6/8] 0, 128
        %1634 = vxpose.xlu0.c.b16.cont [7/8] 0, 128
        %1635 = vxpose.xlu0.c.b16.end [8/8] 0, 128
        %v1636 = vpop.trf.xlu0
        %v1637 = vpop.trf.xlu0
        %v1638 = vpop.trf.xlu0
        %v1639 = vpop.trf.xlu0
        %v1640 = vpop.trf.xlu0
        %v1641 = vpop.trf.xlu0
        %v1642 = vpop.trf.xlu0
        %v1643 = vpop.trf.xlu0
        %1644 = vxpose.xlu0.c.b16.start [1/8] %v1210, 128
        %1645 = vxpose.xlu0.c.b16.cont [2/8] 0, 128
        %1646 = vxpose.xlu0.c.b16.cont [3/8] 0, 128
        %1647 = vxpose.xlu0.c.b16.cont [4/8] 0, 128
        %1648 = vxpose.xlu0.c.b16.cont [5/8] 0, 128
        %1649 = vxpose.xlu0.c.b16.cont [6/8] 0, 128
        %1650 = vxpose.xlu0.c.b16.cont [7/8] 0, 128
        %1651 = vxpose.xlu0.c.b16.end [8/8] 0, 128
        %v1652 = vpop.trf.xlu0
        %v1653 = vpop.trf.xlu0
        %v1654 = vpop.trf.xlu0
        %v1655 = vpop.trf.xlu0
        %v1656 = vpop.trf.xlu0
        %v1657 = vpop.trf.xlu0
        %v1658 = vpop.trf.xlu0
        %v1659 = vpop.trf.xlu0
        %1660 = vxpose.xlu0.c.b16.start [1/8] %v1141, 128
        %1661 = vxpose.xlu0.c.b16.cont [2/8] 0, 128
        %1662 = vxpose.xlu0.c.b16.cont [3/8] 0, 128
        %1663 = vxpose.xlu0.c.b16.cont [4/8] 0, 128
        %1664 = vxpose.xlu0.c.b16.cont [5/8] 0, 128
        %1665 = vxpose.xlu0.c.b16.cont [6/8] 0, 128
        %1666 = vxpose.xlu0.c.b16.cont [7/8] 0, 128
        %1667 = vxpose.xlu0.c.b16.end [8/8] 0, 128
        %v1668 = vpop.trf.xlu0
        %v1669 = vpop.trf.xlu0
        %v1670 = vpop.trf.xlu0
        %v1671 = vpop.trf.xlu0
        %v1672 = vpop.trf.xlu0
        %v1673 = vpop.trf.xlu0
        %v1674 = vpop.trf.xlu0
        %v1675 = vpop.trf.xlu0
        %1676 = vxpose.xlu0.c.b16.start [1/8] %v1207, 128
        %1677 = vxpose.xlu0.c.b16.cont [2/8] 0, 128
        %1678 = vxpose.xlu0.c.b16.cont [3/8] 0, 128
        %1679 = vxpose.xlu0.c.b16.cont [4/8] 0, 128
        %1680 = vxpose.xlu0.c.b16.cont [5/8] 0, 128
        %1681 = vxpose.xlu0.c.b16.cont [6/8] 0, 128
        %1682 = vxpose.xlu0.c.b16.cont [7/8] 0, 128
        %1683 = vxpose.xlu0.c.b16.end [8/8] 0, 128
        %v1684 = vpop.trf.xlu0
        %v1685 = vpop.trf.xlu0
        %v1686 = vpop.trf.xlu0
        %v1687 = vpop.trf.xlu0
        %v1688 = vpop.trf.xlu0
        %v1689 = vpop.trf.xlu0
        %v1690 = vpop.trf.xlu0
        %v1691 = vpop.trf.xlu0
        %1692 = vxpose.xlu0.c.b16.start [1/8] %v1145, 128
        %1693 = vxpose.xlu0.c.b16.cont [2/8] 0, 128
        %1694 = vxpose.xlu0.c.b16.cont [3/8] 0, 128
        %1695 = vxpose.xlu0.c.b16.cont [4/8] 0, 128
        %1696 = vxpose.xlu0.c.b16.cont [5/8] 0, 128
        %1697 = vxpose.xlu0.c.b16.cont [6/8] 0, 128
        %1698 = vxpose.xlu0.c.b16.cont [7/8] 0, 128
        %1699 = vxpose.xlu0.c.b16.end [8/8] 0, 128
        %v1700 = vpop.trf.xlu0
        %v1701 = vpop.trf.xlu0
        %v1702 = vpop.trf.xlu0
        %v1703 = vpop.trf.xlu0
        %v1704 = vpop.trf.xlu0
        %v1705 = vpop.trf.xlu0
        %v1706 = vpop.trf.xlu0
        %v1707 = vpop.trf.xlu0
        %1708 = vxpose.xlu0.c.b16.start [1/8] %v1211, 128
        %1709 = vxpose.xlu0.c.b16.cont [2/8] 0, 128
        %1710 = vxpose.xlu0.c.b16.cont [3/8] 0, 128
        %1711 = vxpose.xlu0.c.b16.cont [4/8] 0, 128
        %1712 = vxpose.xlu0.c.b16.cont [5/8] 0, 128
        %1713 = vxpose.xlu0.c.b16.cont [6/8] 0, 128
        %1714 = vxpose.xlu0.c.b16.cont [7/8] 0, 128
        %1715 = vxpose.xlu0.c.b16.end [8/8] 0, 128
        %v1716 = vpop.trf.xlu0
        %v1717 = vpop.trf.xlu0
        %v1718 = vpop.trf.xlu0
        %v1719 = vpop.trf.xlu0
        %v1720 = vpop.trf.xlu0
        %v1721 = vpop.trf.xlu0
        %v1722 = vpop.trf.xlu0
        %v1723 = vpop.trf.xlu0
        %v1724 = vcombine.low %v1220, %v1284
        %v1726 = vunpack.c.l.s4 1983009808
        %v1727 = vunpack.c.0.s8 %v1726
        %v1728 = vlaneseq
        %v1729 = vshrl.u32 %v1728, 7
        %v1730 = vsub.s32 %v1727, %v1729
        %v1731 = vrot.slane %v1724, %v1730
        %v1732 = vcombine.low %v1252, %v1316
        %v1734 = vunpack.c.l.s4 1983009808
        %v1735 = vunpack.c.0.s8 %v1734
        %v1736 = vlaneseq
        %v1737 = vshrl.u32 %v1736, 7
        %v1738 = vsub.s32 %v1735, %v1737
        %v1739 = vrot.slane %v1732, %v1738
        %v1740 = vcombine.low %v1348, %v1412
        %v1742 = vunpack.c.l.s4 1983009808
        %v1743 = vunpack.c.0.s8 %v1742
        %v1744 = vlaneseq
        %v1745 = vshrl.u32 %v1744, 7
        %v1746 = vsub.s32 %v1743, %v1745
        %v1747 = vrot.slane %v1740, %v1746
        %v1748 = vcombine.low %v1380, %v1444
        %v1750 = vunpack.c.l.s4 1983009808
        %v1751 = vunpack.c.0.s8 %v1750
        %v1752 = vlaneseq
        %v1753 = vshrl.u32 %v1752, 7
        %v1754 = vsub.s32 %v1751, %v1753
        %v1755 = vrot.slane %v1748, %v1754
        %v1756 = vcombine.low %v1731, %v1739
        %v1757 = vcombine.high %v1731, %v1739
        %v1759 = vunpack.c.l.s4 1934713408
        %v1760 = vunpack.c.0.s8 %v1759
        %v1761 = vlaneseq
        %v1762 = vshrl.u32 %v1761, 7
        %v1763 = vsub.s32 %v1760, %v1762
        %v1764 = vrot.slane %v1756, %v1763
        %v1766 = vunpack.c.l.s4 1934713408
        %v1767 = vunpack.c.0.s8 %v1766
        %v1768 = vlaneseq
        %v1769 = vshrl.u32 %v1768, 7
        %v1770 = vsub.s32 %v1767, %v1769
        %v1771 = vrot.slane %v1757, %v1770
        %v1772 = vcombine.low %v1747, %v1755
        %v1773 = vcombine.high %v1747, %v1755
        %v1775 = vunpack.c.l.s4 1934713408
        %v1776 = vunpack.c.0.s8 %v1775
        %v1777 = vlaneseq
        %v1778 = vshrl.u32 %v1777, 7
        %v1779 = vsub.s32 %v1776, %v1778
        %v1780 = vrot.slane %v1772, %v1779
        %v1782 = vunpack.c.l.s4 1934713408
        %v1783 = vunpack.c.0.s8 %v1782
        %v1784 = vlaneseq
        %v1785 = vshrl.u32 %v1784, 7
        %v1786 = vsub.s32 %v1783, %v1785
        %v1787 = vrot.slane %v1773, %v1786
        %v1788 = vcombine.low %v1764, %v1780
        %v1789 = vcombine.high %v1764, %v1780
        %v1790 = vcombine.low %v1771, %v1787
        %v1791 = vcombine.high %v1771, %v1787
        %v1792 = vcombine.low %v1236, %v1300
        %v1794 = vunpack.c.l.s4 1983009808
        %v1795 = vunpack.c.0.s8 %v1794
        %v1796 = vlaneseq
        %v1797 = vshrl.u32 %v1796, 7
        %v1798 = vsub.s32 %v1795, %v1797
        %v1799 = vrot.slane %v1792, %v1798
        %v1800 = vcombine.low %v1268, %v1332
        %v1802 = vunpack.c.l.s4 1983009808
        %v1803 = vunpack.c.0.s8 %v1802
        %v1804 = vlaneseq
        %v1805 = vshrl.u32 %v1804, 7
        %v1806 = vsub.s32 %v1803, %v1805
        %v1807 = vrot.slane %v1800, %v1806
        %v1808 = vcombine.low %v1364, %v1428
        %v1810 = vunpack.c.l.s4 1983009808
        %v1811 = vunpack.c.0.s8 %v1810
        %v1812 = vlaneseq
        %v1813 = vshrl.u32 %v1812, 7
        %v1814 = vsub.s32 %v1811, %v1813
        %v1815 = vrot.slane %v1808, %v1814
        %v1816 = vcombine.low %v1396, %v1460
        %v1818 = vunpack.c.l.s4 1983009808
        %v1819 = vunpack.c.0.s8 %v1818
        %v1820 = vlaneseq
        %v1821 = vshrl.u32 %v1820, 7
        %v1822 = vsub.s32 %v1819, %v1821
        %v1823 = vrot.slane %v1816, %v1822
        %v1824 = vcombine.low %v1799, %v1807
        %v1825 = vcombine.high %v1799, %v1807
        %v1827 = vunpack.c.l.s4 1934713408
        %v1828 = vunpack.c.0.s8 %v1827
        %v1829 = vlaneseq
        %v1830 = vshrl.u32 %v1829, 7
        %v1831 = vsub.s32 %v1828, %v1830
        %v1832 = vrot.slane %v1824, %v1831
        %v1834 = vunpack.c.l.s4 1934713408
        %v1835 = vunpack.c.0.s8 %v1834
        %v1836 = vlaneseq
        %v1837 = vshrl.u32 %v1836, 7
        %v1838 = vsub.s32 %v1835, %v1837
        %v1839 = vrot.slane %v1825, %v1838
        %v1840 = vcombine.low %v1815, %v1823
        %v1841 = vcombine.high %v1815, %v1823
        %v1843 = vunpack.c.l.s4 1934713408
        %v1844 = vunpack.c.0.s8 %v1843
        %v1845 = vlaneseq
        %v1846 = vshrl.u32 %v1845, 7
        %v1847 = vsub.s32 %v1844, %v1846
        %v1848 = vrot.slane %v1840, %v1847
        %v1850 = vunpack.c.l.s4 1934713408
        %v1851 = vunpack.c.0.s8 %v1850
        %v1852 = vlaneseq
        %v1853 = vshrl.u32 %v1852, 7
        %v1854 = vsub.s32 %v1851, %v1853
        %v1855 = vrot.slane %v1841, %v1854
        %v1856 = vcombine.low %v1832, %v1848
        %v1857 = vcombine.high %v1832, %v1848
        %v1858 = vcombine.low %v1839, %v1855
        %v1859 = vcombine.high %v1839, %v1855
        %v1860 = vcombine.low %v1476, %v1540
        %v1862 = vunpack.c.l.s4 1983009808
        %v1863 = vunpack.c.0.s8 %v1862
        %v1864 = vlaneseq
        %v1865 = vshrl.u32 %v1864, 7
        %v1866 = vsub.s32 %v1863, %v1865
        %v1867 = vrot.slane %v1860, %v1866
        %v1868 = vcombine.low %v1508, %v1572
        %v1870 = vunpack.c.l.s4 1983009808
        %v1871 = vunpack.c.0.s8 %v1870
        %v1872 = vlaneseq
        %v1873 = vshrl.u32 %v1872, 7
        %v1874 = vsub.s32 %v1871, %v1873
        %v1875 = vrot.slane %v1868, %v1874
        %v1876 = vcombine.low %v1604, %v1668
        %v1878 = vunpack.c.l.s4 1983009808
        %v1879 = vunpack.c.0.s8 %v1878
        %v1880 = vlaneseq
        %v1881 = vshrl.u32 %v1880, 7
        %v1882 = vsub.s32 %v1879, %v1881
        %v1883 = vrot.slane %v1876, %v1882
        %v1884 = vcombine.low %v1636, %v1700
        %v1886 = vunpack.c.l.s4 1983009808
        %v1887 = vunpack.c.0.s8 %v1886
        %v1888 = vlaneseq
        %v1889 = vshrl.u32 %v1888, 7
        %v1890 = vsub.s32 %v1887, %v1889
        %v1891 = vrot.slane %v1884, %v1890
        %v1892 = vcombine.low %v1867, %v1875
        %v1893 = vcombine.high %v1867, %v1875
        %v1895 = vunpack.c.l.s4 1934713408
        %v1896 = vunpack.c.0.s8 %v1895
        %v1897 = vlaneseq
        %v1898 = vshrl.u32 %v1897, 7
        %v1899 = vsub.s32 %v1896, %v1898
        %v1900 = vrot.slane %v1892, %v1899
        %v1902 = vunpack.c.l.s4 1934713408
        %v1903 = vunpack.c.0.s8 %v1902
        %v1904 = vlaneseq
        %v1905 = vshrl.u32 %v1904, 7
        %v1906 = vsub.s32 %v1903, %v1905
        %v1907 = vrot.slane %v1893, %v1906
        %v1908 = vcombine.low %v1883, %v1891
        %v1909 = vcombine.high %v1883, %v1891
        %v1911 = vunpack.c.l.s4 1934713408
        %v1912 = vunpack.c.0.s8 %v1911
        %v1913 = vlaneseq
        %v1914 = vshrl.u32 %v1913, 7
        %v1915 = vsub.s32 %v1912, %v1914
        %v1916 = vrot.slane %v1908, %v1915
        %v1918 = vunpack.c.l.s4 1934713408
        %v1919 = vunpack.c.0.s8 %v1918
        %v1920 = vlaneseq
        %v1921 = vshrl.u32 %v1920, 7
        %v1922 = vsub.s32 %v1919, %v1921
        %v1923 = vrot.slane %v1909, %v1922
        %v1924 = vcombine.low %v1900, %v1916
        %v1925 = vcombine.high %v1900, %v1916
        %v1926 = vcombine.low %v1907, %v1923
        %v1927 = vcombine.high %v1907, %v1923
        %v1928 = vcombine.low %v1492, %v1556
        %v1930 = vunpack.c.l.s4 1983009808
        %v1931 = vunpack.c.0.s8 %v1930
        %v1932 = vlaneseq
        %v1933 = vshrl.u32 %v1932, 7
        %v1934 = vsub.s32 %v1931, %v1933
        %v1935 = vrot.slane %v1928, %v1934
        %v1936 = vcombine.low %v1524, %v1588
        %v1938 = vunpack.c.l.s4 1983009808
        %v1939 = vunpack.c.0.s8 %v1938
        %v1940 = vlaneseq
        %v1941 = vshrl.u32 %v1940, 7
        %v1942 = vsub.s32 %v1939, %v1941
        %v1943 = vrot.slane %v1936, %v1942
        %v1944 = vcombine.low %v1620, %v1684
        %v1946 = vunpack.c.l.s4 1983009808
        %v1947 = vunpack.c.0.s8 %v1946
        %v1948 = vlaneseq
        %v1949 = vshrl.u32 %v1948, 7
        %v1950 = vsub.s32 %v1947, %v1949
        %v1951 = vrot.slane %v1944, %v1950
        %v1952 = vcombine.low %v1652, %v1716
        %v1954 = vunpack.c.l.s4 1983009808
        %v1955 = vunpack.c.0.s8 %v1954
        %v1956 = vlaneseq
        %v1957 = vshrl.u32 %v1956, 7
        %v1958 = vsub.s32 %v1955, %v1957
        %v1959 = vrot.slane %v1952, %v1958
        %v1960 = vcombine.low %v1935, %v1943
        %v1961 = vcombine.high %v1935, %v1943
        %v1963 = vunpack.c.l.s4 1934713408
        %v1964 = vunpack.c.0.s8 %v1963
        %v1965 = vlaneseq
        %v1966 = vshrl.u32 %v1965, 7
        %v1967 = vsub.s32 %v1964, %v1966
        %v1968 = vrot.slane %v1960, %v1967
        %v1970 = vunpack.c.l.s4 1934713408
        %v1971 = vunpack.c.0.s8 %v1970
        %v1972 = vlaneseq
        %v1973 = vshrl.u32 %v1972, 7
        %v1974 = vsub.s32 %v1971, %v1973
        %v1975 = vrot.slane %v1961, %v1974
        %v1976 = vcombine.low %v1951, %v1959
        %v1977 = vcombine.high %v1951, %v1959
        %v1979 = vunpack.c.l.s4 1934713408
        %v1980 = vunpack.c.0.s8 %v1979
        %v1981 = vlaneseq
        %v1982 = vshrl.u32 %v1981, 7
        %v1983 = vsub.s32 %v1980, %v1982
        %v1984 = vrot.slane %v1976, %v1983
        %v1986 = vunpack.c.l.s4 1934713408
        %v1987 = vunpack.c.0.s8 %v1986
        %v1988 = vlaneseq
        %v1989 = vshrl.u32 %v1988, 7
        %v1990 = vsub.s32 %v1987, %v1989
        %v1991 = vrot.slane %v1977, %v1990
        %v1992 = vcombine.low %v1968, %v1984
        %v1993 = vcombine.high %v1968, %v1984
        %v1994 = vcombine.low %v1975, %v1991
        %v1995 = vcombine.high %v1975, %v1991
        %v1998 = vpack.i.b16 %v1856, %v1788
        %v2000 = vshrl.u32 %v1788, 16
        %v2001 = vshrl.u32 %v1856, 16
        %v2002 = vpack.i.b16 %v2001, %v2000
        %v2006 = vpack.i.b16 %v1857, %v1789
        %v2008 = vshrl.u32 %v1789, 16
        %v2009 = vshrl.u32 %v1857, 16
        %v2010 = vpack.i.b16 %v2009, %v2008
        %v2014 = vpack.i.b16 %v1858, %v1790
        %v2016 = vshrl.u32 %v1790, 16
        %v2017 = vshrl.u32 %v1858, 16
        %v2018 = vpack.i.b16 %v2017, %v2016
        %v2022 = vpack.i.b16 %v1859, %v1791
        %v2024 = vshrl.u32 %v1791, 16
        %v2025 = vshrl.u32 %v1859, 16
        %v2026 = vpack.i.b16 %v2025, %v2024
        %v2030 = vpack.i.b16 %v1992, %v1924
        %v2032 = vshrl.u32 %v1924, 16
        %v2033 = vshrl.u32 %v1992, 16
        %v2034 = vpack.i.b16 %v2033, %v2032
        %v2038 = vpack.i.b16 %v1993, %v1925
        %v2040 = vshrl.u32 %v1925, 16
        %v2041 = vshrl.u32 %v1993, 16
        %v2042 = vpack.i.b16 %v2041, %v2040
        %v2046 = vpack.i.b16 %v1994, %v1926
        %v2048 = vshrl.u32 %v1926, 16
        %v2049 = vshrl.u32 %v1994, 16
        %v2050 = vpack.i.b16 %v2049, %v2048
        %v2054 = vpack.i.b16 %v1995, %v1927
        %v2056 = vshrl.u32 %v1927, 16
        %v2057 = vshrl.u32 %v1995, 16
        %v2058 = vpack.i.b16 %v2057, %v2056
        %vm2060 = vcmask 261120
        %v2062 = vsel %vm2060, %v838, 0
        %2064 = vmatprep.subr.bf16.mxu0 0
        %2065 = vmatpush1.bf16.msra.mxu0 %v1998
        %2066 = vmatprep.subr.bf16.mxu0 0
        %2067 = vmatpush1.bf16.msra.mxu0 %v2030
        %2068 = vmatprep.subr.bf16.mxu0 0
        %2069 = vmatpush1.bf16.msra.mxu0 0
        %2070 = vmatprep.subr.bf16.mxu0 0
        %2071 = vmatpush1.bf16.msra.mxu0 0
        %2072 = vmatprep.subr.bf16.mxu0 0
        %2073 = vmatpush1.bf16.msra.mxu0 0
        %2074 = vmatprep.subr.bf16.mxu0 0
        %2075 = vmatpush1.bf16.msra.mxu0 0
        %2076 = vmatprep.subr.bf16.mxu0 0
        %2077 = vmatpush1.bf16.msra.mxu0 0
        %2078 = vmatprep.subr.bf16.mxu0 0
        %2079 = vmatpush1.bf16.msra.mxu0 0
        %2080 = vmatprep.subr.bf16.mxu0 0
        %2081 = vmatpush1.bf16.msra.mxu0 0
        %2082 = vmatprep.subr.bf16.mxu0 0
        %2083 = vmatpush1.bf16.msra.mxu0 0
        %2084 = vmatprep.subr.bf16.mxu0 0
        %2085 = vmatpush1.bf16.msra.mxu0 0
        %2086 = vmatprep.subr.bf16.mxu0 0
        %2087 = vmatpush1.bf16.msra.mxu0 0
        %2088 = vmatprep.subr.bf16.mxu0 0
        %2089 = vmatpush1.bf16.msra.mxu0 0
        %2090 = vmatprep.subr.bf16.mxu0 0
        %2091 = vmatpush1.bf16.msra.mxu0 0
        %2092 = vmatprep.subr.bf16.mxu0 0
        %2093 = vmatpush1.bf16.msra.mxu0 0
        %2094 = vmatprep.subr.bf16.mxu0 0
        %2095 = vmatpush1.bf16.msra.mxu0 0
        %2096 = vmatprep.mubr.bf16.mxu0 0
        %2097 = vmatmul.mubr.bf16.gmra.mrb[0].mxu0 %v2062
        %v2098 = vpop.f32.mrb[0].mxu0
        %v2099 = vadd.f32 0.0, %v2098
        %v2100 = vpop.f32.mrb[0].mxu0
        %v2101 = vpop.f32.mrb[0].mxu0
        %v2102 = vpop.f32.mrb[0].mxu0
        %2103 = vdwg.mxu0
        %v2105 = vsel %vm2060, %v839, 0
        %2107 = vmatprep.subr.bf16.mxu0 0
        %2108 = vmatpush1.bf16.msra.mxu0 %v2002
        %2109 = vmatprep.subr.bf16.mxu0 0
        %2110 = vmatpush1.bf16.msra.mxu0 %v2034
        %2111 = vmatprep.subr.bf16.mxu0 0
        %2112 = vmatpush1.bf16.msra.mxu0 0
        %2113 = vmatprep.subr.bf16.mxu0 0
        %2114 = vmatpush1.bf16.msra.mxu0 0
        %2115 = vmatprep.subr.bf16.mxu0 0
        %2116 = vmatpush1.bf16.msra.mxu0 0
        %2117 = vmatprep.subr.bf16.mxu0 0
        %2118 = vmatpush1.bf16.msra.mxu0 0
        %2119 = vmatprep.subr.bf16.mxu0 0
        %2120 = vmatpush1.bf16.msra.mxu0 0
        %2121 = vmatprep.subr.bf16.mxu0 0
        %2122 = vmatpush1.bf16.msra.mxu0 0
        %2123 = vmatprep.subr.bf16.mxu0 0
        %2124 = vmatpush1.bf16.msra.mxu0 0
        %2125 = vmatprep.subr.bf16.mxu0 0
        %2126 = vmatpush1.bf16.msra.mxu0 0
        %2127 = vmatprep.subr.bf16.mxu0 0
        %2128 = vmatpush1.bf16.msra.mxu0 0
        %2129 = vmatprep.subr.bf16.mxu0 0
        %2130 = vmatpush1.bf16.msra.mxu0 0
        %2131 = vmatprep.subr.bf16.mxu0 0
        %2132 = vmatpush1.bf16.msra.mxu0 0
        %2133 = vmatprep.subr.bf16.mxu0 0
        %2134 = vmatpush1.bf16.msra.mxu0 0
        %2135 = vmatprep.subr.bf16.mxu0 0
        %2136 = vmatpush1.bf16.msra.mxu0 0
        %2137 = vmatprep.subr.bf16.mxu0 0
        %2138 = vmatpush1.bf16.msra.mxu0 0
        %2139 = vmatprep.mubr.bf16.mxu0 0
        %2140 = vmatmul.mubr.bf16.gmra.mrb[0].mxu0 %v2105
        %v2141 = vpop.f32.mrb[0].mxu0
        %v2142 = vadd.f32 0.0, %v2141
        %v2143 = vpop.f32.mrb[0].mxu0
        %v2144 = vpop.f32.mrb[0].mxu0
        %v2145 = vpop.f32.mrb[0].mxu0
        %2146 = vdwg.mxu0
        %v2148 = vsel %vm2060, %v840, 0
        %2150 = vmatprep.subr.bf16.mxu0 0
        %2151 = vmatpush1.bf16.msra.mxu0 %v2006
        %2152 = vmatprep.subr.bf16.mxu0 0
        %2153 = vmatpush1.bf16.msra.mxu0 %v2038
        %2154 = vmatprep.subr.bf16.mxu0 0
        %2155 = vmatpush1.bf16.msra.mxu0 0
        %2156 = vmatprep.subr.bf16.mxu0 0
        %2157 = vmatpush1.bf16.msra.mxu0 0
        %2158 = vmatprep.subr.bf16.mxu0 0
        %2159 = vmatpush1.bf16.msra.mxu0 0
        %2160 = vmatprep.subr.bf16.mxu0 0
        %2161 = vmatpush1.bf16.msra.mxu0 0
        %2162 = vmatprep.subr.bf16.mxu0 0
        %2163 = vmatpush1.bf16.msra.mxu0 0
        %2164 = vmatprep.subr.bf16.mxu0 0
        %2165 = vmatpush1.bf16.msra.mxu0 0
        %2166 = vmatprep.subr.bf16.mxu0 0
        %2167 = vmatpush1.bf16.msra.mxu0 0
        %2168 = vmatprep.subr.bf16.mxu0 0
        %2169 = vmatpush1.bf16.msra.mxu0 0
        %2170 = vmatprep.subr.bf16.mxu0 0
        %2171 = vmatpush1.bf16.msra.mxu0 0
        %2172 = vmatprep.subr.bf16.mxu0 0
        %2173 = vmatpush1.bf16.msra.mxu0 0
        %2174 = vmatprep.subr.bf16.mxu0 0
        %2175 = vmatpush1.bf16.msra.mxu0 0
        %2176 = vmatprep.subr.bf16.mxu0 0
        %2177 = vmatpush1.bf16.msra.mxu0 0
        %2178 = vmatprep.subr.bf16.mxu0 0
        %2179 = vmatpush1.bf16.msra.mxu0 0
        %2180 = vmatprep.subr.bf16.mxu0 0
        %2181 = vmatpush1.bf16.msra.mxu0 0
        %2182 = vmatprep.mubr.bf16.mxu0 0
        %2183 = vmatmul.mubr.bf16.gmra.mrb[0].mxu0 %v2148
        %v2184 = vpop.f32.mrb[0].mxu0
        %v2185 = vadd.f32 0.0, %v2184
        %v2186 = vpop.f32.mrb[0].mxu0
        %v2187 = vpop.f32.mrb[0].mxu0
        %v2188 = vpop.f32.mrb[0].mxu0
        %2189 = vdwg.mxu0
        %v2191 = vsel %vm2060, %v841, 0
        %2193 = vmatprep.subr.bf16.mxu0 0
        %2194 = vmatpush1.bf16.msra.mxu0 %v2010
        %2195 = vmatprep.subr.bf16.mxu0 0
        %2196 = vmatpush1.bf16.msra.mxu0 %v2042
        %2197 = vmatprep.subr.bf16.mxu0 0
        %2198 = vmatpush1.bf16.msra.mxu0 0
        %2199 = vmatprep.subr.bf16.mxu0 0
        %2200 = vmatpush1.bf16.msra.mxu0 0
        %2201 = vmatprep.subr.bf16.mxu0 0
        %2202 = vmatpush1.bf16.msra.mxu0 0
        %2203 = vmatprep.subr.bf16.mxu0 0
        %2204 = vmatpush1.bf16.msra.mxu0 0
        %2205 = vmatprep.subr.bf16.mxu0 0
        %2206 = vmatpush1.bf16.msra.mxu0 0
        %2207 = vmatprep.subr.bf16.mxu0 0
        %2208 = vmatpush1.bf16.msra.mxu0 0
        %2209 = vmatprep.subr.bf16.mxu0 0
        %2210 = vmatpush1.bf16.msra.mxu0 0
        %2211 = vmatprep.subr.bf16.mxu0 0
        %2212 = vmatpush1.bf16.msra.mxu0 0
        %2213 = vmatprep.subr.bf16.mxu0 0
        %2214 = vmatpush1.bf16.msra.mxu0 0
        %2215 = vmatprep.subr.bf16.mxu0 0
        %2216 = vmatpush1.bf16.msra.mxu0 0
        %2217 = vmatprep.subr.bf16.mxu0 0
        %2218 = vmatpush1.bf16.msra.mxu0 0
        %2219 = vmatprep.subr.bf16.mxu0 0
        %2220 = vmatpush1.bf16.msra.mxu0 0
        %2221 = vmatprep.subr.bf16.mxu0 0
        %2222 = vmatpush1.bf16.msra.mxu0 0
        %2223 = vmatprep.subr.bf16.mxu0 0
        %2224 = vmatpush1.bf16.msra.mxu0 0
        %2225 = vmatprep.mubr.bf16.mxu0 0
        %2226 = vmatmul.mubr.bf16.gmra.mrb[0].mxu0 %v2191
        %v2227 = vpop.f32.mrb[0].mxu0
        %v2228 = vadd.f32 0.0, %v2227
        %v2229 = vpop.f32.mrb[0].mxu0
        %v2230 = vpop.f32.mrb[0].mxu0
        %v2231 = vpop.f32.mrb[0].mxu0
        %2232 = vdwg.mxu0
        %v2234 = vsel %vm2060, %v842, 0
        %2236 = vmatprep.subr.bf16.mxu0 0
        %2237 = vmatpush1.bf16.msra.mxu0 %v2014
        %2238 = vmatprep.subr.bf16.mxu0 0
        %2239 = vmatpush1.bf16.msra.mxu0 %v2046
        %2240 = vmatprep.subr.bf16.mxu0 0
        %2241 = vmatpush1.bf16.msra.mxu0 0
        %2242 = vmatprep.subr.bf16.mxu0 0
        %2243 = vmatpush1.bf16.msra.mxu0 0
        %2244 = vmatprep.subr.bf16.mxu0 0
        %2245 = vmatpush1.bf16.msra.mxu0 0
        %2246 = vmatprep.subr.bf16.mxu0 0
        %2247 = vmatpush1.bf16.msra.mxu0 0
        %2248 = vmatprep.subr.bf16.mxu0 0
        %2249 = vmatpush1.bf16.msra.mxu0 0
        %2250 = vmatprep.subr.bf16.mxu0 0
        %2251 = vmatpush1.bf16.msra.mxu0 0
        %2252 = vmatprep.subr.bf16.mxu0 0
        %2253 = vmatpush1.bf16.msra.mxu0 0
        %2254 = vmatprep.subr.bf16.mxu0 0
        %2255 = vmatpush1.bf16.msra.mxu0 0
        %2256 = vmatprep.subr.bf16.mxu0 0
        %2257 = vmatpush1.bf16.msra.mxu0 0
        %2258 = vmatprep.subr.bf16.mxu0 0
        %2259 = vmatpush1.bf16.msra.mxu0 0
        %2260 = vmatprep.subr.bf16.mxu0 0
        %2261 = vmatpush1.bf16.msra.mxu0 0
        %2262 = vmatprep.subr.bf16.mxu0 0
        %2263 = vmatpush1.bf16.msra.mxu0 0
        %2264 = vmatprep.subr.bf16.mxu0 0
        %2265 = vmatpush1.bf16.msra.mxu0 0
        %2266 = vmatprep.subr.bf16.mxu0 0
        %2267 = vmatpush1.bf16.msra.mxu0 0
        %2268 = vmatprep.mubr.bf16.mxu0 0
        %2269 = vmatmul.mubr.bf16.gmra.mrb[0].mxu0 %v2234
        %v2270 = vpop.f32.mrb[0].mxu0
        %v2271 = vadd.f32 0.0, %v2270
        %v2272 = vpop.f32.mrb[0].mxu0
        %v2273 = vpop.f32.mrb[0].mxu0
        %v2274 = vpop.f32.mrb[0].mxu0
        %2275 = vdwg.mxu0
        %v2277 = vsel %vm2060, %v843, 0
        %2279 = vmatprep.subr.bf16.mxu0 0
        %2280 = vmatpush1.bf16.msra.mxu0 %v2018
        %2281 = vmatprep.subr.bf16.mxu0 0
        %2282 = vmatpush1.bf16.msra.mxu0 %v2050
        %2283 = vmatprep.subr.bf16.mxu0 0
        %2284 = vmatpush1.bf16.msra.mxu0 0
        %2285 = vmatprep.subr.bf16.mxu0 0
        %2286 = vmatpush1.bf16.msra.mxu0 0
        %2287 = vmatprep.subr.bf16.mxu0 0
        %2288 = vmatpush1.bf16.msra.mxu0 0
        %2289 = vmatprep.subr.bf16.mxu0 0
        %2290 = vmatpush1.bf16.msra.mxu0 0
        %2291 = vmatprep.subr.bf16.mxu0 0
        %2292 = vmatpush1.bf16.msra.mxu0 0
        %2293 = vmatprep.subr.bf16.mxu0 0
        %2294 = vmatpush1.bf16.msra.mxu0 0
        %2295 = vmatprep.subr.bf16.mxu0 0
        %2296 = vmatpush1.bf16.msra.mxu0 0
        %2297 = vmatprep.subr.bf16.mxu0 0
        %2298 = vmatpush1.bf16.msra.mxu0 0
        %2299 = vmatprep.subr.bf16.mxu0 0
        %2300 = vmatpush1.bf16.msra.mxu0 0
        %2301 = vmatprep.subr.bf16.mxu0 0
        %2302 = vmatpush1.bf16.msra.mxu0 0
        %2303 = vmatprep.subr.bf16.mxu0 0
        %2304 = vmatpush1.bf16.msra.mxu0 0
        %2305 = vmatprep.subr.bf16.mxu0 0
        %2306 = vmatpush1.bf16.msra.mxu0 0
        %2307 = vmatprep.subr.bf16.mxu0 0
        %2308 = vmatpush1.bf16.msra.mxu0 0
        %2309 = vmatprep.subr.bf16.mxu0 0
        %2310 = vmatpush1.bf16.msra.mxu0 0
        %2311 = vmatprep.mubr.bf16.mxu0 0
        %2312 = vmatmul.mubr.bf16.gmra.mrb[0].mxu0 %v2277
        %v2313 = vpop.f32.mrb[0].mxu0
        %v2314 = vadd.f32 0.0, %v2313
        %v2315 = vpop.f32.mrb[0].mxu0
        %v2316 = vpop.f32.mrb[0].mxu0
        %v2317 = vpop.f32.mrb[0].mxu0
        %2318 = vdwg.mxu0
        %v2320 = vsel %vm2060, %v844, 0
        %2322 = vmatprep.subr.bf16.mxu0 0
        %2323 = vmatpush1.bf16.msra.mxu0 %v2022
        %2324 = vmatprep.subr.bf16.mxu0 0
        %2325 = vmatpush1.bf16.msra.mxu0 %v2054
        %2326 = vmatprep.subr.bf16.mxu0 0
        %2327 = vmatpush1.bf16.msra.mxu0 0
        %2328 = vmatprep.subr.bf16.mxu0 0
        %2329 = vmatpush1.bf16.msra.mxu0 0
        %2330 = vmatprep.subr.bf16.mxu0 0
        %2331 = vmatpush1.bf16.msra.mxu0 0
        %2332 = vmatprep.subr.bf16.mxu0 0
        %2333 = vmatpush1.bf16.msra.mxu0 0
        %2334 = vmatprep.subr.bf16.mxu0 0
        %2335 = vmatpush1.bf16.msra.mxu0 0
        %2336 = vmatprep.subr.bf16.mxu0 0
        %2337 = vmatpush1.bf16.msra.mxu0 0
        %2338 = vmatprep.subr.bf16.mxu0 0
        %2339 = vmatpush1.bf16.msra.mxu0 0
        %2340 = vmatprep.subr.bf16.mxu0 0
        %2341 = vmatpush1.bf16.msra.mxu0 0
        %2342 = vmatprep.subr.bf16.mxu0 0
        %2343 = vmatpush1.bf16.msra.mxu0 0
        %2344 = vmatprep.subr.bf16.mxu0 0
        %2345 = vmatpush1.bf16.msra.mxu0 0
        %2346 = vmatprep.subr.bf16.mxu0 0
        %2347 = vmatpush1.bf16.msra.mxu0 0
        %2348 = vmatprep.subr.bf16.mxu0 0
        %2349 = vmatpush1.bf16.msra.mxu0 0
        %2350 = vmatprep.subr.bf16.mxu0 0
        %2351 = vmatpush1.bf16.msra.mxu0 0
        %2352 = vmatprep.subr.bf16.mxu0 0
        %2353 = vmatpush1.bf16.msra.mxu0 0
        %2354 = vmatprep.mubr.bf16.mxu0 0
        %2355 = vmatmul.mubr.bf16.gmra.mrb[0].mxu0 %v2320
        %v2356 = vpop.f32.mrb[0].mxu0
        %v2357 = vadd.f32 0.0, %v2356
        %v2358 = vpop.f32.mrb[0].mxu0
        %v2359 = vpop.f32.mrb[0].mxu0
        %v2360 = vpop.f32.mrb[0].mxu0
        %2361 = vdwg.mxu0
        %v2363 = vsel %vm2060, %v845, 0
        %2365 = vmatprep.subr.bf16.mxu0 0
        %2366 = vmatpush1.bf16.msra.mxu0 %v2026
        %2367 = vmatprep.subr.bf16.mxu0 0
        %2368 = vmatpush1.bf16.msra.mxu0 %v2058
        %2369 = vmatprep.subr.bf16.mxu0 0
        %2370 = vmatpush1.bf16.msra.mxu0 0
        %2371 = vmatprep.subr.bf16.mxu0 0
        %2372 = vmatpush1.bf16.msra.mxu0 0
        %2373 = vmatprep.subr.bf16.mxu0 0
        %2374 = vmatpush1.bf16.msra.mxu0 0
        %2375 = vmatprep.subr.bf16.mxu0 0
        %2376 = vmatpush1.bf16.msra.mxu0 0
        %2377 = vmatprep.subr.bf16.mxu0 0
        %2378 = vmatpush1.bf16.msra.mxu0 0
        %2379 = vmatprep.subr.bf16.mxu0 0
        %2380 = vmatpush1.bf16.msra.mxu0 0
        %2381 = vmatprep.subr.bf16.mxu0 0
        %2382 = vmatpush1.bf16.msra.mxu0 0
        %2383 = vmatprep.subr.bf16.mxu0 0
        %2384 = vmatpush1.bf16.msra.mxu0 0
        %2385 = vmatprep.subr.bf16.mxu0 0
        %2386 = vmatpush1.bf16.msra.mxu0 0
        %2387 = vmatprep.subr.bf16.mxu0 0
        %2388 = vmatpush1.bf16.msra.mxu0 0
        %2389 = vmatprep.subr.bf16.mxu0 0
        %2390 = vmatpush1.bf16.msra.mxu0 0
        %2391 = vmatprep.subr.bf16.mxu0 0
        %2392 = vmatpush1.bf16.msra.mxu0 0
        %2393 = vmatprep.subr.bf16.mxu0 0
        %2394 = vmatpush1.bf16.msra.mxu0 0
        %2395 = vmatprep.subr.bf16.mxu0 0
        %2396 = vmatpush1.bf16.msra.mxu0 0
        %2397 = vmatprep.mubr.bf16.mxu0 0
        %2398 = vmatmul.mubr.bf16.gmra.mrb[0].mxu0 %v2363
        %v2399 = vpop.f32.mrb[0].mxu0
        %v2400 = vadd.f32 0.0, %v2399
        %v2401 = vpop.f32.mrb[0].mxu0
        %v2402 = vpop.f32.mrb[0].mxu0
        %v2403 = vpop.f32.mrb[0].mxu0
        %2404 = vdwg.mxu0
        %2405 = vxpose.xlu0.b32.start [1/16] %v2099, 128
        %2406 = vxpose.xlu0.b32.cont [2/16] 0.0, 128
        %2407 = vxpose.xlu0.b32.cont [3/16] 0.0, 128
        %2408 = vxpose.xlu0.b32.cont [4/16] 0.0, 128
        %2409 = vxpose.xlu0.b32.cont [5/16] 0.0, 128
        %2410 = vxpose.xlu0.b32.cont [6/16] 0.0, 128
        %2411 = vxpose.xlu0.b32.cont [7/16] 0.0, 128
        %2412 = vxpose.xlu0.b32.cont [8/16] 0.0, 128
        %2413 = vxpose.xlu0.b32.cont [9/16] 0.0, 128
        %2414 = vxpose.xlu0.b32.cont [10/16] 0.0, 128
        %2415 = vxpose.xlu0.b32.cont [11/16] 0.0, 128
        %2416 = vxpose.xlu0.b32.cont [12/16] 0.0, 128
        %2417 = vxpose.xlu0.b32.cont [13/16] 0.0, 128
        %2418 = vxpose.xlu0.b32.cont [14/16] 0.0, 128
        %2419 = vxpose.xlu0.b32.cont [15/16] 0.0, 128
        %2420 = vxpose.xlu0.b32.end [16/16] 0.0, 128
        %v2421 = vpop.trf.xlu0
        %v2422 = vpop.trf.xlu0
        %v2423 = vpop.trf.xlu0
        %v2424 = vpop.trf.xlu0
        %v2425 = vpop.trf.xlu0
        %v2426 = vpop.trf.xlu0
        %v2427 = vpop.trf.xlu0
        %v2428 = vpop.trf.xlu0
        %v2429 = vpop.trf.xlu0
        %v2430 = vpop.trf.xlu0
        %v2431 = vpop.trf.xlu0
        %v2432 = vpop.trf.xlu0
        %v2433 = vpop.trf.xlu0
        %v2434 = vpop.trf.xlu0
        %v2435 = vpop.trf.xlu0
        %v2436 = vpop.trf.xlu0
        %2437 = vxpose.xlu0.b32.start [1/16] %v2142, 128
        %2438 = vxpose.xlu0.b32.cont [2/16] 0.0, 128
        %2439 = vxpose.xlu0.b32.cont [3/16] 0.0, 128
        %2440 = vxpose.xlu0.b32.cont [4/16] 0.0, 128
        %2441 = vxpose.xlu0.b32.cont [5/16] 0.0, 128
        %2442 = vxpose.xlu0.b32.cont [6/16] 0.0, 128
        %2443 = vxpose.xlu0.b32.cont [7/16] 0.0, 128
        %2444 = vxpose.xlu0.b32.cont [8/16] 0.0, 128
        %2445 = vxpose.xlu0.b32.cont [9/16] 0.0, 128
        %2446 = vxpose.xlu0.b32.cont [10/16] 0.0, 128
        %2447 = vxpose.xlu0.b32.cont [11/16] 0.0, 128
        %2448 = vxpose.xlu0.b32.cont [12/16] 0.0, 128
        %2449 = vxpose.xlu0.b32.cont [13/16] 0.0, 128
        %2450 = vxpose.xlu0.b32.cont [14/16] 0.0, 128
        %2451 = vxpose.xlu0.b32.cont [15/16] 0.0, 128
        %2452 = vxpose.xlu0.b32.end [16/16] 0.0, 128
        %v2453 = vpop.trf.xlu0
        %v2454 = vpop.trf.xlu0
        %v2455 = vpop.trf.xlu0
        %v2456 = vpop.trf.xlu0
        %v2457 = vpop.trf.xlu0
        %v2458 = vpop.trf.xlu0
        %v2459 = vpop.trf.xlu0
        %v2460 = vpop.trf.xlu0
        %v2461 = vpop.trf.xlu0
        %v2462 = vpop.trf.xlu0
        %v2463 = vpop.trf.xlu0
        %v2464 = vpop.trf.xlu0
        %v2465 = vpop.trf.xlu0
        %v2466 = vpop.trf.xlu0
        %v2467 = vpop.trf.xlu0
        %v2468 = vpop.trf.xlu0
        %2469 = vxpose.xlu0.b32.start [1/16] %v2185, 128
        %2470 = vxpose.xlu0.b32.cont [2/16] 0.0, 128
        %2471 = vxpose.xlu0.b32.cont [3/16] 0.0, 128
        %2472 = vxpose.xlu0.b32.cont [4/16] 0.0, 128
        %2473 = vxpose.xlu0.b32.cont [5/16] 0.0, 128
        %2474 = vxpose.xlu0.b32.cont [6/16] 0.0, 128
        %2475 = vxpose.xlu0.b32.cont [7/16] 0.0, 128
        %2476 = vxpose.xlu0.b32.cont [8/16] 0.0, 128
        %2477 = vxpose.xlu0.b32.cont [9/16] 0.0, 128
        %2478 = vxpose.xlu0.b32.cont [10/16] 0.0, 128
        %2479 = vxpose.xlu0.b32.cont [11/16] 0.0, 128
        %2480 = vxpose.xlu0.b32.cont [12/16] 0.0, 128
        %2481 = vxpose.xlu0.b32.cont [13/16] 0.0, 128
        %2482 = vxpose.xlu0.b32.cont [14/16] 0.0, 128
        %2483 = vxpose.xlu0.b32.cont [15/16] 0.0, 128
        %2484 = vxpose.xlu0.b32.end [16/16] 0.0, 128
        %v2485 = vpop.trf.xlu0
        %v2486 = vpop.trf.xlu0
        %v2487 = vpop.trf.xlu0
        %v2488 = vpop.trf.xlu0
        %v2489 = vpop.trf.xlu0
        %v2490 = vpop.trf.xlu0
        %v2491 = vpop.trf.xlu0
        %v2492 = vpop.trf.xlu0
        %v2493 = vpop.trf.xlu0
        %v2494 = vpop.trf.xlu0
        %v2495 = vpop.trf.xlu0
        %v2496 = vpop.trf.xlu0
        %v2497 = vpop.trf.xlu0
        %v2498 = vpop.trf.xlu0
        %v2499 = vpop.trf.xlu0
        %v2500 = vpop.trf.xlu0
        %2501 = vxpose.xlu0.b32.start [1/16] %v2228, 128
        %2502 = vxpose.xlu0.b32.cont [2/16] 0.0, 128
        %2503 = vxpose.xlu0.b32.cont [3/16] 0.0, 128
        %2504 = vxpose.xlu0.b32.cont [4/16] 0.0, 128
        %2505 = vxpose.xlu0.b32.cont [5/16] 0.0, 128
        %2506 = vxpose.xlu0.b32.cont [6/16] 0.0, 128
        %2507 = vxpose.xlu0.b32.cont [7/16] 0.0, 128
        %2508 = vxpose.xlu0.b32.cont [8/16] 0.0, 128
        %2509 = vxpose.xlu0.b32.cont [9/16] 0.0, 128
        %2510 = vxpose.xlu0.b32.cont [10/16] 0.0, 128
        %2511 = vxpose.xlu0.b32.cont [11/16] 0.0, 128
        %2512 = vxpose.xlu0.b32.cont [12/16] 0.0, 128
        %2513 = vxpose.xlu0.b32.cont [13/16] 0.0, 128
        %2514 = vxpose.xlu0.b32.cont [14/16] 0.0, 128
        %2515 = vxpose.xlu0.b32.cont [15/16] 0.0, 128
        %2516 = vxpose.xlu0.b32.end [16/16] 0.0, 128
        %v2517 = vpop.trf.xlu0
        %v2518 = vpop.trf.xlu0
        %v2519 = vpop.trf.xlu0
        %v2520 = vpop.trf.xlu0
        %v2521 = vpop.trf.xlu0
        %v2522 = vpop.trf.xlu0
        %v2523 = vpop.trf.xlu0
        %v2524 = vpop.trf.xlu0
        %v2525 = vpop.trf.xlu0
        %v2526 = vpop.trf.xlu0
        %v2527 = vpop.trf.xlu0
        %v2528 = vpop.trf.xlu0
        %v2529 = vpop.trf.xlu0
        %v2530 = vpop.trf.xlu0
        %v2531 = vpop.trf.xlu0
        %v2532 = vpop.trf.xlu0
        %2533 = vxpose.xlu0.b32.start [1/16] %v2271, 128
        %2534 = vxpose.xlu0.b32.cont [2/16] 0.0, 128
        %2535 = vxpose.xlu0.b32.cont [3/16] 0.0, 128
        %2536 = vxpose.xlu0.b32.cont [4/16] 0.0, 128
        %2537 = vxpose.xlu0.b32.cont [5/16] 0.0, 128
        %2538 = vxpose.xlu0.b32.cont [6/16] 0.0, 128
        %2539 = vxpose.xlu0.b32.cont [7/16] 0.0, 128
        %2540 = vxpose.xlu0.b32.cont [8/16] 0.0, 128
        %2541 = vxpose.xlu0.b32.cont [9/16] 0.0, 128
        %2542 = vxpose.xlu0.b32.cont [10/16] 0.0, 128
        %2543 = vxpose.xlu0.b32.cont [11/16] 0.0, 128
        %2544 = vxpose.xlu0.b32.cont [12/16] 0.0, 128
        %2545 = vxpose.xlu0.b32.cont [13/16] 0.0, 128
        %2546 = vxpose.xlu0.b32.cont [14/16] 0.0, 128
        %2547 = vxpose.xlu0.b32.cont [15/16] 0.0, 128
        %2548 = vxpose.xlu0.b32.end [16/16] 0.0, 128
        %v2549 = vpop.trf.xlu0
        %v2550 = vpop.trf.xlu0
        %v2551 = vpop.trf.xlu0
        %v2552 = vpop.trf.xlu0
        %v2553 = vpop.trf.xlu0
        %v2554 = vpop.trf.xlu0
        %v2555 = vpop.trf.xlu0
        %v2556 = vpop.trf.xlu0
        %v2557 = vpop.trf.xlu0
        %v2558 = vpop.trf.xlu0
        %v2559 = vpop.trf.xlu0
        %v2560 = vpop.trf.xlu0
        %v2561 = vpop.trf.xlu0
        %v2562 = vpop.trf.xlu0
        %v2563 = vpop.trf.xlu0
        %v2564 = vpop.trf.xlu0
        %2565 = vxpose.xlu0.b32.start [1/16] %v2314, 128
        %2566 = vxpose.xlu0.b32.cont [2/16] 0.0, 128
        %2567 = vxpose.xlu0.b32.cont [3/16] 0.0, 128
        %2568 = vxpose.xlu0.b32.cont [4/16] 0.0, 128
        %2569 = vxpose.xlu0.b32.cont [5/16] 0.0, 128
        %2570 = vxpose.xlu0.b32.cont [6/16] 0.0, 128
        %2571 = vxpose.xlu0.b32.cont [7/16] 0.0, 128
        %2572 = vxpose.xlu0.b32.cont [8/16] 0.0, 128
        %2573 = vxpose.xlu0.b32.cont [9/16] 0.0, 128
        %2574 = vxpose.xlu0.b32.cont [10/16] 0.0, 128
        %2575 = vxpose.xlu0.b32.cont [11/16] 0.0, 128
        %2576 = vxpose.xlu0.b32.cont [12/16] 0.0, 128
        %2577 = vxpose.xlu0.b32.cont [13/16] 0.0, 128
        %2578 = vxpose.xlu0.b32.cont [14/16] 0.0, 128
        %2579 = vxpose.xlu0.b32.cont [15/16] 0.0, 128
        %2580 = vxpose.xlu0.b32.end [16/16] 0.0, 128
        %v2581 = vpop.trf.xlu0
        %v2582 = vpop.trf.xlu0
        %v2583 = vpop.trf.xlu0
        %v2584 = vpop.trf.xlu0
        %v2585 = vpop.trf.xlu0
        %v2586 = vpop.trf.xlu0
        %v2587 = vpop.trf.xlu0
        %v2588 = vpop.trf.xlu0
        %v2589 = vpop.trf.xlu0
        %v2590 = vpop.trf.xlu0
        %v2591 = vpop.trf.xlu0
        %v2592 = vpop.trf.xlu0
        %v2593 = vpop.trf.xlu0
        %v2594 = vpop.trf.xlu0
        %v2595 = vpop.trf.xlu0
        %v2596 = vpop.trf.xlu0
        %2597 = vxpose.xlu0.b32.start [1/16] %v2357, 128
        %2598 = vxpose.xlu0.b32.cont [2/16] 0.0, 128
        %2599 = vxpose.xlu0.b32.cont [3/16] 0.0, 128
        %2600 = vxpose.xlu0.b32.cont [4/16] 0.0, 128
        %2601 = vxpose.xlu0.b32.cont [5/16] 0.0, 128
        %2602 = vxpose.xlu0.b32.cont [6/16] 0.0, 128
        %2603 = vxpose.xlu0.b32.cont [7/16] 0.0, 128
        %2604 = vxpose.xlu0.b32.cont [8/16] 0.0, 128
        %2605 = vxpose.xlu0.b32.cont [9/16] 0.0, 128
        %2606 = vxpose.xlu0.b32.cont [10/16] 0.0, 128
        %2607 = vxpose.xlu0.b32.cont [11/16] 0.0, 128
        %2608 = vxpose.xlu0.b32.cont [12/16] 0.0, 128
        %2609 = vxpose.xlu0.b32.cont [13/16] 0.0, 128
        %2610 = vxpose.xlu0.b32.cont [14/16] 0.0, 128
        %2611 = vxpose.xlu0.b32.cont [15/16] 0.0, 128
        %2612 = vxpose.xlu0.b32.end [16/16] 0.0, 128
        %v2613 = vpop.trf.xlu0
        %v2614 = vpop.trf.xlu0
        %v2615 = vpop.trf.xlu0
        %v2616 = vpop.trf.xlu0
        %v2617 = vpop.trf.xlu0
        %v2618 = vpop.trf.xlu0
        %v2619 = vpop.trf.xlu0
        %v2620 = vpop.trf.xlu0
        %v2621 = vpop.trf.xlu0
        %v2622 = vpop.trf.xlu0
        %v2623 = vpop.trf.xlu0
        %v2624 = vpop.trf.xlu0
        %v2625 = vpop.trf.xlu0
        %v2626 = vpop.trf.xlu0
        %v2627 = vpop.trf.xlu0
        %v2628 = vpop.trf.xlu0
        %2629 = vxpose.xlu0.b32.start [1/16] %v2400, 128
        %2630 = vxpose.xlu0.b32.cont [2/16] 0.0, 128
        %2631 = vxpose.xlu0.b32.cont [3/16] 0.0, 128
        %2632 = vxpose.xlu0.b32.cont [4/16] 0.0, 128
        %2633 = vxpose.xlu0.b32.cont [5/16] 0.0, 128
        %2634 = vxpose.xlu0.b32.cont [6/16] 0.0, 128
        %2635 = vxpose.xlu0.b32.cont [7/16] 0.0, 128
        %2636 = vxpose.xlu0.b32.cont [8/16] 0.0, 128
        %2637 = vxpose.xlu0.b32.cont [9/16] 0.0, 128
        %2638 = vxpose.xlu0.b32.cont [10/16] 0.0, 128
        %2639 = vxpose.xlu0.b32.cont [11/16] 0.0, 128
        %2640 = vxpose.xlu0.b32.cont [12/16] 0.0, 128
        %2641 = vxpose.xlu0.b32.cont [13/16] 0.0, 128
        %2642 = vxpose.xlu0.b32.cont [14/16] 0.0, 128
        %2643 = vxpose.xlu0.b32.cont [15/16] 0.0, 128
        %2644 = vxpose.xlu0.b32.end [16/16] 0.0, 128
        %v2645 = vpop.trf.xlu0
        %v2646 = vpop.trf.xlu0
        %v2647 = vpop.trf.xlu0
        %v2648 = vpop.trf.xlu0
        %v2649 = vpop.trf.xlu0
        %v2650 = vpop.trf.xlu0
        %v2651 = vpop.trf.xlu0
        %v2652 = vpop.trf.xlu0
        %v2653 = vpop.trf.xlu0
        %v2654 = vpop.trf.xlu0
        %v2655 = vpop.trf.xlu0
        %v2656 = vpop.trf.xlu0
        %v2657 = vpop.trf.xlu0
        %v2658 = vpop.trf.xlu0
        %v2659 = vpop.trf.xlu0
        %v2660 = vpop.trf.xlu0
        %v2661 = vcombine.low %v2421, %v2485
        %v2663 = vunpack.c.l.s4 1983009808
        %v2664 = vunpack.c.0.s8 %v2663
        %v2665 = vlaneseq
        %v2666 = vshrl.u32 %v2665, 7
        %v2667 = vsub.s32 %v2664, %v2666
        %v2668 = vrot.slane %v2661, %v2667
        %v2669 = vcombine.low %v2453, %v2517
        %v2671 = vunpack.c.l.s4 1983009808
        %v2672 = vunpack.c.0.s8 %v2671
        %v2673 = vlaneseq
        %v2674 = vshrl.u32 %v2673, 7
        %v2675 = vsub.s32 %v2672, %v2674
        %v2676 = vrot.slane %v2669, %v2675
        %v2677 = vcombine.low %v2549, %v2613
        %v2679 = vunpack.c.l.s4 1983009808
        %v2680 = vunpack.c.0.s8 %v2679
        %v2681 = vlaneseq
        %v2682 = vshrl.u32 %v2681, 7
        %v2683 = vsub.s32 %v2680, %v2682
        %v2684 = vrot.slane %v2677, %v2683
        %v2685 = vcombine.low %v2581, %v2645
        %v2687 = vunpack.c.l.s4 1983009808
        %v2688 = vunpack.c.0.s8 %v2687
        %v2689 = vlaneseq
        %v2690 = vshrl.u32 %v2689, 7
        %v2691 = vsub.s32 %v2688, %v2690
        %v2692 = vrot.slane %v2685, %v2691
        %v2693 = vcombine.low %v2668, %v2676
        %v2694 = vcombine.high %v2668, %v2676
        %v2696 = vunpack.c.l.s4 1934713408
        %v2697 = vunpack.c.0.s8 %v2696
        %v2698 = vlaneseq
        %v2699 = vshrl.u32 %v2698, 7
        %v2700 = vsub.s32 %v2697, %v2699
        %v2701 = vrot.slane %v2693, %v2700
        %v2703 = vunpack.c.l.s4 1934713408
        %v2704 = vunpack.c.0.s8 %v2703
        %v2705 = vlaneseq
        %v2706 = vshrl.u32 %v2705, 7
        %v2707 = vsub.s32 %v2704, %v2706
        %v2708 = vrot.slane %v2694, %v2707
        %v2709 = vcombine.low %v2684, %v2692
        %v2710 = vcombine.high %v2684, %v2692
        %v2712 = vunpack.c.l.s4 1934713408
        %v2713 = vunpack.c.0.s8 %v2712
        %v2714 = vlaneseq
        %v2715 = vshrl.u32 %v2714, 7
        %v2716 = vsub.s32 %v2713, %v2715
        %v2717 = vrot.slane %v2709, %v2716
        %v2719 = vunpack.c.l.s4 1934713408
        %v2720 = vunpack.c.0.s8 %v2719
        %v2721 = vlaneseq
        %v2722 = vshrl.u32 %v2721, 7
        %v2723 = vsub.s32 %v2720, %v2722
        %v2724 = vrot.slane %v2710, %v2723
        %v2725 = vcombine.low %v2701, %v2717
        %v2726 = vcombine.high %v2701, %v2717
        %v2727 = vcombine.low %v2708, %v2724
        %v2728 = vcombine.high %v2708, %v2724
        %vm2729 = vcmask 64512
        %v2731 = vsel %vm2729, %v826, 0
        %vm2733 = vcmask 1043456
        %v2735 = vsel %vm2733, %v830, 0
        %2737 = vmatprep.subr.bf16.mxu0 0
        %2738 = vmatpush1.bf16.msra.mxu0 %v2735
        %2739 = vmatprep.subr.bf16.mxu0 0
        %2740 = vmatpush1.bf16.msra.mxu0 0
        %2741 = vmatprep.subr.bf16.mxu0 0
        %2742 = vmatpush1.bf16.msra.mxu0 0
        %2743 = vmatprep.subr.bf16.mxu0 0
        %2744 = vmatpush1.bf16.msra.mxu0 0
        %2745 = vmatprep.subr.bf16.mxu0 0
        %2746 = vmatpush1.bf16.msra.mxu0 0
        %2747 = vmatprep.subr.bf16.mxu0 0
        %2748 = vmatpush1.bf16.msra.mxu0 0
        %2749 = vmatprep.subr.bf16.mxu0 0
        %2750 = vmatpush1.bf16.msra.mxu0 0
        %2751 = vmatprep.subr.bf16.mxu0 0
        %2752 = vmatpush1.bf16.msra.mxu0 0
        %2753 = vmatprep.subr.bf16.mxu0 0
        %2754 = vmatpush1.bf16.msra.mxu0 0
        %2755 = vmatprep.subr.bf16.mxu0 0
        %2756 = vmatpush1.bf16.msra.mxu0 0
        %2757 = vmatprep.subr.bf16.mxu0 0
        %2758 = vmatpush1.bf16.msra.mxu0 0
        %2759 = vmatprep.subr.bf16.mxu0 0
        %2760 = vmatpush1.bf16.msra.mxu0 0
        %2761 = vmatprep.subr.bf16.mxu0 0
        %2762 = vmatpush1.bf16.msra.mxu0 0
        %2763 = vmatprep.subr.bf16.mxu0 0
        %2764 = vmatpush1.bf16.msra.mxu0 0
        %2765 = vmatprep.subr.bf16.mxu0 0
        %2766 = vmatpush1.bf16.msra.mxu0 0
        %2767 = vmatprep.subr.bf16.mxu0 0
        %2768 = vmatpush1.bf16.msra.mxu0 0
        %2769 = vmatprep.mubr.bf16.mxu0 0
        %2770 = vmatmul.mubr.bf16.gmra.mrb[0].mxu0 %v2731
        %v2771 = vpop.f32.mrb[0].mxu0
        %v2772 = vadd.f32 %v2725, %v2771
        %v2773 = vpop.f32.mrb[0].mxu0
        %v2774 = vpop.f32.mrb[0].mxu0
        %v2775 = vpop.f32.mrb[0].mxu0
        %2776 = vdwg.mxu0
        %v2778 = vsel %vm2729, %v827, 0
        %v2781 = vsel %vm2733, %v831, 0
        %2783 = vmatprep.subr.bf16.mxu0 0
        %2784 = vmatpush1.bf16.msra.mxu0 %v2781
        %2785 = vmatprep.subr.bf16.mxu0 0
        %2786 = vmatpush1.bf16.msra.mxu0 0
        %2787 = vmatprep.subr.bf16.mxu0 0
        %2788 = vmatpush1.bf16.msra.mxu0 0
        %2789 = vmatprep.subr.bf16.mxu0 0
        %2790 = vmatpush1.bf16.msra.mxu0 0
        %2791 = vmatprep.subr.bf16.mxu0 0
        %2792 = vmatpush1.bf16.msra.mxu0 0
        %2793 = vmatprep.subr.bf16.mxu0 0
        %2794 = vmatpush1.bf16.msra.mxu0 0
        %2795 = vmatprep.subr.bf16.mxu0 0
        %2796 = vmatpush1.bf16.msra.mxu0 0
        %2797 = vmatprep.subr.bf16.mxu0 0
        %2798 = vmatpush1.bf16.msra.mxu0 0
        %2799 = vmatprep.subr.bf16.mxu0 0
        %2800 = vmatpush1.bf16.msra.mxu0 0
        %2801 = vmatprep.subr.bf16.mxu0 0
        %2802 = vmatpush1.bf16.msra.mxu0 0
        %2803 = vmatprep.subr.bf16.mxu0 0
        %2804 = vmatpush1.bf16.msra.mxu0 0
        %2805 = vmatprep.subr.bf16.mxu0 0
        %2806 = vmatpush1.bf16.msra.mxu0 0
        %2807 = vmatprep.subr.bf16.mxu0 0
        %2808 = vmatpush1.bf16.msra.mxu0 0
        %2809 = vmatprep.subr.bf16.mxu0 0
        %2810 = vmatpush1.bf16.msra.mxu0 0
        %2811 = vmatprep.subr.bf16.mxu0 0
        %2812 = vmatpush1.bf16.msra.mxu0 0
        %2813 = vmatprep.subr.bf16.mxu0 0
        %2814 = vmatpush1.bf16.msra.mxu0 0
        %2815 = vmatprep.mubr.bf16.mxu0 0
        %2816 = vmatmul.mubr.bf16.gmra.mrb[0].mxu0 %v2778
        %v2817 = vpop.f32.mrb[0].mxu0
        %v2818 = vadd.f32 %v2726, %v2817
        %v2819 = vpop.f32.mrb[0].mxu0
        %v2820 = vpop.f32.mrb[0].mxu0
        %v2821 = vpop.f32.mrb[0].mxu0
        %2822 = vdwg.mxu0
        %v2824 = vsel %vm2729, %v828, 0
        %v2827 = vsel %vm2733, %v832, 0
        %2829 = vmatprep.subr.bf16.mxu0 0
        %2830 = vmatpush1.bf16.msra.mxu0 %v2827
        %2831 = vmatprep.subr.bf16.mxu0 0
        %2832 = vmatpush1.bf16.msra.mxu0 0
        %2833 = vmatprep.subr.bf16.mxu0 0
        %2834 = vmatpush1.bf16.msra.mxu0 0
        %2835 = vmatprep.subr.bf16.mxu0 0
        %2836 = vmatpush1.bf16.msra.mxu0 0
        %2837 = vmatprep.subr.bf16.mxu0 0
        %2838 = vmatpush1.bf16.msra.mxu0 0
        %2839 = vmatprep.subr.bf16.mxu0 0
        %2840 = vmatpush1.bf16.msra.mxu0 0
        %2841 = vmatprep.subr.bf16.mxu0 0
        %2842 = vmatpush1.bf16.msra.mxu0 0
        %2843 = vmatprep.subr.bf16.mxu0 0
        %2844 = vmatpush1.bf16.msra.mxu0 0
        %2845 = vmatprep.subr.bf16.mxu0 0
        %2846 = vmatpush1.bf16.msra.mxu0 0
        %2847 = vmatprep.subr.bf16.mxu0 0
        %2848 = vmatpush1.bf16.msra.mxu0 0
        %2849 = vmatprep.subr.bf16.mxu0 0
        %2850 = vmatpush1.bf16.msra.mxu0 0
        %2851 = vmatprep.subr.bf16.mxu0 0
        %2852 = vmatpush1.bf16.msra.mxu0 0
        %2853 = vmatprep.subr.bf16.mxu0 0
        %2854 = vmatpush1.bf16.msra.mxu0 0
        %2855 = vmatprep.subr.bf16.mxu0 0
        %2856 = vmatpush1.bf16.msra.mxu0 0
        %2857 = vmatprep.subr.bf16.mxu0 0
        %2858 = vmatpush1.bf16.msra.mxu0 0
        %2859 = vmatprep.subr.bf16.mxu0 0
        %2860 = vmatpush1.bf16.msra.mxu0 0
        %2861 = vmatprep.mubr.bf16.mxu0 0
        %2862 = vmatmul.mubr.bf16.gmra.mrb[0].mxu0 %v2824
        %v2863 = vpop.f32.mrb[0].mxu0
        %v2864 = vadd.f32 %v2727, %v2863
        %v2865 = vpop.f32.mrb[0].mxu0
        %v2866 = vpop.f32.mrb[0].mxu0
        %v2867 = vpop.f32.mrb[0].mxu0
        %2868 = vdwg.mxu0
        %v2870 = vsel %vm2729, %v829, 0
        %v2873 = vsel %vm2733, %v833, 0
        %2875 = vmatprep.subr.bf16.mxu0 0
        %2876 = vmatpush1.bf16.msra.mxu0 %v2873
        %2877 = vmatprep.subr.bf16.mxu0 0
        %2878 = vmatpush1.bf16.msra.mxu0 0
        %2879 = vmatprep.subr.bf16.mxu0 0
        %2880 = vmatpush1.bf16.msra.mxu0 0
        %2881 = vmatprep.subr.bf16.mxu0 0
        %2882 = vmatpush1.bf16.msra.mxu0 0
        %2883 = vmatprep.subr.bf16.mxu0 0
        %2884 = vmatpush1.bf16.msra.mxu0 0
        %2885 = vmatprep.subr.bf16.mxu0 0
        %2886 = vmatpush1.bf16.msra.mxu0 0
        %2887 = vmatprep.subr.bf16.mxu0 0
        %2888 = vmatpush1.bf16.msra.mxu0 0
        %2889 = vmatprep.subr.bf16.mxu0 0
        %2890 = vmatpush1.bf16.msra.mxu0 0
        %2891 = vmatprep.subr.bf16.mxu0 0
        %2892 = vmatpush1.bf16.msra.mxu0 0
        %2893 = vmatprep.subr.bf16.mxu0 0
        %2894 = vmatpush1.bf16.msra.mxu0 0
        %2895 = vmatprep.subr.bf16.mxu0 0
        %2896 = vmatpush1.bf16.msra.mxu0 0
        %2897 = vmatprep.subr.bf16.mxu0 0
        %2898 = vmatpush1.bf16.msra.mxu0 0
        %2899 = vmatprep.subr.bf16.mxu0 0
        %2900 = vmatpush1.bf16.msra.mxu0 0
        %2901 = vmatprep.subr.bf16.mxu0 0
        %2902 = vmatpush1.bf16.msra.mxu0 0
        %2903 = vmatprep.subr.bf16.mxu0 0
        %2904 = vmatpush1.bf16.msra.mxu0 0
        %2905 = vmatprep.subr.bf16.mxu0 0
        %2906 = vmatpush1.bf16.msra.mxu0 0
        %2907 = vmatprep.mubr.bf16.mxu0 0
        %2908 = vmatmul.mubr.bf16.gmra.mrb[0].mxu0 %v2870
        %v2909 = vpop.f32.mrb[0].mxu0
        %v2910 = vadd.f32 %v2728, %v2909
        %v2911 = vpop.f32.mrb[0].mxu0
        %v2912 = vpop.f32.mrb[0].mxu0
        %v2913 = vpop.f32.mrb[0].mxu0
        %2914 = vdwg.mxu0
        %v2915 = vld [vmem:[%s691] sm:$0xff]
        %v2916 = vadd.f32 %v2772, %v2915
        %v2917 = vadd.f32 %v2818, %v2915
        %v2918 = vadd.f32 %v2864, %v2915
        %v2919 = vadd.f32 %v2910, %v2915
        %v2920 = vld [vmem:[#allocation2] sm:$0xff]
        %v2921 = vld [vmem:[#allocation2 + $0x8] sm:$0xff]
        %v2922 = vld [vmem:[#allocation2 + $0x10] sm:$0xff]
        %v2923 = vld [vmem:[#allocation2 + $0x18] sm:$0xff]
        %v2924 = vsel %vm2729, %v2916, -inf
        %2925 = vmax.xlane.f32.xlu0 %v2924
        %v2926 = vpop.xlane.xlu0 %2925
        %v2927 = vsel %vm2729, %v2917, -inf
        %2928 = vmax.xlane.f32.xlu0 %v2927
        %v2929 = vpop.xlane.xlu0 %2928
        %v2930 = vsel %vm2729, %v2918, -inf
        %2931 = vmax.xlane.f32.xlu0 %v2930
        %v2932 = vpop.xlane.xlu0 %2931
        %v2933 = vsel %vm2729, %v2919, -inf
        %2934 = vmax.xlane.f32.xlu0 %v2933
        %v2935 = vpop.xlane.xlu0 %2934
        %v2936 = vmax.f32 %v2920, %v2926
        %v2937 = vmax.f32 %v2921, %v2929
        %v2938 = vmax.f32 %v2922, %v2932
        %v2939 = vmax.f32 %v2923, %v2935
        %v2940 = vsub.f32 %v2920, %v2936
        %v2941 = vsub.f32 %v2921, %v2937
        %v2942 = vsub.f32 %v2922, %v2938
        %v2943 = vsub.f32 %v2923, %v2939
        %v2944 = vmul.f32 %v2940, 1.442695
        %v2945 = vpow.pop %v2944
        %v2946 = vmul.f32 %v2941, 1.442695
        %v2947 = vpow.pop %v2946
        %v2948 = vmul.f32 %v2942, 1.442695
        %v2949 = vpow.pop %v2948
        %v2950 = vmul.f32 %v2943, 1.442695
        %v2951 = vpow.pop %v2950
        %2953 = vset.pattern.permute.xlu0 0
        %2954 = vperm.xlu0 %2953, %v2936
        %v2955 = vpop.permute.xlu0 %2954
        %2958 = vset.pattern.permute.xlu0 0
        %2959 = vperm.xlu0 %2958, %v2937
        %v2960 = vpop.permute.xlu0 %2959
        %2963 = vset.pattern.permute.xlu0 0
        %2964 = vperm.xlu0 %2963, %v2938
        %v2965 = vpop.permute.xlu0 %2964
        %2968 = vset.pattern.permute.xlu0 0
        %2969 = vperm.xlu0 %2968, %v2939
        %v2970 = vpop.permute.xlu0 %2969
        %v2972 = vsub.f32 %v2916, %v2955
        %v2973 = vsub.f32 %v2917, %v2960
        %v2974 = vsub.f32 %v2918, %v2965
        %v2975 = vsub.f32 %v2919, %v2970
        %v2976 = vmul.f32 %v2972, 1.442695
        %v2977 = vpow.pop %v2976
        %v2978 = vmul.f32 %v2973, 1.442695
        %v2979 = vpow.pop %v2978
        %v2980 = vmul.f32 %v2974, 1.442695
        %v2981 = vpow.pop %v2980
        %v2982 = vmul.f32 %v2975, 1.442695
        %v2983 = vpow.pop %v2982
        %v2984 = vld [vmem:[#allocation3] sm:$0xff]
        %v2985 = vld [vmem:[#allocation3 + $0x8] sm:$0xff]
        %v2986 = vld [vmem:[#allocation3 + $0x10] sm:$0xff]
        %v2987 = vld [vmem:[#allocation3 + $0x18] sm:$0xff]
        %v2988 = vmul.f32 %v2945, %v2984
        %v2989 = vmul.f32 %v2947, %v2985
        %v2990 = vmul.f32 %v2949, %v2986
        %v2991 = vmul.f32 %v2951, %v2987
        %v2992 = vsel %vm2729, %v2977, 0.0
        %2993 = vadd.xlane.f32.xlu0 %v2992
        %v2994 = vpop.xlane.xlu0 %2993
        %v2995 = vsel %vm2729, %v2979, 0.0
        %2996 = vadd.xlane.f32.xlu0 %v2995
        %v2997 = vpop.xlane.xlu0 %2996
        %v2998 = vsel %vm2729, %v2981, 0.0
        %2999 = vadd.xlane.f32.xlu0 %v2998
        %v3000 = vpop.xlane.xlu0 %2999
        %v3001 = vsel %vm2729, %v2983, 0.0
        %3002 = vadd.xlane.f32.xlu0 %v3001
        %v3003 = vpop.xlane.xlu0 %3002
        %v3004 = vadd.f32 %v2988, %v2994
        %v3005 = vadd.f32 %v2989, %v2997
        %v3006 = vadd.f32 %v2990, %v3000
        %v3007 = vadd.f32 %v2991, %v3003
        %vm3008 = vcmask 7168
        %3009 = vst.msk [vmem:[#allocation3] sm:$0xff] %vm3008, %v3004
        %3010 = vst.msk [vmem:[#allocation3 + $0x8] sm:$0xff] %vm3008, %v3005
        %3011 = vst.msk [vmem:[#allocation3 + $0x10] sm:$0xff] %vm3008, %v3006
        %3012 = vst.msk [vmem:[#allocation3 + $0x18] sm:$0xff] %vm3008, %v3007
        %v3013 = vld [vmem:[#allocation4] sm:$0xff]
        %v3014 = vld [vmem:[#allocation4 + $0x8] sm:$0xff]
        %v3015 = vld [vmem:[#allocation4 + $0x10] sm:$0xff]
        %v3016 = vld [vmem:[#allocation4 + $0x18] sm:$0xff]
        %3018 = vset.pattern.permute.xlu0 0
        %3019 = vperm.xlu0 %3018, %v2945
        %v3020 = vpop.permute.xlu0 %3019
        %3023 = vset.pattern.permute.xlu0 0
        %3024 = vperm.xlu0 %3023, %v2947
        %v3025 = vpop.permute.xlu0 %3024
        %3028 = vset.pattern.permute.xlu0 0
        %3029 = vperm.xlu0 %3028, %v2949
        %v3030 = vpop.permute.xlu0 %3029
        %3033 = vset.pattern.permute.xlu0 0
        %3034 = vperm.xlu0 %3033, %v2951
        %v3035 = vpop.permute.xlu0 %3034
        %v3037 = vmul.f32 %v3020, %v3013
        %v3038 = vmul.f32 %v3025, %v3014
        %v3039 = vmul.f32 %v3030, %v3015
        %v3040 = vmul.f32 %v3035, %v3016
        %v3041 = vpack.c.bf16 %v2977, %v2977
        %v3042 = vpack.c.bf16 %v2979, %v2979
        %v3043 = vpack.c.bf16 %v2981, %v2981
        %v3044 = vpack.c.bf16 %v2983, %v2983
        %v3045 = vld [vmem:[%s682] sm:$0xf]
        %v3046 = vld [vmem:[%s682 + $0x4] sm:$0xf]
        %v3047 = vld [vmem:[%s682 + $0x8] sm:$0xf]
        %v3048 = vld [vmem:[%s682 + $0xc] sm:$0xf]
        %v3050 = vsel %vm2729, %v3041, 0
        %v3053 = vsel %vm2733, %v3045, 0
        %3055 = vmatprep.subr.bf16.mxu0 0
        %3056 = vmatpush1.bf16.msra.mxu0 %v3053
        %3057 = vmatprep.subr.bf16.mxu0 0
        %3058 = vmatpush1.bf16.msra.mxu0 0
        %3059 = vmatprep.subr.bf16.mxu0 0
        %3060 = vmatpush1.bf16.msra.mxu0 0
        %3061 = vmatprep.subr.bf16.mxu0 0
        %3062 = vmatpush1.bf16.msra.mxu0 0
        %3063 = vmatprep.subr.bf16.mxu0 0
        %3064 = vmatpush1.bf16.msra.mxu0 0
        %3065 = vmatprep.subr.bf16.mxu0 0
        %3066 = vmatpush1.bf16.msra.mxu0 0
        %3067 = vmatprep.subr.bf16.mxu0 0
        %3068 = vmatpush1.bf16.msra.mxu0 0
        %3069 = vmatprep.subr.bf16.mxu0 0
        %3070 = vmatpush1.bf16.msra.mxu0 0
        %3071 = vmatprep.subr.bf16.mxu0 0
        %3072 = vmatpush1.bf16.msra.mxu0 0
        %3073 = vmatprep.subr.bf16.mxu0 0
        %3074 = vmatpush1.bf16.msra.mxu0 0
        %3075 = vmatprep.subr.bf16.mxu0 0
        %3076 = vmatpush1.bf16.msra.mxu0 0
        %3077 = vmatprep.subr.bf16.mxu0 0
        %3078 = vmatpush1.bf16.msra.mxu0 0
        %3079 = vmatprep.subr.bf16.mxu0 0
        %3080 = vmatpush1.bf16.msra.mxu0 0
        %3081 = vmatprep.subr.bf16.mxu0 0
        %3082 = vmatpush1.bf16.msra.mxu0 0
        %3083 = vmatprep.subr.bf16.mxu0 0
        %3084 = vmatpush1.bf16.msra.mxu0 0
        %3085 = vmatprep.subr.bf16.mxu0 0
        %3086 = vmatpush1.bf16.msra.mxu0 0
        %3087 = vmatprep.mubr.bf16.mxu0 0
        %3088 = vmatmul.mubr.bf16.gmra.mrb[0].mxu0 %v3050
        %v3089 = vpop.f32.mrb[0].mxu0
        %v3090 = vadd.f32 0.0, %v3089
        %v3091 = vpop.f32.mrb[0].mxu0
        %v3092 = vpop.f32.mrb[0].mxu0
        %v3093 = vpop.f32.mrb[0].mxu0
        %3094 = vdwg.mxu0
        %v3096 = vsel %vm2729, %v3042, 0
        %v3099 = vsel %vm2733, %v3046, 0
        %3101 = vmatprep.subr.bf16.mxu0 0
        %3102 = vmatpush1.bf16.msra.mxu0 %v3099
        %3103 = vmatprep.subr.bf16.mxu0 0
        %3104 = vmatpush1.bf16.msra.mxu0 0
        %3105 = vmatprep.subr.bf16.mxu0 0
        %3106 = vmatpush1.bf16.msra.mxu0 0
        %3107 = vmatprep.subr.bf16.mxu0 0
        %3108 = vmatpush1.bf16.msra.mxu0 0
        %3109 = vmatprep.subr.bf16.mxu0 0
        %3110 = vmatpush1.bf16.msra.mxu0 0
        %3111 = vmatprep.subr.bf16.mxu0 0
        %3112 = vmatpush1.bf16.msra.mxu0 0
        %3113 = vmatprep.subr.bf16.mxu0 0
        %3114 = vmatpush1.bf16.msra.mxu0 0
        %3115 = vmatprep.subr.bf16.mxu0 0
        %3116 = vmatpush1.bf16.msra.mxu0 0
        %3117 = vmatprep.subr.bf16.mxu0 0
        %3118 = vmatpush1.bf16.msra.mxu0 0
        %3119 = vmatprep.subr.bf16.mxu0 0
        %3120 = vmatpush1.bf16.msra.mxu0 0
        %3121 = vmatprep.subr.bf16.mxu0 0
        %3122 = vmatpush1.bf16.msra.mxu0 0
        %3123 = vmatprep.subr.bf16.mxu0 0
        %3124 = vmatpush1.bf16.msra.mxu0 0
        %3125 = vmatprep.subr.bf16.mxu0 0
        %3126 = vmatpush1.bf16.msra.mxu0 0
        %3127 = vmatprep.subr.bf16.mxu0 0
        %3128 = vmatpush1.bf16.msra.mxu0 0
        %3129 = vmatprep.subr.bf16.mxu0 0
        %3130 = vmatpush1.bf16.msra.mxu0 0
        %3131 = vmatprep.subr.bf16.mxu0 0
        %3132 = vmatpush1.bf16.msra.mxu0 0
        %3133 = vmatprep.mubr.bf16.mxu0 0
        %3134 = vmatmul.mubr.bf16.gmra.mrb[0].mxu0 %v3096
        %v3135 = vpop.f32.mrb[0].mxu0
        %v3136 = vadd.f32 0.0, %v3135
        %v3137 = vpop.f32.mrb[0].mxu0
        %v3138 = vpop.f32.mrb[0].mxu0
        %v3139 = vpop.f32.mrb[0].mxu0
        %3140 = vdwg.mxu0
        %v3142 = vsel %vm2729, %v3043, 0
        %v3145 = vsel %vm2733, %v3047, 0
        %3147 = vmatprep.subr.bf16.mxu0 0
        %3148 = vmatpush1.bf16.msra.mxu0 %v3145
        %3149 = vmatprep.subr.bf16.mxu0 0
        %3150 = vmatpush1.bf16.msra.mxu0 0
        %3151 = vmatprep.subr.bf16.mxu0 0
        %3152 = vmatpush1.bf16.msra.mxu0 0
        %3153 = vmatprep.subr.bf16.mxu0 0
        %3154 = vmatpush1.bf16.msra.mxu0 0
        %3155 = vmatprep.subr.bf16.mxu0 0
        %3156 = vmatpush1.bf16.msra.mxu0 0
        %3157 = vmatprep.subr.bf16.mxu0 0
        %3158 = vmatpush1.bf16.msra.mxu0 0
        %3159 = vmatprep.subr.bf16.mxu0 0
        %3160 = vmatpush1.bf16.msra.mxu0 0
        %3161 = vmatprep.subr.bf16.mxu0 0
        %3162 = vmatpush1.bf16.msra.mxu0 0
        %3163 = vmatprep.subr.bf16.mxu0 0
        %3164 = vmatpush1.bf16.msra.mxu0 0
        %3165 = vmatprep.subr.bf16.mxu0 0
        %3166 = vmatpush1.bf16.msra.mxu0 0
        %3167 = vmatprep.subr.bf16.mxu0 0
        %3168 = vmatpush1.bf16.msra.mxu0 0
        %3169 = vmatprep.subr.bf16.mxu0 0
        %3170 = vmatpush1.bf16.msra.mxu0 0
        %3171 = vmatprep.subr.bf16.mxu0 0
        %3172 = vmatpush1.bf16.msra.mxu0 0
        %3173 = vmatprep.subr.bf16.mxu0 0
        %3174 = vmatpush1.bf16.msra.mxu0 0
        %3175 = vmatprep.subr.bf16.mxu0 0
        %3176 = vmatpush1.bf16.msra.mxu0 0
        %3177 = vmatprep.subr.bf16.mxu0 0
        %3178 = vmatpush1.bf16.msra.mxu0 0
        %3179 = vmatprep.mubr.bf16.mxu0 0
        %3180 = vmatmul.mubr.bf16.gmra.mrb[0].mxu0 %v3142
        %v3181 = vpop.f32.mrb[0].mxu0
        %v3182 = vadd.f32 0.0, %v3181
        %v3183 = vpop.f32.mrb[0].mxu0
        %v3184 = vpop.f32.mrb[0].mxu0
        %v3185 = vpop.f32.mrb[0].mxu0
        %3186 = vdwg.mxu0
        %v3188 = vsel %vm2729, %v3044, 0
        %v3191 = vsel %vm2733, %v3048, 0
        %3193 = vmatprep.subr.bf16.mxu0 0
        %3194 = vmatpush1.bf16.msra.mxu0 %v3191
        %3195 = vmatprep.subr.bf16.mxu0 0
        %3196 = vmatpush1.bf16.msra.mxu0 0
        %3197 = vmatprep.subr.bf16.mxu0 0
        %3198 = vmatpush1.bf16.msra.mxu0 0
        %3199 = vmatprep.subr.bf16.mxu0 0
        %3200 = vmatpush1.bf16.msra.mxu0 0
        %3201 = vmatprep.subr.bf16.mxu0 0
        %3202 = vmatpush1.bf16.msra.mxu0 0
        %3203 = vmatprep.subr.bf16.mxu0 0
        %3204 = vmatpush1.bf16.msra.mxu0 0
        %3205 = vmatprep.subr.bf16.mxu0 0
        %3206 = vmatpush1.bf16.msra.mxu0 0
        %3207 = vmatprep.subr.bf16.mxu0 0
        %3208 = vmatpush1.bf16.msra.mxu0 0
        %3209 = vmatprep.subr.bf16.mxu0 0
        %3210 = vmatpush1.bf16.msra.mxu0 0
        %3211 = vmatprep.subr.bf16.mxu0 0
        %3212 = vmatpush1.bf16.msra.mxu0 0
        %3213 = vmatprep.subr.bf16.mxu0 0
        %3214 = vmatpush1.bf16.msra.mxu0 0
        %3215 = vmatprep.subr.bf16.mxu0 0
        %3216 = vmatpush1.bf16.msra.mxu0 0
        %3217 = vmatprep.subr.bf16.mxu0 0
        %3218 = vmatpush1.bf16.msra.mxu0 0
        %3219 = vmatprep.subr.bf16.mxu0 0
        %3220 = vmatpush1.bf16.msra.mxu0 0
        %3221 = vmatprep.subr.bf16.mxu0 0
        %3222 = vmatpush1.bf16.msra.mxu0 0
        %3223 = vmatprep.subr.bf16.mxu0 0
        %3224 = vmatpush1.bf16.msra.mxu0 0
        %3225 = vmatprep.mubr.bf16.mxu0 0
        %3226 = vmatmul.mubr.bf16.gmra.mrb[0].mxu0 %v3188
        %v3227 = vpop.f32.mrb[0].mxu0
        %v3228 = vadd.f32 0.0, %v3227
        %v3229 = vpop.f32.mrb[0].mxu0
        %v3230 = vpop.f32.mrb[0].mxu0
        %v3231 = vpop.f32.mrb[0].mxu0
        %3232 = vdwg.mxu0
        %v3233 = vadd.f32 %v3037, %v3090
        %v3234 = vadd.f32 %v3038, %v3136
        %v3235 = vadd.f32 %v3039, %v3182
        %v3236 = vadd.f32 %v3040, %v3228
        %3237 = vst.msk [vmem:[#allocation4] sm:$0xff] %vm2729, %v3233
        %3238 = vst.msk [vmem:[#allocation4 + $0x8] sm:$0xff] %vm2729, %v3234
        %3239 = vst.msk [vmem:[#allocation4 + $0x10] sm:$0xff] %vm2729, %v3235
        %3240 = vst.msk [vmem:[#allocation4 + $0x18] sm:$0xff] %vm2729, %v3236
        %3241 = vst.msk [vmem:[#allocation2] sm:$0xff] %vm3008, %v2936
        %3242 = vst.msk [vmem:[#allocation2 + $0x8] sm:$0xff] %vm3008, %v2937
        %3243 = vst.msk [vmem:[#allocation2 + $0x10] sm:$0xff] %vm3008, %v2938
        %3244 = vst.msk [vmem:[#allocation2 + $0x18] sm:$0xff] %vm3008, %v2939
        // Predicated region
        $region113: #{tpu_custom_call.1} parent=79 // pred_check
          %p3245 = pneg %p808
        $region114: #{tpu_custom_call.1} parent=79 // pred_check_branch
          %3247 = sbr.rel (%p3245) target = $region116
        $region115: #{tpu_custom_call.1} parent=79 // pred_region
          %v3248 = vld [vmem:[#allocation4] sm:$0xff]
          %v3249 = vld [vmem:[#allocation4 + $0x8] sm:$0xff]
          %v3250 = vld [vmem:[#allocation4 + $0x10] sm:$0xff]
          %v3251 = vld [vmem:[#allocation4 + $0x18] sm:$0xff]
          %v3252 = vld [vmem:[#allocation3] sm:$0xff]
          %v3253 = vld [vmem:[#allocation3 + $0x8] sm:$0xff]
          %v3254 = vld [vmem:[#allocation3 + $0x10] sm:$0xff]
          %v3255 = vld [vmem:[#allocation3 + $0x18] sm:$0xff]
          %v3256 = vrcp.pop %v3252
          %v3257 = vrcp.pop %v3253
          %v3258 = vrcp.pop %v3254
          %v3259 = vrcp.pop %v3255
          %3261 = vset.pattern.permute.xlu0 0
          %3262 = vperm.xlu0 %3261, %v3256
          %v3263 = vpop.permute.xlu0 %3262
          %3266 = vset.pattern.permute.xlu0 0
          %3267 = vperm.xlu0 %3266, %v3257
          %v3268 = vpop.permute.xlu0 %3267
          %3271 = vset.pattern.permute.xlu0 0
          %3272 = vperm.xlu0 %3271, %v3258
          %v3273 = vpop.permute.xlu0 %3272
          %3276 = vset.pattern.permute.xlu0 0
          %3277 = vperm.xlu0 %3276, %v3259
          %v3278 = vpop.permute.xlu0 %3277
          %v3280 = vmul.f32 %v3248, %v3263
          %v3281 = vmul.f32 %v3249, %v3268
          %v3282 = vmul.f32 %v3250, %v3273
          %v3283 = vmul.f32 %v3251, %v3278
          %v3284 = vpack.c.bf16 %v3280, %v3280
          %v3285 = vpack.c.bf16 %v3281, %v3281
          %v3286 = vpack.c.bf16 %v3282, %v3282
          %v3287 = vpack.c.bf16 %v3283, %v3283
          %v3288 = vld [vmem:[#allocation14] sm:$0xf]
          %v3289 = vld [vmem:[#allocation14 + $0x4] sm:$0xf]
          %v3290 = vld [vmem:[#allocation14 + $0x8] sm:$0xf]
          %v3291 = vld [vmem:[#allocation14 + $0xc] sm:$0xf]
          %v3293 = vsel %vm2729, %v3284, 0
          %v3296 = vsel %vm2733, %v3288, 0
          %3298 = vmatprep.subr.bf16.mxu0 0
          %3299 = vmatpush1.bf16.msra.mxu0 %v3296
          %3300 = vmatprep.subr.bf16.mxu0 0
          %3301 = vmatpush1.bf16.msra.mxu0 0
          %3302 = vmatprep.subr.bf16.mxu0 0
          %3303 = vmatpush1.bf16.msra.mxu0 0
          %3304 = vmatprep.subr.bf16.mxu0 0
          %3305 = vmatpush1.bf16.msra.mxu0 0
          %3306 = vmatprep.subr.bf16.mxu0 0
          %3307 = vmatpush1.bf16.msra.mxu0 0
          %3308 = vmatprep.subr.bf16.mxu0 0
          %3309 = vmatpush1.bf16.msra.mxu0 0
          %3310 = vmatprep.subr.bf16.mxu0 0
          %3311 = vmatpush1.bf16.msra.mxu0 0
          %3312 = vmatprep.subr.bf16.mxu0 0
          %3313 = vmatpush1.bf16.msra.mxu0 0
          %3314 = vmatprep.subr.bf16.mxu0 0
          %3315 = vmatpush1.bf16.msra.mxu0 0
          %3316 = vmatprep.subr.bf16.mxu0 0
          %3317 = vmatpush1.bf16.msra.mxu0 0
          %3318 = vmatprep.subr.bf16.mxu0 0
          %3319 = vmatpush1.bf16.msra.mxu0 0
          %3320 = vmatprep.subr.bf16.mxu0 0
          %3321 = vmatpush1.bf16.msra.mxu0 0
          %3322 = vmatprep.subr.bf16.mxu0 0
          %3323 = vmatpush1.bf16.msra.mxu0 0
          %3324 = vmatprep.subr.bf16.mxu0 0
          %3325 = vmatpush1.bf16.msra.mxu0 0
          %3326 = vmatprep.subr.bf16.mxu0 0
          %3327 = vmatpush1.bf16.msra.mxu0 0
          %3328 = vmatprep.subr.bf16.mxu0 0
          %3329 = vmatpush1.bf16.msra.mxu0 0
          %3330 = vmatprep.mubr.bf16.mxu0 0
          %3331 = vmatmul.mubr.bf16.gmra.mrb[0].mxu0 %v3293
          %v3332 = vpop.f32.mrb[0].mxu0
          %v3333 = vadd.f32 0.0, %v3332
          %v3334 = vpop.f32.mrb[0].mxu0
          %v3335 = vpop.f32.mrb[0].mxu0
          %v3336 = vpop.f32.mrb[0].mxu0
          %3337 = vdwg.mxu0
          %v3339 = vsel %vm2729, %v3285, 0
          %v3342 = vsel %vm2733, %v3289, 0
          %3344 = vmatprep.subr.bf16.mxu0 0
          %3345 = vmatpush1.bf16.msra.mxu0 %v3342
          %3346 = vmatprep.subr.bf16.mxu0 0
          %3347 = vmatpush1.bf16.msra.mxu0 0
          %3348 = vmatprep.subr.bf16.mxu0 0
          %3349 = vmatpush1.bf16.msra.mxu0 0
          %3350 = vmatprep.subr.bf16.mxu0 0
          %3351 = vmatpush1.bf16.msra.mxu0 0
          %3352 = vmatprep.subr.bf16.mxu0 0
          %3353 = vmatpush1.bf16.msra.mxu0 0
          %3354 = vmatprep.subr.bf16.mxu0 0
          %3355 = vmatpush1.bf16.msra.mxu0 0
          %3356 = vmatprep.subr.bf16.mxu0 0
          %3357 = vmatpush1.bf16.msra.mxu0 0
          %3358 = vmatprep.subr.bf16.mxu0 0
          %3359 = vmatpush1.bf16.msra.mxu0 0
          %3360 = vmatprep.subr.bf16.mxu0 0
          %3361 = vmatpush1.bf16.msra.mxu0 0
          %3362 = vmatprep.subr.bf16.mxu0 0
          %3363 = vmatpush1.bf16.msra.mxu0 0
          %3364 = vmatprep.subr.bf16.mxu0 0
          %3365 = vmatpush1.bf16.msra.mxu0 0
          %3366 = vmatprep.subr.bf16.mxu0 0
          %3367 = vmatpush1.bf16.msra.mxu0 0
          %3368 = vmatprep.subr.bf16.mxu0 0
          %3369 = vmatpush1.bf16.msra.mxu0 0
          %3370 = vmatprep.subr.bf16.mxu0 0
          %3371 = vmatpush1.bf16.msra.mxu0 0
          %3372 = vmatprep.subr.bf16.mxu0 0
          %3373 = vmatpush1.bf16.msra.mxu0 0
          %3374 = vmatprep.subr.bf16.mxu0 0
          %3375 = vmatpush1.bf16.msra.mxu0 0
          %3376 = vmatprep.mubr.bf16.mxu0 0
          %3377 = vmatmul.mubr.bf16.gmra.mrb[0].mxu0 %v3339
          %v3378 = vpop.f32.mrb[0].mxu0
          %v3379 = vadd.f32 0.0, %v3378
          %v3380 = vpop.f32.mrb[0].mxu0
          %v3381 = vpop.f32.mrb[0].mxu0
          %v3382 = vpop.f32.mrb[0].mxu0
          %3383 = vdwg.mxu0
          %v3385 = vsel %vm2729, %v3286, 0
          %v3388 = vsel %vm2733, %v3290, 0
          %3390 = vmatprep.subr.bf16.mxu0 0
          %3391 = vmatpush1.bf16.msra.mxu0 %v3388
          %3392 = vmatprep.subr.bf16.mxu0 0
          %3393 = vmatpush1.bf16.msra.mxu0 0
          %3394 = vmatprep.subr.bf16.mxu0 0
          %3395 = vmatpush1.bf16.msra.mxu0 0
          %3396 = vmatprep.subr.bf16.mxu0 0
          %3397 = vmatpush1.bf16.msra.mxu0 0
          %3398 = vmatprep.subr.bf16.mxu0 0
          %3399 = vmatpush1.bf16.msra.mxu0 0
          %3400 = vmatprep.subr.bf16.mxu0 0
          %3401 = vmatpush1.bf16.msra.mxu0 0
          %3402 = vmatprep.subr.bf16.mxu0 0
          %3403 = vmatpush1.bf16.msra.mxu0 0
          %3404 = vmatprep.subr.bf16.mxu0 0
          %3405 = vmatpush1.bf16.msra.mxu0 0
          %3406 = vmatprep.subr.bf16.mxu0 0
          %3407 = vmatpush1.bf16.msra.mxu0 0
          %3408 = vmatprep.subr.bf16.mxu0 0
          %3409 = vmatpush1.bf16.msra.mxu0 0
          %3410 = vmatprep.subr.bf16.mxu0 0
          %3411 = vmatpush1.bf16.msra.mxu0 0
          %3412 = vmatprep.subr.bf16.mxu0 0
          %3413 = vmatpush1.bf16.msra.mxu0 0
          %3414 = vmatprep.subr.bf16.mxu0 0
          %3415 = vmatpush1.bf16.msra.mxu0 0
          %3416 = vmatprep.subr.bf16.mxu0 0
          %3417 = vmatpush1.bf16.msra.mxu0 0
          %3418 = vmatprep.subr.bf16.mxu0 0
          %3419 = vmatpush1.bf16.msra.mxu0 0
          %3420 = vmatprep.subr.bf16.mxu0 0
          %3421 = vmatpush1.bf16.msra.mxu0 0
          %3422 = vmatprep.mubr.bf16.mxu0 0
          %3423 = vmatmul.mubr.bf16.gmra.mrb[0].mxu0 %v3385
          %v3424 = vpop.f32.mrb[0].mxu0
          %v3425 = vadd.f32 0.0, %v3424
          %v3426 = vpop.f32.mrb[0].mxu0
          %v3427 = vpop.f32.mrb[0].mxu0
          %v3428 = vpop.f32.mrb[0].mxu0
          %3429 = vdwg.mxu0
          %v3431 = vsel %vm2729, %v3287, 0
          %v3434 = vsel %vm2733, %v3291, 0
          %3436 = vmatprep.subr.bf16.mxu0 0
          %3437 = vmatpush1.bf16.msra.mxu0 %v3434
          %3438 = vmatprep.subr.bf16.mxu0 0
          %3439 = vmatpush1.bf16.msra.mxu0 0
          %3440 = vmatprep.subr.bf16.mxu0 0
          %3441 = vmatpush1.bf16.msra.mxu0 0
          %3442 = vmatprep.subr.bf16.mxu0 0
          %3443 = vmatpush1.bf16.msra.mxu0 0
          %3444 = vmatprep.subr.bf16.mxu0 0
          %3445 = vmatpush1.bf16.msra.mxu0 0
          %3446 = vmatprep.subr.bf16.mxu0 0
          %3447 = vmatpush1.bf16.msra.mxu0 0
          %3448 = vmatprep.subr.bf16.mxu0 0
          %3449 = vmatpush1.bf16.msra.mxu0 0
          %3450 = vmatprep.subr.bf16.mxu0 0
          %3451 = vmatpush1.bf16.msra.mxu0 0
          %3452 = vmatprep.subr.bf16.mxu0 0
          %3453 = vmatpush1.bf16.msra.mxu0 0
          %3454 = vmatprep.subr.bf16.mxu0 0
          %3455 = vmatpush1.bf16.msra.mxu0 0
          %3456 = vmatprep.subr.bf16.mxu0 0
          %3457 = vmatpush1.bf16.msra.mxu0 0
          %3458 = vmatprep.subr.bf16.mxu0 0
          %3459 = vmatpush1.bf16.msra.mxu0 0
          %3460 = vmatprep.subr.bf16.mxu0 0
          %3461 = vmatpush1.bf16.msra.mxu0 0
          %3462 = vmatprep.subr.bf16.mxu0 0
          %3463 = vmatpush1.bf16.msra.mxu0 0
          %3464 = vmatprep.subr.bf16.mxu0 0
          %3465 = vmatpush1.bf16.msra.mxu0 0
          %3466 = vmatprep.subr.bf16.mxu0 0
          %3467 = vmatpush1.bf16.msra.mxu0 0
          %3468 = vmatprep.mubr.bf16.mxu0 0
          %3469 = vmatmul.mubr.bf16.gmra.mrb[0].mxu0 %v3431
          %v3470 = vpop.f32.mrb[0].mxu0
          %v3471 = vadd.f32 0.0, %v3470
          %v3472 = vpop.f32.mrb[0].mxu0
          %v3473 = vpop.f32.mrb[0].mxu0
          %v3474 = vpop.f32.mrb[0].mxu0
          %3475 = vdwg.mxu0
          %v3476 = vsel %vm2060, %v3333, 0.0
          %v3477 = vsel %vm2060, %v3379, 0.0
          %v3478 = vadd.f32 %v3476, %v3477
          %v3479 = vsel %vm2060, %v3425, 0.0
          %v3480 = vadd.f32 %v3478, %v3479
          %v3481 = vsel %vm2060, %v3471, 0.0
          %v3482 = vadd.f32 %v3480, %v3481
          %v3483 = vld [vmem:[%s8] sm:$0x1]
          %v3485 = vlaneseq
          %v3486 = vshrl.u32 %v3485, 7
          %v3487 = vsub.s32 0, %v3486
          %v3488 = vrot.slane %v3483, %v3487
          %v3490 = vadd.f32 %v3482, %v3488
          %v3491 = vld [vmem:[%s655] sm:$0xff]
          %v3492 = vadd.f32 %v3491, %v3490
          %v3493 = vld [vmem:[%s9] sm:$0x1]
          %v3494 = vld [vmem:[%s10] sm:$0x1]
          %v3495 = vsel %vm2060, %v3492, 0.0
          %3496 = vadd.xlane.f32.xlu0 %v3495
          %v3497 = vpop.xlane.xlu0 %3496
          %v3498 = vrcp.pop 32.0
          %v3499 = vmul.f32 %v3497, %v3498
          %v3500 = vsub.f32 %v3492, %v3499
          %v3501 = vmul.f32 %v3500, %v3500
          %v3502 = vsel %vm2060, %v3501, 0.0
          %3503 = vadd.xlane.f32.xlu0 %v3502
          %v3504 = vpop.xlane.xlu0 %3503
          %v3505 = vmul.f32 %v3504, 0.032258064
          %v3507 = vlaneseq
          %v3508 = vshrl.u32 %v3507, 7
          %v3509 = vsub.s32 0, %v3508
          %v3510 = vrot.slane %v3493, %v3509
          %v3512 = vmul.f32 %v3510, %v3500
          %v3513 = vrsqrt.pop %v3505
          %v3514 = vmul.f32 %v3505, %v3513
          %vm3515 = vcmp.eq.f32.partialorder %v3505, inf
          %v3516 = vsel %vm3515, %v3505, %v3514
          %vm3517 = vcmp.eq.f32.partialorder %v3505, 0.0
          %v3518 = vand.u32 %v3505, 2147483648
          %v3519 = vsel %vm3517, %v3518, %v3516
          %v3520 = vadd.f32 %v3519, 1e-06
          %v3521 = vrcp.pop %v3520
          %v3522 = vmul.f32 %v3512, %v3521
          %v3524 = vlaneseq
          %v3525 = vshrl.u32 %v3524, 7
          %v3526 = vsub.s32 0, %v3525
          %v3527 = vrot.slane %v3494, %v3526
          %v3529 = vadd.f32 %v3522, %v3527
          %v3530 = vpack.c.bf16 %v3529, %v3529
          %v3531 = vld [vmem:[#allocation16] sm:$0xf]
          %v3532 = vld [vmem:[#allocation16 + $0x4] sm:$0xf]
          %v3533 = vld [vmem:[#allocation16 + $0x8] sm:$0xf]
          %v3534 = vld [vmem:[#allocation16 + $0xc] sm:$0xf]
          %v3535 = vld [vmem:[%s12] sm:$0x1]
          %v3537 = vlaneseq
          %v3538 = vshrl.u32 %v3537, 7
          %v3539 = vsub.s32 0, %v3538
          %v3540 = vrot.slane %v3535, %v3539
          %v3546 = vunpack.c.l.b16 %v3531
          %v3547 = vunpack.c.l.b16 %v3532
          %v3548 = vunpack.c.l.b16 %v3533
          %v3549 = vunpack.c.l.b16 %v3534
          %v3550 = vpack.c.b16 %v3547, %v3546
          %v3551 = vpack.c.b16 %v3549, %v3548
          %v3555 = vsel %vm2060, %v3530, 0
          %3557 = vmatprep.subr.bf16.mxu0 0
          %3558 = vmatpush1.bf16.msra.mxu0 %v3550
          %3559 = vmatprep.subr.bf16.mxu0 0
          %3560 = vmatpush1.bf16.msra.mxu0 %v3551
          %3561 = vmatprep.subr.bf16.mxu0 0
          %3562 = vmatpush1.bf16.msra.mxu0 0
          %3563 = vmatprep.subr.bf16.mxu0 0
          %3564 = vmatpush1.bf16.msra.mxu0 0
          %3565 = vmatprep.subr.bf16.mxu0 0
          %3566 = vmatpush1.bf16.msra.mxu0 0
          %3567 = vmatprep.subr.bf16.mxu0 0
          %3568 = vmatpush1.bf16.msra.mxu0 0
          %3569 = vmatprep.subr.bf16.mxu0 0
          %3570 = vmatpush1.bf16.msra.mxu0 0
          %3571 = vmatprep.subr.bf16.mxu0 0
          %3572 = vmatpush1.bf16.msra.mxu0 0
          %3573 = vmatprep.subr.bf16.mxu0 0
          %3574 = vmatpush1.bf16.msra.mxu0 0
          %3575 = vmatprep.subr.bf16.mxu0 0
          %3576 = vmatpush1.bf16.msra.mxu0 0
          %3577 = vmatprep.subr.bf16.mxu0 0
          %3578 = vmatpush1.bf16.msra.mxu0 0
          %3579 = vmatprep.subr.bf16.mxu0 0
          %3580 = vmatpush1.bf16.msra.mxu0 0
          %3581 = vmatprep.subr.bf16.mxu0 0
          %3582 = vmatpush1.bf16.msra.mxu0 0
          %3583 = vmatprep.subr.bf16.mxu0 0
          %3584 = vmatpush1.bf16.msra.mxu0 0
          %3585 = vmatprep.subr.bf16.mxu0 0
          %3586 = vmatpush1.bf16.msra.mxu0 0
          %3587 = vmatprep.subr.bf16.mxu0 0
          %3588 = vmatpush1.bf16.msra.mxu0 0
          %3589 = vmatprep.mubr.bf16.mxu0 0
          %3590 = vmatmul.mubr.bf16.gmra.mrb[0].mxu0 %v3555
          %v3591 = vpop.f32.mrb[0].mxu0
          %v3592 = vadd.f32 %v3540, %v3591
          %v3593 = vpop.f32.mrb[0].mxu0
          %v3594 = vpop.f32.mrb[0].mxu0
          %v3595 = vpop.f32.mrb[0].mxu0
          %3596 = vdwg.mxu0
          %v3597 = vmul.f32 %v3592, %v3592
          %v3598 = vmul.f32 %v3592, %v3597
          %v3599 = vmul.f32 %v3598, 0.044715
          %v3600 = vadd.f32 %v3592, %v3599
          %v3601 = vmul.f32 %v3600, 0.7978846
          %v3602 = vtanh.pop %v3601
          %v3603 = vadd.f32 %v3602, 1.0
          %v3604 = vmul.f32 %v3603, 0.5
          %v3605 = vmul.f32 %v3592, %v3604
          %v3606 = vpack.c.bf16 %v3605, %v3605
          %v3607 = vld [vmem:[%s13] sm:$0xf]
          %v3608 = vld [vmem:[%s13 + $0x4] sm:$0xf]
          %v3609 = vld [vmem:[%s13 + $0x8] sm:$0xf]
          %v3610 = vld [vmem:[%s13 + $0xc] sm:$0xf]
          %v3611 = vld [vmem:[%s13 + $0x10] sm:$0xf]
          %v3612 = vld [vmem:[%s13 + $0x14] sm:$0xf]
          %v3613 = vld [vmem:[%s13 + $0x18] sm:$0xf]
          %v3614 = vld [vmem:[%s13 + $0x1c] sm:$0xf]
          %v3615 = vld [vmem:[%s13 + $0x20] sm:$0xf]
          %v3616 = vld [vmem:[%s13 + $0x24] sm:$0xf]
          %v3617 = vld [vmem:[%s13 + $0x28] sm:$0xf]
          %v3618 = vld [vmem:[%s13 + $0x2c] sm:$0xf]
          %v3619 = vld [vmem:[%s13 + $0x30] sm:$0xf]
          %v3620 = vld [vmem:[%s13 + $0x34] sm:$0xf]
          %v3621 = vld [vmem:[%s13 + $0x38] sm:$0xf]
          %v3622 = vld [vmem:[%s13 + $0x3c] sm:$0xf]
          %v3623 = vld [vmem:[%s14] sm:$0x1]
          %v3625 = vlaneseq
          %v3626 = vshrl.u32 %v3625, 7
          %v3627 = vsub.s32 0, %v3626
          %v3628 = vrot.slane %v3623, %v3627
          %v3646 = vunpack.c.l.b16 %v3607
          %v3647 = vunpack.c.l.b16 %v3608
          %v3648 = vunpack.c.l.b16 %v3609
          %v3649 = vunpack.c.l.b16 %v3610
          %v3650 = vunpack.c.l.b16 %v3611
          %v3651 = vunpack.c.l.b16 %v3612
          %v3652 = vunpack.c.l.b16 %v3613
          %v3653 = vunpack.c.l.b16 %v3614
          %v3654 = vunpack.c.l.b16 %v3615
          %v3655 = vunpack.c.l.b16 %v3616
          %v3656 = vunpack.c.l.b16 %v3617
          %v3657 = vunpack.c.l.b16 %v3618
          %v3658 = vunpack.c.l.b16 %v3619
          %v3659 = vunpack.c.l.b16 %v3620
          %v3660 = vunpack.c.l.b16 %v3621
          %v3661 = vunpack.c.l.b16 %v3622
          %v3662 = vpack.c.b16 %v3647, %v3646
          %v3663 = vpack.c.b16 %v3649, %v3648
          %v3664 = vpack.c.b16 %v3651, %v3650
          %v3665 = vpack.c.b16 %v3653, %v3652
          %v3666 = vpack.c.b16 %v3655, %v3654
          %v3667 = vpack.c.b16 %v3657, %v3656
          %v3668 = vpack.c.b16 %v3659, %v3658
          %v3669 = vpack.c.b16 %v3661, %v3660
          %3678 = vmatprep.subr.bf16.mxu0 0
          %3679 = vmatpush1.bf16.msra.mxu0 %v3662
          %3680 = vmatprep.subr.bf16.mxu0 0
          %3681 = vmatpush1.bf16.msra.mxu0 %v3663
          %3682 = vmatprep.subr.bf16.mxu0 0
          %3683 = vmatpush1.bf16.msra.mxu0 %v3664
          %3684 = vmatprep.subr.bf16.mxu0 0
          %3685 = vmatpush1.bf16.msra.mxu0 %v3665
          %3686 = vmatprep.subr.bf16.mxu0 0
          %3687 = vmatpush1.bf16.msra.mxu0 %v3666
          %3688 = vmatprep.subr.bf16.mxu0 0
          %3689 = vmatpush1.bf16.msra.mxu0 %v3667
          %3690 = vmatprep.subr.bf16.mxu0 0
          %3691 = vmatpush1.bf16.msra.mxu0 %v3668
          %3692 = vmatprep.subr.bf16.mxu0 0
          %3693 = vmatpush1.bf16.msra.mxu0 %v3669
          %3694 = vmatprep.subr.bf16.mxu0 0
          %3695 = vmatpush1.bf16.msra.mxu0 0
          %3696 = vmatprep.subr.bf16.mxu0 0
          %3697 = vmatpush1.bf16.msra.mxu0 0
          %3698 = vmatprep.subr.bf16.mxu0 0
          %3699 = vmatpush1.bf16.msra.mxu0 0
          %3700 = vmatprep.subr.bf16.mxu0 0
          %3701 = vmatpush1.bf16.msra.mxu0 0
          %3702 = vmatprep.subr.bf16.mxu0 0
          %3703 = vmatpush1.bf16.msra.mxu0 0
          %3704 = vmatprep.subr.bf16.mxu0 0
          %3705 = vmatpush1.bf16.msra.mxu0 0
          %3706 = vmatprep.subr.bf16.mxu0 0
          %3707 = vmatpush1.bf16.msra.mxu0 0
          %3708 = vmatprep.subr.bf16.mxu0 0
          %3709 = vmatpush1.bf16.msra.mxu0 0
          %3710 = vmatprep.mubr.bf16.mxu0 0
          %3711 = vmatmul.mubr.bf16.gmra.mrb[0].mxu0 %v3606
          %v3712 = vpop.f32.mrb[0].mxu0
          %v3713 = vadd.f32 %v3628, %v3712
          %v3714 = vpop.f32.mrb[0].mxu0
          %v3715 = vpop.f32.mrb[0].mxu0
          %v3716 = vpop.f32.mrb[0].mxu0
          %3717 = vdwg.mxu0
          %v3718 = vadd.f32 %v3492, %v3713
          %3719 = vst.msk [vmem:[%s785] sm:$0xff] %vm2060, %v3718
        $region116: #{tpu_custom_call.1} parent=79 // pred_fallthru
          _
        %s3720 = sand.u32 %s436, 1
        %s3721 = scalar_lea.sflag [#allocation7], %s3720
        %s3722 = sand.u32 %s436, 1
        %s3723 = smul.addr %s3722, 8
        %s3724 = scalar_lea.vmem [#allocation17], %s3723
        // Predicated region
        $region117: #{tpu_custom_call.1} parent=79 // pred_check
          %p3725 = pneg %p446
        $region118: #{tpu_custom_call.1} parent=79 // pred_check_branch
          %3727 = sbr.rel (%p3725) target = $region120
        $region119: #{tpu_custom_call.1} parent=79 // pred_region
          %s3729 = ssub.s32 128, 128
          %3730 = vsyncadd %s3721, %s3729
          %s3731 = sadd.s32 %s45, %s44
          %s3732 = smul.addr %s3731, 128
          %s3733 = scalar_lea.hbm %s15, %s3732
          %s3735 = sshll.u32 %s3724, 4
          %s3736 = int_to_ptr.vmem [resolvable:$true] %s3735
          %3738 = dma.vmem_to_hbm [thread:$0]  %s3736, 128, %s3733, %s3721
        $region120: #{tpu_custom_call.1} parent=79 // pred_fallthru
          _
      $region80: #{tpu_custom_call.1} parent=5 // pred_fallthru
        _
      %p3739 = scmp.le.s32.totalorder 2, %s34
      // Predicated region
      $region121: #{tpu_custom_call.1} parent=5 // pred_check
        %p3740 = pneg %p3739
      $region122: #{tpu_custom_call.1} parent=5 // pred_check_branch
        %3742 = sbr.rel (%p3740) target = $region124
      $region123: #{tpu_custom_call.1} parent=5 // pred_region
        %s3743 = ssub.s32 %s34, 2
        // Predicated region
        $region125: #{tpu_custom_call.1} parent=123 // pred_check
          %p3744 = pneg %p452
        $region126: #{tpu_custom_call.1} parent=123 // pred_check_branch
          %3746 = sbr.rel (%p3744) target = $region128
        $region127: #{tpu_custom_call.1} parent=123 // pred_region
          %s3747 = sand.u32 %s437, 1
          %s3748 = scalar_lea.sflag [#allocation7], %s3747
          %s3749 = sand.u32 %s437, 1
          %s3750 = smul.addr %s3749, 8
          %s3751 = scalar_lea.vmem [#allocation17], %s3750
          %3752 = dma.done %s3748, 128
        $region128: #{tpu_custom_call.1} parent=123 // pred_fallthru
          _
      $region124: #{tpu_custom_call.1} parent=5 // pred_fallthru
        _
    $region6: #{tpu_custom_call.1} parent=1 // loop_footer
      %s38 = sadd.s32 1, %s34
    $region7: #{tpu_custom_call.1} parent=1 // loop_footer_branch
      %33 = sbr.rel target = $region3
    $region8: #{tpu_custom_call.1} parent=1 // loop_exit
      _
    %3753 = vsyncpa [#allocation6], 1
    %s3754 = scalar_lea.sflag [#allocation6], 1
    %3755 = vsyncpa %s3754, 1
    %3756 = vsyncpa [#allocation9], 1
    %s3757 = scalar_lea.sflag [#allocation9], 1
    %3758 = vsyncpa %s3757, 1
    %3759 = vsyncpa [#allocation12], 1
    %s3760 = scalar_lea.sflag [#allocation12], 1
    %3761 = vsyncpa %s3760, 1
    %3762 = vsyncpa [#allocation15], 1
    %3763 = vsyncpa [#allocation7], 1
    %s3764 = scalar_lea.sflag [#allocation7], 1
    %3765 = vsyncpa %s3764, 1

// kernel: tpu_custom_call.1
$region0: #{tpu_custom_call.1}
  #allocation0 [shape = 'u32[]', space=smem, size = 0x4, offset = 0x4, fixed_abs, tag = 'smem constant byte address 0x4 - core index']
  #allocation1 [shape = 'u32[144,128]{1,0:T(1,128)}', space=vmem, size = 0x12000, scoped, tag = 'internal scratch']
  #allocation2 [shape = 'f32[4,8,1]{2,1,0:T(8,128)}', space=vmem, size = 0x4000, scoped, tag = 'scratch operand']
  #allocation3 [shape = 'f32[4,8,1]{2,1,0:T(8,128)}', space=vmem, size = 0x4000, scoped, tag = 'scratch operand']
  #allocation4 [shape = 'f32[4,8,8]{2,1,0:T(8,128)}', space=vmem, size = 0x4000, scoped, tag = 'scratch operand']
  %s0 = inlined_call_operand.hbm [shape: f32[2,8,32], index: 0, kind: input, shape index: {}]
  %s1 = inlined_call_operand.vmem [shape: bf16[2,4,8,8], index: 1, kind: input, shape index: {}]
  %s2 = inlined_call_operand.hbm [shape: bf16[2,4,8,32], index: 2, kind: input, shape index: {}]
  %s3 = inlined_call_operand.hbm [shape: bf16[2,4,8,8], index: 3, kind: input, shape index: {}]
  %s4 = inlined_call_operand.hbm [shape: bf16[2,4,8,8], index: 4, kind: input, shape index: {}]
  %s5 = inlined_call_operand.vmem [shape: bf16[2,8,8,32], index: 5, kind: input, shape index: {}]
  %s6 = inlined_call_operand.hbm [shape: f32[2,8,8], index: 6, kind: input, shape index: {}]
  %s7 = inlined_call_operand.hbm [shape: bf16[4,8,32], index: 7, kind: input, shape index: {}]
  %s8 = inlined_call_operand.vmem [shape: f32[1,32], index: 8, kind: input, shape index: {}]
  %s9 = inlined_call_operand.vmem [shape: f32[1,32], index: 9, kind: input, shape index: {}]
  %s10 = inlined_call_operand.vmem [shape: f32[1,32], index: 10, kind: input, shape index: {}]
  %s11 = inlined_call_operand.hbm [shape: bf16[32,128], index: 11, kind: input, shape index: {}]
  %s12 = inlined_call_operand.vmem [shape: f32[1,128], index: 12, kind: input, shape index: {}]
  %s13 = inlined_call_operand.vmem [shape: bf16[128,32], index: 13, kind: input, shape index: {}]
  %s14 = inlined_call_operand.vmem [shape: f32[1,32], index: 14, kind: input, shape index: {}]
  %s15 = inlined_call_operand.hbm [shape: f32[2,8,32], index: 15, kind: output, shape index: {}]
  %s16 = sld [smem:[#allocation0]]
  $region129: #{tpu_custom_call.1} parent=0
    _
  %s18 = ssub.s32 1, %s16
  %s19 = scalar_select 0, %s18, %s16
  $region1: #{tpu_custom_call.1} parent=0
    #allocation5 [shape = 'u8[8192]{0}', space=vmem, size = 0x2000, scoped, tag = 'input window, operand 0']
    #allocation6 [shape = 's32[2]{0}', space=sflag, size = 0x8, scoped, tag = 'scoped memory for tpu_custom_call.1']
    #allocation7 [shape = 's32[2]{0}', space=sflag, size = 0x8, scoped, tag = 'scoped memory for tpu_custom_call.1']
    #allocation8 [shape = 'u8[16384]{0}', space=vmem, size = 0x4000, scoped, tag = 'input window, operand 2']
    #allocation9 [shape = 's32[2]{0}', space=sflag, size = 0x8, scoped, tag = 'scoped memory for tpu_custom_call.1']
    #allocation10 [shape = 'u8[16384]{0}', space=vmem, size = 0x4000, scoped, tag = 'input window, operand 3']
    #allocation11 [shape = 'u8[16384]{0}', space=vmem, size = 0x4000, scoped, tag = 'input window, operand 4']
    #allocation12 [shape = 's32[2]{0}', space=sflag, size = 0x8, scoped, tag = 'scoped memory for tpu_custom_call.1']
    #allocation13 [shape = 'u8[8192]{0}', space=vmem, size = 0x2000, scoped, tag = 'input window, operand 6']
    #allocation14 [shape = 'u8[8192]{0}', space=vmem, size = 0x2000, scoped, tag = 'input window, operand 7, single buffered']
    #allocation15 [shape = 's32[1]{0}', space=sflag, size = 0x4, scoped, tag = 'scoped memory for tpu_custom_call.1']
    #allocation16 [shape = 'u8[8192]{0}', space=vmem, size = 0x2000, scoped, tag = 'input window, operand 11, single buffered']
    #allocation17 [shape = 'u8[8192]{0}', space=vmem, size = 0x2000, scoped, tag = 'output window, operand 0']
    %20 = vsyncpa [#allocation6], 0
    %s21 = scalar_lea.sflag [#allocation6], 1
    %22 = vsyncpa %s21, 0
    %23 = vsyncpa [#allocation9], 0
    %s24 = scalar_lea.sflag [#allocation9], 1
    %25 = vsyncpa %s24, 0
    %26 = vsyncpa [#allocation12], 0
    %s27 = scalar_lea.sflag [#allocation12], 1
    %28 = vsyncpa %s27, 0
    %29 = vsyncpa [#allocation15], 0
    %30 = vsyncpa [#allocation7], 0
    %s31 = scalar_lea.sflag [#allocation7], 1
    %32 = vsyncpa %s31, 0
    loop: start=0, step=1, limit=4
    $region2: #{tpu_custom_call.1} parent=1 // loop_pre_header
      _
    $region3: #{tpu_custom_call.1} parent=1 // loop_header
      %s34 = sphi 0, %s38
      %p35 = scmp.ge.s32.totalorder %s34, 4
      %s41 = sphi 0, %s60
      %s42 = sphi 0, %s56
      %s43 = sphi 0, %s52
      %s44 = sphi 0, %s41
      %s45 = sphi 0, %s42
      %s46 = sphi 0, %s43
      %s47 = sphi 0, %s44
      %s48 = sphi 0, %s45
      %s49 = sphi 0, %s46
      %s65 = sphi 0, %s67
      %s68 = sphi 0, %s65
      %s69 = sphi 0, %s68
      %s85 = sphi 0, %s69
      %s93 = sphi 0, %s95
      %s96 = sphi 0, %s93
      %s97 = sphi 0, %s96
      %s113 = sphi 0, %s97
      %s121 = sphi 0, %s123
      %s124 = sphi 0, %s121
      %s125 = sphi 0, %s124
      %s141 = sphi 0, %s125
      %s149 = sphi 0, %s151
      %s152 = sphi 0, %s149
      %s153 = sphi 0, %s152
      %s169 = sphi 0, %s153
      %s177 = sphi 0, %s179
      %s180 = sphi 0, %s177
      %s181 = sphi 0, %s180
      %s197 = sphi 0, %s181
      %s207 = sphi 0, %s209
      %s210 = sphi 0, %s207
      %s211 = sphi 0, %s210
      %s227 = sphi 0, %s211
      %s237 = sphi 0, %s239
      %s240 = sphi 0, %s237
      %s241 = sphi 0, %s240
      %s257 = sphi 0, %s241
      %s261 = sphi 0, %s261
      %s263 = sphi 0, %s261
      %s264 = sphi 0, %s263
      %s278 = sphi 0, %s264
      %s282 = sphi 0, %s282
      %s284 = sphi 0, %s282
      %s285 = sphi 0, %s284
      %s299 = sphi 0, %s285
      %s303 = sphi 0, %s303
      %s305 = sphi 0, %s303
      %s306 = sphi 0, %s305
      %s320 = sphi 0, %s306
      %s324 = sphi 0, %s324
      %s326 = sphi 0, %s324
      %s327 = sphi 0, %s326
      %s341 = sphi 0, %s327
      %s345 = sphi 0, %s345
      %s347 = sphi 0, %s345
      %s348 = sphi 0, %s347
      %s362 = sphi 0, %s348
      %s366 = sphi 0, %s366
      %s368 = sphi 0, %s366
      %s369 = sphi 0, %s368
      %s383 = sphi 0, %s369
      %s387 = sphi 0, %s387
      %s389 = sphi 0, %s387
      %s390 = sphi 0, %s389
      %s404 = sphi 0, %s390
      %s408 = sphi 0, %s408
      %s410 = sphi 0, %s408
      %s411 = sphi 0, %s410
      %s425 = sphi 0, %s411
      %s433 = sphi 0, %s435
      %s436 = sphi 0, %s433
      %s437 = sphi 0, %s436
      %s453 = sphi 0, %s437
    $region4: #{tpu_custom_call.1} parent=1 // loop_header_branch
      %37 = sbr.rel (%p35) target = $region8
    $region5: #{tpu_custom_call.1} parent=1 // loop_body
      %s39 = ssub.s32 %s34, 1
      %s40 = ssub.s32 %s34, 2
      %s50 = sadd.s32 1, %s43
      %p51 = scmp.ge.s32.totalorder %s50, 1
      %s52 = scalar_select %p51, 0, %s50
      %s53 = sadd.s32 1, %s42
      %s54 = scalar_select %p51, %s53, %s42
      %p55 = scmp.ge.s32.totalorder %s54, 1
      %s56 = scalar_select %p55, 0, %s54
      %s57 = sadd.s32 1, %s41
      %s58 = scalar_select %p55, %s57, %s41
      %p59 = scmp.ge.s32.totalorder %s58, 2
      %s60 = scalar_select %p59, 0, %s58
      %s61 = ssub.s32 %s41, %s60
      %s62 = ssub.s32 %s42, %s56
      %s63 = sor.u32 %s61, %s62
      %p64 = scmp.eq.s32.totalorder %s63, 0
      %s66 = sadd.s32 %s65, 1
      %s67 = scalar_select %p64, %s65, %s66
      %p70 = pneg %p64
      %p71 = scmp.eq.s32.totalorder %s34, 1
      %p72 = por %p70, %p71
      %p73 = scmp.ne.s32.totalorder %s65, %s68
      %p74 = scmp.eq.s32.totalorder %s34, 0
      %p75 = por %p73, %p74
      %p76 = scmp.ne.s32.totalorder %s65, %s68
      %p77 = scmp.eq.s32.totalorder %s39, 1
      %p78 = por %p76, %p77
      %p79 = scmp.ne.s32.totalorder %s68, %s69
      %p80 = scmp.eq.s32.totalorder %s39, 0
      %p81 = por %p79, %p80
      %p82 = scmp.ne.s32.totalorder %s68, %s69
      %p83 = scmp.eq.s32.totalorder %s40, 1
      %p84 = por %p82, %p83
      %p86 = scmp.ne.s32.totalorder %s69, %s85
      %p87 = scmp.eq.s32.totalorder %s40, 0
      %p88 = por %p86, %p87
      %s89 = ssub.s32 %s41, %s60
      %s90 = ssub.s32 %s42, %s56
      %s91 = sor.u32 %s89, %s90
      %p92 = scmp.eq.s32.totalorder %s91, 0
      %s94 = sadd.s32 %s93, 1
      %s95 = scalar_select %p92, %s93, %s94
      %p98 = pneg %p92
      %p99 = scmp.eq.s32.totalorder %s34, 1
      %p100 = por %p98, %p99
      %p101 = scmp.ne.s32.totalorder %s93, %s96
      %p102 = scmp.eq.s32.totalorder %s34, 0
      %p103 = por %p101, %p102
      %p104 = scmp.ne.s32.totalorder %s93, %s96
      %p105 = scmp.eq.s32.totalorder %s39, 1
      %p106 = por %p104, %p105
      %p107 = scmp.ne.s32.totalorder %s96, %s97
      %p108 = scmp.eq.s32.totalorder %s39, 0
      %p109 = por %p107, %p108
      %p110 = scmp.ne.s32.totalorder %s96, %s97
      %p111 = scmp.eq.s32.totalorder %s40, 1
      %p112 = por %p110, %p111
      %p114 = scmp.ne.s32.totalorder %s97, %s113
      %p115 = scmp.eq.s32.totalorder %s40, 0
      %p116 = por %p114, %p115
      %s117 = ssub.s32 %s41, %s60
      %s118 = ssub.s32 %s42, %s56
      %s119 = sor.u32 %s117, %s118
      %p120 = scmp.eq.s32.totalorder %s119, 0
      %s122 = sadd.s32 %s121, 1
      %s123 = scalar_select %p120, %s121, %s122
      %p126 = pneg %p120
      %p127 = scmp.eq.s32.totalorder %s34, 1
      %p128 = por %p126, %p127
      %p129 = scmp.ne.s32.totalorder %s121, %s124
      %p130 = scmp.eq.s32.totalorder %s34, 0
      %p131 = por %p129, %p130
      %p132 = scmp.ne.s32.totalorder %s121, %s124
      %p133 = scmp.eq.s32.totalorder %s39, 1
      %p134 = por %p132, %p133
      %p135 = scmp.ne.s32.totalorder %s124, %s125
      %p136 = scmp.eq.s32.totalorder %s39, 0
      %p137 = por %p135, %p136
      %p138 = scmp.ne.s32.totalorder %s124, %s125
      %p139 = scmp.eq.s32.totalorder %s40, 1
      %p140 = por %p138, %p139
      %p142 = scmp.ne.s32.totalorder %s125, %s141
      %p143 = scmp.eq.s32.totalorder %s40, 0
      %p144 = por %p142, %p143
      %s145 = ssub.s32 %s41, %s60
      %s146 = ssub.s32 %s43, %s52
      %s147 = sor.u32 %s145, %s146
      %p148 = scmp.eq.s32.totalorder %s147, 0
      %s150 = sadd.s32 %s149, 1
      %s151 = scalar_select %p148, %s149, %s150
      %p154 = pneg %p148
      %p155 = scmp.eq.s32.totalorder %s34, 1
      %p156 = por %p154, %p155
      %p157 = scmp.ne.s32.totalorder %s149, %s152
      %p158 = scmp.eq.s32.totalorder %s34, 0
      %p159 = por %p157, %p158
      %p160 = scmp.ne.s32.totalorder %s149, %s152
      %p161 = scmp.eq.s32.totalorder %s39, 1
      %p162 = por %p160, %p161
      %p163 = scmp.ne.s32.totalorder %s152, %s153
      %p164 = scmp.eq.s32.totalorder %s39, 0
      %p165 = por %p163, %p164
      %p166 = scmp.ne.s32.totalorder %s152, %s153
      %p167 = scmp.eq.s32.totalorder %s40, 1
      %p168 = por %p166, %p167
      %p170 = scmp.ne.s32.totalorder %s153, %s169
      %p171 = scmp.eq.s32.totalorder %s40, 0
      %p172 = por %p170, %p171
      %s173 = ssub.s32 %s41, %s60
      %s174 = ssub.s32 %s43, %s52
      %s175 = sor.u32 %s173, %s174
      %p176 = scmp.eq.s32.totalorder %s175, 0
      %s178 = sadd.s32 %s177, 1
      %s179 = scalar_select %p176, %s177, %s178
      %p182 = pneg %p176
      %p183 = scmp.eq.s32.totalorder %s34, 1
      %p184 = por %p182, %p183
      %p185 = scmp.ne.s32.totalorder %s177, %s180
      %p186 = scmp.eq.s32.totalorder %s34, 0
      %p187 = por %p185, %p186
      %p188 = scmp.ne.s32.totalorder %s177, %s180
      %p189 = scmp.eq.s32.totalorder %s39, 1
      %p190 = por %p188, %p189
      %p191 = scmp.ne.s32.totalorder %s180, %s181
      %p192 = scmp.eq.s32.totalorder %s39, 0
      %p193 = por %p191, %p192
      %p194 = scmp.ne.s32.totalorder %s180, %s181
      %p195 = scmp.eq.s32.totalorder %s40, 1
      %p196 = por %p194, %p195
      %p198 = scmp.ne.s32.totalorder %s181, %s197
      %p199 = scmp.eq.s32.totalorder %s40, 0
      %p200 = por %p198, %p199
      %s201 = ssub.s32 %s41, %s60
      %s202 = ssub.s32 %s42, %s56
      %s203 = sor.u32 %s201, %s202
      %s204 = ssub.s32 %s43, %s52
      %s205 = sor.u32 %s203, %s204
      %p206 = scmp.eq.s32.totalorder %s205, 0
      %s208 = sadd.s32 %s207, 1
      %s209 = scalar_select %p206, %s207, %s208
      %p212 = pneg %p206
      %p213 = scmp.eq.s32.totalorder %s34, 1
      %p214 = por %p212, %p213
      %p215 = scmp.ne.s32.totalorder %s207, %s210
      %p216 = scmp.eq.s32.totalorder %s34, 0
      %p217 = por %p215, %p216
      %p218 = scmp.ne.s32.totalorder %s207, %s210
      %p219 = scmp.eq.s32.totalorder %s39, 1
      %p220 = por %p218, %p219
      %p221 = scmp.ne.s32.totalorder %s210, %s211
      %p222 = scmp.eq.s32.totalorder %s39, 0
      %p223 = por %p221, %p222
      %p224 = scmp.ne.s32.totalorder %s210, %s211
      %p225 = scmp.eq.s32.totalorder %s40, 1
      %p226 = por %p224, %p225
      %p228 = scmp.ne.s32.totalorder %s211, %s227
      %p229 = scmp.eq.s32.totalorder %s40, 0
      %p230 = por %p228, %p229
      %s231 = ssub.s32 %s41, %s60
      %s232 = ssub.s32 %s42, %s56
      %s233 = sor.u32 %s231, %s232
      %s234 = ssub.s32 %s43, %s52
      %s235 = sor.u32 %s233, %s234
      %p236 = scmp.eq.s32.totalorder %s235, 0
      %s238 = sadd.s32 %s237, 1
      %s239 = scalar_select %p236, %s237, %s238
      %p242 = pneg %p236
      %p243 = scmp.eq.s32.totalorder %s34, 1
      %p244 = por %p242, %p243
      %p245 = scmp.ne.s32.totalorder %s237, %s240
      %p246 = scmp.eq.s32.totalorder %s34, 0
      %p247 = por %p245, %p246
      %p248 = scmp.ne.s32.totalorder %s237, %s240
      %p249 = scmp.eq.s32.totalorder %s39, 1
      %p250 = por %p248, %p249
      %p251 = scmp.ne.s32.totalorder %s240, %s241
      %p252 = scmp.eq.s32.totalorder %s39, 0
      %p253 = por %p251, %p252
      %p254 = scmp.ne.s32.totalorder %s240, %s241
      %p255 = scmp.eq.s32.totalorder %s40, 1
      %p256 = por %p254, %p255
      %p258 = scmp.ne.s32.totalorder %s241, %s257
      %p259 = scmp.eq.s32.totalorder %s40, 0
      %p260 = por %p258, %p259
      %s262 = sadd.s32 %s261, 1
      %p265 = scmp.eq.s32.totalorder %s34, 1
      %p266 = scmp.ne.s32.totalorder %s261, %s263
      %p267 = scmp.eq.s32.totalorder %s34, 0
      %p268 = por %p266, %p267
      %p269 = scmp.ne.s32.totalorder %s261, %s263
      %p270 = scmp.eq.s32.totalorder %s39, 1
      %p271 = por %p269, %p270
      %p272 = scmp.ne.s32.totalorder %s263, %s264
      %p273 = scmp.eq.s32.totalorder %s39, 0
      %p274 = por %p272, %p273
      %p275 = scmp.ne.s32.totalorder %s263, %s264
      %p276 = scmp.eq.s32.totalorder %s40, 1
      %p277 = por %p275, %p276
      %p279 = scmp.ne.s32.totalorder %s264, %s278
      %p280 = scmp.eq.s32.totalorder %s40, 0
      %p281 = por %p279, %p280
      %s283 = sadd.s32 %s282, 1
      %p286 = scmp.eq.s32.totalorder %s34, 1
      %p287 = scmp.ne.s32.totalorder %s282, %s284
      %p288 = scmp.eq.s32.totalorder %s34, 0
      %p289 = por %p287, %p288
      %p290 = scmp.ne.s32.totalorder %s282, %s284
      %p291 = scmp.eq.s32.totalorder %s39, 1
      %p292 = por %p290, %p291
      %p293 = scmp.ne.s32.totalorder %s284, %s285
      %p294 = scmp.eq.s32.totalorder %s39, 0
      %p295 = por %p293, %p294
      %p296 = scmp.ne.s32.totalorder %s284, %s285
      %p297 = scmp.eq.s32.totalorder %s40, 1
      %p298 = por %p296, %p297
      %p300 = scmp.ne.s32.totalorder %s285, %s299
      %p301 = scmp.eq.s32.totalorder %s40, 0
      %p302 = por %p300, %p301
      %s304 = sadd.s32 %s303, 1
      %p307 = scmp.eq.s32.totalorder %s34, 1
      %p308 = scmp.ne.s32.totalorder %s303, %s305
      %p309 = scmp.eq.s32.totalorder %s34, 0
      %p310 = por %p308, %p309
      %p311 = scmp.ne.s32.totalorder %s303, %s305
      %p312 = scmp.eq.s32.totalorder %s39, 1
      %p313 = por %p311, %p312
      %p314 = scmp.ne.s32.totalorder %s305, %s306
      %p315 = scmp.eq.s32.totalorder %s39, 0
      %p316 = por %p314, %p315
      %p317 = scmp.ne.s32.totalorder %s305, %s306
      %p318 = scmp.eq.s32.totalorder %s40, 1
      %p319 = por %p317, %p318
      %p321 = scmp.ne.s32.totalorder %s306, %s320
      %p322 = scmp.eq.s32.totalorder %s40, 0
      %p323 = por %p321, %p322
      %s325 = sadd.s32 %s324, 1
      %p328 = scmp.eq.s32.totalorder %s34, 1
      %p329 = scmp.ne.s32.totalorder %s324, %s326
      %p330 = scmp.eq.s32.totalorder %s34, 0
      %p331 = por %p329, %p330
      %p332 = scmp.ne.s32.totalorder %s324, %s326
      %p333 = scmp.eq.s32.totalorder %s39, 1
      %p334 = por %p332, %p333
      %p335 = scmp.ne.s32.totalorder %s326, %s327
      %p336 = scmp.eq.s32.totalorder %s39, 0
      %p337 = por %p335, %p336
      %p338 = scmp.ne.s32.totalorder %s326, %s327
      %p339 = scmp.eq.s32.totalorder %s40, 1
      %p340 = por %p338, %p339
      %p342 = scmp.ne.s32.totalorder %s327, %s341
      %p343 = scmp.eq.s32.totalorder %s40, 0
      %p344 = por %p342, %p343
      %s346 = sadd.s32 %s345, 1
      %p349 = scmp.eq.s32.totalorder %s34, 1
      %p350 = scmp.ne.s32.totalorder %s345, %s347
      %p351 = scmp.eq.s32.totalorder %s34, 0
      %p352 = por %p350, %p351
      %p353 = scmp.ne.s32.totalorder %s345, %s347
      %p354 = scmp.eq.s32.totalorder %s39, 1
      %p355 = por %p353, %p354
      %p356 = scmp.ne.s32.totalorder %s347, %s348
      %p357 = scmp.eq.s32.totalorder %s39, 0
      %p358 = por %p356, %p357
      %p359 = scmp.ne.s32.totalorder %s347, %s348
      %p360 = scmp.eq.s32.totalorder %s40, 1
      %p361 = por %p359, %p360
      %p363 = scmp.ne.s32.totalorder %s348, %s362
      %p364 = scmp.eq.s32.totalorder %s40, 0
      %p365 = por %p363, %p364
      %s367 = sadd.s32 %s366, 1
      %p370 = scmp.eq.s32.totalorder %s34, 1
      %p371 = scmp.ne.s32.totalorder %s366, %s368
      %p372 = scmp.eq.s32.totalorder %s34, 0
      %p373 = por %p371, %p372
      %p374 = scmp.ne.s32.totalorder %s366, %s368
      %p375 = scmp.eq.s32.totalorder %s39, 1
      %p376 = por %p374, %p375
      %p377 = scmp.ne.s32.totalorder %s368, %s369
      %p378 = scmp.eq.s32.totalorder %s39, 0
      %p379 = por %p377, %p378
      %p380 = scmp.ne.s32.totalorder %s368, %s369
      %p381 = scmp.eq.s32.totalorder %s40, 1
      %p382 = por %p380, %p381
      %p384 = scmp.ne.s32.totalorder %s369, %s383
      %p385 = scmp.eq.s32.totalorder %s40, 0
      %p386 = por %p384, %p385
      %s388 = sadd.s32 %s387, 1
      %p391 = scmp.eq.s32.totalorder %s34, 1
      %p392 = scmp.ne.s32.totalorder %s387, %s389
      %p393 = scmp.eq.s32.totalorder %s34, 0
      %p394 = por %p392, %p393
      %p395 = scmp.ne.s32.totalorder %s387, %s389
      %p396 = scmp.eq.s32.totalorder %s39, 1
      %p397 = por %p395, %p396
      %p398 = scmp.ne.s32.totalorder %s389, %s390
      %p399 = scmp.eq.s32.totalorder %s39, 0
      %p400 = por %p398, %p399
      %p401 = scmp.ne.s32.totalorder %s389, %s390
      %p402 = scmp.eq.s32.totalorder %s40, 1
      %p403 = por %p401, %p402
      %p405 = scmp.ne.s32.totalorder %s390, %s404
      %p406 = scmp.eq.s32.totalorder %s40, 0
      %p407 = por %p405, %p406
      %s409 = sadd.s32 %s408, 1
      %p412 = scmp.eq.s32.totalorder %s34, 1
      %p413 = scmp.ne.s32.totalorder %s408, %s410
      %p414 = scmp.eq.s32.totalorder %s34, 0
      %p415 = por %p413, %p414
      %p416 = scmp.ne.s32.totalorder %s408, %s410
      %p417 = scmp.eq.s32.totalorder %s39, 1
      %p418 = por %p416, %p417
      %p419 = scmp.ne.s32.totalorder %s410, %s411
      %p420 = scmp.eq.s32.totalorder %s39, 0
      %p421 = por %p419, %p420
      %p422 = scmp.ne.s32.totalorder %s410, %s411
      %p423 = scmp.eq.s32.totalorder %s40, 1
      %p424 = por %p422, %p423
      %p426 = scmp.ne.s32.totalorder %s411, %s425
      %p427 = scmp.eq.s32.totalorder %s40, 0
      %p428 = por %p426, %p427
      %s429 = ssub.s32 %s41, %s60
      %s430 = ssub.s32 %s42, %s56
      %s431 = sor.u32 %s429, %s430
      %p432 = scmp.eq.s32.totalorder %s431, 0
      %s434 = sadd.s32 %s433, 1
      %s435 = scalar_select %p432, %s433, %s434
      %p438 = pneg %p432
      %p439 = scmp.eq.s32.totalorder %s34, 1
      %p440 = por %p438, %p439
      %p441 = scmp.ne.s32.totalorder %s433, %s436
      %p442 = scmp.eq.s32.totalorder %s34, 0
      %p443 = por %p441, %p442
      %p444 = scmp.ne.s32.totalorder %s433, %s436
      %p445 = scmp.eq.s32.totalorder %s39, 1
      %p446 = por %p444, %p445
      %p447 = scmp.ne.s32.totalorder %s436, %s437
      %p448 = scmp.eq.s32.totalorder %s39, 0
      %p449 = por %p447, %p448
      %p450 = scmp.ne.s32.totalorder %s436, %s437
      %p451 = scmp.eq.s32.totalorder %s40, 1
      %p452 = por %p450, %p451
      %p454 = scmp.ne.s32.totalorder %s437, %s453
      %p455 = scmp.eq.s32.totalorder %s40, 0
      %p456 = por %p454, %p455
      %p457 = scmp.le.s32.totalorder 1, %s34
      %p458 = scmp.lt.s32.totalorder %s34, 3
      %p459 = pnand %p457, %p458
      %p460 = pneg %p459
      // Predicated region
      $region9: #{tpu_custom_call.1} parent=5 // pred_check
        _
      $region10: #{tpu_custom_call.1} parent=5 // pred_check_branch
        %462 = sbr.rel (%p459) target = $region12
      $region11: #{tpu_custom_call.1} parent=5 // pred_region
        %s463 = ssub.s32 %s34, 1
        // Predicated region
        $region13: #{tpu_custom_call.1} parent=11 // pred_check
          %p464 = pneg %p274
        $region14: #{tpu_custom_call.1} parent=11 // pred_check_branch
          %466 = sbr.rel (%p464) target = $region16
        $region15: #{tpu_custom_call.1} parent=11 // pred_region
          %s468 = ssub.s32 256, 256
          %469 = vsyncadd [#allocation15], %s468
          %s470 = sshll.u32 [#allocation14], 4
          %s471 = int_to_ptr.vmem [resolvable:$true] %s470
          %476 = dma.hbm_to_vmem [thread:$0]  %s7, 256, %s471, [#allocation15], 64, 64, 4
        $region16: #{tpu_custom_call.1} parent=11 // pred_fallthru
          _
        // Predicated region
        $region17: #{tpu_custom_call.1} parent=11 // pred_check
          %p477 = pneg %p295
        $region18: #{tpu_custom_call.1} parent=11 // pred_check_branch
          %479 = sbr.rel (%p477) target = $region20
        $region19: #{tpu_custom_call.1} parent=11 // pred_region
          _
        $region20: #{tpu_custom_call.1} parent=11 // pred_fallthru
          _
        // Predicated region
        $region21: #{tpu_custom_call.1} parent=11 // pred_check
          %p480 = pneg %p316
        $region22: #{tpu_custom_call.1} parent=11 // pred_check_branch
          %482 = sbr.rel (%p480) target = $region24
        $region23: #{tpu_custom_call.1} parent=11 // pred_region
          _
        $region24: #{tpu_custom_call.1} parent=11 // pred_fallthru
          _
        // Predicated region
        $region25: #{tpu_custom_call.1} parent=11 // pred_check
          %p483 = pneg %p337
        $region26: #{tpu_custom_call.1} parent=11 // pred_check_branch
          %485 = sbr.rel (%p483) target = $region28
        $region27: #{tpu_custom_call.1} parent=11 // pred_region
          _
        $region28: #{tpu_custom_call.1} parent=11 // pred_fallthru
          _
        // Predicated region
        $region29: #{tpu_custom_call.1} parent=11 // pred_check
          %p486 = pneg %p358
        $region30: #{tpu_custom_call.1} parent=11 // pred_check_branch
          %488 = sbr.rel (%p486) target = $region32
        $region31: #{tpu_custom_call.1} parent=11 // pred_region
          %s490 = ssub.s32 256, 256
          %491 = vsyncadd [#allocation15], %s490
          %s492 = sshll.u32 [#allocation16], 4
          %s493 = int_to_ptr.vmem [resolvable:$true] %s492
          %498 = dma.hbm_to_vmem [thread:$0]  %s11, 256, %s493, [#allocation15], 64, 64, 4
        $region32: #{tpu_custom_call.1} parent=11 // pred_fallthru
          _
        // Predicated region
        $region33: #{tpu_custom_call.1} parent=11 // pred_check
          %p499 = pneg %p379
        $region34: #{tpu_custom_call.1} parent=11 // pred_check_branch
          %501 = sbr.rel (%p499) target = $region36
        $region35: #{tpu_custom_call.1} parent=11 // pred_region
          _
        $region36: #{tpu_custom_call.1} parent=11 // pred_fallthru
          _
        // Predicated region
        $region37: #{tpu_custom_call.1} parent=11 // pred_check
          %p502 = pneg %p400
        $region38: #{tpu_custom_call.1} parent=11 // pred_check_branch
          %504 = sbr.rel (%p502) target = $region40
        $region39: #{tpu_custom_call.1} parent=11 // pred_region
          _
        $region40: #{tpu_custom_call.1} parent=11 // pred_fallthru
          _
        // Predicated region
        $region41: #{tpu_custom_call.1} parent=11 // pred_check
          %p505 = pneg %p421
        $region42: #{tpu_custom_call.1} parent=11 // pred_check_branch
          %507 = sbr.rel (%p505) target = $region44
        $region43: #{tpu_custom_call.1} parent=11 // pred_region
          _
        $region44: #{tpu_custom_call.1} parent=11 // pred_fallthru
          _
      $region12: #{tpu_custom_call.1} parent=5 // pred_fallthru
        _
      %p508 = scmp.lt.s32.totalorder %s34, 2
      // Predicated region
      $region45: #{tpu_custom_call.1} parent=5 // pred_check
        %p509 = pneg %p508
      $region46: #{tpu_custom_call.1} parent=5 // pred_check_branch
        %511 = sbr.rel (%p509) target = $region48
      $region47: #{tpu_custom_call.1} parent=5 // pred_region
        // Predicated region
        $region49: #{tpu_custom_call.1} parent=47 // pred_check
          %p512 = pneg %p75
        $region50: #{tpu_custom_call.1} parent=47 // pred_check_branch
          %514 = sbr.rel (%p512) target = $region52
        $region51: #{tpu_custom_call.1} parent=47 // pred_region
          %s515 = sand.u32 %s65, 1
          %s516 = scalar_lea.sflag [#allocation6], %s515
          %s517 = sand.u32 %s65, 1
          %s518 = smul.addr %s517, 8
          %s519 = scalar_lea.vmem [#allocation5], %s518
          %s521 = ssub.s32 128, 128
          %522 = vsyncadd %s516, %s521
          %s523 = sadd.s32 %s42, %s41
          %s524 = smul.addr %s523, 128
          %s525 = scalar_lea.hbm %s0, %s524
          %s527 = sshll.u32 %s519, 4
          %s528 = int_to_ptr.vmem [resolvable:$true] %s527
          %530 = dma.hbm_to_vmem [thread:$0]  %s525, 128, %s528, %s516
        $region52: #{tpu_custom_call.1} parent=47 // pred_fallthru
          _
        // Predicated region
        $region53: #{tpu_custom_call.1} parent=47 // pred_check
          %p531 = pneg %p103
        $region54: #{tpu_custom_call.1} parent=47 // pred_check_branch
          %533 = sbr.rel (%p531) target = $region56
        $region55: #{tpu_custom_call.1} parent=47 // pred_region
          %p534 = scmp.lt.s32.totalorder %s41, 1
          %s535 = scalar_select %p534, %s41, 1
          %p536 = scmp.lt.s32.totalorder %s42, 0
          %s537 = scalar_select %p536, %s42, 0
          %s538 = smul.addr %s535, 4
          %s539 = sadd.s32 %s537, %s538
          %s540 = smul.addr %s539, 4
          %s541 = scalar_lea.vmem %s1, %s540
        $region56: #{tpu_custom_call.1} parent=47 // pred_fallthru
          _
        // Predicated region
        $region57: #{tpu_custom_call.1} parent=47 // pred_check
          %p542 = pneg %p131
        $region58: #{tpu_custom_call.1} parent=47 // pred_check_branch
          %544 = sbr.rel (%p542) target = $region60
        $region59: #{tpu_custom_call.1} parent=47 // pred_region
          %s545 = sand.u32 %s34, 1
          %s546 = scalar_lea.sflag [#allocation9], %s545
          %s547 = sand.u32 %s121, 1
          %s548 = smul.addr %s547, 16
          %s549 = scalar_lea.vmem [#allocation8], %s548
          %s551 = ssub.s32 256, 256
          %552 = vsyncadd %s546, %s551
          %s553 = smul.addr %s41, 4
          %s554 = sadd.s32 %s42, %s553
          %s555 = smul.addr %s554, 64
          %s556 = scalar_lea.hbm %s2, %s555
          %s557 = sshll.u32 %s549, 4
          %s558 = int_to_ptr.vmem [resolvable:$true] %s557
          %563 = dma.hbm_to_vmem [thread:$0]  %s556, 256, %s558, %s546, 64, 64, 4
        $region60: #{tpu_custom_call.1} parent=47 // pred_fallthru
          _
        // Predicated region
        $region61: #{tpu_custom_call.1} parent=47 // pred_check
          %p564 = pneg %p159
        $region62: #{tpu_custom_call.1} parent=47 // pred_check_branch
          %566 = sbr.rel (%p564) target = $region64
        $region63: #{tpu_custom_call.1} parent=47 // pred_region
          %s567 = sand.u32 %s34, 1
          %s568 = scalar_lea.sflag [#allocation9], %s567
          %s569 = sand.u32 %s149, 1
          %s570 = smul.addr %s569, 16
          %s571 = scalar_lea.vmem [#allocation10], %s570
          %s573 = ssub.s32 256, 256
          %574 = vsyncadd %s568, %s573
          %s575 = smul.addr %s41, 4
          %s576 = sadd.s32 %s43, %s575
          %s577 = smul.addr %s576, 64
          %s578 = scalar_lea.hbm %s3, %s577
          %s579 = sshll.u32 %s571, 4
          %s580 = int_to_ptr.vmem [resolvable:$true] %s579
          %585 = dma.hbm_to_vmem [thread:$0]  %s578, 256, %s580, %s568, 64, 64, 4
        $region64: #{tpu_custom_call.1} parent=47 // pred_fallthru
          _
        // Predicated region
        $region65: #{tpu_custom_call.1} parent=47 // pred_check
          %p586 = pneg %p187
        $region66: #{tpu_custom_call.1} parent=47 // pred_check_branch
          %588 = sbr.rel (%p586) target = $region68
        $region67: #{tpu_custom_call.1} parent=47 // pred_region
          %s589 = sand.u32 %s34, 1
          %s590 = scalar_lea.sflag [#allocation12], %s589
          %s591 = sand.u32 %s177, 1
          %s592 = smul.addr %s591, 16
          %s593 = scalar_lea.vmem [#allocation11], %s592
          %s595 = ssub.s32 256, 256
          %596 = vsyncadd %s590, %s595
          %s597 = smul.addr %s41, 4
          %s598 = sadd.s32 %s43, %s597
          %s599 = smul.addr %s598, 64
          %s600 = scalar_lea.hbm %s4, %s599
          %s601 = sshll.u32 %s593, 4
          %s602 = int_to_ptr.vmem [resolvable:$true] %s601
          %607 = dma.hbm_to_vmem [thread:$0]  %s600, 256, %s602, %s590, 64, 64, 4
        $region68: #{tpu_custom_call.1} parent=47 // pred_fallthru
          _
        // Predicated region
        $region69: #{tpu_custom_call.1} parent=47 // pred_check
          %p608 = pneg %p217
        $region70: #{tpu_custom_call.1} parent=47 // pred_check_branch
          %610 = sbr.rel (%p608) target = $region72
        $region71: #{tpu_custom_call.1} parent=47 // pred_region
          %s611 = smul.u32 8, %s42
          %p612 = scmp.lt.s32.totalorder %s41, 1
          %s613 = scalar_select %p612, %s41, 1
          %p614 = scmp.lt.s32.totalorder %s611, 7
          %s615 = scalar_select %p614, %s611, 7
          %p616 = scmp.lt.s32.totalorder %s43, 0
          %s617 = scalar_select %p616, %s43, 0
          %s618 = sadd.s32 %s617, %s615
          %s619 = smul.addr %s613, 8
          %s620 = sadd.s32 %s618, %s619
          %s621 = smul.addr %s620, 4
          %s622 = scalar_lea.vmem %s5, %s621
          %s623 = smul.u32 8, %s42
        $region72: #{tpu_custom_call.1} parent=47 // pred_fallthru
          _
        // Predicated region
        $region73: #{tpu_custom_call.1} parent=47 // pred_check
          %p624 = pneg %p247
        $region74: #{tpu_custom_call.1} parent=47 // pred_check_branch
          %626 = sbr.rel (%p624) target = $region76
        $region75: #{tpu_custom_call.1} parent=47 // pred_region
          %s627 = sand.u32 %s34, 1
          %s628 = scalar_lea.sflag [#allocation12], %s627
          %s629 = sand.u32 %s237, 1
          %s630 = smul.addr %s629, 8
          %s631 = scalar_lea.vmem [#allocation13], %s630
          %s633 = ssub.s32 128, 128
          %634 = vsyncadd %s628, %s633
          %s635 = sadd.s32 %s43, %s42
          %s636 = sadd.s32 %s635, %s41
          %s637 = smul.addr %s636, 128
          %s638 = scalar_lea.hbm %s6, %s637
          %s640 = sshll.u32 %s631, 4
          %s641 = int_to_ptr.vmem [resolvable:$true] %s640
          %643 = dma.hbm_to_vmem [thread:$0]  %s638, 128, %s641, %s628
        $region76: #{tpu_custom_call.1} parent=47 // pred_fallthru
          _
      $region48: #{tpu_custom_call.1} parent=5 // pred_fallthru
        _
      %p644 = scmp.le.s32.totalorder 1, %s34
      %p645 = scmp.lt.s32.totalorder %s34, 3
      %p646 = pnand %p644, %p645
      %p647 = pneg %p646
      // Predicated region
      $region77: #{tpu_custom_call.1} parent=5 // pred_check
        _
      $region78: #{tpu_custom_call.1} parent=5 // pred_check_branch
        %649 = sbr.rel (%p646) target = $region80
      $region79: #{tpu_custom_call.1} parent=5 // pred_region
        %s650 = ssub.s32 %s34, 1
        %s651 = sand.u32 %s68, 1
        %s652 = scalar_lea.sflag [#allocation6], %s651
        %s653 = sand.u32 %s68, 1
        %s654 = smul.addr %s653, 8
        %s655 = scalar_lea.vmem [#allocation5], %s654
        // Predicated region
        $region81: #{tpu_custom_call.1} parent=79 // pred_check
          %p656 = pneg %p81
        $region82: #{tpu_custom_call.1} parent=79 // pred_check_branch
          %658 = sbr.rel (%p656) target = $region84
        $region83: #{tpu_custom_call.1} parent=79 // pred_region
          %659 = dma.done %s652, 128
        $region84: #{tpu_custom_call.1} parent=79 // pred_fallthru
          _
        %s660 = sand.u32 %s39, 1
        %s661 = scalar_lea.sflag [#allocation9], %s660
        %s662 = sand.u32 %s124, 1
        %s663 = smul.addr %s662, 16
        %s664 = scalar_lea.vmem [#allocation8], %s663
        // Predicated region
        $region85: #{tpu_custom_call.1} parent=79 // pred_check
          %p665 = pneg %p137
        $region86: #{tpu_custom_call.1} parent=79 // pred_check_branch
          %667 = sbr.rel (%p665) target = $region88
        $region87: #{tpu_custom_call.1} parent=79 // pred_region
          %668 = dma.done %s661, 256
        $region88: #{tpu_custom_call.1} parent=79 // pred_fallthru
          _
        %s669 = sand.u32 %s39, 1
        %s670 = scalar_lea.sflag [#allocation9], %s669
        %s671 = sand.u32 %s152, 1
        %s672 = smul.addr %s671, 16
        %s673 = scalar_lea.vmem [#allocation10], %s672
        // Predicated region
        $region89: #{tpu_custom_call.1} parent=79 // pred_check
          %p674 = pneg %p165
        $region90: #{tpu_custom_call.1} parent=79 // pred_check_branch
          %676 = sbr.rel (%p674) target = $region92
        $region91: #{tpu_custom_call.1} parent=79 // pred_region
          %677 = dma.done %s670, 256
        $region92: #{tpu_custom_call.1} parent=79 // pred_fallthru
          _
        %s678 = sand.u32 %s39, 1
        %s679 = scalar_lea.sflag [#allocation12], %s678
        %s680 = sand.u32 %s180, 1
        %s681 = smul.addr %s680, 16
        %s682 = scalar_lea.vmem [#allocation11], %s681
        // Predicated region
        $region93: #{tpu_custom_call.1} parent=79 // pred_check
          %p683 = pneg %p193
        $region94: #{tpu_custom_call.1} parent=79 // pred_check_branch
          %685 = sbr.rel (%p683) target = $region96
        $region95: #{tpu_custom_call.1} parent=79 // pred_region
          %686 = dma.done %s679, 256
        $region96: #{tpu_custom_call.1} parent=79 // pred_fallthru
          _
        %s687 = sand.u32 %s39, 1
        %s688 = scalar_lea.sflag [#allocation12], %s687
        %s689 = sand.u32 %s240, 1
        %s690 = smul.addr %s689, 8
        %s691 = scalar_lea.vmem [#allocation13], %s690
        // Predicated region
        $region97: #{tpu_custom_call.1} parent=79 // pred_check
          %p692 = pneg %p253
        $region98: #{tpu_custom_call.1} parent=79 // pred_check_branch
          %694 = sbr.rel (%p692) target = $region100
        $region99: #{tpu_custom_call.1} parent=79 // pred_region
          %695 = dma.done %s688, 128
        $region100: #{tpu_custom_call.1} parent=79 // pred_fallthru
          _
        // Predicated region
        $region101: #{tpu_custom_call.1} parent=79 // pred_check
          %p696 = pneg %p274
        $region102: #{tpu_custom_call.1} parent=79 // pred_check_branch
          %698 = sbr.rel (%p696) target = $region104
        $region103: #{tpu_custom_call.1} parent=79 // pred_region
          %699 = dma.done [#allocation15], 256
        $region104: #{tpu_custom_call.1} parent=79 // pred_fallthru
          _
        // Predicated region
        $region105: #{tpu_custom_call.1} parent=79 // pred_check
          %p700 = pneg %p358
        $region106: #{tpu_custom_call.1} parent=79 // pred_check_branch
          %702 = sbr.rel (%p700) target = $region108
        $region107: #{tpu_custom_call.1} parent=79 // pred_region
          %703 = dma.done [#allocation15], 256
        $region108: #{tpu_custom_call.1} parent=79 // pred_fallthru
          _
        %s704 = sand.u32 %s68, 1
        %s705 = scalar_lea.sflag [#allocation6], %s704
        %s706 = sand.u32 %s68, 1
        %s707 = smul.addr %s706, 8
        %s708 = scalar_lea.vmem [#allocation5], %s707
        %p709 = pneg %p81
        %p710 = pneg %p78
        %p711 = scmp.lt.s32.totalorder %s44, 1
        %s712 = scalar_select %p711, %s44, 1
        %p713 = scmp.lt.s32.totalorder %s45, 0
        %s714 = scalar_select %p713, %s45, 0
        %s715 = smul.addr %s712, 4
        %s716 = sadd.s32 %s714, %s715
        %s717 = smul.addr %s716, 4
        %s718 = scalar_lea.vmem %s1, %s717
        %p719 = pneg %p109
        %p720 = pneg %p106
        %s721 = sand.u32 %s39, 1
        %s722 = scalar_lea.sflag [#allocation9], %s721
        %s723 = sand.u32 %s124, 1
        %s724 = smul.addr %s723, 16
        %s725 = scalar_lea.vmem [#allocation8], %s724
        %p726 = pneg %p137
        %p727 = pneg %p134
        %s728 = sand.u32 %s39, 1
        %s729 = scalar_lea.sflag [#allocation9], %s728
        %s730 = sand.u32 %s152, 1
        %s731 = smul.addr %s730, 16
        %s732 = scalar_lea.vmem [#allocation10], %s731
        %p733 = pneg %p165
        %p734 = pneg %p162
        %s735 = sand.u32 %s39, 1
        %s736 = scalar_lea.sflag [#allocation12], %s735
        %s737 = sand.u32 %s180, 1
        %s738 = smul.addr %s737, 16
        %s739 = scalar_lea.vmem [#allocation11], %s738
        %p740 = pneg %p193
        %p741 = pneg %p190
        %s742 = smul.u32 8, %s45
        %p743 = scmp.lt.s32.totalorder %s44, 1
        %s744 = scalar_select %p743, %s44, 1
        %p745 = scmp.lt.s32.totalorder %s742, 7
        %s746 = scalar_select %p745, %s742, 7
        %p747 = scmp.lt.s32.totalorder %s46, 0
        %s748 = scalar_select %p747, %s46, 0
        %s749 = sadd.s32 %s748, %s746
        %s750 = smul.addr %s744, 8
        %s751 = sadd.s32 %s749, %s750
        %s752 = smul.addr %s751, 4
        %s753 = scalar_lea.vmem %s5, %s752
        %p754 = pneg %p223
        %p755 = pneg %p220
        %s756 = sand.u32 %s39, 1
        %s757 = scalar_lea.sflag [#allocation12], %s756
        %s758 = sand.u32 %s240, 1
        %s759 = smul.addr %s758, 8
        %s760 = scalar_lea.vmem [#allocation13], %s759
        %p761 = pneg %p253
        %p762 = pneg %p250
        %p763 = pneg %p274
        %p764 = pneg %p271
        %p765 = pneg %p295
        %p766 = pneg %p292
        %p767 = pneg %p316
        %p768 = pneg %p313
        %p769 = pneg %p337
        %p770 = pneg %p334
        %p771 = pneg %p358
        %p772 = pneg %p355
        %p773 = pneg %p379
        %p774 = pneg %p376
        %p775 = pneg %p400
        %p776 = pneg %p397
        %p777 = pneg %p421
        %p778 = pneg %p418
        %p779 = pneg %p449
        %p780 = pneg %p446
        %s781 = sand.u32 %s436, 1
        %s782 = scalar_lea.sflag [#allocation7], %s781
        %s783 = sand.u32 %s436, 1
        %s784 = smul.addr %s783, 8
        %s785 = scalar_lea.vmem [#allocation17], %s784
        %p786 = scmp.lt.s32.totalorder %s44, 1
        %s787 = scalar_select %p786, %s44, 1
        %p788 = scmp.lt.s32.totalorder %s45, 0
        %s789 = scalar_select %p788, %s45, 0
        %s790 = smul.addr %s787, 4
        %s791 = sadd.s32 %s789, %s790
        %s792 = smul.addr %s791, 4
        %s793 = scalar_lea.vmem %s1, %s792
        %s794 = smul.u32 8, %s45
        %p795 = scmp.lt.s32.totalorder %s44, 1
        %s796 = scalar_select %p795, %s44, 1
        %p797 = scmp.lt.s32.totalorder %s794, 7
        %s798 = scalar_select %p797, %s794, 7
        %p799 = scmp.lt.s32.totalorder %s46, 0
        %s800 = scalar_select %p799, %s46, 0
        %s801 = sadd.s32 %s800, %s798
        %s802 = smul.addr %s796, 8
        %s803 = sadd.s32 %s801, %s802
        %s804 = smul.addr %s803, 4
        %s805 = scalar_lea.vmem %s5, %s804
        %s806 = smul.u32 8, %s45
        %p808 = scmp.eq.s32.totalorder %s46, 0
        // Predicated region
        $region109: #{tpu_custom_call.1} parent=79 // pred_check
          %p809 = pneg %p808
        $region110: #{tpu_custom_call.1} parent=79 // pred_check_branch
          %811 = sbr.rel (%p809) target = $region112
        $region111: #{tpu_custom_call.1} parent=79 // pred_region
          %vm812 = vcmask 7168
          %813 = vst.msk [vmem:[#allocation2] sm:$0xff] %vm812, -inf
          %814 = vst.msk [vmem:[#allocation2 + $0x8] sm:$0xff] %vm812, -inf
          %815 = vst.msk [vmem:[#allocation2 + $0x10] sm:$0xff] %vm812, -inf
          %816 = vst.msk [vmem:[#allocation2 + $0x18] sm:$0xff] %vm812, -inf
          %817 = vst.msk [vmem:[#allocation3] sm:$0xff] %vm812, 0.0
          %818 = vst.msk [vmem:[#allocation3 + $0x8] sm:$0xff] %vm812, 0.0
          %819 = vst.msk [vmem:[#allocation3 + $0x10] sm:$0xff] %vm812, 0.0
          %820 = vst.msk [vmem:[#allocation3 + $0x18] sm:$0xff] %vm812, 0.0
          %vm821 = vcmask 64512
          %822 = vst.msk [vmem:[#allocation4] sm:$0xff] %vm821, 0.0
          %823 = vst.msk [vmem:[#allocation4 + $0x8] sm:$0xff] %vm821, 0.0
          %824 = vst.msk [vmem:[#allocation4 + $0x10] sm:$0xff] %vm821, 0.0
          %825 = vst.msk [vmem:[#allocation4 + $0x18] sm:$0xff] %vm821, 0.0
        $region112: #{tpu_custom_call.1} parent=79 // pred_fallthru
          _
        %v826 = vld [vmem:[%s793] sm:$0xf]
        %v827 = vld [vmem:[%s793 + $0x4] sm:$0xf]
        %v828 = vld [vmem:[%s793 + $0x8] sm:$0xf]
        %v829 = vld [vmem:[%s793 + $0xc] sm:$0xf]
        %v830 = vld [vmem:[%s673] sm:$0xf]
        %v831 = vld [vmem:[%s673 + $0x4] sm:$0xf]
        %v832 = vld [vmem:[%s673 + $0x8] sm:$0xf]
        %v833 = vld [vmem:[%s673 + $0xc] sm:$0xf]
        %v834 = vld [vmem:[%s664] sm:$0xf]
        %v835 = vld [vmem:[%s664 + $0x4] sm:$0xf]
        %v836 = vld [vmem:[%s664 + $0x8] sm:$0xf]
        %v837 = vld [vmem:[%s664 + $0xc] sm:$0xf]
        %v838 = vld [vmem:[%s805] sm:$0xf]
        %v839 = vld [vmem:[%s805 + $0x4] sm:$0xf]
        %v840 = vld [vmem:[%s805 + $0x8] sm:$0xf]
        %v841 = vld [vmem:[%s805 + $0xc] sm:$0xf]
        %v842 = vld [vmem:[%s805 + $0x10] sm:$0xf]
        %v843 = vld [vmem:[%s805 + $0x14] sm:$0xf]
        %v844 = vld [vmem:[%s805 + $0x18] sm:$0xf]
        %v845 = vld [vmem:[%s805 + $0x1c] sm:$0xf]
        %846 = vxpose.xlu0.c.b16.start [1/8] %v834, 128
        %847 = vxpose.xlu0.c.b16.cont [2/8] 0, 128
        %848 = vxpose.xlu0.c.b16.cont [3/8] 0, 128
        %849 = vxpose.xlu0.c.b16.cont [4/8] 0, 128
        %850 = vxpose.xlu0.c.b16.cont [5/8] 0, 128
        %851 = vxpose.xlu0.c.b16.cont [6/8] 0, 128
        %852 = vxpose.xlu0.c.b16.cont [7/8] 0, 128
        %853 = vxpose.xlu0.c.b16.end [8/8] 0, 128
        %v854 = vpop.trf.xlu0
        %v855 = vpop.trf.xlu0
        %v856 = vpop.trf.xlu0
        %v857 = vpop.trf.xlu0
        %v858 = vpop.trf.xlu0
        %v859 = vpop.trf.xlu0
        %v860 = vpop.trf.xlu0
        %v861 = vpop.trf.xlu0
        %862 = vxpose.xlu0.c.b16.start [1/8] %v835, 128
        %863 = vxpose.xlu0.c.b16.cont [2/8] 0, 128
        %864 = vxpose.xlu0.c.b16.cont [3/8] 0, 128
        %865 = vxpose.xlu0.c.b16.cont [4/8] 0, 128
        %866 = vxpose.xlu0.c.b16.cont [5/8] 0, 128
        %867 = vxpose.xlu0.c.b16.cont [6/8] 0, 128
        %868 = vxpose.xlu0.c.b16.cont [7/8] 0, 128
        %869 = vxpose.xlu0.c.b16.end [8/8] 0, 128
        %v870 = vpop.trf.xlu0
        %v871 = vpop.trf.xlu0
        %v872 = vpop.trf.xlu0
        %v873 = vpop.trf.xlu0
        %v874 = vpop.trf.xlu0
        %v875 = vpop.trf.xlu0
        %v876 = vpop.trf.xlu0
        %v877 = vpop.trf.xlu0
        %878 = vxpose.xlu0.c.b16.start [1/8] %v836, 128
        %879 = vxpose.xlu0.c.b16.cont [2/8] 0, 128
        %880 = vxpose.xlu0.c.b16.cont [3/8] 0, 128
        %881 = vxpose.xlu0.c.b16.cont [4/8] 0, 128
        %882 = vxpose.xlu0.c.b16.cont [5/8] 0, 128
        %883 = vxpose.xlu0.c.b16.cont [6/8] 0, 128
        %884 = vxpose.xlu0.c.b16.cont [7/8] 0, 128
        %885 = vxpose.xlu0.c.b16.end [8/8] 0, 128
        %v886 = vpop.trf.xlu0
        %v887 = vpop.trf.xlu0
        %v888 = vpop.trf.xlu0
        %v889 = vpop.trf.xlu0
        %v890 = vpop.trf.xlu0
        %v891 = vpop.trf.xlu0
        %v892 = vpop.trf.xlu0
        %v893 = vpop.trf.xlu0
        %894 = vxpose.xlu0.c.b16.start [1/8] %v837, 128
        %895 = vxpose.xlu0.c.b16.cont [2/8] 0, 128
        %896 = vxpose.xlu0.c.b16.cont [3/8] 0, 128
        %897 = vxpose.xlu0.c.b16.cont [4/8] 0, 128
        %898 = vxpose.xlu0.c.b16.cont [5/8] 0, 128
        %899 = vxpose.xlu0.c.b16.cont [6/8] 0, 128
        %900 = vxpose.xlu0.c.b16.cont [7/8] 0, 128
        %901 = vxpose.xlu0.c.b16.end [8/8] 0, 128
        %v902 = vpop.trf.xlu0
        %v903 = vpop.trf.xlu0
        %v904 = vpop.trf.xlu0
        %v905 = vpop.trf.xlu0
        %v906 = vpop.trf.xlu0
        %v907 = vpop.trf.xlu0
        %v908 = vpop.trf.xlu0
        %v909 = vpop.trf.xlu0
        %v912 = vpack.i.b16 %v870, %v854
        %v914 = vshrl.u32 %v854, 16
        %v915 = vshrl.u32 %v870, 16
        %v916 = vpack.i.b16 %v915, %v914
        %v920 = vpack.i.b16 %v902, %v886
        %v922 = vshrl.u32 %v886, 16
        %v923 = vshrl.u32 %v902, 16
        %v924 = vpack.i.b16 %v923, %v922
        %v927 = vpack.i.b16 0, 0
        %v929 = vshrl.u32 0, 16
        %v930 = vpack.i.b16 %v929, %v929
        %v934 = vpack.i.b16 %v871, %v855
        %v936 = vshrl.u32 %v855, 16
        %v937 = vshrl.u32 %v871, 16
        %v938 = vpack.i.b16 %v937, %v936
        %v942 = vpack.i.b16 %v903, %v887
        %v944 = vshrl.u32 %v887, 16
        %v945 = vshrl.u32 %v903, 16
        %v946 = vpack.i.b16 %v945, %v944
        %v948 = vcombine.high %v912, %v927
        %v950 = vunpack.c.l.s4 1983009808
        %v951 = vunpack.c.0.s8 %v950
        %v952 = vlaneseq
        %v953 = vshrl.u32 %v952, 7
        %v954 = vsub.s32 %v951, %v953
        %v955 = vrot.slane %v912, %v954
        %v957 = vunpack.c.l.s4 1983009808
        %v958 = vunpack.c.0.s8 %v957
        %v959 = vlaneseq
        %v960 = vshrl.u32 %v959, 7
        %v961 = vsub.s32 %v958, %v960
        %v962 = vrot.slane %v948, %v961
        %v963 = vcombine.high %v920, %v927
        %v965 = vunpack.c.l.s4 1983009808
        %v966 = vunpack.c.0.s8 %v965
        %v967 = vlaneseq
        %v968 = vshrl.u32 %v967, 7
        %v969 = vsub.s32 %v966, %v968
        %v970 = vrot.slane %v920, %v969
        %v972 = vunpack.c.l.s4 1983009808
        %v973 = vunpack.c.0.s8 %v972
        %v974 = vlaneseq
        %v975 = vshrl.u32 %v974, 7
        %v976 = vsub.s32 %v973, %v975
        %v977 = vrot.slane %v963, %v976
        %v978 = vcombine.low %v955, %v970
        %v979 = vcombine.high %v955, %v970
        %v981 = vunpack.c.l.s4 1934713408
        %v982 = vunpack.c.0.s8 %v981
        %v983 = vlaneseq
        %v984 = vshrl.u32 %v983, 7
        %v985 = vsub.s32 %v982, %v984
        %v986 = vrot.slane %v978, %v985
        %v988 = vunpack.c.l.s4 1934713408
        %v989 = vunpack.c.0.s8 %v988
        %v990 = vlaneseq
        %v991 = vshrl.u32 %v990, 7
        %v992 = vsub.s32 %v989, %v991
        %v993 = vrot.slane %v979, %v992
        %v994 = vcombine.low %v962, %v977
        %v995 = vcombine.high %v962, %v977
        %v997 = vunpack.c.l.s4 1934713408
        %v998 = vunpack.c.0.s8 %v997
        %v999 = vlaneseq
        %v1000 = vshrl.u32 %v999, 7
        %v1001 = vsub.s32 %v998, %v1000
        %v1002 = vrot.slane %v994, %v1001
        %v1004 = vunpack.c.l.s4 1934713408
        %v1005 = vunpack.c.0.s8 %v1004
        %v1006 = vlaneseq
        %v1007 = vshrl.u32 %v1006, 7
        %v1008 = vsub.s32 %v1005, %v1007
        %v1009 = vrot.slane %v995, %v1008
        %v1010 = vcombine.high %v986, 0
        %v1011 = vcombine.high %v993, 0
        %v1012 = vcombine.high %v1002, 0
        %v1013 = vcombine.high %v1009, 0
        %v1014 = vcombine.high %v916, %v930
        %v1016 = vunpack.c.l.s4 1983009808
        %v1017 = vunpack.c.0.s8 %v1016
        %v1018 = vlaneseq
        %v1019 = vshrl.u32 %v1018, 7
        %v1020 = vsub.s32 %v1017, %v1019
        %v1021 = vrot.slane %v916, %v1020
        %v1023 = vunpack.c.l.s4 1983009808
        %v1024 = vunpack.c.0.s8 %v1023
        %v1025 = vlaneseq
        %v1026 = vshrl.u32 %v1025, 7
        %v1027 = vsub.s32 %v1024, %v1026
        %v1028 = vrot.slane %v1014, %v1027
        %v1029 = vcombine.high %v924, %v930
        %v1031 = vunpack.c.l.s4 1983009808
        %v1032 = vunpack.c.0.s8 %v1031
        %v1033 = vlaneseq
        %v1034 = vshrl.u32 %v1033, 7
        %v1035 = vsub.s32 %v1032, %v1034
        %v1036 = vrot.slane %v924, %v1035
        %v1038 = vunpack.c.l.s4 1983009808
        %v1039 = vunpack.c.0.s8 %v1038
        %v1040 = vlaneseq
        %v1041 = vshrl.u32 %v1040, 7
        %v1042 = vsub.s32 %v1039, %v1041
        %v1043 = vrot.slane %v1029, %v1042
        %v1044 = vcombine.low %v1021, %v1036
        %v1045 = vcombine.high %v1021, %v1036
        %v1047 = vunpack.c.l.s4 1934713408
        %v1048 = vunpack.c.0.s8 %v1047
        %v1049 = vlaneseq
        %v1050 = vshrl.u32 %v1049, 7
        %v1051 = vsub.s32 %v1048, %v1050
        %v1052 = vrot.slane %v1044, %v1051
        %v1054 = vunpack.c.l.s4 1934713408
        %v1055 = vunpack.c.0.s8 %v1054
        %v1056 = vlaneseq
        %v1057 = vshrl.u32 %v1056, 7
        %v1058 = vsub.s32 %v1055, %v1057
        %v1059 = vrot.slane %v1045, %v1058
        %v1060 = vcombine.low %v1028, %v1043
        %v1061 = vcombine.high %v1028, %v1043
        %v1063 = vunpack.c.l.s4 1934713408
        %v1064 = vunpack.c.0.s8 %v1063
        %v1065 = vlaneseq
        %v1066 = vshrl.u32 %v1065, 7
        %v1067 = vsub.s32 %v1064, %v1066
        %v1068 = vrot.slane %v1060, %v1067
        %v1070 = vunpack.c.l.s4 1934713408
        %v1071 = vunpack.c.0.s8 %v1070
        %v1072 = vlaneseq
        %v1073 = vshrl.u32 %v1072, 7
        %v1074 = vsub.s32 %v1071, %v1073
        %v1075 = vrot.slane %v1061, %v1074
        %v1076 = vcombine.high %v1052, 0
        %v1077 = vcombine.high %v1059, 0
        %v1078 = vcombine.high %v1068, 0
        %v1079 = vcombine.high %v1075, 0
        %v1080 = vcombine.high %v934, %v927
        %v1082 = vunpack.c.l.s4 1983009808
        %v1083 = vunpack.c.0.s8 %v1082
        %v1084 = vlaneseq
        %v1085 = vshrl.u32 %v1084, 7
        %v1086 = vsub.s32 %v1083, %v1085
        %v1087 = vrot.slane %v934, %v1086
        %v1089 = vunpack.c.l.s4 1983009808
        %v1090 = vunpack.c.0.s8 %v1089
        %v1091 = vlaneseq
        %v1092 = vshrl.u32 %v1091, 7
        %v1093 = vsub.s32 %v1090, %v1092
        %v1094 = vrot.slane %v1080, %v1093
        %v1095 = vcombine.high %v942, %v927
        %v1097 = vunpack.c.l.s4 1983009808
        %v1098 = vunpack.c.0.s8 %v1097
        %v1099 = vlaneseq
        %v1100 = vshrl.u32 %v1099, 7
        %v1101 = vsub.s32 %v1098, %v1100
        %v1102 = vrot.slane %v942, %v1101
        %v1104 = vunpack.c.l.s4 1983009808
        %v1105 = vunpack.c.0.s8 %v1104
        %v1106 = vlaneseq
        %v1107 = vshrl.u32 %v1106, 7
        %v1108 = vsub.s32 %v1105, %v1107
        %v1109 = vrot.slane %v1095, %v1108
        %v1110 = vcombine.low %v1087, %v1102
        %v1111 = vcombine.high %v1087, %v1102
        %v1113 = vunpack.c.l.s4 1934713408
        %v1114 = vunpack.c.0.s8 %v1113
        %v1115 = vlaneseq
        %v1116 = vshrl.u32 %v1115, 7
        %v1117 = vsub.s32 %v1114, %v1116
        %v1118 = vrot.slane %v1110, %v1117
        %v1120 = vunpack.c.l.s4 1934713408
        %v1121 = vunpack.c.0.s8 %v1120
        %v1122 = vlaneseq
        %v1123 = vshrl.u32 %v1122, 7
        %v1124 = vsub.s32 %v1121, %v1123
        %v1125 = vrot.slane %v1111, %v1124
        %v1126 = vcombine.low %v1094, %v1109
        %v1127 = vcombine.high %v1094, %v1109
        %v1129 = vunpack.c.l.s4 1934713408
        %v1130 = vunpack.c.0.s8 %v1129
        %v1131 = vlaneseq
        %v1132 = vshrl.u32 %v1131, 7
        %v1133 = vsub.s32 %v1130, %v1132
        %v1134 = vrot.slane %v1126, %v1133
        %v1136 = vunpack.c.l.s4 1934713408
        %v1137 = vunpack.c.0.s8 %v1136
        %v1138 = vlaneseq
        %v1139 = vshrl.u32 %v1138, 7
        %v1140 = vsub.s32 %v1137, %v1139
        %v1141 = vrot.slane %v1127, %v1140
        %v1142 = vcombine.high %v1118, 0
        %v1143 = vcombine.high %v1125, 0
        %v1144 = vcombine.high %v1134, 0
        %v1145 = vcombine.high %v1141, 0
        %v1146 = vcombine.high %v938, %v930
        %v1148 = vunpack.c.l.s4 1983009808
        %v1149 = vunpack.c.0.s8 %v1148
        %v1150 = vlaneseq
        %v1151 = vshrl.u32 %v1150, 7
        %v1152 = vsub.s32 %v1149, %v1151
        %v1153 = vrot.slane %v938, %v1152
        %v1155 = vunpack.c.l.s4 1983009808
        %v1156 = vunpack.c.0.s8 %v1155
        %v1157 = vlaneseq
        %v1158 = vshrl.u32 %v1157, 7
        %v1159 = vsub.s32 %v1156, %v1158
        %v1160 = vrot.slane %v1146, %v1159
        %v1161 = vcombine.high %v946, %v930
        %v1163 = vunpack.c.l.s4 1983009808
        %v1164 = vunpack.c.0.s8 %v1163
        %v1165 = vlaneseq
        %v1166 = vshrl.u32 %v1165, 7
        %v1167 = vsub.s32 %v1164, %v1166
        %v1168 = vrot.slane %v946, %v1167
        %v1170 = vunpack.c.l.s4 1983009808
        %v1171 = vunpack.c.0.s8 %v1170
        %v1172 = vlaneseq
        %v1173 = vshrl.u32 %v1172, 7
        %v1174 = vsub.s32 %v1171, %v1173
        %v1175 = vrot.slane %v1161, %v1174
        %v1176 = vcombine.low %v1153, %v1168
        %v1177 = vcombine.high %v1153, %v1168
        %v1179 = vunpack.c.l.s4 1934713408
        %v1180 = vunpack.c.0.s8 %v1179
        %v1181 = vlaneseq
        %v1182 = vshrl.u32 %v1181, 7
        %v1183 = vsub.s32 %v1180, %v1182
        %v1184 = vrot.slane %v1176, %v1183
        %v1186 = vunpack.c.l.s4 1934713408
        %v1187 = vunpack.c.0.s8 %v1186
        %v1188 = vlaneseq
        %v1189 = vshrl.u32 %v1188, 7
        %v1190 = vsub.s32 %v1187, %v1189
        %v1191 = vrot.slane %v1177, %v1190
        %v1192 = vcombine.low %v1160, %v1175
        %v1193 = vcombine.high %v1160, %v1175
        %v1195 = vunpack.c.l.s4 1934713408
        %v1196 = vunpack.c.0.s8 %v1195
        %v1197 = vlaneseq
        %v1198 = vshrl.u32 %v1197, 7
        %v1199 = vsub.s32 %v1196, %v1198
        %v1200 = vrot.slane %v1192, %v1199
        %v1202 = vunpack.c.l.s4 1934713408
        %v1203 = vunpack.c.0.s8 %v1202
        %v1204 = vlaneseq
        %v1205 = vshrl.u32 %v1204, 7
        %v1206 = vsub.s32 %v1203, %v1205
        %v1207 = vrot.slane %v1193, %v1206
        %v1208 = vcombine.high %v1184, 0
        %v1209 = vcombine.high %v1191, 0
        %v1210 = vcombine.high %v1200, 0
        %v1211 = vcombine.high %v1207, 0
        %1212 = vxpose.xlu0.c.b16.start [1/8] %v986, 128
        %1213 = vxpose.xlu0.c.b16.cont [2/8] 0, 128
        %1214 = vxpose.xlu0.c.b16.cont [3/8] 0, 128
        %1215 = vxpose.xlu0.c.b16.cont [4/8] 0, 128
        %1216 = vxpose.xlu0.c.b16.cont [5/8] 0, 128
        %1217 = vxpose.xlu0.c.b16.cont [6/8] 0, 128
        %1218 = vxpose.xlu0.c.b16.cont [7/8] 0, 128
        %1219 = vxpose.xlu0.c.b16.end [8/8] 0, 128
        %v1220 = vpop.trf.xlu0
        %v1221 = vpop.trf.xlu0
        %v1222 = vpop.trf.xlu0
        %v1223 = vpop.trf.xlu0
        %v1224 = vpop.trf.xlu0
        %v1225 = vpop.trf.xlu0
        %v1226 = vpop.trf.xlu0
        %v1227 = vpop.trf.xlu0
        %1228 = vxpose.xlu0.c.b16.start [1/8] %v1052, 128
        %1229 = vxpose.xlu0.c.b16.cont [2/8] 0, 128
        %1230 = vxpose.xlu0.c.b16.cont [3/8] 0, 128
        %1231 = vxpose.xlu0.c.b16.cont [4/8] 0, 128
        %1232 = vxpose.xlu0.c.b16.cont [5/8] 0, 128
        %1233 = vxpose.xlu0.c.b16.cont [6/8] 0, 128
        %1234 = vxpose.xlu0.c.b16.cont [7/8] 0, 128
        %1235 = vxpose.xlu0.c.b16.end [8/8] 0, 128
        %v1236 = vpop.trf.xlu0
        %v1237 = vpop.trf.xlu0
        %v1238 = vpop.trf.xlu0
        %v1239 = vpop.trf.xlu0
        %v1240 = vpop.trf.xlu0
        %v1241 = vpop.trf.xlu0
        %v1242 = vpop.trf.xlu0
        %v1243 = vpop.trf.xlu0
        %1244 = vxpose.xlu0.c.b16.start [1/8] %v1010, 128
        %1245 = vxpose.xlu0.c.b16.cont [2/8] 0, 128
        %1246 = vxpose.xlu0.c.b16.cont [3/8] 0, 128
        %1247 = vxpose.xlu0.c.b16.cont [4/8] 0, 128
        %1248 = vxpose.xlu0.c.b16.cont [5/8] 0, 128
        %1249 = vxpose.xlu0.c.b16.cont [6/8] 0, 128
        %1250 = vxpose.xlu0.c.b16.cont [7/8] 0, 128
        %1251 = vxpose.xlu0.c.b16.end [8/8] 0, 128
        %v1252 = vpop.trf.xlu0
        %v1253 = vpop.trf.xlu0
        %v1254 = vpop.trf.xlu0
        %v1255 = vpop.trf.xlu0
        %v1256 = vpop.trf.xlu0
        %v1257 = vpop.trf.xlu0
        %v1258 = vpop.trf.xlu0
        %v1259 = vpop.trf.xlu0
        %1260 = vxpose.xlu0.c.b16.start [1/8] %v1076, 128
        %1261 = vxpose.xlu0.c.b16.cont [2/8] 0, 128
        %1262 = vxpose.xlu0.c.b16.cont [3/8] 0, 128
        %1263 = vxpose.xlu0.c.b16.cont [4/8] 0, 128
        %1264 = vxpose.xlu0.c.b16.cont [5/8] 0, 128
        %1265 = vxpose.xlu0.c.b16.cont [6/8] 0, 128
        %1266 = vxpose.xlu0.c.b16.cont [7/8] 0, 128
        %1267 = vxpose.xlu0.c.b16.end [8/8] 0, 128
        %v1268 = vpop.trf.xlu0
        %v1269 = vpop.trf.xlu0
        %v1270 = vpop.trf.xlu0
        %v1271 = vpop.trf.xlu0
        %v1272 = vpop.trf.xlu0
        %v1273 = vpop.trf.xlu0
        %v1274 = vpop.trf.xlu0
        %v1275 = vpop.trf.xlu0
        %1276 = vxpose.xlu0.c.b16.start [1/8] %v993, 128
        %1277 = vxpose.xlu0.c.b16.cont [2/8] 0, 128
        %1278 = vxpose.xlu0.c.b16.cont [3/8] 0, 128
        %1279 = vxpose.xlu0.c.b16.cont [4/8] 0, 128
        %1280 = vxpose.xlu0.c.b16.cont [5/8] 0, 128
        %1281 = vxpose.xlu0.c.b16.cont [6/8] 0, 128
        %1282 = vxpose.xlu0.c.b16.cont [7/8] 0, 128
        %1283 = vxpose.xlu0.c.b16.end [8/8] 0, 128
        %v1284 = vpop.trf.xlu0
        %v1285 = vpop.trf.xlu0
        %v1286 = vpop.trf.xlu0
        %v1287 = vpop.trf.xlu0
        %v1288 = vpop.trf.xlu0
        %v1289 = vpop.trf.xlu0
        %v1290 = vpop.trf.xlu0
        %v1291 = vpop.trf.xlu0
        %1292 = vxpose.xlu0.c.b16.start [1/8] %v1059, 128
        %1293 = vxpose.xlu0.c.b16.cont [2/8] 0, 128
        %1294 = vxpose.xlu0.c.b16.cont [3/8] 0, 128
        %1295 = vxpose.xlu0.c.b16.cont [4/8] 0, 128
        %1296 = vxpose.xlu0.c.b16.cont [5/8] 0, 128
        %1297 = vxpose.xlu0.c.b16.cont [6/8] 0, 128
        %1298 = vxpose.xlu0.c.b16.cont [7/8] 0, 128
        %1299 = vxpose.xlu0.c.b16.end [8/8] 0, 128
        %v1300 = vpop.trf.xlu0
        %v1301 = vpop.trf.xlu0
        %v1302 = vpop.trf.xlu0
        %v1303 = vpop.trf.xlu0
        %v1304 = vpop.trf.xlu0
        %v1305 = vpop.trf.xlu0
        %v1306 = vpop.trf.xlu0
        %v1307 = vpop.trf.xlu0
        %1308 = vxpose.xlu0.c.b16.start [1/8] %v1011, 128
        %1309 = vxpose.xlu0.c.b16.cont [2/8] 0, 128
        %1310 = vxpose.xlu0.c.b16.cont [3/8] 0, 128
        %1311 = vxpose.xlu0.c.b16.cont [4/8] 0, 128
        %1312 = vxpose.xlu0.c.b16.cont [5/8] 0, 128
        %1313 = vxpose.xlu0.c.b16.cont [6/8] 0, 128
        %1314 = vxpose.xlu0.c.b16.cont [7/8] 0, 128
        %1315 = vxpose.xlu0.c.b16.end [8/8] 0, 128
        %v1316 = vpop.trf.xlu0
        %v1317 = vpop.trf.xlu0
        %v1318 = vpop.trf.xlu0
        %v1319 = vpop.trf.xlu0
        %v1320 = vpop.trf.xlu0
        %v1321 = vpop.trf.xlu0
        %v1322 = vpop.trf.xlu0
        %v1323 = vpop.trf.xlu0
        %1324 = vxpose.xlu0.c.b16.start [1/8] %v1077, 128
        %1325 = vxpose.xlu0.c.b16.cont [2/8] 0, 128
        %1326 = vxpose.xlu0.c.b16.cont [3/8] 0, 128
        %1327 = vxpose.xlu0.c.b16.cont [4/8] 0, 128
        %1328 = vxpose.xlu0.c.b16.cont [5/8] 0, 128
        %1329 = vxpose.xlu0.c.b16.cont [6/8] 0, 128
        %1330 = vxpose.xlu0.c.b16.cont [7/8] 0, 128
        %1331 = vxpose.xlu0.c.b16.end [8/8] 0, 128
        %v1332 = vpop.trf.xlu0
        %v1333 = vpop.trf.xlu0
        %v1334 = vpop.trf.xlu0
        %v1335 = vpop.trf.xlu0
        %v1336 = vpop.trf.xlu0
        %v1337 = vpop.trf.xlu0
        %v1338 = vpop.trf.xlu0
        %v1339 = vpop.trf.xlu0
        %1340 = vxpose.xlu0.c.b16.start [1/8] %v1002, 128
        %1341 = vxpose.xlu0.c.b16.cont [2/8] 0, 128
        %1342 = vxpose.xlu0.c.b16.cont [3/8] 0, 128
        %1343 = vxpose.xlu0.c.b16.cont [4/8] 0, 128
        %1344 = vxpose.xlu0.c.b16.cont [5/8] 0, 128
        %1345 = vxpose.xlu0.c.b16.cont [6/8] 0, 128
        %1346 = vxpose.xlu0.c.b16.cont [7/8] 0, 128
        %1347 = vxpose.xlu0.c.b16.end [8/8] 0, 128
        %v1348 = vpop.trf.xlu0
        %v1349 = vpop.trf.xlu0
        %v1350 = vpop.trf.xlu0
        %v1351 = vpop.trf.xlu0
        %v1352 = vpop.trf.xlu0
        %v1353 = vpop.trf.xlu0
        %v1354 = vpop.trf.xlu0
        %v1355 = vpop.trf.xlu0
        %1356 = vxpose.xlu0.c.b16.start [1/8] %v1068, 128
        %1357 = vxpose.xlu0.c.b16.cont [2/8] 0, 128
        %1358 = vxpose.xlu0.c.b16.cont [3/8] 0, 128
        %1359 = vxpose.xlu0.c.b16.cont [4/8] 0, 128
        %1360 = vxpose.xlu0.c.b16.cont [5/8] 0, 128
        %1361 = vxpose.xlu0.c.b16.cont [6/8] 0, 128
        %1362 = vxpose.xlu0.c.b16.cont [7/8] 0, 128
        %1363 = vxpose.xlu0.c.b16.end [8/8] 0, 128
        %v1364 = vpop.trf.xlu0
        %v1365 = vpop.trf.xlu0
        %v1366 = vpop.trf.xlu0
        %v1367 = vpop.trf.xlu0
        %v1368 = vpop.trf.xlu0
        %v1369 = vpop.trf.xlu0
        %v1370 = vpop.trf.xlu0
        %v1371 = vpop.trf.xlu0
        %1372 = vxpose.xlu0.c.b16.start [1/8] %v1012, 128
        %1373 = vxpose.xlu0.c.b16.cont [2/8] 0, 128
        %1374 = vxpose.xlu0.c.b16.cont [3/8] 0, 128
        %1375 = vxpose.xlu0.c.b16.cont [4/8] 0, 128
        %1376 = vxpose.xlu0.c.b16.cont [5/8] 0, 128
        %1377 = vxpose.xlu0.c.b16.cont [6/8] 0, 128
        %1378 = vxpose.xlu0.c.b16.cont [7/8] 0, 128
        %1379 = vxpose.xlu0.c.b16.end [8/8] 0, 128
        %v1380 = vpop.trf.xlu0
        %v1381 = vpop.trf.xlu0
        %v1382 = vpop.trf.xlu0
        %v1383 = vpop.trf.xlu0
        %v1384 = vpop.trf.xlu0
        %v1385 = vpop.trf.xlu0
        %v1386 = vpop.trf.xlu0
        %v1387 = vpop.trf.xlu0
        %1388 = vxpose.xlu0.c.b16.start [1/8] %v1078, 128
        %1389 = vxpose.xlu0.c.b16.cont [2/8] 0, 128
        %1390 = vxpose.xlu0.c.b16.cont [3/8] 0, 128
        %1391 = vxpose.xlu0.c.b16.cont [4/8] 0, 128
        %1392 = vxpose.xlu0.c.b16.cont [5/8] 0, 128
        %1393 = vxpose.xlu0.c.b16.cont [6/8] 0, 128
        %1394 = vxpose.xlu0.c.b16.cont [7/8] 0, 128
        %1395 = vxpose.xlu0.c.b16.end [8/8] 0, 128
        %v1396 = vpop.trf.xlu0
        %v1397 = vpop.trf.xlu0
        %v1398 = vpop.trf.xlu0
        %v1399 = vpop.trf.xlu0
        %v1400 = vpop.trf.xlu0
        %v1401 = vpop.trf.xlu0
        %v1402 = vpop.trf.xlu0
        %v1403 = vpop.trf.xlu0
        %1404 = vxpose.xlu0.c.b16.start [1/8] %v1009, 128
        %1405 = vxpose.xlu0.c.b16.cont [2/8] 0, 128
        %1406 = vxpose.xlu0.c.b16.cont [3/8] 0, 128
        %1407 = vxpose.xlu0.c.b16.cont [4/8] 0, 128
        %1408 = vxpose.xlu0.c.b16.cont [5/8] 0, 128
        %1409 = vxpose.xlu0.c.b16.cont [6/8] 0, 128
        %1410 = vxpose.xlu0.c.b16.cont [7/8] 0, 128
        %1411 = vxpose.xlu0.c.b16.end [8/8] 0, 128
        %v1412 = vpop.trf.xlu0
        %v1413 = vpop.trf.xlu0
        %v1414 = vpop.trf.xlu0
        %v1415 = vpop.trf.xlu0
        %v1416 = vpop.trf.xlu0
        %v1417 = vpop.trf.xlu0
        %v1418 = vpop.trf.xlu0
        %v1419 = vpop.trf.xlu0
        %1420 = vxpose.xlu0.c.b16.start [1/8] %v1075, 128
        %1421 = vxpose.xlu0.c.b16.cont [2/8] 0, 128
        %1422 = vxpose.xlu0.c.b16.cont [3/8] 0, 128
        %1423 = vxpose.xlu0.c.b16.cont [4/8] 0, 128
        %1424 = vxpose.xlu0.c.b16.cont [5/8] 0, 128
        %1425 = vxpose.xlu0.c.b16.cont [6/8] 0, 128
        %1426 = vxpose.xlu0.c.b16.cont [7/8] 0, 128
        %1427 = vxpose.xlu0.c.b16.end [8/8] 0, 128
        %v1428 = vpop.trf.xlu0
        %v1429 = vpop.trf.xlu0
        %v1430 = vpop.trf.xlu0
        %v1431 = vpop.trf.xlu0
        %v1432 = vpop.trf.xlu0
        %v1433 = vpop.trf.xlu0
        %v1434 = vpop.trf.xlu0
        %v1435 = vpop.trf.xlu0
        %1436 = vxpose.xlu0.c.b16.start [1/8] %v1013, 128
        %1437 = vxpose.xlu0.c.b16.cont [2/8] 0, 128
        %1438 = vxpose.xlu0.c.b16.cont [3/8] 0, 128
        %1439 = vxpose.xlu0.c.b16.cont [4/8] 0, 128
        %1440 = vxpose.xlu0.c.b16.cont [5/8] 0, 128
        %1441 = vxpose.xlu0.c.b16.cont [6/8] 0, 128
        %1442 = vxpose.xlu0.c.b16.cont [7/8] 0, 128
        %1443 = vxpose.xlu0.c.b16.end [8/8] 0, 128
        %v1444 = vpop.trf.xlu0
        %v1445 = vpop.trf.xlu0
        %v1446 = vpop.trf.xlu0
        %v1447 = vpop.trf.xlu0
        %v1448 = vpop.trf.xlu0
        %v1449 = vpop.trf.xlu0
        %v1450 = vpop.trf.xlu0
        %v1451 = vpop.trf.xlu0
        %1452 = vxpose.xlu0.c.b16.start [1/8] %v1079, 128
        %1453 = vxpose.xlu0.c.b16.cont [2/8] 0, 128
        %1454 = vxpose.xlu0.c.b16.cont [3/8] 0, 128
        %1455 = vxpose.xlu0.c.b16.cont [4/8] 0, 128
        %1456 = vxpose.xlu0.c.b16.cont [5/8] 0, 128
        %1457 = vxpose.xlu0.c.b16.cont [6/8] 0, 128
        %1458 = vxpose.xlu0.c.b16.cont [7/8] 0, 128
        %1459 = vxpose.xlu0.c.b16.end [8/8] 0, 128
        %v1460 = vpop.trf.xlu0
        %v1461 = vpop.trf.xlu0
        %v1462 = vpop.trf.xlu0
        %v1463 = vpop.trf.xlu0
        %v1464 = vpop.trf.xlu0
        %v1465 = vpop.trf.xlu0
        %v1466 = vpop.trf.xlu0
        %v1467 = vpop.trf.xlu0
        %1468 = vxpose.xlu0.c.b16.start [1/8] %v1118, 128
        %1469 = vxpose.xlu0.c.b16.cont [2/8] 0, 128
        %1470 = vxpose.xlu0.c.b16.cont [3/8] 0, 128
        %1471 = vxpose.xlu0.c.b16.cont [4/8] 0, 128
        %1472 = vxpose.xlu0.c.b16.cont [5/8] 0, 128
        %1473 = vxpose.xlu0.c.b16.cont [6/8] 0, 128
        %1474 = vxpose.xlu0.c.b16.cont [7/8] 0, 128
        %1475 = vxpose.xlu0.c.b16.end [8/8] 0, 128
        %v1476 = vpop.trf.xlu0
        %v1477 = vpop.trf.xlu0
        %v1478 = vpop.trf.xlu0
        %v1479 = vpop.trf.xlu0
        %v1480 = vpop.trf.xlu0
        %v1481 = vpop.trf.xlu0
        %v1482 = vpop.trf.xlu0
        %v1483 = vpop.trf.xlu0
        %1484 = vxpose.xlu0.c.b16.start [1/8] %v1184, 128
        %1485 = vxpose.xlu0.c.b16.cont [2/8] 0, 128
        %1486 = vxpose.xlu0.c.b16.cont [3/8] 0, 128
        %1487 = vxpose.xlu0.c.b16.cont [4/8] 0, 128
        %1488 = vxpose.xlu0.c.b16.cont [5/8] 0, 128
        %1489 = vxpose.xlu0.c.b16.cont [6/8] 0, 128
        %1490 = vxpose.xlu0.c.b16.cont [7/8] 0, 128
        %1491 = vxpose.xlu0.c.b16.end [8/8] 0, 128
        %v1492 = vpop.trf.xlu0
        %v1493 = vpop.trf.xlu0
        %v1494 = vpop.trf.xlu0
        %v1495 = vpop.trf.xlu0
        %v1496 = vpop.trf.xlu0
        %v1497 = vpop.trf.xlu0
        %v1498 = vpop.trf.xlu0
        %v1499 = vpop.trf.xlu0
        %1500 = vxpose.xlu0.c.b16.start [1/8] %v1142, 128
        %1501 = vxpose.xlu0.c.b16.cont [2/8] 0, 128
        %1502 = vxpose.xlu0.c.b16.cont [3/8] 0, 128
        %1503 = vxpose.xlu0.c.b16.cont [4/8] 0, 128
        %1504 = vxpose.xlu0.c.b16.cont [5/8] 0, 128
        %1505 = vxpose.xlu0.c.b16.cont [6/8] 0, 128
        %1506 = vxpose.xlu0.c.b16.cont [7/8] 0, 128
        %1507 = vxpose.xlu0.c.b16.end [8/8] 0, 128
        %v1508 = vpop.trf.xlu0
        %v1509 = vpop.trf.xlu0
        %v1510 = vpop.trf.xlu0
        %v1511 = vpop.trf.xlu0
        %v1512 = vpop.trf.xlu0
        %v1513 = vpop.trf.xlu0
        %v1514 = vpop.trf.xlu0
        %v1515 = vpop.trf.xlu0
        %1516 = vxpose.xlu0.c.b16.start [1/8] %v1208, 128
        %1517 = vxpose.xlu0.c.b16.cont [2/8] 0, 128
        %1518 = vxpose.xlu0.c.b16.cont [3/8] 0, 128
        %1519 = vxpose.xlu0.c.b16.cont [4/8] 0, 128
        %1520 = vxpose.xlu0.c.b16.cont [5/8] 0, 128
        %1521 = vxpose.xlu0.c.b16.cont [6/8] 0, 128
        %1522 = vxpose.xlu0.c.b16.cont [7/8] 0, 128
        %1523 = vxpose.xlu0.c.b16.end [8/8] 0, 128
        %v1524 = vpop.trf.xlu0
        %v1525 = vpop.trf.xlu0
        %v1526 = vpop.trf.xlu0
        %v1527 = vpop.trf.xlu0
        %v1528 = vpop.trf.xlu0
        %v1529 = vpop.trf.xlu0
        %v1530 = vpop.trf.xlu0
        %v1531 = vpop.trf.xlu0
        %1532 = vxpose.xlu0.c.b16.start [1/8] %v1125, 128
        %1533 = vxpose.xlu0.c.b16.cont [2/8] 0, 128
        %1534 = vxpose.xlu0.c.b16.cont [3/8] 0, 128
        %1535 = vxpose.xlu0.c.b16.cont [4/8] 0, 128
        %1536 = vxpose.xlu0.c.b16.cont [5/8] 0, 128
        %1537 = vxpose.xlu0.c.b16.cont [6/8] 0, 128
        %1538 = vxpose.xlu0.c.b16.cont [7/8] 0, 128
        %1539 = vxpose.xlu0.c.b16.end [8/8] 0, 128
        %v1540 = vpop.trf.xlu0
        %v1541 = vpop.trf.xlu0
        %v1542 = vpop.trf.xlu0
        %v1543 = vpop.trf.xlu0
        %v1544 = vpop.trf.xlu0
        %v1545 = vpop.trf.xlu0
        %v1546 = vpop.trf.xlu0
        %v1547 = vpop.trf.xlu0
        %1548 = vxpose.xlu0.c.b16.start [1/8] %v1191, 128
        %1549 = vxpose.xlu0.c.b16.cont [2/8] 0, 128
        %1550 = vxpose.xlu0.c.b16.cont [3/8] 0, 128
        %1551 = vxpose.xlu0.c.b16.cont [4/8] 0, 128
        %1552 = vxpose.xlu0.c.b16.cont [5/8] 0, 128
        %1553 = vxpose.xlu0.c.b16.cont [6/8] 0, 128
        %1554 = vxpose.xlu0.c.b16.cont [7/8] 0, 128
        %1555 = vxpose.xlu0.c.b16.end [8/8] 0, 128
        %v1556 = vpop.trf.xlu0
        %v1557 = vpop.trf.xlu0
        %v1558 = vpop.trf.xlu0
        %v1559 = vpop.trf.xlu0
        %v1560 = vpop.trf.xlu0
        %v1561 = vpop.trf.xlu0
        %v1562 = vpop.trf.xlu0
        %v1563 = vpop.trf.xlu0
        %1564 = vxpose.xlu0.c.b16.start [1/8] %v1143, 128
        %1565 = vxpose.xlu0.c.b16.cont [2/8] 0, 128
        %1566 = vxpose.xlu0.c.b16.cont [3/8] 0, 128
        %1567 = vxpose.xlu0.c.b16.cont [4/8] 0, 128
        %1568 = vxpose.xlu0.c.b16.cont [5/8] 0, 128
        %1569 = vxpose.xlu0.c.b16.cont [6/8] 0, 128
        %1570 = vxpose.xlu0.c.b16.cont [7/8] 0, 128
        %1571 = vxpose.xlu0.c.b16.end [8/8] 0, 128
        %v1572 = vpop.trf.xlu0
        %v1573 = vpop.trf.xlu0
        %v1574 = vpop.trf.xlu0
        %v1575 = vpop.trf.xlu0
        %v1576 = vpop.trf.xlu0
        %v1577 = vpop.trf.xlu0
        %v1578 = vpop.trf.xlu0
        %v1579 = vpop.trf.xlu0
        %1580 = vxpose.xlu0.c.b16.start [1/8] %v1209, 128
        %1581 = vxpose.xlu0.c.b16.cont [2/8] 0, 128
        %1582 = vxpose.xlu0.c.b16.cont [3/8] 0, 128
        %1583 = vxpose.xlu0.c.b16.cont [4/8] 0, 128
        %1584 = vxpose.xlu0.c.b16.cont [5/8] 0, 128
        %1585 = vxpose.xlu0.c.b16.cont [6/8] 0, 128
        %1586 = vxpose.xlu0.c.b16.cont [7/8] 0, 128
        %1587 = vxpose.xlu0.c.b16.end [8/8] 0, 128
        %v1588 = vpop.trf.xlu0
        %v1589 = vpop.trf.xlu0
        %v1590 = vpop.trf.xlu0
        %v1591 = vpop.trf.xlu0
        %v1592 = vpop.trf.xlu0
        %v1593 = vpop.trf.xlu0
        %v1594 = vpop.trf.xlu0
        %v1595 = vpop.trf.xlu0
        %1596 = vxpose.xlu0.c.b16.start [1/8] %v1134, 128
        %1597 = vxpose.xlu0.c.b16.cont [2/8] 0, 128
        %1598 = vxpose.xlu0.c.b16.cont [3/8] 0, 128
        %1599 = vxpose.xlu0.c.b16.cont [4/8] 0, 128
        %1600 = vxpose.xlu0.c.b16.cont [5/8] 0, 128
        %1601 = vxpose.xlu0.c.b16.cont [6/8] 0, 128
        %1602 = vxpose.xlu0.c.b16.cont [7/8] 0, 128
        %1603 = vxpose.xlu0.c.b16.end [8/8] 0, 128
        %v1604 = vpop.trf.xlu0
        %v1605 = vpop.trf.xlu0
        %v1606 = vpop.trf.xlu0
        %v1607 = vpop.trf.xlu0
        %v1608 = vpop.trf.xlu0
        %v1609 = vpop.trf.xlu0
        %v1610 = vpop.trf.xlu0
        %v1611 = vpop.trf.xlu0
        %1612 = vxpose.xlu0.c.b16.start [1/8] %v1200, 128
        %1613 = vxpose.xlu0.c.b16.cont [2/8] 0, 128
        %1614 = vxpose.xlu0.c.b16.cont [3/8] 0, 128
        %1615 = vxpose.xlu0.c.b16.cont [4/8] 0, 128
        %1616 = vxpose.xlu0.c.b16.cont [5/8] 0, 128
        %1617 = vxpose.xlu0.c.b16.cont [6/8] 0, 128
        %1618 = vxpose.xlu0.c.b16.cont [7/8] 0, 128
        %1619 = vxpose.xlu0.c.b16.end [8/8] 0, 128
        %v1620 = vpop.trf.xlu0
        %v1621 = vpop.trf.xlu0
        %v1622 = vpop.trf.xlu0
        %v1623 = vpop.trf.xlu0
        %v1624 = vpop.trf.xlu0
        %v1625 = vpop.trf.xlu0
        %v1626 = vpop.trf.xlu0
        %v1627 = vpop.trf.xlu0
        %1628 = vxpose.xlu0.c.b16.start [1/8] %v1144, 128
        %1629 = vxpose.xlu0.c.b16.cont [2/8] 0, 128
        %1630 = vxpose.xlu0.c.b16.cont [3/8] 0, 128
        %1631 = vxpose.xlu0.c.b16.cont [4/8] 0, 128
        %1632 = vxpose.xlu0.c.b16.cont [5/8] 0, 128
        %1633 = vxpose.xlu0.c.b16.cont [6/8] 0, 128
        %1634 = vxpose.xlu0.c.b16.cont [7/8] 0, 128
        %1635 = vxpose.xlu0.c.b16.end [8/8] 0, 128
        %v1636 = vpop.trf.xlu0
        %v1637 = vpop.trf.xlu0
        %v1638 = vpop.trf.xlu0
        %v1639 = vpop.trf.xlu0
        %v1640 = vpop.trf.xlu0
        %v1641 = vpop.trf.xlu0
        %v1642 = vpop.trf.xlu0
        %v1643 = vpop.trf.xlu0
        %1644 = vxpose.xlu0.c.b16.start [1/8] %v1210, 128
        %1645 = vxpose.xlu0.c.b16.cont [2/8] 0, 128
        %1646 = vxpose.xlu0.c.b16.cont [3/8] 0, 128
        %1647 = vxpose.xlu0.c.b16.cont [4/8] 0, 128
        %1648 = vxpose.xlu0.c.b16.cont [5/8] 0, 128
        %1649 = vxpose.xlu0.c.b16.cont [6/8] 0, 128
        %1650 = vxpose.xlu0.c.b16.cont [7/8] 0, 128
        %1651 = vxpose.xlu0.c.b16.end [8/8] 0, 128
        %v1652 = vpop.trf.xlu0
        %v1653 = vpop.trf.xlu0
        %v1654 = vpop.trf.xlu0
        %v1655 = vpop.trf.xlu0
        %v1656 = vpop.trf.xlu0
        %v1657 = vpop.trf.xlu0
        %v1658 = vpop.trf.xlu0
        %v1659 = vpop.trf.xlu0
        %1660 = vxpose.xlu0.c.b16.start [1/8] %v1141, 128
        %1661 = vxpose.xlu0.c.b16.cont [2/8] 0, 128
        %1662 = vxpose.xlu0.c.b16.cont [3/8] 0, 128
        %1663 = vxpose.xlu0.c.b16.cont [4/8] 0, 128
        %1664 = vxpose.xlu0.c.b16.cont [5/8] 0, 128
        %1665 = vxpose.xlu0.c.b16.cont [6/8] 0, 128
        %1666 = vxpose.xlu0.c.b16.cont [7/8] 0, 128
        %1667 = vxpose.xlu0.c.b16.end [8/8] 0, 128
        %v1668 = vpop.trf.xlu0
        %v1669 = vpop.trf.xlu0
        %v1670 = vpop.trf.xlu0
        %v1671 = vpop.trf.xlu0
        %v1672 = vpop.trf.xlu0
        %v1673 = vpop.trf.xlu0
        %v1674 = vpop.trf.xlu0
        %v1675 = vpop.trf.xlu0
        %1676 = vxpose.xlu0.c.b16.start [1/8] %v1207, 128
        %1677 = vxpose.xlu0.c.b16.cont [2/8] 0, 128
        %1678 = vxpose.xlu0.c.b16.cont [3/8] 0, 128
        %1679 = vxpose.xlu0.c.b16.cont [4/8] 0, 128
        %1680 = vxpose.xlu0.c.b16.cont [5/8] 0, 128
        %1681 = vxpose.xlu0.c.b16.cont [6/8] 0, 128
        %1682 = vxpose.xlu0.c.b16.cont [7/8] 0, 128
        %1683 = vxpose.xlu0.c.b16.end [8/8] 0, 128
        %v1684 = vpop.trf.xlu0
        %v1685 = vpop.trf.xlu0
        %v1686 = vpop.trf.xlu0
        %v1687 = vpop.trf.xlu0
        %v1688 = vpop.trf.xlu0
        %v1689 = vpop.trf.xlu0
        %v1690 = vpop.trf.xlu0
        %v1691 = vpop.trf.xlu0
        %1692 = vxpose.xlu0.c.b16.start [1/8] %v1145, 128
        %1693 = vxpose.xlu0.c.b16.cont [2/8] 0, 128
        %1694 = vxpose.xlu0.c.b16.cont [3/8] 0, 128
        %1695 = vxpose.xlu0.c.b16.cont [4/8] 0, 128
        %1696 = vxpose.xlu0.c.b16.cont [5/8] 0, 128
        %1697 = vxpose.xlu0.c.b16.cont [6/8] 0, 128
        %1698 = vxpose.xlu0.c.b16.cont [7/8] 0, 128
        %1699 = vxpose.xlu0.c.b16.end [8/8] 0, 128
        %v1700 = vpop.trf.xlu0
        %v1701 = vpop.trf.xlu0
        %v1702 = vpop.trf.xlu0
        %v1703 = vpop.trf.xlu0
        %v1704 = vpop.trf.xlu0
        %v1705 = vpop.trf.xlu0
        %v1706 = vpop.trf.xlu0
        %v1707 = vpop.trf.xlu0
        %1708 = vxpose.xlu0.c.b16.start [1/8] %v1211, 128
        %1709 = vxpose.xlu0.c.b16.cont [2/8] 0, 128
        %1710 = vxpose.xlu0.c.b16.cont [3/8] 0, 128
        %1711 = vxpose.xlu0.c.b16.cont [4/8] 0, 128
        %1712 = vxpose.xlu0.c.b16.cont [5/8] 0, 128
        %1713 = vxpose.xlu0.c.b16.cont [6/8] 0, 128
        %1714 = vxpose.xlu0.c.b16.cont [7/8] 0, 128
        %1715 = vxpose.xlu0.c.b16.end [8/8] 0, 128
        %v1716 = vpop.trf.xlu0
        %v1717 = vpop.trf.xlu0
        %v1718 = vpop.trf.xlu0
        %v1719 = vpop.trf.xlu0
        %v1720 = vpop.trf.xlu0
        %v1721 = vpop.trf.xlu0
        %v1722 = vpop.trf.xlu0
        %v1723 = vpop.trf.xlu0
        %v1724 = vcombine.low %v1220, %v1284
        %v1726 = vunpack.c.l.s4 1983009808
        %v1727 = vunpack.c.0.s8 %v1726
        %v1728 = vlaneseq
        %v1729 = vshrl.u32 %v1728, 7
        %v1730 = vsub.s32 %v1727, %v1729
        %v1731 = vrot.slane %v1724, %v1730
        %v1732 = vcombine.low %v1252, %v1316
        %v1734 = vunpack.c.l.s4 1983009808
        %v1735 = vunpack.c.0.s8 %v1734
        %v1736 = vlaneseq
        %v1737 = vshrl.u32 %v1736, 7
        %v1738 = vsub.s32 %v1735, %v1737
        %v1739 = vrot.slane %v1732, %v1738
        %v1740 = vcombine.low %v1348, %v1412
        %v1742 = vunpack.c.l.s4 1983009808
        %v1743 = vunpack.c.0.s8 %v1742
        %v1744 = vlaneseq
        %v1745 = vshrl.u32 %v1744, 7
        %v1746 = vsub.s32 %v1743, %v1745
        %v1747 = vrot.slane %v1740, %v1746
        %v1748 = vcombine.low %v1380, %v1444
        %v1750 = vunpack.c.l.s4 1983009808
        %v1751 = vunpack.c.0.s8 %v1750
        %v1752 = vlaneseq
        %v1753 = vshrl.u32 %v1752, 7
        %v1754 = vsub.s32 %v1751, %v1753
        %v1755 = vrot.slane %v1748, %v1754
        %v1756 = vcombine.low %v1731, %v1739
        %v1757 = vcombine.high %v1731, %v1739
        %v1759 = vunpack.c.l.s4 1934713408
        %v1760 = vunpack.c.0.s8 %v1759
        %v1761 = vlaneseq
        %v1762 = vshrl.u32 %v1761, 7
        %v1763 = vsub.s32 %v1760, %v1762
        %v1764 = vrot.slane %v1756, %v1763
        %v1766 = vunpack.c.l.s4 1934713408
        %v1767 = vunpack.c.0.s8 %v1766
        %v1768 = vlaneseq
        %v1769 = vshrl.u32 %v1768, 7
        %v1770 = vsub.s32 %v1767, %v1769
        %v1771 = vrot.slane %v1757, %v1770
        %v1772 = vcombine.low %v1747, %v1755
        %v1773 = vcombine.high %v1747, %v1755
        %v1775 = vunpack.c.l.s4 1934713408
        %v1776 = vunpack.c.0.s8 %v1775
        %v1777 = vlaneseq
        %v1778 = vshrl.u32 %v1777, 7
        %v1779 = vsub.s32 %v1776, %v1778
        %v1780 = vrot.slane %v1772, %v1779
        %v1782 = vunpack.c.l.s4 1934713408
        %v1783 = vunpack.c.0.s8 %v1782
        %v1784 = vlaneseq
        %v1785 = vshrl.u32 %v1784, 7
        %v1786 = vsub.s32 %v1783, %v1785
        %v1787 = vrot.slane %v1773, %v1786
        %v1788 = vcombine.low %v1764, %v1780
        %v1789 = vcombine.high %v1764, %v1780
        %v1790 = vcombine.low %v1771, %v1787
        %v1791 = vcombine.high %v1771, %v1787
        %v1792 = vcombine.low %v1236, %v1300
        %v1794 = vunpack.c.l.s4 1983009808
        %v1795 = vunpack.c.0.s8 %v1794
        %v1796 = vlaneseq
        %v1797 = vshrl.u32 %v1796, 7
        %v1798 = vsub.s32 %v1795, %v1797
        %v1799 = vrot.slane %v1792, %v1798
        %v1800 = vcombine.low %v1268, %v1332
        %v1802 = vunpack.c.l.s4 1983009808
        %v1803 = vunpack.c.0.s8 %v1802
        %v1804 = vlaneseq
        %v1805 = vshrl.u32 %v1804, 7
        %v1806 = vsub.s32 %v1803, %v1805
        %v1807 = vrot.slane %v1800, %v1806
        %v1808 = vcombine.low %v1364, %v1428
        %v1810 = vunpack.c.l.s4 1983009808
        %v1811 = vunpack.c.0.s8 %v1810
        %v1812 = vlaneseq
        %v1813 = vshrl.u32 %v1812, 7
        %v1814 = vsub.s32 %v1811, %v1813
        %v1815 = vrot.slane %v1808, %v1814
        %v1816 = vcombine.low %v1396, %v1460
        %v1818 = vunpack.c.l.s4 1983009808
        %v1819 = vunpack.c.0.s8 %v1818
        %v1820 = vlaneseq
        %v1821 = vshrl.u32 %v1820, 7
        %v1822 = vsub.s32 %v1819, %v1821
        %v1823 = vrot.slane %v1816, %v1822
        %v1824 = vcombine.low %v1799, %v1807
        %v1825 = vcombine.high %v1799, %v1807
        %v1827 = vunpack.c.l.s4 1934713408
        %v1828 = vunpack.c.0.s8 %v1827
        %v1829 = vlaneseq
        %v1830 = vshrl.u32 %v1829, 7
        %v1831 = vsub.s32 %v1828, %v1830
        %v1832 = vrot.slane %v1824, %v1831
        %v1834 = vunpack.c.l.s4 1934713408
        %v1835 = vunpack.c.0.s8 %v1834
        %v1836 = vlaneseq
        %v1837 = vshrl.u32 %v1836, 7
        %v1838 = vsub.s32 %v1835, %v1837
        %v1839 = vrot.slane %v1825, %v1838
        %v1840 = vcombine.low %v1815, %v1823
        %v1841 = vcombine.high %v1815, %v1823
        %v1843 = vunpack.c.l.s4 1934713408
        %v1844 = vunpack.c.0.s8 %v1843
        %v1845 = vlaneseq
        %v1846 = vshrl.u32 %v1845, 7
        %v1847 = vsub.s32 %v1844, %v1846
        %v1848 = vrot.slane %v1840, %v1847
        %v1850 = vunpack.c.l.s4 1934713408
        %v1851 = vunpack.c.0.s8 %v1850
        %v1852 = vlaneseq
        %v1853 = vshrl.u32 %v1852, 7
        %v1854 = vsub.s32 %v1851, %v1853
        %v1855 = vrot.slane %v1841, %v1854
        %v1856 = vcombine.low %v1832, %v1848
        %v1857 = vcombine.high %v1832, %v1848
        %v1858 = vcombine.low %v1839, %v1855
        %v1859 = vcombine.high %v1839, %v1855
        %v1860 = vcombine.low %v1476, %v1540
        %v1862 = vunpack.c.l.s4 1983009808
        %v1863 = vunpack.c.0.s8 %v1862
        %v1864 = vlaneseq
        %v1865 = vshrl.u32 %v1864, 7
        %v1866 = vsub.s32 %v1863, %v1865
        %v1867 = vrot.slane %v1860, %v1866
        %v1868 = vcombine.low %v1508, %v1572
        %v1870 = vunpack.c.l.s4 1983009808
        %v1871 = vunpack.c.0.s8 %v1870
        %v1872 = vlaneseq
        %v1873 = vshrl.u32 %v1872, 7
        %v1874 = vsub.s32 %v1871, %v1873
        %v1875 = vrot.slane %v1868, %v1874
        %v1876 = vcombine.low %v1604, %v1668
        %v1878 = vunpack.c.l.s4 1983009808
        %v1879 = vunpack.c.0.s8 %v1878
        %v1880 = vlaneseq
        %v1881 = vshrl.u32 %v1880, 7
        %v1882 = vsub.s32 %v1879, %v1881
        %v1883 = vrot.slane %v1876, %v1882
        %v1884 = vcombine.low %v1636, %v1700
        %v1886 = vunpack.c.l.s4 1983009808
        %v1887 = vunpack.c.0.s8 %v1886
        %v1888 = vlaneseq
        %v1889 = vshrl.u32 %v1888, 7
        %v1890 = vsub.s32 %v1887, %v1889
        %v1891 = vrot.slane %v1884, %v1890
        %v1892 = vcombine.low %v1867, %v1875
        %v1893 = vcombine.high %v1867, %v1875
        %v1895 = vunpack.c.l.s4 1934713408
        %v1896 = vunpack.c.0.s8 %v1895
        %v1897 = vlaneseq
        %v1898 = vshrl.u32 %v1897, 7
        %v1899 = vsub.s32 %v1896, %v1898
        %v1900 = vrot.slane %v1892, %v1899
        %v1902 = vunpack.c.l.s4 1934713408
        %v1903 = vunpack.c.0.s8 %v1902
        %v1904 = vlaneseq
        %v1905 = vshrl.u32 %v1904, 7
        %v1906 = vsub.s32 %v1903, %v1905
        %v1907 = vrot.slane %v1893, %v1906
        %v1908 = vcombine.low %v1883, %v1891
        %v1909 = vcombine.high %v1883, %v1891
        %v1911 = vunpack.c.l.s4 1934713408
        %v1912 = vunpack.c.0.s8 %v1911
        %v1913 = vlaneseq
        %v1914 = vshrl.u32 %v1913, 7
        %v1915 = vsub.s32 %v1912, %v1914
        %v1916 = vrot.slane %v1908, %v1915
        %v1918 = vunpack.c.l.s4 1934713408
        %v1919 = vunpack.c.0.s8 %v1918
        %v1920 = vlaneseq
        %v1921 = vshrl.u32 %v1920, 7
        %v1922 = vsub.s32 %v1919, %v1921
        %v1923 = vrot.slane %v1909, %v1922
        %v1924 = vcombine.low %v1900, %v1916
        %v1925 = vcombine.high %v1900, %v1916
        %v1926 = vcombine.low %v1907, %v1923
        %v1927 = vcombine.high %v1907, %v1923
        %v1928 = vcombine.low %v1492, %v1556
        %v1930 = vunpack.c.l.s4 1983009808
        %v1931 = vunpack.c.0.s8 %v1930
        %v1932 = vlaneseq
        %v1933 = vshrl.u32 %v1932, 7
        %v1934 = vsub.s32 %v1931, %v1933
        %v1935 = vrot.slane %v1928, %v1934
        %v1936 = vcombine.low %v1524, %v1588
        %v1938 = vunpack.c.l.s4 1983009808
        %v1939 = vunpack.c.0.s8 %v1938
        %v1940 = vlaneseq
        %v1941 = vshrl.u32 %v1940, 7
        %v1942 = vsub.s32 %v1939, %v1941
        %v1943 = vrot.slane %v1936, %v1942
        %v1944 = vcombine.low %v1620, %v1684
        %v1946 = vunpack.c.l.s4 1983009808
        %v1947 = vunpack.c.0.s8 %v1946
        %v1948 = vlaneseq
        %v1949 = vshrl.u32 %v1948, 7
        %v1950 = vsub.s32 %v1947, %v1949
        %v1951 = vrot.slane %v1944, %v1950
        %v1952 = vcombine.low %v1652, %v1716
        %v1954 = vunpack.c.l.s4 1983009808
        %v1955 = vunpack.c.0.s8 %v1954
        %v1956 = vlaneseq
        %v1957 = vshrl.u32 %v1956, 7
        %v1958 = vsub.s32 %v1955, %v1957
        %v1959 = vrot.slane %v1952, %v1958
        %v1960 = vcombine.low %v1935, %v1943
        %v1961 = vcombine.high %v1935, %v1943
        %v1963 = vunpack.c.l.s4 1934713408
        %v1964 = vunpack.c.0.s8 %v1963
        %v1965 = vlaneseq
        %v1966 = vshrl.u32 %v1965, 7
        %v1967 = vsub.s32 %v1964, %v1966
        %v1968 = vrot.slane %v1960, %v1967
        %v1970 = vunpack.c.l.s4 1934713408
        %v1971 = vunpack.c.0.s8 %v1970
        %v1972 = vlaneseq
        %v1973 = vshrl.u32 %v1972, 7
        %v1974 = vsub.s32 %v1971, %v1973
        %v1975 = vrot.slane %v1961, %v1974
        %v1976 = vcombine.low %v1951, %v1959
        %v1977 = vcombine.high %v1951, %v1959
        %v1979 = vunpack.c.l.s4 1934713408
        %v1980 = vunpack.c.0.s8 %v1979
        %v1981 = vlaneseq
        %v1982 = vshrl.u32 %v1981, 7
        %v1983 = vsub.s32 %v1980, %v1982
        %v1984 = vrot.slane %v1976, %v1983
        %v1986 = vunpack.c.l.s4 1934713408
        %v1987 = vunpack.c.0.s8 %v1986
        %v1988 = vlaneseq
        %v1989 = vshrl.u32 %v1988, 7
        %v1990 = vsub.s32 %v1987, %v1989
        %v1991 = vrot.slane %v1977, %v1990
        %v1992 = vcombine.low %v1968, %v1984
        %v1993 = vcombine.high %v1968, %v1984
        %v1994 = vcombine.low %v1975, %v1991
        %v1995 = vcombine.high %v1975, %v1991
        %v1998 = vpack.i.b16 %v1856, %v1788
        %v2000 = vshrl.u32 %v1788, 16
        %v2001 = vshrl.u32 %v1856, 16
        %v2002 = vpack.i.b16 %v2001, %v2000
        %v2006 = vpack.i.b16 %v1857, %v1789
        %v2008 = vshrl.u32 %v1789, 16
        %v2009 = vshrl.u32 %v1857, 16
        %v2010 = vpack.i.b16 %v2009, %v2008
        %v2014 = vpack.i.b16 %v1858, %v1790
        %v2016 = vshrl.u32 %v1790, 16
        %v2017 = vshrl.u32 %v1858, 16
        %v2018 = vpack.i.b16 %v2017, %v2016
        %v2022 = vpack.i.b16 %v1859, %v1791
        %v2024 = vshrl.u32 %v1791, 16
        %v2025 = vshrl.u32 %v1859, 16
        %v2026 = vpack.i.b16 %v2025, %v2024
        %v2030 = vpack.i.b16 %v1992, %v1924
        %v2032 = vshrl.u32 %v1924, 16
        %v2033 = vshrl.u32 %v1992, 16
        %v2034 = vpack.i.b16 %v2033, %v2032
        %v2038 = vpack.i.b16 %v1993, %v1925
        %v2040 = vshrl.u32 %v1925, 16
        %v2041 = vshrl.u32 %v1993, 16
        %v2042 = vpack.i.b16 %v2041, %v2040
        %v2046 = vpack.i.b16 %v1994, %v1926
        %v2048 = vshrl.u32 %v1926, 16
        %v2049 = vshrl.u32 %v1994, 16
        %v2050 = vpack.i.b16 %v2049, %v2048
        %v2054 = vpack.i.b16 %v1995, %v1927
        %v2056 = vshrl.u32 %v1927, 16
        %v2057 = vshrl.u32 %v1995, 16
        %v2058 = vpack.i.b16 %v2057, %v2056
        %vm2060 = vcmask 261120
        %v2062 = vsel %vm2060, %v838, 0
        %2064 = vmatprep.subr.bf16.mxu0 0
        %2065 = vmatpush1.bf16.msra.mxu0 %v1998
        %2066 = vmatprep.subr.bf16.mxu0 0
        %2067 = vmatpush1.bf16.msra.mxu0 %v2030
        %2068 = vmatprep.subr.bf16.mxu0 0
        %2069 = vmatpush1.bf16.msra.mxu0 0
        %2070 = vmatprep.subr.bf16.mxu0 0
        %2071 = vmatpush1.bf16.msra.mxu0 0
        %2072 = vmatprep.subr.bf16.mxu0 0
        %2073 = vmatpush1.bf16.msra.mxu0 0
        %2074 = vmatprep.subr.bf16.mxu0 0
        %2075 = vmatpush1.bf16.msra.mxu0 0
        %2076 = vmatprep.subr.bf16.mxu0 0
        %2077 = vmatpush1.bf16.msra.mxu0 0
        %2078 = vmatprep.subr.bf16.mxu0 0
        %2079 = vmatpush1.bf16.msra.mxu0 0
        %2080 = vmatprep.subr.bf16.mxu0 0
        %2081 = vmatpush1.bf16.msra.mxu0 0
        %2082 = vmatprep.subr.bf16.mxu0 0
        %2083 = vmatpush1.bf16.msra.mxu0 0
        %2084 = vmatprep.subr.bf16.mxu0 0
        %2085 = vmatpush1.bf16.msra.mxu0 0
        %2086 = vmatprep.subr.bf16.mxu0 0
        %2087 = vmatpush1.bf16.msra.mxu0 0
        %2088 = vmatprep.subr.bf16.mxu0 0
        %2089 = vmatpush1.bf16.msra.mxu0 0
        %2090 = vmatprep.subr.bf16.mxu0 0
        %2091 = vmatpush1.bf16.msra.mxu0 0
        %2092 = vmatprep.subr.bf16.mxu0 0
        %2093 = vmatpush1.bf16.msra.mxu0 0
        %2094 = vmatprep.subr.bf16.mxu0 0
        %2095 = vmatpush1.bf16.msra.mxu0 0
        %2096 = vmatprep.mubr.bf16.mxu0 0
        %2097 = vmatmul.mubr.bf16.gmra.mrb[0].mxu0 %v2062
        %v2098 = vpop.f32.mrb[0].mxu0
        %v2099 = vadd.f32 0.0, %v2098
        %v2100 = vpop.f32.mrb[0].mxu0
        %v2101 = vpop.f32.mrb[0].mxu0
        %v2102 = vpop.f32.mrb[0].mxu0
        %2103 = vdwg.mxu0
        %v2105 = vsel %vm2060, %v839, 0
        %2107 = vmatprep.subr.bf16.mxu0 0
        %2108 = vmatpush1.bf16.msra.mxu0 %v2002
        %2109 = vmatprep.subr.bf16.mxu0 0
        %2110 = vmatpush1.bf16.msra.mxu0 %v2034
        %2111 = vmatprep.subr.bf16.mxu0 0
        %2112 = vmatpush1.bf16.msra.mxu0 0
        %2113 = vmatprep.subr.bf16.mxu0 0
        %2114 = vmatpush1.bf16.msra.mxu0 0
        %2115 = vmatprep.subr.bf16.mxu0 0
        %2116 = vmatpush1.bf16.msra.mxu0 0
        %2117 = vmatprep.subr.bf16.mxu0 0
        %2118 = vmatpush1.bf16.msra.mxu0 0
        %2119 = vmatprep.subr.bf16.mxu0 0
        %2120 = vmatpush1.bf16.msra.mxu0 0
        %2121 = vmatprep.subr.bf16.mxu0 0
        %2122 = vmatpush1.bf16.msra.mxu0 0
        %2123 = vmatprep.subr.bf16.mxu0 0
        %2124 = vmatpush1.bf16.msra.mxu0 0
        %2125 = vmatprep.subr.bf16.mxu0 0
        %2126 = vmatpush1.bf16.msra.mxu0 0
        %2127 = vmatprep.subr.bf16.mxu0 0
        %2128 = vmatpush1.bf16.msra.mxu0 0
        %2129 = vmatprep.subr.bf16.mxu0 0
        %2130 = vmatpush1.bf16.msra.mxu0 0
        %2131 = vmatprep.subr.bf16.mxu0 0
        %2132 = vmatpush1.bf16.msra.mxu0 0
        %2133 = vmatprep.subr.bf16.mxu0 0
        %2134 = vmatpush1.bf16.msra.mxu0 0
        %2135 = vmatprep.subr.bf16.mxu0 0
        %2136 = vmatpush1.bf16.msra.mxu0 0
        %2137 = vmatprep.subr.bf16.mxu0 0
        %2138 = vmatpush1.bf16.msra.mxu0 0
        %2139 = vmatprep.mubr.bf16.mxu0 0
        %2140 = vmatmul.mubr.bf16.gmra.mrb[0].mxu0 %v2105
        %v2141 = vpop.f32.mrb[0].mxu0
        %v2142 = vadd.f32 0.0, %v2141
        %v2143 = vpop.f32.mrb[0].mxu0
        %v2144 = vpop.f32.mrb[0].mxu0
        %v2145 = vpop.f32.mrb[0].mxu0
        %2146 = vdwg.mxu0
        %v2148 = vsel %vm2060, %v840, 0
        %2150 = vmatprep.subr.bf16.mxu0 0
        %2151 = vmatpush1.bf16.msra.mxu0 %v2006
        %2152 = vmatprep.subr.bf16.mxu0 0
        %2153 = vmatpush1.bf16.msra.mxu0 %v2038
        %2154 = vmatprep.subr.bf16.mxu0 0
        %2155 = vmatpush1.bf16.msra.mxu0 0
        %2156 = vmatprep.subr.bf16.mxu0 0
        %2157 = vmatpush1.bf16.msra.mxu0 0
        %2158 = vmatprep.subr.bf16.mxu0 0
        %2159 = vmatpush1.bf16.msra.mxu0 0
        %2160 = vmatprep.subr.bf16.mxu0 0
        %2161 = vmatpush1.bf16.msra.mxu0 0
        %2162 = vmatprep.subr.bf16.mxu0 0
        %2163 = vmatpush1.bf16.msra.mxu0 0
        %2164 = vmatprep.subr.bf16.mxu0 0
        %2165 = vmatpush1.bf16.msra.mxu0 0
        %2166 = vmatprep.subr.bf16.mxu0 0
        %2167 = vmatpush1.bf16.msra.mxu0 0
        %2168 = vmatprep.subr.bf16.mxu0 0
        %2169 = vmatpush1.bf16.msra.mxu0 0
        %2170 = vmatprep.subr.bf16.mxu0 0
        %2171 = vmatpush1.bf16.msra.mxu0 0
        %2172 = vmatprep.subr.bf16.mxu0 0
        %2173 = vmatpush1.bf16.msra.mxu0 0
        %2174 = vmatprep.subr.bf16.mxu0 0
        %2175 = vmatpush1.bf16.msra.mxu0 0
        %2176 = vmatprep.subr.bf16.mxu0 0
        %2177 = vmatpush1.bf16.msra.mxu0 0
        %2178 = vmatprep.subr.bf16.mxu0 0
        %2179 = vmatpush1.bf16.msra.mxu0 0
        %2180 = vmatprep.subr.bf16.mxu0 0
        %2181 = vmatpush1.bf16.msra.mxu0 0
        %2182 = vmatprep.mubr.bf16.mxu0 0
        %2183 = vmatmul.mubr.bf16.gmra.mrb[0].mxu0 %v2148
        %v2184 = vpop.f32.mrb[0].mxu0
        %v2185 = vadd.f32 0.0, %v2184
        %v2186 = vpop.f32.mrb[0].mxu0
        %v2187 = vpop.f32.mrb[0].mxu0
        %v2188 = vpop.f32.mrb[0].mxu0
        %2189 = vdwg.mxu0
        %v2191 = vsel %vm2060, %v841, 0
        %2193 = vmatprep.subr.bf16.mxu0 0
        %2194 = vmatpush1.bf16.msra.mxu0 %v2010
        %2195 = vmatprep.subr.bf16.mxu0 0
        %2196 = vmatpush1.bf16.msra.mxu0 %v2042
        %2197 = vmatprep.subr.bf16.mxu0 0
        %2198 = vmatpush1.bf16.msra.mxu0 0
        %2199 = vmatprep.subr.bf16.mxu0 0
        %2200 = vmatpush1.bf16.msra.mxu0 0
        %2201 = vmatprep.subr.bf16.mxu0 0
        %2202 = vmatpush1.bf16.msra.mxu0 0
        %2203 = vmatprep.subr.bf16.mxu0 0
        %2204 = vmatpush1.bf16.msra.mxu0 0
        %2205 = vmatprep.subr.bf16.mxu0 0
        %2206 = vmatpush1.bf16.msra.mxu0 0
        %2207 = vmatprep.subr.bf16.mxu0 0
        %2208 = vmatpush1.bf16.msra.mxu0 0
        %2209 = vmatprep.subr.bf16.mxu0 0
        %2210 = vmatpush1.bf16.msra.mxu0 0
        %2211 = vmatprep.subr.bf16.mxu0 0
        %2212 = vmatpush1.bf16.msra.mxu0 0
        %2213 = vmatprep.subr.bf16.mxu0 0
        %2214 = vmatpush1.bf16.msra.mxu0 0
        %2215 = vmatprep.subr.bf16.mxu0 0
        %2216 = vmatpush1.bf16.msra.mxu0 0
        %2217 = vmatprep.subr.bf16.mxu0 0
        %2218 = vmatpush1.bf16.msra.mxu0 0
        %2219 = vmatprep.subr.bf16.mxu0 0
        %2220 = vmatpush1.bf16.msra.mxu0 0
        %2221 = vmatprep.subr.bf16.mxu0 0
        %2222 = vmatpush1.bf16.msra.mxu0 0
        %2223 = vmatprep.subr.bf16.mxu0 0
        %2224 = vmatpush1.bf16.msra.mxu0 0
        %2225 = vmatprep.mubr.bf16.mxu0 0
        %2226 = vmatmul.mubr.bf16.gmra.mrb[0].mxu0 %v2191
        %v2227 = vpop.f32.mrb[0].mxu0
        %v2228 = vadd.f32 0.0, %v2227
        %v2229 = vpop.f32.mrb[0].mxu0
        %v2230 = vpop.f32.mrb[0].mxu0
        %v2231 = vpop.f32.mrb[0].mxu0
        %2232 = vdwg.mxu0
        %v2234 = vsel %vm2060, %v842, 0
        %2236 = vmatprep.subr.bf16.mxu0 0
        %2237 = vmatpush1.bf16.msra.mxu0 %v2014
        %2238 = vmatprep.subr.bf16.mxu0 0
        %2239 = vmatpush1.bf16.msra.mxu0 %v2046
        %2240 = vmatprep.subr.bf16.mxu0 0
        %2241 = vmatpush1.bf16.msra.mxu0 0
        %2242 = vmatprep.subr.bf16.mxu0 0
        %2243 = vmatpush1.bf16.msra.mxu0 0
        %2244 = vmatprep.subr.bf16.mxu0 0
        %2245 = vmatpush1.bf16.msra.mxu0 0
        %2246 = vmatprep.subr.bf16.mxu0 0
        %2247 = vmatpush1.bf16.msra.mxu0 0
        %2248 = vmatprep.subr.bf16.mxu0 0
        %2249 = vmatpush1.bf16.msra.mxu0 0
        %2250 = vmatprep.subr.bf16.mxu0 0
        %2251 = vmatpush1.bf16.msra.mxu0 0
        %2252 = vmatprep.subr.bf16.mxu0 0
        %2253 = vmatpush1.bf16.msra.mxu0 0
        %2254 = vmatprep.subr.bf16.mxu0 0
        %2255 = vmatpush1.bf16.msra.mxu0 0
        %2256 = vmatprep.subr.bf16.mxu0 0
        %2257 = vmatpush1.bf16.msra.mxu0 0
        %2258 = vmatprep.subr.bf16.mxu0 0
        %2259 = vmatpush1.bf16.msra.mxu0 0
        %2260 = vmatprep.subr.bf16.mxu0 0
        %2261 = vmatpush1.bf16.msra.mxu0 0
        %2262 = vmatprep.subr.bf16.mxu0 0
        %2263 = vmatpush1.bf16.msra.mxu0 0
        %2264 = vmatprep.subr.bf16.mxu0 0
        %2265 = vmatpush1.bf16.msra.mxu0 0
        %2266 = vmatprep.subr.bf16.mxu0 0
        %2267 = vmatpush1.bf16.msra.mxu0 0
        %2268 = vmatprep.mubr.bf16.mxu0 0
        %2269 = vmatmul.mubr.bf16.gmra.mrb[0].mxu0 %v2234
        %v2270 = vpop.f32.mrb[0].mxu0
        %v2271 = vadd.f32 0.0, %v2270
        %v2272 = vpop.f32.mrb[0].mxu0
        %v2273 = vpop.f32.mrb[0].mxu0
        %v2274 = vpop.f32.mrb[0].mxu0
        %2275 = vdwg.mxu0
        %v2277 = vsel %vm2060, %v843, 0
        %2279 = vmatprep.subr.bf16.mxu0 0
        %2280 = vmatpush1.bf16.msra.mxu0 %v2018
        %2281 = vmatprep.subr.bf16.mxu0 0
        %2282 = vmatpush1.bf16.msra.mxu0 %v2050
        %2283 = vmatprep.subr.bf16.mxu0 0
        %2284 = vmatpush1.bf16.msra.mxu0 0
        %2285 = vmatprep.subr.bf16.mxu0 0
        %2286 = vmatpush1.bf16.msra.mxu0 0
        %2287 = vmatprep.subr.bf16.mxu0 0
        %2288 = vmatpush1.bf16.msra.mxu0 0
        %2289 = vmatprep.subr.bf16.mxu0 0
        %2290 = vmatpush1.bf16.msra.mxu0 0
        %2291 = vmatprep.subr.bf16.mxu0 0
        %2292 = vmatpush1.bf16.msra.mxu0 0
        %2293 = vmatprep.subr.bf16.mxu0 0
        %2294 = vmatpush1.bf16.msra.mxu0 0
        %2295 = vmatprep.subr.bf16.mxu0 0
        %2296 = vmatpush1.bf16.msra.mxu0 0
        %2297 = vmatprep.subr.bf16.mxu0 0
        %2298 = vmatpush1.bf16.msra.mxu0 0
        %2299 = vmatprep.subr.bf16.mxu0 0
        %2300 = vmatpush1.bf16.msra.mxu0 0
        %2301 = vmatprep.subr.bf16.mxu0 0
        %2302 = vmatpush1.bf16.msra.mxu0 0
        %2303 = vmatprep.subr.bf16.mxu0 0
        %2304 = vmatpush1.bf16.msra.mxu0 0
        %2305 = vmatprep.subr.bf16.mxu0 0
        %2306 = vmatpush1.bf16.msra.mxu0 0
        %2307 = vmatprep.subr.bf16.mxu0 0
        %2308 = vmatpush1.bf16.msra.mxu0 0
        %2309 = vmatprep.subr.bf16.mxu0 0
        %2310 = vmatpush1.bf16.msra.mxu0 0
        %2311 = vmatprep.mubr.bf16.mxu0 0
        %2312 = vmatmul.mubr.bf16.gmra.mrb[0].mxu0 %v2277
        %v2313 = vpop.f32.mrb[0].mxu0
        %v2314 = vadd.f32 0.0, %v2313
        %v2315 = vpop.f32.mrb[0].mxu0
        %v2316 = vpop.f32.mrb[0].mxu0
        %v2317 = vpop.f32.mrb[0].mxu0
        %2318 = vdwg.mxu0
        %v2320 = vsel %vm2060, %v844, 0
        %2322 = vmatprep.subr.bf16.mxu0 0
        %2323 = vmatpush1.bf16.msra.mxu0 %v2022
        %2324 = vmatprep.subr.bf16.mxu0 0
        %2325 = vmatpush1.bf16.msra.mxu0 %v2054
        %2326 = vmatprep.subr.bf16.mxu0 0
        %2327 = vmatpush1.bf16.msra.mxu0 0
        %2328 = vmatprep.subr.bf16.mxu0 0
        %2329 = vmatpush1.bf16.msra.mxu0 0
        %2330 = vmatprep.subr.bf16.mxu0 0
        %2331 = vmatpush1.bf16.msra.mxu0 0
        %2332 = vmatprep.subr.bf16.mxu0 0
        %2333 = vmatpush1.bf16.msra.mxu0 0
        %2334 = vmatprep.subr.bf16.mxu0 0
        %2335 = vmatpush1.bf16.msra.mxu0 0
        %2336 = vmatprep.subr.bf16.mxu0 0
        %2337 = vmatpush1.bf16.msra.mxu0 0
        %2338 = vmatprep.subr.bf16.mxu0 0
        %2339 = vmatpush1.bf16.msra.mxu0 0
        %2340 = vmatprep.subr.bf16.mxu0 0
        %2341 = vmatpush1.bf16.msra.mxu0 0
        %2342 = vmatprep.subr.bf16.mxu0 0
        %2343 = vmatpush1.bf16.msra.mxu0 0
        %2344 = vmatprep.subr.bf16.mxu0 0
        %2345 = vmatpush1.bf16.msra.mxu0 0
        %2346 = vmatprep.subr.bf16.mxu0 0
        %2347 = vmatpush1.bf16.msra.mxu0 0
        %2348 = vmatprep.subr.bf16.mxu0 0
        %2349 = vmatpush1.bf16.msra.mxu0 0
        %2350 = vmatprep.subr.bf16.mxu0 0
        %2351 = vmatpush1.bf16.msra.mxu0 0
        %2352 = vmatprep.subr.bf16.mxu0 0
        %2353 = vmatpush1.bf16.msra.mxu0 0
        %2354 = vmatprep.mubr.bf16.mxu0 0
        %2355 = vmatmul.mubr.bf16.gmra.mrb[0].mxu0 %v2320
        %v2356 = vpop.f32.mrb[0].mxu0
        %v2357 = vadd.f32 0.0, %v2356
        %v2358 = vpop.f32.mrb[0].mxu0
        %v2359 = vpop.f32.mrb[0].mxu0
        %v2360 = vpop.f32.mrb[0].mxu0
        %2361 = vdwg.mxu0
        %v2363 = vsel %vm2060, %v845, 0
        %2365 = vmatprep.subr.bf16.mxu0 0
        %2366 = vmatpush1.bf16.msra.mxu0 %v2026
        %2367 = vmatprep.subr.bf16.mxu0 0
        %2368 = vmatpush1.bf16.msra.mxu0 %v2058
        %2369 = vmatprep.subr.bf16.mxu0 0
        %2370 = vmatpush1.bf16.msra.mxu0 0
        %2371 = vmatprep.subr.bf16.mxu0 0
        %2372 = vmatpush1.bf16.msra.mxu0 0
        %2373 = vmatprep.subr.bf16.mxu0 0
        %2374 = vmatpush1.bf16.msra.mxu0 0
        %2375 = vmatprep.subr.bf16.mxu0 0
        %2376 = vmatpush1.bf16.msra.mxu0 0
        %2377 = vmatprep.subr.bf16.mxu0 0
        %2378 = vmatpush1.bf16.msra.mxu0 0
        %2379 = vmatprep.subr.bf16.mxu0 0
        %2380 = vmatpush1.bf16.msra.mxu0 0
        %2381 = vmatprep.subr.bf16.mxu0 0
        %2382 = vmatpush1.bf16.msra.mxu0 0
        %2383 = vmatprep.subr.bf16.mxu0 0
        %2384 = vmatpush1.bf16.msra.mxu0 0
        %2385 = vmatprep.subr.bf16.mxu0 0
        %2386 = vmatpush1.bf16.msra.mxu0 0
        %2387 = vmatprep.subr.bf16.mxu0 0
        %2388 = vmatpush1.bf16.msra.mxu0 0
        %2389 = vmatprep.subr.bf16.mxu0 0
        %2390 = vmatpush1.bf16.msra.mxu0 0
        %2391 = vmatprep.subr.bf16.mxu0 0
        %2392 = vmatpush1.bf16.msra.mxu0 0
        %2393 = vmatprep.subr.bf16.mxu0 0
        %2394 = vmatpush1.bf16.msra.mxu0 0
        %2395 = vmatprep.subr.bf16.mxu0 0
        %2396 = vmatpush1.bf16.msra.mxu0 0
        %2397 = vmatprep.mubr.bf16.mxu0 0
        %2398 = vmatmul.mubr.bf16.gmra.mrb[0].mxu0 %v2363
        %v2399 = vpop.f32.mrb[0].mxu0
        %v2400 = vadd.f32 0.0, %v2399
        %v2401 = vpop.f32.mrb[0].mxu0
        %v2402 = vpop.f32.mrb[0].mxu0
        %v2403 = vpop.f32.mrb[0].mxu0
        %2404 = vdwg.mxu0
        %2405 = vxpose.xlu0.b32.start [1/16] %v2099, 128
        %2406 = vxpose.xlu0.b32.cont [2/16] 0.0, 128
        %2407 = vxpose.xlu0.b32.cont [3/16] 0.0, 128
        %2408 = vxpose.xlu0.b32.cont [4/16] 0.0, 128
        %2409 = vxpose.xlu0.b32.cont [5/16] 0.0, 128
        %2410 = vxpose.xlu0.b32.cont [6/16] 0.0, 128
        %2411 = vxpose.xlu0.b32.cont [7/16] 0.0, 128
        %2412 = vxpose.xlu0.b32.cont [8/16] 0.0, 128
        %2413 = vxpose.xlu0.b32.cont [9/16] 0.0, 128
        %2414 = vxpose.xlu0.b32.cont [10/16] 0.0, 128
        %2415 = vxpose.xlu0.b32.cont [11/16] 0.0, 128
        %2416 = vxpose.xlu0.b32.cont [12/16] 0.0, 128
        %2417 = vxpose.xlu0.b32.cont [13/16] 0.0, 128
        %2418 = vxpose.xlu0.b32.cont [14/16] 0.0, 128
        %2419 = vxpose.xlu0.b32.cont [15/16] 0.0, 128
        %2420 = vxpose.xlu0.b32.end [16/16] 0.0, 128
        %v2421 = vpop.trf.xlu0
        %v2422 = vpop.trf.xlu0
        %v2423 = vpop.trf.xlu0
        %v2424 = vpop.trf.xlu0
        %v2425 = vpop.trf.xlu0
        %v2426 = vpop.trf.xlu0
        %v2427 = vpop.trf.xlu0
        %v2428 = vpop.trf.xlu0
        %v2429 = vpop.trf.xlu0
        %v2430 = vpop.trf.xlu0
        %v2431 = vpop.trf.xlu0
        %v2432 = vpop.trf.xlu0
        %v2433 = vpop.trf.xlu0
        %v2434 = vpop.trf.xlu0
        %v2435 = vpop.trf.xlu0
        %v2436 = vpop.trf.xlu0
        %2437 = vxpose.xlu0.b32.start [1/16] %v2142, 128
        %2438 = vxpose.xlu0.b32.cont [2/16] 0.0, 128
        %2439 = vxpose.xlu0.b32.cont [3/16] 0.0, 128
        %2440 = vxpose.xlu0.b32.cont [4/16] 0.0, 128
        %2441 = vxpose.xlu0.b32.cont [5/16] 0.0, 128
        %2442 = vxpose.xlu0.b32.cont [6/16] 0.0, 128
        %2443 = vxpose.xlu0.b32.cont [7/16] 0.0, 128
        %2444 = vxpose.xlu0.b32.cont [8/16] 0.0, 128
        %2445 = vxpose.xlu0.b32.cont [9/16] 0.0, 128
        %2446 = vxpose.xlu0.b32.cont [10/16] 0.0, 128
        %2447 = vxpose.xlu0.b32.cont [11/16] 0.0, 128
        %2448 = vxpose.xlu0.b32.cont [12/16] 0.0, 128
        %2449 = vxpose.xlu0.b32.cont [13/16] 0.0, 128
        %2450 = vxpose.xlu0.b32.cont [14/16] 0.0, 128
        %2451 = vxpose.xlu0.b32.cont [15/16] 0.0, 128
        %2452 = vxpose.xlu0.b32.end [16/16] 0.0, 128
        %v2453 = vpop.trf.xlu0
        %v2454 = vpop.trf.xlu0
        %v2455 = vpop.trf.xlu0
        %v2456 = vpop.trf.xlu0
        %v2457 = vpop.trf.xlu0
        %v2458 = vpop.trf.xlu0
        %v2459 = vpop.trf.xlu0
        %v2460 = vpop.trf.xlu0
        %v2461 = vpop.trf.xlu0
        %v2462 = vpop.trf.xlu0
        %v2463 = vpop.trf.xlu0
        %v2464 = vpop.trf.xlu0
        %v2465 = vpop.trf.xlu0
        %v2466 = vpop.trf.xlu0
        %v2467 = vpop.trf.xlu0
        %v2468 = vpop.trf.xlu0
        %2469 = vxpose.xlu0.b32.start [1/16] %v2185, 128
        %2470 = vxpose.xlu0.b32.cont [2/16] 0.0, 128
        %2471 = vxpose.xlu0.b32.cont [3/16] 0.0, 128
        %2472 = vxpose.xlu0.b32.cont [4/16] 0.0, 128
        %2473 = vxpose.xlu0.b32.cont [5/16] 0.0, 128
        %2474 = vxpose.xlu0.b32.cont [6/16] 0.0, 128
        %2475 = vxpose.xlu0.b32.cont [7/16] 0.0, 128
        %2476 = vxpose.xlu0.b32.cont [8/16] 0.0, 128
        %2477 = vxpose.xlu0.b32.cont [9/16] 0.0, 128
        %2478 = vxpose.xlu0.b32.cont [10/16] 0.0, 128
        %2479 = vxpose.xlu0.b32.cont [11/16] 0.0, 128
        %2480 = vxpose.xlu0.b32.cont [12/16] 0.0, 128
        %2481 = vxpose.xlu0.b32.cont [13/16] 0.0, 128
        %2482 = vxpose.xlu0.b32.cont [14/16] 0.0, 128
        %2483 = vxpose.xlu0.b32.cont [15/16] 0.0, 128
        %2484 = vxpose.xlu0.b32.end [16/16] 0.0, 128
        %v2485 = vpop.trf.xlu0
        %v2486 = vpop.trf.xlu0
        %v2487 = vpop.trf.xlu0
        %v2488 = vpop.trf.xlu0
        %v2489 = vpop.trf.xlu0
        %v2490 = vpop.trf.xlu0
        %v2491 = vpop.trf.xlu0
        %v2492 = vpop.trf.xlu0
        %v2493 = vpop.trf.xlu0
        %v2494 = vpop.trf.xlu0
        %v2495 = vpop.trf.xlu0
        %v2496 = vpop.trf.xlu0
        %v2497 = vpop.trf.xlu0
        %v2498 = vpop.trf.xlu0
        %v2499 = vpop.trf.xlu0
        %v2500 = vpop.trf.xlu0
        %2501 = vxpose.xlu0.b32.start [1/16] %v2228, 128
        %2502 = vxpose.xlu0.b32.cont [2/16] 0.0, 128
        %2503 = vxpose.xlu0.b32.cont [3/16] 0.0, 128
        %2504 = vxpose.xlu0.b32.cont [4/16] 0.0, 128
        %2505 = vxpose.xlu0.b32.cont [5/16] 0.0, 128
        %2506 = vxpose.xlu0.b32.cont [6/16] 0.0, 128
        %2507 = vxpose.xlu0.b32.cont [7/16] 0.0, 128
        %2508 = vxpose.xlu0.b32.cont [8/16] 0.0, 128
        %2509 = vxpose.xlu0.b32.cont [9/16] 0.0, 128
        %2510 = vxpose.xlu0.b32.cont [10/16] 0.0, 128
        %2511 = vxpose.xlu0.b32.cont [11/16] 0.0, 128
        %2512 = vxpose.xlu0.b32.cont [12/16] 0.0, 128
        %2513 = vxpose.xlu0.b32.cont [13/16] 0.0, 128
        %2514 = vxpose.xlu0.b32.cont [14/16] 0.0, 128
        %2515 = vxpose.xlu0.b32.cont [15/16] 0.0, 128
        %2516 = vxpose.xlu0.b32.end [16/16] 0.0, 128
        %v2517 = vpop.trf.xlu0
        %v2518 = vpop.trf.xlu0
        %v2519 = vpop.trf.xlu0
        %v2520 = vpop.trf.xlu0
        %v2521 = vpop.trf.xlu0
        %v2522 = vpop.trf.xlu0
        %v2523 = vpop.trf.xlu0
        %v2524 = vpop.trf.xlu0
        %v2525 = vpop.trf.xlu0
        %v2526 = vpop.trf.xlu0
        %v2527 = vpop.trf.xlu0
        %v2528 = vpop.trf.xlu0
        %v2529 = vpop.trf.xlu0
        %v2530 = vpop.trf.xlu0
        %v2531 = vpop.trf.xlu0
        %v2532 = vpop.trf.xlu0
        %2533 = vxpose.xlu0.b32.start [1/16] %v2271, 128
        %2534 = vxpose.xlu0.b32.cont [2/16] 0.0, 128
        %2535 = vxpose.xlu0.b32.cont [3/16] 0.0, 128
        %2536 = vxpose.xlu0.b32.cont [4/16] 0.0, 128
        %2537 = vxpose.xlu0.b32.cont [5/16] 0.0, 128
        %2538 = vxpose.xlu0.b32.cont [6/16] 0.0, 128
        %2539 = vxpose.xlu0.b32.cont [7/16] 0.0, 128
        %2540 = vxpose.xlu0.b32.cont [8/16] 0.0, 128
        %2541 = vxpose.xlu0.b32.cont [9/16] 0.0, 128
        %2542 = vxpose.xlu0.b32.cont [10/16] 0.0, 128
        %2543 = vxpose.xlu0.b32.cont [11/16] 0.0, 128
        %2544 = vxpose.xlu0.b32.cont [12/16] 0.0, 128
        %2545 = vxpose.xlu0.b32.cont [13/16] 0.0, 128
        %2546 = vxpose.xlu0.b32.cont [14/16] 0.0, 128
        %2547 = vxpose.xlu0.b32.cont [15/16] 0.0, 128
        %2548 = vxpose.xlu0.b32.end [16/16] 0.0, 128
        %v2549 = vpop.trf.xlu0
        %v2550 = vpop.trf.xlu0
        %v2551 = vpop.trf.xlu0
        %v2552 = vpop.trf.xlu0
        %v2553 = vpop.trf.xlu0
        %v2554 = vpop.trf.xlu0
        %v2555 = vpop.trf.xlu0
        %v2556 = vpop.trf.xlu0
        %v2557 = vpop.trf.xlu0
        %v2558 = vpop.trf.xlu0
        %v2559 = vpop.trf.xlu0
        %v2560 = vpop.trf.xlu0
        %v2561 = vpop.trf.xlu0
        %v2562 = vpop.trf.xlu0
        %v2563 = vpop.trf.xlu0
        %v2564 = vpop.trf.xlu0
        %2565 = vxpose.xlu0.b32.start [1/16] %v2314, 128
        %2566 = vxpose.xlu0.b32.cont [2/16] 0.0, 128
        %2567 = vxpose.xlu0.b32.cont [3/16] 0.0, 128
        %2568 = vxpose.xlu0.b32.cont [4/16] 0.0, 128
        %2569 = vxpose.xlu0.b32.cont [5/16] 0.0, 128
        %2570 = vxpose.xlu0.b32.cont [6/16] 0.0, 128
        %2571 = vxpose.xlu0.b32.cont [7/16] 0.0, 128
        %2572 = vxpose.xlu0.b32.cont [8/16] 0.0, 128
        %2573 = vxpose.xlu0.b32.cont [9/16] 0.0, 128
        %2574 = vxpose.xlu0.b32.cont [10/16] 0.0, 128
        %2575 = vxpose.xlu0.b32.cont [11/16] 0.0, 128
        %2576 = vxpose.xlu0.b32.cont [12/16] 0.0, 128
        %2577 = vxpose.xlu0.b32.cont [13/16] 0.0, 128
        %2578 = vxpose.xlu0.b32.cont [14/16] 0.0, 128
        %2579 = vxpose.xlu0.b32.cont [15/16] 0.0, 128
        %2580 = vxpose.xlu0.b32.end [16/16] 0.0, 128
        %v2581 = vpop.trf.xlu0
        %v2582 = vpop.trf.xlu0
        %v2583 = vpop.trf.xlu0
        %v2584 = vpop.trf.xlu0
        %v2585 = vpop.trf.xlu0
        %v2586 = vpop.trf.xlu0
        %v2587 = vpop.trf.xlu0
        %v2588 = vpop.trf.xlu0
        %v2589 = vpop.trf.xlu0
        %v2590 = vpop.trf.xlu0
        %v2591 = vpop.trf.xlu0
        %v2592 = vpop.trf.xlu0
        %v2593 = vpop.trf.xlu0
        %v2594 = vpop.trf.xlu0
        %v2595 = vpop.trf.xlu0
        %v2596 = vpop.trf.xlu0
        %2597 = vxpose.xlu0.b32.start [1/16] %v2357, 128
        %2598 = vxpose.xlu0.b32.cont [2/16] 0.0, 128
        %2599 = vxpose.xlu0.b32.cont [3/16] 0.0, 128
        %2600 = vxpose.xlu0.b32.cont [4/16] 0.0, 128
        %2601 = vxpose.xlu0.b32.cont [5/16] 0.0, 128
        %2602 = vxpose.xlu0.b32.cont [6/16] 0.0, 128
        %2603 = vxpose.xlu0.b32.cont [7/16] 0.0, 128
        %2604 = vxpose.xlu0.b32.cont [8/16] 0.0, 128
        %2605 = vxpose.xlu0.b32.cont [9/16] 0.0, 128
        %2606 = vxpose.xlu0.b32.cont [10/16] 0.0, 128
        %2607 = vxpose.xlu0.b32.cont [11/16] 0.0, 128
        %2608 = vxpose.xlu0.b32.cont [12/16] 0.0, 128
        %2609 = vxpose.xlu0.b32.cont [13/16] 0.0, 128
        %2610 = vxpose.xlu0.b32.cont [14/16] 0.0, 128
        %2611 = vxpose.xlu0.b32.cont [15/16] 0.0, 128
        %2612 = vxpose.xlu0.b32.end [16/16] 0.0, 128
        %v2613 = vpop.trf.xlu0
        %v2614 = vpop.trf.xlu0
        %v2615 = vpop.trf.xlu0
        %v2616 = vpop.trf.xlu0
        %v2617 = vpop.trf.xlu0
        %v2618 = vpop.trf.xlu0
        %v2619 = vpop.trf.xlu0
        %v2620 = vpop.trf.xlu0
        %v2621 = vpop.trf.xlu0
        %v2622 = vpop.trf.xlu0
        %v2623 = vpop.trf.xlu0
        %v2624 = vpop.trf.xlu0
        %v2625 = vpop.trf.xlu0
        %v2626 = vpop.trf.xlu0
        %v2627 = vpop.trf.xlu0
        %v2628 = vpop.trf.xlu0
        %2629 = vxpose.xlu0.b32.start [1/16] %v2400, 128
        %2630 = vxpose.xlu0.b32.cont [2/16] 0.0, 128
        %2631 = vxpose.xlu0.b32.cont [3/16] 0.0, 128
        %2632 = vxpose.xlu0.b32.cont [4/16] 0.0, 128
        %2633 = vxpose.xlu0.b32.cont [5/16] 0.0, 128
        %2634 = vxpose.xlu0.b32.cont [6/16] 0.0, 128
        %2635 = vxpose.xlu0.b32.cont [7/16] 0.0, 128
        %2636 = vxpose.xlu0.b32.cont [8/16] 0.0, 128
        %2637 = vxpose.xlu0.b32.cont [9/16] 0.0, 128
        %2638 = vxpose.xlu0.b32.cont [10/16] 0.0, 128
        %2639 = vxpose.xlu0.b32.cont [11/16] 0.0, 128
        %2640 = vxpose.xlu0.b32.cont [12/16] 0.0, 128
        %2641 = vxpose.xlu0.b32.cont [13/16] 0.0, 128
        %2642 = vxpose.xlu0.b32.cont [14/16] 0.0, 128
        %2643 = vxpose.xlu0.b32.cont [15/16] 0.0, 128
        %2644 = vxpose.xlu0.b32.end [16/16] 0.0, 128
        %v2645 = vpop.trf.xlu0
        %v2646 = vpop.trf.xlu0
        %v2647 = vpop.trf.xlu0
        %v2648 = vpop.trf.xlu0
        %v2649 = vpop.trf.xlu0
        %v2650 = vpop.trf.xlu0
        %v2651 = vpop.trf.xlu0
        %v2652 = vpop.trf.xlu0
        %v2653 = vpop.trf.xlu0
        %v2654 = vpop.trf.xlu0
        %v2655 = vpop.trf.xlu0
        %v2656 = vpop.trf.xlu0
        %v2657 = vpop.trf.xlu0
        %v2658 = vpop.trf.xlu0
        %v2659 = vpop.trf.xlu0
        %v2660 = vpop.trf.xlu0
        %v2661 = vcombine.low %v2421, %v2485
        %v2663 = vunpack.c.l.s4 1983009808
        %v2664 = vunpack.c.0.s8 %v2663
        %v2665 = vlaneseq
        %v2666 = vshrl.u32 %v2665, 7
        %v2667 = vsub.s32 %v2664, %v2666
        %v2668 = vrot.slane %v2661, %v2667
        %v2669 = vcombine.low %v2453, %v2517
        %v2671 = vunpack.c.l.s4 1983009808
        %v2672 = vunpack.c.0.s8 %v2671
        %v2673 = vlaneseq
        %v2674 = vshrl.u32 %v2673, 7
        %v2675 = vsub.s32 %v2672, %v2674
        %v2676 = vrot.slane %v2669, %v2675
        %v2677 = vcombine.low %v2549, %v2613
        %v2679 = vunpack.c.l.s4 1983009808
        %v2680 = vunpack.c.0.s8 %v2679
        %v2681 = vlaneseq
        %v2682 = vshrl.u32 %v2681, 7
        %v2683 = vsub.s32 %v2680, %v2682
        %v2684 = vrot.slane %v2677, %v2683
        %v2685 = vcombine.low %v2581, %v2645
        %v2687 = vunpack.c.l.s4 1983009808
        %v2688 = vunpack.c.0.s8 %v2687
        %v2689 = vlaneseq
        %v2690 = vshrl.u32 %v2689, 7
        %v2691 = vsub.s32 %v2688, %v2690
        %v2692 = vrot.slane %v2685, %v2691
        %v2693 = vcombine.low %v2668, %v2676
        %v2694 = vcombine.high %v2668, %v2676
        %v2696 = vunpack.c.l.s4 1934713408
        %v2697 = vunpack.c.0.s8 %v2696
        %v2698 = vlaneseq
        %v2699 = vshrl.u32 %v2698, 7
        %v2700 = vsub.s32 %v2697, %v2699
        %v2701 = vrot.slane %v2693, %v2700
        %v2703 = vunpack.c.l.s4 1934713408
        %v2704 = vunpack.c.0.s8 %v2703
        %v2705 = vlaneseq
        %v2706 = vshrl.u32 %v2705, 7
        %v2707 = vsub.s32 %v2704, %v2706
        %v2708 = vrot.slane %v2694, %v2707
        %v2709 = vcombine.low %v2684, %v2692
        %v2710 = vcombine.high %v2684, %v2692
        %v2712 = vunpack.c.l.s4 1934713408
        %v2713 = vunpack.c.0.s8 %v2712
        %v2714 = vlaneseq
        %v2715 = vshrl.u32 %v2714, 7
        %v2716 = vsub.s32 %v2713, %v2715
        %v2717 = vrot.slane %v2709, %v2716
        %v2719 = vunpack.c.l.s4 1934713408
        %v2720 = vunpack.c.0.s8 %v2719
        %v2721 = vlaneseq
        %v2722 = vshrl.u32 %v2721, 7
        %v2723 = vsub.s32 %v2720, %v2722
        %v2724 = vrot.slane %v2710, %v2723
        %v2725 = vcombine.low %v2701, %v2717
        %v2726 = vcombine.high %v2701, %v2717
        %v2727 = vcombine.low %v2708, %v2724
        %v2728 = vcombine.high %v2708, %v2724
        %vm2729 = vcmask 64512
        %v2731 = vsel %vm2729, %v826, 0
        %vm2733 = vcmask 1043456
        %v2735 = vsel %vm2733, %v830, 0
        %2737 = vmatprep.subr.bf16.mxu0 0
        %2738 = vmatpush1.bf16.msra.mxu0 %v2735
        %2739 = vmatprep.subr.bf16.mxu0 0
        %2740 = vmatpush1.bf16.msra.mxu0 0
        %2741 = vmatprep.subr.bf16.mxu0 0
        %2742 = vmatpush1.bf16.msra.mxu0 0
        %2743 = vmatprep.subr.bf16.mxu0 0
        %2744 = vmatpush1.bf16.msra.mxu0 0
        %2745 = vmatprep.subr.bf16.mxu0 0
        %2746 = vmatpush1.bf16.msra.mxu0 0
        %2747 = vmatprep.subr.bf16.mxu0 0
        %2748 = vmatpush1.bf16.msra.mxu0 0
        %2749 = vmatprep.subr.bf16.mxu0 0
        %2750 = vmatpush1.bf16.msra.mxu0 0
        %2751 = vmatprep.subr.bf16.mxu0 0
        %2752 = vmatpush1.bf16.msra.mxu0 0
        %2753 = vmatprep.subr.bf16.mxu0 0
        %2754 = vmatpush1.bf16.msra.mxu0 0
        %2755 = vmatprep.subr.bf16.mxu0 0
        %2756 = vmatpush1.bf16.msra.mxu0 0
        %2757 = vmatprep.subr.bf16.mxu0 0
        %2758 = vmatpush1.bf16.msra.mxu0 0
        %2759 = vmatprep.subr.bf16.mxu0 0
        %2760 = vmatpush1.bf16.msra.mxu0 0
        %2761 = vmatprep.subr.bf16.mxu0 0
        %2762 = vmatpush1.bf16.msra.mxu0 0
        %2763 = vmatprep.subr.bf16.mxu0 0
        %2764 = vmatpush1.bf16.msra.mxu0 0
        %2765 = vmatprep.subr.bf16.mxu0 0
        %2766 = vmatpush1.bf16.msra.mxu0 0
        %2767 = vmatprep.subr.bf16.mxu0 0
        %2768 = vmatpush1.bf16.msra.mxu0 0
        %2769 = vmatprep.mubr.bf16.mxu0 0
        %2770 = vmatmul.mubr.bf16.gmra.mrb[0].mxu0 %v2731
        %v2771 = vpop.f32.mrb[0].mxu0
        %v2772 = vadd.f32 %v2725, %v2771
        %v2773 = vpop.f32.mrb[0].mxu0
        %v2774 = vpop.f32.mrb[0].mxu0
        %v2775 = vpop.f32.mrb[0].mxu0
        %2776 = vdwg.mxu0
        %v2778 = vsel %vm2729, %v827, 0
        %v2781 = vsel %vm2733, %v831, 0
        %2783 = vmatprep.subr.bf16.mxu0 0
        %2784 = vmatpush1.bf16.msra.mxu0 %v2781
        %2785 = vmatprep.subr.bf16.mxu0 0
        %2786 = vmatpush1.bf16.msra.mxu0 0
        %2787 = vmatprep.subr.bf16.mxu0 0
        %2788 = vmatpush1.bf16.msra.mxu0 0
        %2789 = vmatprep.subr.bf16.mxu0 0
        %2790 = vmatpush1.bf16.msra.mxu0 0
        %2791 = vmatprep.subr.bf16.mxu0 0
        %2792 = vmatpush1.bf16.msra.mxu0 0
        %2793 = vmatprep.subr.bf16.mxu0 0
        %2794 = vmatpush1.bf16.msra.mxu0 0
        %2795 = vmatprep.subr.bf16.mxu0 0
        %2796 = vmatpush1.bf16.msra.mxu0 0
        %2797 = vmatprep.subr.bf16.mxu0 0
        %2798 = vmatpush1.bf16.msra.mxu0 0
        %2799 = vmatprep.subr.bf16.mxu0 0
        %2800 = vmatpush1.bf16.msra.mxu0 0
        %2801 = vmatprep.subr.bf16.mxu0 0
        %2802 = vmatpush1.bf16.msra.mxu0 0
        %2803 = vmatprep.subr.bf16.mxu0 0
        %2804 = vmatpush1.bf16.msra.mxu0 0
        %2805 = vmatprep.subr.bf16.mxu0 0
        %2806 = vmatpush1.bf16.msra.mxu0 0
        %2807 = vmatprep.subr.bf16.mxu0 0
        %2808 = vmatpush1.bf16.msra.mxu0 0
        %2809 = vmatprep.subr.bf16.mxu0 0
        %2810 = vmatpush1.bf16.msra.mxu0 0
        %2811 = vmatprep.subr.bf16.mxu0 0
        %2812 = vmatpush1.bf16.msra.mxu0 0
        %2813 = vmatprep.subr.bf16.mxu0 0
        %2814 = vmatpush1.bf16.msra.mxu0 0
        %2815 = vmatprep.mubr.bf16.mxu0 0
        %2816 = vmatmul.mubr.bf16.gmra.mrb[0].mxu0 %v2778
        %v2817 = vpop.f32.mrb[0].mxu0
        %v2818 = vadd.f32 %v2726, %v2817
        %v2819 = vpop.f32.mrb[0].mxu0
        %v2820 = vpop.f32.mrb[0].mxu0
        %v2821 = vpop.f32.mrb[0].mxu0
        %2822 = vdwg.mxu0
        %v2824 = vsel %vm2729, %v828, 0
        %v2827 = vsel %vm2733, %v832, 0
        %2829 = vmatprep.subr.bf16.mxu0 0
        %2830 = vmatpush1.bf16.msra.mxu0 %v2827
        %2831 = vmatprep.subr.bf16.mxu0 0
        %2832 = vmatpush1.bf16.msra.mxu0 0
        %2833 = vmatprep.subr.bf16.mxu0 0
        %2834 = vmatpush1.bf16.msra.mxu0 0
        %2835 = vmatprep.subr.bf16.mxu0 0
        %2836 = vmatpush1.bf16.msra.mxu0 0
        %2837 = vmatprep.subr.bf16.mxu0 0
        %2838 = vmatpush1.bf16.msra.mxu0 0
        %2839 = vmatprep.subr.bf16.mxu0 0
        %2840 = vmatpush1.bf16.msra.mxu0 0
        %2841 = vmatprep.subr.bf16.mxu0 0
        %2842 = vmatpush1.bf16.msra.mxu0 0
        %2843 = vmatprep.subr.bf16.mxu0 0
        %2844 = vmatpush1.bf16.msra.mxu0 0
        %2845 = vmatprep.subr.bf16.mxu0 0
        %2846 = vmatpush1.bf16.msra.mxu0 0
        %2847 = vmatprep.subr.bf16.mxu0 0
        %2848 = vmatpush1.bf16.msra.mxu0 0
        %2849 = vmatprep.subr.bf16.mxu0 0
        %2850 = vmatpush1.bf16.msra.mxu0 0
        %2851 = vmatprep.subr.bf16.mxu0 0
        %2852 = vmatpush1.bf16.msra.mxu0 0
        %2853 = vmatprep.subr.bf16.mxu0 0
        %2854 = vmatpush1.bf16.msra.mxu0 0
        %2855 = vmatprep.subr.bf16.mxu0 0
        %2856 = vmatpush1.bf16.msra.mxu0 0
        %2857 = vmatprep.subr.bf16.mxu0 0
        %2858 = vmatpush1.bf16.msra.mxu0 0
        %2859 = vmatprep.subr.bf16.mxu0 0
        %2860 = vmatpush1.bf16.msra.mxu0 0
        %2861 = vmatprep.mubr.bf16.mxu0 0
        %2862 = vmatmul.mubr.bf16.gmra.mrb[0].mxu0 %v2824
        %v2863 = vpop.f32.mrb[0].mxu0
        %v2864 = vadd.f32 %v2727, %v2863
        %v2865 = vpop.f32.mrb[0].mxu0
        %v2866 = vpop.f32.mrb[0].mxu0
        %v2867 = vpop.f32.mrb[0].mxu0
        %2868 = vdwg.mxu0
        %v2870 = vsel %vm2729, %v829, 0
        %v2873 = vsel %vm2733, %v833, 0
        %2875 = vmatprep.subr.bf16.mxu0 0
        %2876 = vmatpush1.bf16.msra.mxu0 %v2873
        %2877 = vmatprep.subr.bf16.mxu0 0
        %2878 = vmatpush1.bf16.msra.mxu0 0
        %2879 = vmatprep.subr.bf16.mxu0 0
        %2880 = vmatpush1.bf16.msra.mxu0 0
        %2881 = vmatprep.subr.bf16.mxu0 0
        %2882 = vmatpush1.bf16.msra.mxu0 0
        %2883 = vmatprep.subr.bf16.mxu0 0
        %2884 = vmatpush1.bf16.msra.mxu0 0
        %2885 = vmatprep.subr.bf16.mxu0 0
        %2886 = vmatpush1.bf16.msra.mxu0 0
        %2887 = vmatprep.subr.bf16.mxu0 0
        %2888 = vmatpush1.bf16.msra.mxu0 0
        %2889 = vmatprep.subr.bf16.mxu0 0
        %2890 = vmatpush1.bf16.msra.mxu0 0
        %2891 = vmatprep.subr.bf16.mxu0 0
        %2892 = vmatpush1.bf16.msra.mxu0 0
        %2893 = vmatprep.subr.bf16.mxu0 0
        %2894 = vmatpush1.bf16.msra.mxu0 0
        %2895 = vmatprep.subr.bf16.mxu0 0
        %2896 = vmatpush1.bf16.msra.mxu0 0
        %2897 = vmatprep.subr.bf16.mxu0 0
        %2898 = vmatpush1.bf16.msra.mxu0 0
        %2899 = vmatprep.subr.bf16.mxu0 0
        %2900 = vmatpush1.bf16.msra.mxu0 0
        %2901 = vmatprep.subr.bf16.mxu0 0
        %2902 = vmatpush1.bf16.msra.mxu0 0
        %2903 = vmatprep.subr.bf16.mxu0 0
        %2904 = vmatpush1.bf16.msra.mxu0 0
        %2905 = vmatprep.subr.bf16.mxu0 0
        %2906 = vmatpush1.bf16.msra.mxu0 0
        %2907 = vmatprep.mubr.bf16.mxu0 0
        %2908 = vmatmul.mubr.bf16.gmra.mrb[0].mxu0 %v2870
        %v2909 = vpop.f32.mrb[0].mxu0
        %v2910 = vadd.f32 %v2728, %v2909
        %v2911 = vpop.f32.mrb[0].mxu0
        %v2912 = vpop.f32.mrb[0].mxu0
        %v2913 = vpop.f32.mrb[0].mxu0
        %2914 = vdwg.mxu0
        %v2915 = vld [vmem:[%s691] sm:$0xff]
        %v2916 = vadd.f32 %v2772, %v2915
        %v2917 = vadd.f32 %v2818, %v2915
        %v2918 = vadd.f32 %v2864, %v2915
        %v2919 = vadd.f32 %v2910, %v2915
        %v2920 = vld [vmem:[#allocation2] sm:$0xff]
        %v2921 = vld [vmem:[#allocation2 + $0x8] sm:$0xff]
        %v2922 = vld [vmem:[#allocation2 + $0x10] sm:$0xff]
        %v2923 = vld [vmem:[#allocation2 + $0x18] sm:$0xff]
        %v2924 = vsel %vm2729, %v2916, -inf
        %2925 = vmax.xlane.f32.xlu0 %v2924
        %v2926 = vpop.xlane.xlu0 %2925
        %v2927 = vsel %vm2729, %v2917, -inf
        %2928 = vmax.xlane.f32.xlu0 %v2927
        %v2929 = vpop.xlane.xlu0 %2928
        %v2930 = vsel %vm2729, %v2918, -inf
        %2931 = vmax.xlane.f32.xlu0 %v2930
        %v2932 = vpop.xlane.xlu0 %2931
        %v2933 = vsel %vm2729, %v2919, -inf
        %2934 = vmax.xlane.f32.xlu0 %v2933
        %v2935 = vpop.xlane.xlu0 %2934
        %v2936 = vmax.f32 %v2920, %v2926
        %v2937 = vmax.f32 %v2921, %v2929
        %v2938 = vmax.f32 %v2922, %v2932
        %v2939 = vmax.f32 %v2923, %v2935
        %v2940 = vsub.f32 %v2920, %v2936
        %v2941 = vsub.f32 %v2921, %v2937
        %v2942 = vsub.f32 %v2922, %v2938
        %v2943 = vsub.f32 %v2923, %v2939
        %v2944 = vmul.f32 %v2940, 1.442695
        %v2945 = vpow.pop %v2944
        %v2946 = vmul.f32 %v2941, 1.442695
        %v2947 = vpow.pop %v2946
        %v2948 = vmul.f32 %v2942, 1.442695
        %v2949 = vpow.pop %v2948
        %v2950 = vmul.f32 %v2943, 1.442695
        %v2951 = vpow.pop %v2950
        %2953 = vset.pattern.permute.xlu0 0
        %2954 = vperm.xlu0 %2953, %v2936
        %v2955 = vpop.permute.xlu0 %2954
        %2958 = vset.pattern.permute.xlu0 0
        %2959 = vperm.xlu0 %2958, %v2937
        %v2960 = vpop.permute.xlu0 %2959
        %2963 = vset.pattern.permute.xlu0 0
        %2964 = vperm.xlu0 %2963, %v2938
        %v2965 = vpop.permute.xlu0 %2964
        %2968 = vset.pattern.permute.xlu0 0
        %2969 = vperm.xlu0 %2968, %v2939
        %v2970 = vpop.permute.xlu0 %2969
        %v2972 = vsub.f32 %v2916, %v2955
        %v2973 = vsub.f32 %v2917, %v2960
        %v2974 = vsub.f32 %v2918, %v2965
        %v2975 = vsub.f32 %v2919, %v2970
        %v2976 = vmul.f32 %v2972, 1.442695
        %v2977 = vpow.pop %v2976
        %v2978 = vmul.f32 %v2973, 1.442695
        %v2979 = vpow.pop %v2978
        %v2980 = vmul.f32 %v2974, 1.442695
        %v2981 = vpow.pop %v2980
        %v2982 = vmul.f32 %v2975, 1.442695
        %v2983 = vpow.pop %v2982
        %v2984 = vld [vmem:[#allocation3] sm:$0xff]
        %v2985 = vld [vmem:[#allocation3 + $0x8] sm:$0xff]
        %v2986 = vld [vmem:[#allocation3 + $0x10] sm:$0xff]
        %v2987 = vld [vmem:[#allocation3 + $0x18] sm:$0xff]
        %v2988 = vmul.f32 %v2945, %v2984
        %v2989 = vmul.f32 %v2947, %v2985
        %v2990 = vmul.f32 %v2949, %v2986
        %v2991 = vmul.f32 %v2951, %v2987
        %v2992 = vsel %vm2729, %v2977, 0.0
        %2993 = vadd.xlane.f32.xlu0 %v2992
        %v2994 = vpop.xlane.xlu0 %2993
        %v2995 = vsel %vm2729, %v2979, 0.0
        %2996 = vadd.xlane.f32.xlu0 %v2995
        %v2997 = vpop.xlane.xlu0 %2996
        %v2998 = vsel %vm2729, %v2981, 0.0
        %2999 = vadd.xlane.f32.xlu0 %v2998
        %v3000 = vpop.xlane.xlu0 %2999
        %v3001 = vsel %vm2729, %v2983, 0.0
        %3002 = vadd.xlane.f32.xlu0 %v3001
        %v3003 = vpop.xlane.xlu0 %3002
        %v3004 = vadd.f32 %v2988, %v2994
        %v3005 = vadd.f32 %v2989, %v2997
        %v3006 = vadd.f32 %v2990, %v3000
        %v3007 = vadd.f32 %v2991, %v3003
        %vm3008 = vcmask 7168
        %3009 = vst.msk [vmem:[#allocation3] sm:$0xff] %vm3008, %v3004
        %3010 = vst.msk [vmem:[#allocation3 + $0x8] sm:$0xff] %vm3008, %v3005
        %3011 = vst.msk [vmem:[#allocation3 + $0x10] sm:$0xff] %vm3008, %v3006
        %3012 = vst.msk [vmem:[#allocation3 + $0x18] sm:$0xff] %vm3008, %v3007
        %v3013 = vld [vmem:[#allocation4] sm:$0xff]
        %v3014 = vld [vmem:[#allocation4 + $0x8] sm:$0xff]
        %v3015 = vld [vmem:[#allocation4 + $0x10] sm:$0xff]
        %v3016 = vld [vmem:[#allocation4 + $0x18] sm:$0xff]
        %3018 = vset.pattern.permute.xlu0 0
        %3019 = vperm.xlu0 %3018, %v2945
        %v3020 = vpop.permute.xlu0 %3019
        %3023 = vset.pattern.permute.xlu0 0
        %3024 = vperm.xlu0 %3023, %v2947
        %v3025 = vpop.permute.xlu0 %3024
        %3028 = vset.pattern.permute.xlu0 0
        %3029 = vperm.xlu0 %3028, %v2949
        %v3030 = vpop.permute.xlu0 %3029
        %3033 = vset.pattern.permute.xlu0 0
        %3034 = vperm.xlu0 %3033, %v2951
        %v3035 = vpop.permute.xlu0 %3034
        %v3037 = vmul.f32 %v3020, %v3013
        %v3038 = vmul.f32 %v3025, %v3014
        %v3039 = vmul.f32 %v3030, %v3015
        %v3040 = vmul.f32 %v3035, %v3016
        %v3041 = vpack.c.bf16 %v2977, %v2977
        %v3042 = vpack.c.bf16 %v2979, %v2979
        %v3043 = vpack.c.bf16 %v2981, %v2981
        %v3044 = vpack.c.bf16 %v2983, %v2983
        %v3045 = vld [vmem:[%s682] sm:$0xf]
        %v3046 = vld [vmem:[%s682 + $0x4] sm:$0xf]
        %v3047 = vld [vmem:[%s682 + $0x8] sm:$0xf]
        %v3048 = vld [vmem:[%s682 + $0xc] sm:$0xf]
        %v3050 = vsel %vm2729, %v3041, 0
        %v3053 = vsel %vm2733, %v3045, 0
        %3055 = vmatprep.subr.bf16.mxu0 0
        %3056 = vmatpush1.bf16.msra.mxu0 %v3053
        %3057 = vmatprep.subr.bf16.mxu0 0
        %3058 = vmatpush1.bf16.msra.mxu0 0
        %3059 = vmatprep.subr.bf16.mxu0 0
        %3060 = vmatpush1.bf16.msra.mxu0 0
        %3061 = vmatprep.subr.bf16.mxu0 0
        %3062 = vmatpush1.bf16.msra.mxu0 0
        %3063 = vmatprep.subr.bf16.mxu0 0
        %3064 = vmatpush1.bf16.msra.mxu0 0
        %3065 = vmatprep.subr.bf16.mxu0 0
        %3066 = vmatpush1.bf16.msra.mxu0 0
        %3067 = vmatprep.subr.bf16.mxu0 0
        %3068 = vmatpush1.bf16.msra.mxu0 0
        %3069 = vmatprep.subr.bf16.mxu0 0
        %3070 = vmatpush1.bf16.msra.mxu0 0
        %3071 = vmatprep.subr.bf16.mxu0 0
        %3072 = vmatpush1.bf16.msra.mxu0 0
        %3073 = vmatprep.subr.bf16.mxu0 0
        %3074 = vmatpush1.bf16.msra.mxu0 0
        %3075 = vmatprep.subr.bf16.mxu0 0
        %3076 = vmatpush1.bf16.msra.mxu0 0
        %3077 = vmatprep.subr.bf16.mxu0 0
        %3078 = vmatpush1.bf16.msra.mxu0 0
        %3079 = vmatprep.subr.bf16.mxu0 0
        %3080 = vmatpush1.bf16.msra.mxu0 0
        %3081 = vmatprep.subr.bf16.mxu0 0
        %3082 = vmatpush1.bf16.msra.mxu0 0
        %3083 = vmatprep.subr.bf16.mxu0 0
        %3084 = vmatpush1.bf16.msra.mxu0 0
        %3085 = vmatprep.subr.bf16.mxu0 0
        %3086 = vmatpush1.bf16.msra.mxu0 0
        %3087 = vmatprep.mubr.bf16.mxu0 0
        %3088 = vmatmul.mubr.bf16.gmra.mrb[0].mxu0 %v3050
        %v3089 = vpop.f32.mrb[0].mxu0
        %v3090 = vadd.f32 0.0, %v3089
        %v3091 = vpop.f32.mrb[0].mxu0
        %v3092 = vpop.f32.mrb[0].mxu0
        %v3093 = vpop.f32.mrb[0].mxu0
        %3094 = vdwg.mxu0
        %v3096 = vsel %vm2729, %v3042, 0
        %v3099 = vsel %vm2733, %v3046, 0
        %3101 = vmatprep.subr.bf16.mxu0 0
        %3102 = vmatpush1.bf16.msra.mxu0 %v3099
        %3103 = vmatprep.subr.bf16.mxu0 0
        %3104 = vmatpush1.bf16.msra.mxu0 0
        %3105 = vmatprep.subr.bf16.mxu0 0
        %3106 = vmatpush1.bf16.msra.mxu0 0
        %3107 = vmatprep.subr.bf16.mxu0 0
        %3108 = vmatpush1.bf16.msra.mxu0 0
        %3109 = vmatprep.subr.bf16.mxu0 0
        %3110 = vmatpush1.bf16.msra.mxu0 0
        %3111 = vmatprep.subr.bf16.mxu0 0
        %3112 = vmatpush1.bf16.msra.mxu0 0
        %3113 = vmatprep.subr.bf16.mxu0 0
        %3114 = vmatpush1.bf16.msra.mxu0 0
        %3115 = vmatprep.subr.bf16.mxu0 0
        %3116 = vmatpush1.bf16.msra.mxu0 0
        %3117 = vmatprep.subr.bf16.mxu0 0
        %3118 = vmatpush1.bf16.msra.mxu0 0
        %3119 = vmatprep.subr.bf16.mxu0 0
        %3120 = vmatpush1.bf16.msra.mxu0 0
        %3121 = vmatprep.subr.bf16.mxu0 0
        %3122 = vmatpush1.bf16.msra.mxu0 0
        %3123 = vmatprep.subr.bf16.mxu0 0
        %3124 = vmatpush1.bf16.msra.mxu0 0
        %3125 = vmatprep.subr.bf16.mxu0 0
        %3126 = vmatpush1.bf16.msra.mxu0 0
        %3127 = vmatprep.subr.bf16.mxu0 0
        %3128 = vmatpush1.bf16.msra.mxu0 0
        %3129 = vmatprep.subr.bf16.mxu0 0
        %3130 = vmatpush1.bf16.msra.mxu0 0
        %3131 = vmatprep.subr.bf16.mxu0 0
        %3132 = vmatpush1.bf16.msra.mxu0 0
        %3133 = vmatprep.mubr.bf16.mxu0 0
        %3134 = vmatmul.mubr.bf16.gmra.mrb[0].mxu0 %v3096
        %v3135 = vpop.f32.mrb[0].mxu0
        %v3136 = vadd.f32 0.0, %v3135
        %v3137 = vpop.f32.mrb[0].mxu0
        %v3138 = vpop.f32.mrb[0].mxu0
        %v3139 = vpop.f32.mrb[0].mxu0
        %3140 = vdwg.mxu0
        %v3142 = vsel %vm2729, %v3043, 0
        %v3145 = vsel %vm2733, %v3047, 0
        %3147 = vmatprep.subr.bf16.mxu0 0
        %3148 = vmatpush1.bf16.msra.mxu0 %v3145
        %3149 = vmatprep.subr.bf16.mxu0 0
        %3150 = vmatpush1.bf16.msra.mxu0 0
        %3151 = vmatprep.subr.bf16.mxu0 0
        %3152 = vmatpush1.bf16.msra.mxu0 0
        %3153 = vmatprep.subr.bf16.mxu0 0
        %3154 = vmatpush1.bf16.msra.mxu0 0
        %3155 = vmatprep.subr.bf16.mxu0 0
        %3156 = vmatpush1.bf16.msra.mxu0 0
        %3157 = vmatprep.subr.bf16.mxu0 0
        %3158 = vmatpush1.bf16.msra.mxu0 0
        %3159 = vmatprep.subr.bf16.mxu0 0
        %3160 = vmatpush1.bf16.msra.mxu0 0
        %3161 = vmatprep.subr.bf16.mxu0 0
        %3162 = vmatpush1.bf16.msra.mxu0 0
        %3163 = vmatprep.subr.bf16.mxu0 0
        %3164 = vmatpush1.bf16.msra.mxu0 0
        %3165 = vmatprep.subr.bf16.mxu0 0
        %3166 = vmatpush1.bf16.msra.mxu0 0
        %3167 = vmatprep.subr.bf16.mxu0 0
        %3168 = vmatpush1.bf16.msra.mxu0 0
        %3169 = vmatprep.subr.bf16.mxu0 0
        %3170 = vmatpush1.bf16.msra.mxu0 0
        %3171 = vmatprep.subr.bf16.mxu0 0
        %3172 = vmatpush1.bf16.msra.mxu0 0
        %3173 = vmatprep.subr.bf16.mxu0 0
        %3174 = vmatpush1.bf16.msra.mxu0 0
        %3175 = vmatprep.subr.bf16.mxu0 0
        %3176 = vmatpush1.bf16.msra.mxu0 0
        %3177 = vmatprep.subr.bf16.mxu0 0
        %3178 = vmatpush1.bf16.msra.mxu0 0
        %3179 = vmatprep.mubr.bf16.mxu0 0
        %3180 = vmatmul.mubr.bf16.gmra.mrb[0].mxu0 %v3142
        %v3181 = vpop.f32.mrb[0].mxu0
        %v3182 = vadd.f32 0.0, %v3181
        %v3183 = vpop.f32.mrb[0].mxu0
        %v3184 = vpop.f32.mrb[0].mxu0
        %v3185 = vpop.f32.mrb[0].mxu0
        %3186 = vdwg.mxu0
        %v3188 = vsel %vm2729, %v3044, 0
        %v3191 = vsel %vm2733, %v3048, 0
        %3193 = vmatprep.subr.bf16.mxu0 0
        %3194 = vmatpush1.bf16.msra.mxu0 %v3191
        %3195 = vmatprep.subr.bf16.mxu0 0
        %3196 = vmatpush1.bf16.msra.mxu0 0
        %3197 = vmatprep.subr.bf16.mxu0 0
        %3198 = vmatpush1.bf16.msra.mxu0 0
        %3199 = vmatprep.subr.bf16.mxu0 0
        %3200 = vmatpush1.bf16.msra.mxu0 0
        %3201 = vmatprep.subr.bf16.mxu0 0
        %3202 = vmatpush1.bf16.msra.mxu0 0
        %3203 = vmatprep.subr.bf16.mxu0 0
        %3204 = vmatpush1.bf16.msra.mxu0 0
        %3205 = vmatprep.subr.bf16.mxu0 0
        %3206 = vmatpush1.bf16.msra.mxu0 0
        %3207 = vmatprep.subr.bf16.mxu0 0
        %3208 = vmatpush1.bf16.msra.mxu0 0
        %3209 = vmatprep.subr.bf16.mxu0 0
        %3210 = vmatpush1.bf16.msra.mxu0 0
        %3211 = vmatprep.subr.bf16.mxu0 0
        %3212 = vmatpush1.bf16.msra.mxu0 0
        %3213 = vmatprep.subr.bf16.mxu0 0
        %3214 = vmatpush1.bf16.msra.mxu0 0
        %3215 = vmatprep.subr.bf16.mxu0 0
        %3216 = vmatpush1.bf16.msra.mxu0 0
        %3217 = vmatprep.subr.bf16.mxu0 0
        %3218 = vmatpush1.bf16.msra.mxu0 0
        %3219 = vmatprep.subr.bf16.mxu0 0
        %3220 = vmatpush1.bf16.msra.mxu0 0
        %3221 = vmatprep.subr.bf16.mxu0 0
        %3222 = vmatpush1.bf16.msra.mxu0 0
        %3223 = vmatprep.subr.bf16.mxu0 0
        %3224 = vmatpush1.bf16.msra.mxu0 0
        %3225 = vmatprep.mubr.bf16.mxu0 0
        %3226 = vmatmul.mubr.bf16.gmra.mrb[0].mxu0 %v3188
        %v3227 = vpop.f32.mrb[0].mxu0
        %v3228 = vadd.f32 0.0, %v3227
        %v3229 = vpop.f32.mrb[0].mxu0
        %v3230 = vpop.f32.mrb[0].mxu0
        %v3231 = vpop.f32.mrb[0].mxu0
        %3232 = vdwg.mxu0
        %v3233 = vadd.f32 %v3037, %v3090
        %v3234 = vadd.f32 %v3038, %v3136
        %v3235 = vadd.f32 %v3039, %v3182
        %v3236 = vadd.f32 %v3040, %v3228
        %3237 = vst.msk [vmem:[#allocation4] sm:$0xff] %vm2729, %v3233
        %3238 = vst.msk [vmem:[#allocation4 + $0x8] sm:$0xff] %vm2729, %v3234
        %3239 = vst.msk [vmem:[#allocation4 + $0x10] sm:$0xff] %vm2729, %v3235
        %3240 = vst.msk [vmem:[#allocation4 + $0x18] sm:$0xff] %vm2729, %v3236
        %3241 = vst.msk [vmem:[#allocation2] sm:$0xff] %vm3008, %v2936
        %3242 = vst.msk [vmem:[#allocation2 + $0x8] sm:$0xff] %vm3008, %v2937
        %3243 = vst.msk [vmem:[#allocation2 + $0x10] sm:$0xff] %vm3008, %v2938
        %3244 = vst.msk [vmem:[#allocation2 + $0x18] sm:$0xff] %vm3008, %v2939
        // Predicated region
        $region113: #{tpu_custom_call.1} parent=79 // pred_check
          %p3245 = pneg %p808
        $region114: #{tpu_custom_call.1} parent=79 // pred_check_branch
          %3247 = sbr.rel (%p3245) target = $region116
        $region115: #{tpu_custom_call.1} parent=79 // pred_region
          %v3248 = vld [vmem:[#allocation4] sm:$0xff]
          %v3249 = vld [vmem:[#allocation4 + $0x8] sm:$0xff]
          %v3250 = vld [vmem:[#allocation4 + $0x10] sm:$0xff]
          %v3251 = vld [vmem:[#allocation4 + $0x18] sm:$0xff]
          %v3252 = vld [vmem:[#allocation3] sm:$0xff]
          %v3253 = vld [vmem:[#allocation3 + $0x8] sm:$0xff]
          %v3254 = vld [vmem:[#allocation3 + $0x10] sm:$0xff]
          %v3255 = vld [vmem:[#allocation3 + $0x18] sm:$0xff]
          %v3256 = vrcp.pop %v3252
          %v3257 = vrcp.pop %v3253
          %v3258 = vrcp.pop %v3254
          %v3259 = vrcp.pop %v3255
          %3261 = vset.pattern.permute.xlu0 0
          %3262 = vperm.xlu0 %3261, %v3256
          %v3263 = vpop.permute.xlu0 %3262
          %3266 = vset.pattern.permute.xlu0 0
          %3267 = vperm.xlu0 %3266, %v3257
          %v3268 = vpop.permute.xlu0 %3267
          %3271 = vset.pattern.permute.xlu0 0
          %3272 = vperm.xlu0 %3271, %v3258
          %v3273 = vpop.permute.xlu0 %3272
          %3276 = vset.pattern.permute.xlu0 0
          %3277 = vperm.xlu0 %3276, %v3259
          %v3278 = vpop.permute.xlu0 %3277
          %v3280 = vmul.f32 %v3248, %v3263
          %v3281 = vmul.f32 %v3249, %v3268
          %v3282 = vmul.f32 %v3250, %v3273
          %v3283 = vmul.f32 %v3251, %v3278
          %v3284 = vpack.c.bf16 %v3280, %v3280
          %v3285 = vpack.c.bf16 %v3281, %v3281
          %v3286 = vpack.c.bf16 %v3282, %v3282
          %v3287 = vpack.c.bf16 %v3283, %v3283
          %v3288 = vld [vmem:[#allocation14] sm:$0xf]
          %v3289 = vld [vmem:[#allocation14 + $0x4] sm:$0xf]
          %v3290 = vld [vmem:[#allocation14 + $0x8] sm:$0xf]
          %v3291 = vld [vmem:[#allocation14 + $0xc] sm:$0xf]
          %v3293 = vsel %vm2729, %v3284, 0
          %v3296 = vsel %vm2733, %v3288, 0
          %3298 = vmatprep.subr.bf16.mxu0 0
          %3299 = vmatpush1.bf16.msra.mxu0 %v3296
          %3300 = vmatprep.subr.bf16.mxu0 0
          %3301 = vmatpush1.bf16.msra.mxu0 0
          %3302 = vmatprep.subr.bf16.mxu0 0
          %3303 = vmatpush1.bf16.msra.mxu0 0
          %3304 = vmatprep.subr.bf16.mxu0 0
          %3305 = vmatpush1.bf16.msra.mxu0 0
          %3306 = vmatprep.subr.bf16.mxu0 0
          %3307 = vmatpush1.bf16.msra.mxu0 0
          %3308 = vmatprep.subr.bf16.mxu0 0
          %3309 = vmatpush1.bf16.msra.mxu0 0
          %3310 = vmatprep.subr.bf16.mxu0 0
          %3311 = vmatpush1.bf16.msra.mxu0 0
          %3312 = vmatprep.subr.bf16.mxu0 0
          %3313 = vmatpush1.bf16.msra.mxu0 0
          %3314 = vmatprep.subr.bf16.mxu0 0
          %3315 = vmatpush1.bf16.msra.mxu0 0
          %3316 = vmatprep.subr.bf16.mxu0 0
          %3317 = vmatpush1.bf16.msra.mxu0 0
          %3318 = vmatprep.subr.bf16.mxu0 0
          %3319 = vmatpush1.bf16.msra.mxu0 0
          %3320 = vmatprep.subr.bf16.mxu0 0
          %3321 = vmatpush1.bf16.msra.mxu0 0
          %3322 = vmatprep.subr.bf16.mxu0 0
          %3323 = vmatpush1.bf16.msra.mxu0 0
          %3324 = vmatprep.subr.bf16.mxu0 0
          %3325 = vmatpush1.bf16.msra.mxu0 0
          %3326 = vmatprep.subr.bf16.mxu0 0
          %3327 = vmatpush1.bf16.msra.mxu0 0
          %3328 = vmatprep.subr.bf16.mxu0 0
          %3329 = vmatpush1.bf16.msra.mxu0 0
          %3330 = vmatprep.mubr.bf16.mxu0 0
          %3331 = vmatmul.mubr.bf16.gmra.mrb[0].mxu0 %v3293
          %v3332 = vpop.f32.mrb[0].mxu0
          %v3333 = vadd.f32 0.0, %v3332
          %v3334 = vpop.f32.mrb[0].mxu0
          %v3335 = vpop.f32.mrb[0].mxu0
          %v3336 = vpop.f32.mrb[0].mxu0
          %3337 = vdwg.mxu0
          %v3339 = vsel %vm2729, %v3285, 0
          %v3342 = vsel %vm2733, %v3289, 0
          %3344 = vmatprep.subr.bf16.mxu0 0
          %3345 = vmatpush1.bf16.msra.mxu0 %v3342
          %3346 = vmatprep.subr.bf16.mxu0 0
          %3347 = vmatpush1.bf16.msra.mxu0 0
          %3348 = vmatprep.subr.bf16.mxu0 0
          %3349 = vmatpush1.bf16.msra.mxu0 0
          %3350 = vmatprep.subr.bf16.mxu0 0
          %3351 = vmatpush1.bf16.msra.mxu0 0
          %3352 = vmatprep.subr.bf16.mxu0 0
          %3353 = vmatpush1.bf16.msra.mxu0 0
          %3354 = vmatprep.subr.bf16.mxu0 0
          %3355 = vmatpush1.bf16.msra.mxu0 0
          %3356 = vmatprep.subr.bf16.mxu0 0
          %3357 = vmatpush1.bf16.msra.mxu0 0
          %3358 = vmatprep.subr.bf16.mxu0 0
          %3359 = vmatpush1.bf16.msra.mxu0 0
          %3360 = vmatprep.subr.bf16.mxu0 0
          %3361 = vmatpush1.bf16.msra.mxu0 0
          %3362 = vmatprep.subr.bf16.mxu0 0
          %3363 = vmatpush1.bf16.msra.mxu0 0
          %3364 = vmatprep.subr.bf16.mxu0 0
          %3365 = vmatpush1.bf16.msra.mxu0 0
          %3366 = vmatprep.subr.bf16.mxu0 0
          %3367 = vmatpush1.bf16.msra.mxu0 0
          %3368 = vmatprep.subr.bf16.mxu0 0
          %3369 = vmatpush1.bf16.msra.mxu0 0
          %3370 = vmatprep.subr.bf16.mxu0 0
          %3371 = vmatpush1.bf16.msra.mxu0 0
          %3372 = vmatprep.subr.bf16.mxu0 0
          %3373 = vmatpush1.bf16.msra.mxu0 0
          %3374 = vmatprep.subr.bf16.mxu0 0
          %3375 = vmatpush1.bf16.msra.mxu0 0
          %3376 = vmatprep.mubr.bf16.mxu0 0
          %3377 = vmatmul.mubr.bf16.gmra.mrb[0].mxu0 %v3339
          %v3378 = vpop.f32.mrb[0].mxu0
          %v3379 = vadd.f32 0.0, %v3378
          %v3380 = vpop.f32.mrb[0].mxu0
          %v3381 = vpop.f32.mrb[0].mxu0
          %v3382 = vpop.f32.mrb[0].mxu0
          %3383 = vdwg.mxu0
          %v3385 = vsel %vm2729, %v3286, 0
          %v3388 = vsel %vm2733, %v3290, 0
          %3390 = vmatprep.subr.bf16.mxu0 0
          %3391 = vmatpush1.bf16.msra.mxu0 %v3388
          %3392 = vmatprep.subr.bf16.mxu0 0
          %3393 = vmatpush1.bf16.msra.mxu0 0
          %3394 = vmatprep.subr.bf16.mxu0 0
          %3395 = vmatpush1.bf16.msra.mxu0 0
          %3396 = vmatprep.subr.bf16.mxu0 0
          %3397 = vmatpush1.bf16.msra.mxu0 0
          %3398 = vmatprep.subr.bf16.mxu0 0
          %3399 = vmatpush1.bf16.msra.mxu0 0
          %3400 = vmatprep.subr.bf16.mxu0 0
          %3401 = vmatpush1.bf16.msra.mxu0 0
          %3402 = vmatprep.subr.bf16.mxu0 0
          %3403 = vmatpush1.bf16.msra.mxu0 0
          %3404 = vmatprep.subr.bf16.mxu0 0
          %3405 = vmatpush1.bf16.msra.mxu0 0
          %3406 = vmatprep.subr.bf16.mxu0 0
          %3407 = vmatpush1.bf16.msra.mxu0 0
          %3408 = vmatprep.subr.bf16.mxu0 0
          %3409 = vmatpush1.bf16.msra.mxu0 0
          %3410 = vmatprep.subr.bf16.mxu0 0
          %3411 = vmatpush1.bf16.msra.mxu0 0
          %3412 = vmatprep.subr.bf16.mxu0 0
          %3413 = vmatpush1.bf16.msra.mxu0 0
          %3414 = vmatprep.subr.bf16.mxu0 0
          %3415 = vmatpush1.bf16.msra.mxu0 0
          %3416 = vmatprep.subr.bf16.mxu0 0
          %3417 = vmatpush1.bf16.msra.mxu0 0
          %3418 = vmatprep.subr.bf16.mxu0 0
          %3419 = vmatpush1.bf16.msra.mxu0 0
          %3420 = vmatprep.subr.bf16.mxu0 0
          %3421 = vmatpush1.bf16.msra.mxu0 0
          %3422 = vmatprep.mubr.bf16.mxu0 0
          %3423 = vmatmul.mubr.bf16.gmra.mrb[0].mxu0 %v3385
          %v3424 = vpop.f32.mrb[0].mxu0
          %v3425 = vadd.f32 0.0, %v3424
          %v3426 = vpop.f32.mrb[0].mxu0
          %v3427 = vpop.f32.mrb[0].mxu0
          %v3428 = vpop.f32.mrb[0].mxu0
          %3429 = vdwg.mxu0
          %v3431 = vsel %vm2729, %v3287, 0
          %v3434 = vsel %vm2733, %v3291, 0
          %3436 = vmatprep.subr.bf16.mxu0 0
          %3437 = vmatpush1.bf16.msra.mxu0 %v3434
          %3438 = vmatprep.subr.bf16.mxu0 0
          %3439 = vmatpush1.bf16.msra.mxu0 0
          %3440 = vmatprep.subr.bf16.mxu0 0
          %3441 = vmatpush1.bf16.msra.mxu0 0
          %3442 = vmatprep.subr.bf16.mxu0 0
          %3443 = vmatpush1.bf16.msra.mxu0 0
          %3444 = vmatprep.subr.bf16.mxu0 0
          %3445 = vmatpush1.bf16.msra.mxu0 0
          %3446 = vmatprep.subr.bf16.mxu0 0
          %3447 = vmatpush1.bf16.msra.mxu0 0
          %3448 = vmatprep.subr.bf16.mxu0 0
          %3449 = vmatpush1.bf16.msra.mxu0 0
          %3450 = vmatprep.subr.bf16.mxu0 0
          %3451 = vmatpush1.bf16.msra.mxu0 0
          %3452 = vmatprep.subr.bf16.mxu0 0
          %3453 = vmatpush1.bf16.msra.mxu0 0
          %3454 = vmatprep.subr.bf16.mxu0 0
          %3455 = vmatpush1.bf16.msra.mxu0 0
          %3456 = vmatprep.subr.bf16.mxu0 0
          %3457 = vmatpush1.bf16.msra.mxu0 0
          %3458 = vmatprep.subr.bf16.mxu0 0
          %3459 = vmatpush1.bf16.msra.mxu0 0
          %3460 = vmatprep.subr.bf16.mxu0 0
          %3461 = vmatpush1.bf16.msra.mxu0 0
          %3462 = vmatprep.subr.bf16.mxu0 0
          %3463 = vmatpush1.bf16.msra.mxu0 0
          %3464 = vmatprep.subr.bf16.mxu0 0
          %3465 = vmatpush1.bf16.msra.mxu0 0
          %3466 = vmatprep.subr.bf16.mxu0 0
          %3467 = vmatpush1.bf16.msra.mxu0 0
          %3468 = vmatprep.mubr.bf16.mxu0 0
          %3469 = vmatmul.mubr.bf16.gmra.mrb[0].mxu0 %v3431
          %v3470 = vpop.f32.mrb[0].mxu0
          %v3471 = vadd.f32 0.0, %v3470
          %v3472 = vpop.f32.mrb[0].mxu0
          %v3473 = vpop.f32.mrb[0].mxu0
          %v3474 = vpop.f32.mrb[0].mxu0
          %3475 = vdwg.mxu0
          %v3476 = vsel %vm2060, %v3333, 0.0
          %v3477 = vsel %vm2060, %v3379, 0.0
          %v3478 = vadd.f32 %v3476, %v3477
          %v3479 = vsel %vm2060, %v3425, 0.0
          %v3480 = vadd.f32 %v3478, %v3479
          %v3481 = vsel %vm2060, %v3471, 0.0
          %v3482 = vadd.f32 %v3480, %v3481
          %v3483 = vld [vmem:[%s8] sm:$0x1]
          %v3485 = vlaneseq
          %v3486 = vshrl.u32 %v3485, 7
          %v3487 = vsub.s32 0, %v3486
          %v3488 = vrot.slane %v3483, %v3487
          %v3490 = vadd.f32 %v3482, %v3488
          %v3491 = vld [vmem:[%s655] sm:$0xff]
          %v3492 = vadd.f32 %v3491, %v3490
          %v3493 = vld [vmem:[%s9] sm:$0x1]
          %v3494 = vld [vmem:[%s10] sm:$0x1]
          %v3495 = vsel %vm2060, %v3492, 0.0
          %3496 = vadd.xlane.f32.xlu0 %v3495
          %v3497 = vpop.xlane.xlu0 %3496
          %v3498 = vrcp.pop 32.0
          %v3499 = vmul.f32 %v3497, %v3498
          %v3500 = vsub.f32 %v3492, %v3499
          %v3501 = vmul.f32 %v3500, %v3500
          %v3502 = vsel %vm2060, %v3501, 0.0
          %3503 = vadd.xlane.f32.xlu0 %v3502
          %v3504 = vpop.xlane.xlu0 %3503
          %v3505 = vmul.f32 %v3504, 0.032258064
          %v3507 = vlaneseq
          %v3508 = vshrl.u32 %v3507, 7
          %v3509 = vsub.s32 0, %v3508
          %v3510 = vrot.slane %v3493, %v3509
          %v3512 = vmul.f32 %v3510, %v3500
          %v3513 = vrsqrt.pop %v3505
          %v3514 = vmul.f32 %v3505, %v3513
          %vm3515 = vcmp.eq.f32.partialorder %v3505, inf
          %v3516 = vsel %vm3515, %v3505, %v3514
          %vm3517 = vcmp.eq.f32.partialorder %v3505, 0.0
          %v3518 = vand.u32 %v3505, 2147483648
          %v3519 = vsel %vm3517, %v3518, %v3516
          %v3520 = vadd.f32 %v3519, 1e-06
          %v3521 = vrcp.pop %v3520
          %v3522 = vmul.f32 %v3512, %v3521
          %v3524 = vlaneseq
          %v3525 = vshrl.u32 %v3524, 7
          %v3526 = vsub.s32 0, %v3525
          %v3527 = vrot.slane %v3494, %v3526
          %v3529 = vadd.f32 %v3522, %v3527
          %v3530 = vpack.c.bf16 %v3529, %v3529
          %v3531 = vld [vmem:[#allocation16] sm:$0xf]
          %v3532 = vld [vmem:[#allocation16 + $0x4] sm:$0xf]
          %v3533 = vld [vmem:[#allocation16 + $0x8] sm:$0xf]
          %v3534 = vld [vmem:[#allocation16 + $0xc] sm:$0xf]
          %v3535 = vld [vmem:[%s12] sm:$0x1]
          %v3537 = vlaneseq
          %v3538 = vshrl.u32 %v3537, 7
          %v3539 = vsub.s32 0, %v3538
          %v3540 = vrot.slane %v3535, %v3539
          %v3546 = vunpack.c.l.b16 %v3531
          %v3547 = vunpack.c.l.b16 %v3532
          %v3548 = vunpack.c.l.b16 %v3533
          %v3549 = vunpack.c.l.b16 %v3534
          %v3550 = vpack.c.b16 %v3547, %v3546
          %v3551 = vpack.c.b16 %v3549, %v3548
          %v3555 = vsel %vm2060, %v3530, 0
          %3557 = vmatprep.subr.bf16.mxu0 0
          %3558 = vmatpush1.bf16.msra.mxu0 %v3550
          %3559 = vmatprep.subr.bf16.mxu0 0
          %3560 = vmatpush1.bf16.msra.mxu0 %v3551
          %3561 = vmatprep.subr.bf16.mxu0 0
          %3562 = vmatpush1.bf16.msra.mxu0 0
          %3563 = vmatprep.subr.bf16.mxu0 0
          %3564 = vmatpush1.bf16.msra.mxu0 0
          %3565 = vmatprep.subr.bf16.mxu0 0
          %3566 = vmatpush1.bf16.msra.mxu0 0
          %3567 = vmatprep.subr.bf16.mxu0 0
          %3568 = vmatpush1.bf16.msra.mxu0 0
          %3569 = vmatprep.subr.bf16.mxu0 0
          %3570 = vmatpush1.bf16.msra.mxu0 0
          %3571 = vmatprep.subr.bf16.mxu0 0
          %3572 = vmatpush1.bf16.msra.mxu0 0
          %3573 = vmatprep.subr.bf16.mxu0 0
          %3574 = vmatpush1.bf16.msra.mxu0 0
          %3575 = vmatprep.subr.bf16.mxu0 0
          %3576 = vmatpush1.bf16.msra.mxu0 0
          %3577 = vmatprep.subr.bf16.mxu0 0
          %3578 = vmatpush1.bf16.msra.mxu0 0
          %3579 = vmatprep.subr.bf16.mxu0 0
          %3580 = vmatpush1.bf16.msra.mxu0 0
          %3581 = vmatprep.subr.bf16.mxu0 0
          %3582 = vmatpush1.bf16.msra.mxu0 0
          %3583 = vmatprep.subr.bf16.mxu0 0
          %3584 = vmatpush1.bf16.msra.mxu0 0
          %3585 = vmatprep.subr.bf16.mxu0 0
          %3586 = vmatpush1.bf16.msra.mxu0 0
          %3587 = vmatprep.subr.bf16.mxu0 0
          %3588 = vmatpush1.bf16.msra.mxu0 0
          %3589 = vmatprep.mubr.bf16.mxu0 0
          %3590 = vmatmul.mubr.bf16.gmra.mrb[0].mxu0 %v3555
          %v3591 = vpop.f32.mrb[0].mxu0
          %v3592 = vadd.f32 %v3540, %v3591
          %v3593 = vpop.f32.mrb[0].mxu0
          %v3594 = vpop.f32.mrb[0].mxu0
          %v3595 = vpop.f32.mrb[0].mxu0
          %3596 = vdwg.mxu0
          %v3597 = vmul.f32 %v3592, %v3592
          %v3598 = vmul.f32 %v3592, %v3597
          %v3599 = vmul.f32 %v3598, 0.044715
          %v3600 = vadd.f32 %v3592, %v3599
          %v3601 = vmul.f32 %v3600, 0.7978846
          %v3602 = vtanh.pop %v3601
          %v3603 = vadd.f32 %v3602, 1.0
          %v3604 = vmul.f32 %v3603, 0.5
          %v3605 = vmul.f32 %v3592, %v3604
          %v3606 = vpack.c.bf16 %v3605, %v3605
          %v3607 = vld [vmem:[%s13] sm:$0xf]
          %v3608 = vld [vmem:[%s13 + $0x4] sm:$0xf]
          %v3609 = vld [vmem:[%s13 + $0x8] sm:$0xf]
          %v3610 = vld [vmem:[%s13 + $0xc] sm:$0xf]
          %v3611 = vld [vmem:[%s13 + $0x10] sm:$0xf]
          %v3612 = vld [vmem:[%s13 + $0x14] sm:$0xf]
          %v3613 = vld [vmem:[%s13 + $0x18] sm:$0xf]
          %v3614 = vld [vmem:[%s13 + $0x1c] sm:$0xf]
          %v3615 = vld [vmem:[%s13 + $0x20] sm:$0xf]
          %v3616 = vld [vmem:[%s13 + $0x24] sm:$0xf]
          %v3617 = vld [vmem:[%s13 + $0x28] sm:$0xf]
          %v3618 = vld [vmem:[%s13 + $0x2c] sm:$0xf]
          %v3619 = vld [vmem:[%s13 + $0x30] sm:$0xf]
          %v3620 = vld [vmem:[%s13 + $0x34] sm:$0xf]
          %v3621 = vld [vmem:[%s13 + $0x38] sm:$0xf]
          %v3622 = vld [vmem:[%s13 + $0x3c] sm:$0xf]
          %v3623 = vld [vmem:[%s14] sm:$0x1]
          %v3625 = vlaneseq
          %v3626 = vshrl.u32 %v3625, 7
          %v3627 = vsub.s32 0, %v3626
          %v3628 = vrot.slane %v3623, %v3627
          %v3646 = vunpack.c.l.b16 %v3607
          %v3647 = vunpack.c.l.b16 %v3608
          %v3648 = vunpack.c.l.b16 %v3609
          %v3649 = vunpack.c.l.b16 %v3610
          %v3650 = vunpack.c.l.b16 %v3611
          %v3651 = vunpack.c.l.b16 %v3612
          %v3652 = vunpack.c.l.b16 %v3613
          %v3653 = vunpack.c.l.b16 %v3614
          %v3654 = vunpack.c.l.b16 %v3615
          %v3655 = vunpack.c.l.b16 %v3616
          %v3656 = vunpack.c.l.b16 %v3617
          %v3657 = vunpack.c.l.b16 %v3618
          %v3658 = vunpack.c.l.b16 %v3619
          %v3659 = vunpack.c.l.b16 %v3620
          %v3660 = vunpack.c.l.b16 %v3621
          %v3661 = vunpack.c.l.b16 %v3622
          %v3662 = vpack.c.b16 %v3647, %v3646
          %v3663 = vpack.c.b16 %v3649, %v3648
          %v3664 = vpack.c.b16 %v3651, %v3650
          %v3665 = vpack.c.b16 %v3653, %v3652
          %v3666 = vpack.c.b16 %v3655, %v3654
          %v3667 = vpack.c.b16 %v3657, %v3656
          %v3668 = vpack.c.b16 %v3659, %v3658
          %v3669 = vpack.c.b16 %v3661, %v3660
          %3678 = vmatprep.subr.bf16.mxu0 0
          %3679 = vmatpush1.bf16.msra.mxu0 %v3662
          %3680 = vmatprep.subr.bf16.mxu0 0
          %3681 = vmatpush1.bf16.msra.mxu0 %v3663
          %3682 = vmatprep.subr.bf16.mxu0 0
          %3683 = vmatpush1.bf16.msra.mxu0 %v3664
          %3684 = vmatprep.subr.bf16.mxu0 0
          %3685 = vmatpush1.bf16.msra.mxu0 %v3665
          %3686 = vmatprep.subr.bf16.mxu0 0
          %3687 = vmatpush1.bf16.msra.mxu0 %v3666
          %3688 = vmatprep.subr.bf16.mxu0 0
          %3689 = vmatpush1.bf16.msra.mxu0 %v3667
          %3690 = vmatprep.subr.bf16.mxu0 0
          %3691 = vmatpush1.bf16.msra.mxu0 %v3668
          %3692 = vmatprep.subr.bf16.mxu0 0
          %3693 = vmatpush1.bf16.msra.mxu0 %v3669
          %3694 = vmatprep.subr.bf16.mxu0 0
          %3695 = vmatpush1.bf16.msra.mxu0 0
          %3696 = vmatprep.subr.bf16.mxu0 0
          %3697 = vmatpush1.bf16.msra.mxu0 0
          %3698 = vmatprep.subr.bf16.mxu0 0
          %3699 = vmatpush1.bf16.msra.mxu0 0
          %3700 = vmatprep.subr.bf16.mxu0 0
          %3701 = vmatpush1.bf16.msra.mxu0 0
          %3702 = vmatprep.subr.bf16.mxu0 0
          %3703 = vmatpush1.bf16.msra.mxu0 0
          %3704 = vmatprep.subr.bf16.mxu0 0
          %3705 = vmatpush1.bf16.msra.mxu0 0
          %3706 = vmatprep.subr.bf16.mxu0 0
          %3707 = vmatpush1.bf16.msra.mxu0 0
          %3708 = vmatprep.subr.bf16.mxu0 0
          %3709 = vmatpush1.bf16.msra.mxu0 0
          %3710 = vmatprep.mubr.bf16.mxu0 0
          %3711 = vmatmul.mubr.bf16.gmra.mrb[0].mxu0 %v3606
          %v3712 = vpop.f32.mrb[0].mxu0
          %v3713 = vadd.f32 %v3628, %v3712
          %v3714 = vpop.f32.mrb[0].mxu0
          %v3715 = vpop.f32.mrb[0].mxu0
          %v3716 = vpop.f32.mrb[0].mxu0
          %3717 = vdwg.mxu0
          %v3718 = vadd.f32 %v3492, %v3713
          %3719 = vst.msk [vmem:[%s785] sm:$0xff] %vm2060, %v3718
        $region116: #{tpu_custom_call.1} parent=79 // pred_fallthru
          _
        %s3720 = sand.u32 %s436, 1
        %s3721 = scalar_lea.sflag [#allocation7], %s3720
        %s3722 = sand.u32 %s436, 1
        %s3723 = smul.addr %s3722, 8
        %s3724 = scalar_lea.vmem [#allocation17], %s3723
        // Predicated region
        $region117: #{tpu_custom_call.1} parent=79 // pred_check
          %p3725 = pneg %p446
        $region118: #{tpu_custom_call.1} parent=79 // pred_check_branch
          %3727 = sbr.rel (%p3725) target = $region120
        $region119: #{tpu_custom_call.1} parent=79 // pred_region
          %s3729 = ssub.s32 128, 128
          %3730 = vsyncadd %s3721, %s3729
          %s3731 = sadd.s32 %s45, %s44
          %s3732 = smul.addr %s3731, 128
          %s3733 = scalar_lea.hbm %s15, %s3732
          %s3735 = sshll.u32 %s3724, 4
          %s3736 = int_to_ptr.vmem [resolvable:$true] %s3735
          %3738 = dma.vmem_to_hbm [thread:$0]  %s3736, 128, %s3733, %s3721
        $region120: #{tpu_custom_call.1} parent=79 // pred_fallthru
          _
      $region80: #{tpu_custom_call.1} parent=5 // pred_fallthru
        _
      %p3739 = scmp.le.s32.totalorder 2, %s34
      // Predicated region
      $region121: #{tpu_custom_call.1} parent=5 // pred_check
        %p3740 = pneg %p3739
      $region122: #{tpu_custom_call.1} parent=5 // pred_check_branch
        %3742 = sbr.rel (%p3740) target = $region124
      $region123: #{tpu_custom_call.1} parent=5 // pred_region
        %s3743 = ssub.s32 %s34, 2
        // Predicated region
        $region125: #{tpu_custom_call.1} parent=123 // pred_check
          %p3744 = pneg %p452
        $region126: #{tpu_custom_call.1} parent=123 // pred_check_branch
          %3746 = sbr.rel (%p3744) target = $region128
        $region127: #{tpu_custom_call.1} parent=123 // pred_region
          %s3747 = sand.u32 %s437, 1
          %s3748 = scalar_lea.sflag [#allocation7], %s3747
          %s3749 = sand.u32 %s437, 1
          %s3750 = smul.addr %s3749, 8
          %s3751 = scalar_lea.vmem [#allocation17], %s3750
          %3752 = dma.done %s3748, 128
        $region128: #{tpu_custom_call.1} parent=123 // pred_fallthru
          _
      $region124: #{tpu_custom_call.1} parent=5 // pred_fallthru
        _
    $region6: #{tpu_custom_call.1} parent=1 // loop_footer
      %s38 = sadd.s32 1, %s34
    $region7: #{tpu_custom_call.1} parent=1 // loop_footer_branch
      %33 = sbr.rel target = $region3
    $region8: #{tpu_custom_call.1} parent=1 // loop_exit
      _
    %3753 = vsyncpa [#allocation6], 1
    %s3754 = scalar_lea.sflag [#allocation6], 1
    %3755 = vsyncpa %s3754, 1
    %3756 = vsyncpa [#allocation9], 1
    %s3757 = scalar_lea.sflag [#allocation9], 1
    %3758 = vsyncpa %s3757, 1
    %3759 = vsyncpa [#allocation12], 1
    %s3760 = scalar_lea.sflag [#allocation12], 1
    %3761 = vsyncpa %s3760, 1
    %3762 = vsyncpa [#allocation15], 1
    %3763 = vsyncpa [#allocation7], 1
    %s3764 = scalar_lea.sflag [#allocation7], 1
    %3765 = vsyncpa %s3764, 1

</llo_original>
